<compile_context>
chip_gen: v6e
topology: v6e:2x2x1
jax: 0.10.0
libtpu: 0.0.40
codegen_flags: <defaults>
</compile_context>

<pallas_src>
import jax
import jax.numpy as jnp
from jax.experimental import pallas as pl
from jax.experimental.pallas import tpu as pltpu


HIDDEN = 32
OUTPUT = 20
MAX_LENGTH = 10


def _round_up(x, m):
    return ((x + m - 1) // m) * m


# ---- packed weight slab layout (rows x 128 lanes); fused blocks pair segments at lanes 0/64 ----
_H, _O, _L = HIDDEN, OUTPUT, MAX_LENGTH
W_LANES = 128
HALF = 64  # lane offset of the second segment inside a fused 128-lane weight block

R_HID_A = 0               # (H,128): [W_attn_h @0:L   | W_hh_r  @64:96]   (multiplies hidden)
R_HID_B = R_HID_A + _H    # (H,128): [W_hh_z   @0:H   | W_hh_n  @64:96]   (multiplies hidden)
R_EMB = R_HID_B + _H      # (H,128): [W_attn_e @0:L   | W_comb_e @64:96]  (multiplies embedded)
R_XA = R_EMB + _H         # (H,128): [W_ih_r   @0:H   | W_ih_z  @64:96]   (multiplies relu-combine)
R_XN = R_XA + _H          # (H,H)  : W_ih_n                               (multiplies relu-combine)
R_CA = R_XN + _H          # (H,H)  : attn_combine rows multiplying attn_applied
R_OUT = R_CA + _H         # (H,O)  : output projection
R_B_HID_A = R_OUT + _H    # (1,128): [b_attn @0:L | (b_ih_r + b_hh_r) @64:96]
R_B_HID_B = R_B_HID_A + 1 # (1,128): [(b_ih_z + b_hh_z) @0:H | b_hh_n @64:96]
R_B_EMB = R_B_HID_B + 1   # (1,128): [b_comb @64:96]
R_B_XN = R_B_EMB + 1      # (1,H)  : b_ih_n
R_B_OUT = R_B_XN + 1      # (1,O)  : output bias
W_ROWS = _round_up(R_B_OUT + 1, 8)

# ---- packed per-step output lane layout: [log_probs | new_hidden | attn_w | 0-pad] ----
OFF_LOGP = 0
OFF_H = 32
OFF_ATTW = 64
OUT_LANES = 128


def _attn_decoder_kernel(
    emb_ref,   # VMEM (T, HIDDEN)        : pre-gathered embedded tokens (teacher forcing)
    h0_ref,    # VMEM (1, HIDDEN)        : initial hidden state
    enc_ref,   # VMEM (MAX_LENGTH, H)    : encoder outputs
    w_ref,     # VMEM (W_ROWS, 128)      : packed weights + biases
    out_ref,   # VMEM out (T, 128)       : packed per-step outputs (one block, one writeback DMA)
):
    H, L, O = HIDDEN, MAX_LENGTH, OUTPUT
    T = emb_ref.shape[0]

    def dot(a, b):
        return jnp.dot(a, b, preferred_element_type=jnp.float32)

    def upper(v):
        # Move lanes [64:128) of a (1,128) value to lanes [0:64): single half-width XLU roll.
        return pltpu.roll(v, shift=HALF, axis=1)

    # Weights/biases loaded once, reused by all T unrolled steps (one slab DMA for the loop).
    w_hid_a = w_ref[R_HID_A:R_HID_A + H, :]
    w_hid_b = w_ref[R_HID_B:R_HID_B + H, :]
    w_emb = w_ref[R_EMB:R_EMB + H, :]
    w_xa = w_ref[R_XA:R_XA + H, :]
    w_xn = w_ref[R_XN:R_XN + H, :H]
    w_ca = w_ref[R_CA:R_CA + H, :H]
    w_out = w_ref[R_OUT:R_OUT + H, :O]
    b_hid_a = w_ref[R_B_HID_A:R_B_HID_A + 1, :]
    b_hid_b = w_ref[R_B_HID_B:R_B_HID_B + 1, :]
    b_emb = w_ref[R_B_EMB:R_B_EMB + 1, :]
    b_xn = w_ref[R_B_XN:R_B_XN + 1, :H]
    b_out = w_ref[R_B_OUT:R_B_OUT + 1, :O]
    enc = enc_ref[...]                                    # (L, H)

    out_ref[...] = jnp.zeros_like(out_ref)                # zero pad lanes once (not per step)

    h = h0_ref[...]                                       # (1, H) hidden, carried in registers

    for t in range(T):   # static unroll: one basic block, no per-step grid / launch overhead
        emb = emb_ref[t:t + 1, :]                         # (1, H) static row slice

        # --- fused shared-activation dots (weights packed pairwise along lanes) ---
        hid_a = dot(h, w_hid_a) + b_hid_a                 # [attn_h + b_attn | gh_r + b_r]
        hid_b = dot(h, w_hid_b) + b_hid_b                 # [gh_z + b_z      | gh_n + b_hhn]
        emb_z = dot(emb, w_emb) + b_emb                   # [attn_e          | comb_e + b_comb]

        # --- attention softmax over the L encoder positions ---
        attn_logits = emb_z[:, :L] + hid_a[:, :L]         # (1, L)
        a_max = jnp.max(attn_logits, axis=1, keepdims=True)
        a_exp = jnp.exp(attn_logits - a_max)
        denom = jnp.sum(a_exp, axis=1, keepdims=True)
        inv = pl.reciprocal(denom, approx=True)           # EUP slot
        inv = inv * (2.0 - denom * inv)                   # one Newton step -> ~f32 accuracy
        attn_w = a_exp * inv                              # (1, L)

        attn_applied = dot(attn_w, enc)                   # (1, H)  (the batch-1 bmm)

        # --- attn_combine + relu ---
        x = jnp.maximum(upper(emb_z)[:, :H] + dot(attn_applied, w_ca), 0.0)   # (1, H)

        # --- GRU cell (PyTorch gate order r, z, n) ---
        x_a = dot(x, w_xa)                                # [gi_r | gi_z]
        x_n = dot(x, w_xn) + b_xn                         # (1, H) gi_n + b_ihn

        r = jax.nn.sigmoid(x_a[:, :H] + upper(hid_a)[:, :H])
        z = jax.nn.sigmoid(upper(x_a)[:, :H] + hid_b[:, :H])
        n = jnp.tanh(x_n + r * upper(hid_b)[:, :H])
        h = (1.0 - z) * n + z * h                         # (1, H) new hidden (stays in vregs)

        # --- output projection + log_softmax ---
        logits = dot(h, w_out) + b_out                    # (1, O)
        l_max = jnp.max(logits, axis=1, keepdims=True)
        shifted = logits - l_max
        logp = shifted - jnp.log(jnp.sum(jnp.exp(shifted), axis=1, keepdims=True))

        # --- packed per-step row [log_probs | hidden | attn_w | pad]: on-chip VMEM stores;
        #     the whole (T,128) block writes back to HBM as a single DMA after the loop. ---
        out_ref[t:t + 1, OFF_LOGP:OFF_LOGP + O] = logp
        out_ref[t:t + 1, OFF_H:OFF_H + H] = h
        out_ref[t:t + 1, OFF_ATTW:OFF_ATTW + L] = attn_w


@jax.jit
def attn_decoder_decode(tokens, hidden, encoder_outputs, embedding, w_slab):
    """Run T teacher-forced AttnDecoderRNN steps in one Pallas kernel launch.

    tokens: (T,) int32; hidden: (1,1,H); encoder_outputs: (L,H); embedding: (O,H);
    w_slab: (W_ROWS, 128) packed weights (see pack_weights).
    Returns (log_probs (T,O), hiddens (T,H), attn_weights (T,L)).
    """
    T = tokens.shape[0]
    # Embedding gather hoisted out of the kernel (tiny one-time XLA gather).
    emb_tok = embedding.astype(jnp.float32)[tokens.astype(jnp.int32)]   # (T, H)
    hid2d = hidden.reshape(1, HIDDEN).astype(jnp.float32)
    enc = encoder_outputs.astype(jnp.float32)

    packed = pl.pallas_call(
        _attn_decoder_kernel,
        out_shape=jax.ShapeDtypeStruct((T, OUT_LANES), jnp.float32),
        grid=(1,),
        in_specs=[
            pl.BlockSpec((T, HIDDEN), lambda i: (0, 0)),           # embedded tokens
            pl.BlockSpec((1, HIDDEN), lambda i: (0, 0)),           # initial hidden
            pl.BlockSpec((MAX_LENGTH, HIDDEN), lambda i: (0, 0)),  # encoder outputs
            pl.BlockSpec((W_ROWS, W_LANES), lambda i: (0, 0)),     # packed weights
        ],
        out_specs=pl.BlockSpec((T, OUT_LANES), lambda i: (0, 0)),
        compiler_params=pltpu.CompilerParams(
            dimension_semantics=("arbitrary",),   # single sequential invocation
        ),
    )(emb_tok, hid2d, enc, w_slab)

    log_probs = packed[:, OFF_LOGP:OFF_LOGP + OUTPUT]
    hiddens = packed[:, OFF_H:OFF_H + HIDDEN]
    attn_weights = packed[:, OFF_ATTW:OFF_ATTW + MAX_LENGTH]
    return log_probs, hiddens, attn_weights


def attn_decoder_forward(token, hidden, encoder_outputs, embedding, w_slab):
    """Single decoder step, same signature/semantics as the PyTorch module's forward."""
    logp, hs, aw = attn_decoder_decode(
        token.reshape(1), hidden, encoder_outputs, embedding, w_slab
    )
    return logp, hs.reshape(1, 1, HIDDEN), aw


def init_params(key):
    ks = jax.random.split(key, 11)
    u = lambda k, shape, scale: jax.random.uniform(
        k, shape, jnp.float32, minval=-scale, maxval=scale
    )
    H, O, L = HIDDEN, OUTPUT, MAX_LENGTH
    return {
        "embedding": jax.random.normal(ks[0], (O, H), jnp.float32),
        "w_attn": u(ks[1], (2 * H, L), 1.0 / jnp.sqrt(2.0 * H)),
        "b_attn": u(ks[2], (1, L), 1.0 / jnp.sqrt(2.0 * H)),
        "w_comb": u(ks[3], (2 * H, H), 1.0 / jnp.sqrt(2.0 * H)),
        "b_comb": u(ks[4], (1, H), 1.0 / jnp.sqrt(2.0 * H)),
        "w_ih": u(ks[5], (H, 3 * H), 1.0 / jnp.sqrt(H)),     # gates packed [r | z | n]
        "b_ih": u(ks[6], (1, 3 * H), 1.0 / jnp.sqrt(H)),
        "w_hh": u(ks[7], (H, 3 * H), 1.0 / jnp.sqrt(H)),
        "b_hh": u(ks[8], (1, 3 * H), 1.0 / jnp.sqrt(H)),
        "w_out": u(ks[9], (H, O), 1.0 / jnp.sqrt(H)),
        "b_out": u(ks[10], (1, O), 1.0 / jnp.sqrt(H)),
    }


def pack_weights(p):
    """Pack all weight/bias tensors into a single (W_ROWS, 128) f32 slab (done once)."""
    H, O, L = HIDDEN, OUTPUT, MAX_LENGTH
    s = jnp.zeros((W_ROWS, W_LANES), jnp.float32)
    # hidden-activation fused blocks
    s = s.at[R_HID_A:R_HID_A + H, 0:L].set(p["w_attn"][H:])
    s = s.at[R_HID_A:R_HID_A + H, HALF:HALF + H].set(p["w_hh"][:, 0:H])
    s = s.at[R_HID_B:R_HID_B + H, 0:H].set(p["w_hh"][:, H:2 * H])
    s = s.at[R_HID_B:R_HID_B + H, HALF:HALF + H].set(p["w_hh"][:, 2 * H:3 * H])
    # embedded-activation fused block
    s = s.at[R_EMB:R_EMB + H, 0:L].set(p["w_attn"][:H])
    s = s.at[R_EMB:R_EMB + H, HALF:HALF + H].set(p["w_comb"][:H])
    # relu(attn_combine)-activation fused blocks (GRU input weights)
    s = s.at[R_XA:R_XA + H, 0:H].set(p["w_ih"][:, 0:H])
    s = s.at[R_XA:R_XA + H, HALF:HALF + H].set(p["w_ih"][:, H:2 * H])
    s = s.at[R_XN:R_XN + H, 0:H].set(p["w_ih"][:, 2 * H:3 * H])
    # attn_combine (attn_applied part) and output projection
    s = s.at[R_CA:R_CA + H, 0:H].set(p["w_comb"][H:])
    s = s.at[R_OUT:R_OUT + H, 0:O].set(p["w_out"])
    # biases (each added exactly once; r/z biases pre-summed, b_hhn kept inside r*(...) term)
    s = s.at[R_B_HID_A, 0:L].set(p["b_attn"][0])
    s = s.at[R_B_HID_A, HALF:HALF + H].set(p["b_ih"][0, :H] + p["b_hh"][0, :H])
    s = s.at[R_B_HID_B, 0:H].set(p["b_ih"][0, H:2 * H] + p["b_hh"][0, H:2 * H])
    s = s.at[R_B_HID_B, HALF:HALF + H].set(p["b_hh"][0, 2 * H:])
    s = s.at[R_B_EMB, HALF:HALF + H].set(p["b_comb"][0])
    s = s.at[R_B_XN, 0:H].set(p["b_ih"][0, 2 * H:])
    s = s.at[R_B_OUT, 0:O].set(p["b_out"][0])
    return s


def reference_forward(token, hidden, encoder_outputs, p):
    """Pure-JAX single-step reference mirroring the PyTorch forward (eval mode)."""
    H = HIDDEN
    embedded = p["embedding"][token[0]][None, :]                 # (1, H)
    hid = hidden.reshape(1, H)
    attn_w = jax.nn.softmax(
        jnp.concatenate([embedded, hid], axis=1) @ p["w_attn"] + p["b_attn"], axis=1
    )
    attn_applied = attn_w @ encoder_outputs
    x = jax.nn.relu(
        jnp.concatenate([embedded, attn_applied], axis=1) @ p["w_comb"] + p["b_comb"]
    )
    gi = x @ p["w_ih"] + p["b_ih"]
    gh = hid @ p["w_hh"] + p["b_hh"]
    r = jax.nn.sigmoid(gi[:, :H] + gh[:, :H])
    z = jax.nn.sigmoid(gi[:, H:2 * H] + gh[:, H:2 * H])
    n = jnp.tanh(gi[:, 2 * H:] + r * gh[:, 2 * H:])
    h_new = (1.0 - z) * n + z * hid
    logp = jax.nn.log_softmax(h_new @ p["w_out"] + p["b_out"], axis=1)
    return logp, h_new.reshape(1, 1, H), attn_w


if __name__ == "__main__":
    key = jax.random.PRNGKey(0)
    k_param, k_hid, k_enc, k_tok = jax.random.split(key, 4)

    params = init_params(k_param)
    w_slab = pack_weights(params)          # packed once, reused across all calls

    T = 8
    tokens = jax.random.randint(k_tok, (T,), 0, OUTPUT, dtype=jnp.int32)
    hidden0 = jax.random.normal(k_hid, (1, 1, HIDDEN), jnp.float32)
    encoder_outputs = jax.random.normal(k_enc, (MAX_LENGTH, HIDDEN), jnp.float32)

    # full teacher-forced decode loop in ONE kernel launch
    log_probs, hiddens, attn_weights = attn_decoder_decode(
        tokens, hidden0, encoder_outputs, params["embedding"], w_slab
    )
    jax.block_until_ready((log_probs, hiddens, attn_weights))

    # step-by-step pure-JAX reference of the PyTorch forward
    h = hidden0
    for t in range(T):
        ref_lp, h, ref_aw = reference_forward(tokens[t:t + 1], h, encoder_outputs, params)
        assert jnp.allclose(log_probs[t], ref_lp[0], atol=2e-3), f"log_probs mismatch @ {t}"
        assert jnp.allclose(attn_weights[t], ref_aw[0], atol=2e-3), f"attn_w mismatch @ {t}"
        assert jnp.allclose(hiddens[t], h.reshape(HIDDEN), atol=2e-3), f"hidden mismatch @ {t}"

    # single-step API (same signature as the original nn.Module forward)
    lp1, h1, aw1 = attn_decoder_forward(
        tokens[:1], hidden0, encoder_outputs, params["embedding"], w_slab
    )
    r_lp1, r_h1, r_aw1 = reference_forward(tokens[:1], hidden0, encoder_outputs, params)
    assert jnp.allclose(lp1, r_lp1, atol=2e-3), "single-step log_probs mismatch"
    assert jnp.allclose(h1, r_h1, atol=2e-3), "single-step hidden mismatch"
    assert jnp.allclose(aw1, r_aw1, atol=2e-3), "single-step attn_weights mismatch"

    print("KERNEL_OK")
</pallas_src>

<mosaic_0001>
module attributes {stable_mosaic.version = 11 : i64} {
  func.func @_attn_decoder_kernel(%arg0: i32, %arg1: memref<8x32xf32, #tpu.memory_space<vmem>>, %arg2: memref<1x32xf32, #tpu.memory_space<vmem>>, %arg3: memref<10x32xf32, #tpu.memory_space<vmem>>, %arg4: memref<232x128xf32, #tpu.memory_space<vmem>>, %arg5: memref<8x128xf32, #tpu.memory_space<vmem>>) attributes {dimension_semantics = [#tpu.dimension_semantics<arbitrary>], iteration_bounds = array<i64: 1>, scalar_prefetch = 0 : i64, scratch_operands = 0 : i64, tpu.core_type = #tpu.core_type<tc>, window_params = [{pipeline_mode = #tpu.pipeline_mode<synchronous>, transform_indices = @transform_0, window_bounds = array<i64: 8, 32>}, {pipeline_mode = #tpu.pipeline_mode<synchronous>, transform_indices = @transform_1, window_bounds = array<i64: 1, 32>}, {pipeline_mode = #tpu.pipeline_mode<synchronous>, transform_indices = @transform_2, window_bounds = array<i64: 10, 32>}, {pipeline_mode = #tpu.pipeline_mode<synchronous>, transform_indices = @transform_3, window_bounds = array<i64: 232, 128>}, {pipeline_mode = #tpu.pipeline_mode<synchronous>, transform_indices = @transform_4, window_bounds = array<i64: 8, 128>}]} {
    %c0 = arith.constant 0 : index
    %c0_0 = arith.constant 0 : index
    %0 = vector.load %arg4[%c0, %c0_0] : memref<232x128xf32, #tpu.memory_space<vmem>>, vector<32x128xf32>
    %c32 = arith.constant 32 : index
    %c0_1 = arith.constant 0 : index
    %1 = vector.load %arg4[%c32, %c0_1] : memref<232x128xf32, #tpu.memory_space<vmem>>, vector<32x128xf32>
    %c64 = arith.constant 64 : index
    %c0_2 = arith.constant 0 : index
    %2 = vector.load %arg4[%c64, %c0_2] : memref<232x128xf32, #tpu.memory_space<vmem>>, vector<32x128xf32>
    %c96 = arith.constant 96 : index
    %c0_3 = arith.constant 0 : index
    %3 = vector.load %arg4[%c96, %c0_3] : memref<232x128xf32, #tpu.memory_space<vmem>>, vector<32x128xf32>
    %c128 = arith.constant 128 : index
    %c0_4 = arith.constant 0 : index
    %4 = vector.load %arg4[%c128, %c0_4] : memref<232x128xf32, #tpu.memory_space<vmem>>, vector<32x32xf32>
    %c160 = arith.constant 160 : index
    %c0_5 = arith.constant 0 : index
    %5 = vector.load %arg4[%c160, %c0_5] : memref<232x128xf32, #tpu.memory_space<vmem>>, vector<32x32xf32>
    %c192 = arith.constant 192 : index
    %c0_6 = arith.constant 0 : index
    %6 = vector.load %arg4[%c192, %c0_6] : memref<232x128xf32, #tpu.memory_space<vmem>>, vector<32x20xf32>
    %c224 = arith.constant 224 : index
    %c0_7 = arith.constant 0 : index
    %7 = vector.load %arg4[%c224, %c0_7] : memref<232x128xf32, #tpu.memory_space<vmem>>, vector<1x128xf32>
    %c225 = arith.constant 225 : index
    %c0_8 = arith.constant 0 : index
    %8 = vector.load %arg4[%c225, %c0_8] : memref<232x128xf32, #tpu.memory_space<vmem>>, vector<1x128xf32>
    %c226 = arith.constant 226 : index
    %c0_9 = arith.constant 0 : index
    %9 = vector.load %arg4[%c226, %c0_9] : memref<232x128xf32, #tpu.memory_space<vmem>>, vector<1x128xf32>
    %c227 = arith.constant 227 : index
    %c0_10 = arith.constant 0 : index
    %10 = vector.load %arg4[%c227, %c0_10] : memref<232x128xf32, #tpu.memory_space<vmem>>, vector<1x32xf32>
    %c228 = arith.constant 228 : index
    %c0_11 = arith.constant 0 : index
    %11 = vector.load %arg4[%c228, %c0_11] : memref<232x128xf32, #tpu.memory_space<vmem>>, vector<1x20xf32>
    %c0_12 = arith.constant 0 : index
    %c0_13 = arith.constant 0 : index
    %12 = vector.load %arg3[%c0_12, %c0_13] : memref<10x32xf32, #tpu.memory_space<vmem>>, vector<10x32xf32>
    %cst = arith.constant 0.000000e+00 : f32
    %13 = vector.broadcast %cst : f32 to vector<8x128xf32>
    %c0_14 = arith.constant 0 : index
    %c0_15 = arith.constant 0 : index
    %14 = vector.load %arg5[%c0_14, %c0_15] : memref<8x128xf32, #tpu.memory_space<vmem>>, vector<8x128xf32>
    tpu.vector_store %arg5[%c0_14, %c0_15], %13 {strides = array<i32>} : memref<8x128xf32, #tpu.memory_space<vmem>>, vector<8x128xf32>,
    %c0_16 = arith.constant 0 : index
    %c0_17 = arith.constant 0 : index
    %15 = vector.load %arg2[%c0_16, %c0_17] : memref<1x32xf32, #tpu.memory_space<vmem>>, vector<1x32xf32>
    %c0_18 = arith.constant 0 : index
    %c0_19 = arith.constant 0 : index
    %16 = vector.load %arg1[%c0_18, %c0_19] : memref<8x32xf32, #tpu.memory_space<vmem>>, vector<1x32xf32>
    %cst_20 = arith.constant dense<0.000000e+00> : vector<1x128xf32>
    %17 = tpu.matmul %15, %0, %cst_20 {dimension_numbers = #tpu.dot_dimension_numbers<[1], [0], [0], [1], [0, 0, 1, 1], [], []>} : vector<1x32xf32>, vector<32x128xf32>, vector<1x128xf32> -> vector<1x128xf32>
    %18 = arith.addf %17, %7 : vector<1x128xf32>
    %cst_21 = arith.constant dense<0.000000e+00> : vector<1x128xf32>
    %19 = tpu.matmul %15, %1, %cst_21 {dimension_numbers = #tpu.dot_dimension_numbers<[1], [0], [0], [1], [0, 0, 1, 1], [], []>} : vector<1x32xf32>, vector<32x128xf32>, vector<1x128xf32> -> vector<1x128xf32>
    %20 = arith.addf %19, %8 : vector<1x128xf32>
    %cst_22 = arith.constant dense<0.000000e+00> : vector<1x128xf32>
    %21 = tpu.matmul %16, %2, %cst_22 {dimension_numbers = #tpu.dot_dimension_numbers<[1], [0], [0], [1], [0, 0, 1, 1], [], []>} : vector<1x32xf32>, vector<32x128xf32>, vector<1x128xf32> -> vector<1x128xf32>
    %22 = arith.addf %21, %9 : vector<1x128xf32>
    %23 = vector.extract_strided_slice %22 {offsets = [0, 0], sizes = [1, 10], strides = [1, 1]} : vector<1x128xf32> to vector<1x10xf32>
    %24 = vector.extract_strided_slice %18 {offsets = [0, 0], sizes = [1, 10], strides = [1, 1]} : vector<1x128xf32> to vector<1x10xf32>
    %25 = arith.addf %23, %24 : vector<1x10xf32>
    %cst_23 = arith.constant dense<0xFF800000> : vector<1xf32>
    %26 = vector.multi_reduction <maximumf>, %25, %cst_23 [1] : vector<1x10xf32> to vector<1xf32>
    %27 = vector.shape_cast %26 : vector<1xf32> to vector<1x1xf32>
    %28 = vector.broadcast %27 : vector<1x1xf32> to vector<1x10xf32>
    %29 = arith.subf %25, %28 : vector<1x10xf32>
    %30 = math.exp %29 : vector<1x10xf32>
    %cst_24 = arith.constant dense<0.000000e+00> : vector<1xf32>
    %31 = vector.multi_reduction <add>, %30, %cst_24 [1] : vector<1x10xf32> to vector<1xf32>
    %32 = vector.shape_cast %31 : vector<1xf32> to vector<1x1xf32>
    %33 = tpu.reciprocal %32 {approx = true} : vector<1x1xf32> -> vector<1x1xf32>
    %34 = arith.mulf %32, %33 : vector<1x1xf32>
    %cst_25 = arith.constant 2.000000e+00 : f32
    %35 = vector.broadcast %cst_25 : f32 to vector<1x1xf32>
    %36 = arith.subf %35, %34 : vector<1x1xf32>
    %37 = arith.mulf %33, %36 : vector<1x1xf32>
    %38 = vector.broadcast %37 : vector<1x1xf32> to vector<1x10xf32>
    %39 = arith.mulf %30, %38 : vector<1x10xf32>
    %cst_26 = arith.constant dense<0.000000e+00> : vector<1x32xf32>
    %40 = tpu.matmul %39, %12, %cst_26 {dimension_numbers = #tpu.dot_dimension_numbers<[1], [0], [0], [1], [0, 0, 1, 1], [], []>} : vector<1x10xf32>, vector<10x32xf32>, vector<1x32xf32> -> vector<1x32xf32>
    %c64_i32 = arith.constant 64 : i32
    %41 = tpu.dynamic_rotate %22 by %c64_i32 dim 1 : vector<1x128xf32>, i32 -> vector<1x128xf32>
    %42 = vector.extract_strided_slice %41 {offsets = [0, 0], sizes = [1, 32], strides = [1, 1]} : vector<1x128xf32> to vector<1x32xf32>
    %cst_27 = arith.constant dense<0.000000e+00> : vector<1x32xf32>
    %43 = tpu.matmul %40, %5, %cst_27 {dimension_numbers = #tpu.dot_dimension_numbers<[1], [0], [0], [1], [0, 0, 1, 1], [], []>} : vector<1x32xf32>, vector<32x32xf32>, vector<1x32xf32> -> vector<1x32xf32>
    %44 = arith.addf %42, %43 : vector<1x32xf32>
    %cst_28 = arith.constant 0.000000e+00 : f32
    %45 = vector.broadcast %cst_28 : f32 to vector<1x32xf32>
    %46 = arith.maximumf %44, %45 : vector<1x32xf32>
    %cst_29 = arith.constant dense<0.000000e+00> : vector<1x128xf32>
    %47 = tpu.matmul %46, %3, %cst_29 {dimension_numbers = #tpu.dot_dimension_numbers<[1], [0], [0], [1], [0, 0, 1, 1], [], []>} : vector<1x32xf32>, vector<32x128xf32>, vector<1x128xf32> -> vector<1x128xf32>
    %cst_30 = arith.constant dense<0.000000e+00> : vector<1x32xf32>
    %48 = tpu.matmul %46, %4, %cst_30 {dimension_numbers = #tpu.dot_dimension_numbers<[1], [0], [0], [1], [0, 0, 1, 1], [], []>} : vector<1x32xf32>, vector<32x32xf32>, vector<1x32xf32> -> vector<1x32xf32>
    %49 = arith.addf %48, %10 : vector<1x32xf32>
    %50 = vector.extract_strided_slice %47 {offsets = [0, 0], sizes = [1, 32], strides = [1, 1]} : vector<1x128xf32> to vector<1x32xf32>
    %c64_i32_31 = arith.constant 64 : i32
    %51 = tpu.dynamic_rotate %18 by %c64_i32_31 dim 1 : vector<1x128xf32>, i32 -> vector<1x128xf32>
    %52 = vector.extract_strided_slice %51 {offsets = [0, 0], sizes = [1, 32], strides = [1, 1]} : vector<1x128xf32> to vector<1x32xf32>
    %53 = arith.addf %50, %52 : vector<1x32xf32>
    %54 = arith.negf %53 : vector<1x32xf32>
    %55 = math.exp %54 : vector<1x32xf32>
    %cst_32 = arith.constant 1.000000e+00 : f32
    %56 = vector.broadcast %cst_32 : f32 to vector<1x32xf32>
    %57 = arith.addf %56, %55 : vector<1x32xf32>
    %58 = arith.divf %56, %57 : vector<1x32xf32>
    %c64_i32_33 = arith.constant 64 : i32
    %59 = tpu.dynamic_rotate %47 by %c64_i32_33 dim 1 : vector<1x128xf32>, i32 -> vector<1x128xf32>
    %60 = vector.extract_strided_slice %59 {offsets = [0, 0], sizes = [1, 32], strides = [1, 1]} : vector<1x128xf32> to vector<1x32xf32>
    %61 = vector.extract_strided_slice %20 {offsets = [0, 0], sizes = [1, 32], strides = [1, 1]} : vector<1x128xf32> to vector<1x32xf32>
    %62 = arith.addf %60, %61 : vector<1x32xf32>
    %63 = arith.negf %62 : vector<1x32xf32>
    %64 = math.exp %63 : vector<1x32xf32>
    %cst_34 = arith.constant 1.000000e+00 : f32
    %65 = vector.broadcast %cst_34 : f32 to vector<1x32xf32>
    %66 = arith.addf %65, %64 : vector<1x32xf32>
    %67 = arith.divf %65, %66 : vector<1x32xf32>
    %c64_i32_35 = arith.constant 64 : i32
    %68 = tpu.dynamic_rotate %20 by %c64_i32_35 dim 1 : vector<1x128xf32>, i32 -> vector<1x128xf32>
    %69 = vector.extract_strided_slice %68 {offsets = [0, 0], sizes = [1, 32], strides = [1, 1]} : vector<1x128xf32> to vector<1x32xf32>
    %70 = arith.mulf %58, %69 : vector<1x32xf32>
    %71 = arith.addf %49, %70 : vector<1x32xf32>
    %72 = math.tanh %71 : vector<1x32xf32>
    %cst_36 = arith.constant 1.000000e+00 : f32
    %73 = vector.broadcast %cst_36 : f32 to vector<1x32xf32>
    %74 = arith.subf %73, %67 : vector<1x32xf32>
    %75 = arith.mulf %74, %72 : vector<1x32xf32>
    %76 = arith.mulf %67, %15 : vector<1x32xf32>
    %77 = arith.addf %75, %76 : vector<1x32xf32>
    %cst_37 = arith.constant dense<0.000000e+00> : vector<1x20xf32>
    %78 = tpu.matmul %77, %6, %cst_37 {dimension_numbers = #tpu.dot_dimension_numbers<[1], [0], [0], [1], [0, 0, 1, 1], [], []>} : vector<1x32xf32>, vector<32x20xf32>, vector<1x20xf32> -> vector<1x20xf32>
    %79 = arith.addf %78, %11 : vector<1x20xf32>
    %cst_38 = arith.constant dense<0xFF800000> : vector<1xf32>
    %80 = vector.multi_reduction <maximumf>, %79, %cst_38 [1] : vector<1x20xf32> to vector<1xf32>
    %81 = vector.shape_cast %80 : vector<1xf32> to vector<1x1xf32>
    %82 = vector.broadcast %81 : vector<1x1xf32> to vector<1x20xf32>
    %83 = arith.subf %79, %82 : vector<1x20xf32>
    %84 = math.exp %83 : vector<1x20xf32>
    %cst_39 = arith.constant dense<0.000000e+00> : vector<1xf32>
    %85 = vector.multi_reduction <add>, %84, %cst_39 [1] : vector<1x20xf32> to vector<1xf32>
    %86 = vector.shape_cast %85 : vector<1xf32> to vector<1x1xf32>
    %87 = math.log %86 : vector<1x1xf32>
    %88 = vector.broadcast %87 : vector<1x1xf32> to vector<1x20xf32>
    %89 = arith.subf %83, %88 : vector<1x20xf32>
    %c0_40 = arith.constant 0 : index
    %c0_41 = arith.constant 0 : index
    %90 = vector.load %arg5[%c0_40, %c0_41] : memref<8x128xf32, #tpu.memory_space<vmem>>, vector<1x20xf32>
    tpu.vector_store %arg5[%c0_40, %c0_41], %89 {strides = array<i32>} : memref<8x128xf32, #tpu.memory_space<vmem>>, vector<1x20xf32>,
    %c0_42 = arith.constant 0 : index
    %c32_43 = arith.constant 32 : index
    %91 = vector.load %arg5[%c0_42, %c32_43] : memref<8x128xf32, #tpu.memory_space<vmem>>, vector<1x32xf32>
    tpu.vector_store %arg5[%c0_42, %c32_43], %77 {strides = array<i32>} : memref<8x128xf32, #tpu.memory_space<vmem>>, vector<1x32xf32>,
    %c0_44 = arith.constant 0 : index
    %c64_45 = arith.constant 64 : index
    %92 = vector.load %arg5[%c0_44, %c64_45] : memref<8x128xf32, #tpu.memory_space<vmem>>, vector<1x10xf32>
    tpu.vector_store %arg5[%c0_44, %c64_45], %39 {strides = array<i32>} : memref<8x128xf32, #tpu.memory_space<vmem>>, vector<1x10xf32>,
    %c1 = arith.constant 1 : index
    %c0_46 = arith.constant 0 : index
    %93 = vector.load %arg1[%c1, %c0_46] : memref<8x32xf32, #tpu.memory_space<vmem>>, vector<1x32xf32>
    %cst_47 = arith.constant dense<0.000000e+00> : vector<1x128xf32>
    %94 = tpu.matmul %77, %0, %cst_47 {dimension_numbers = #tpu.dot_dimension_numbers<[1], [0], [0], [1], [0, 0, 1, 1], [], []>} : vector<1x32xf32>, vector<32x128xf32>, vector<1x128xf32> -> vector<1x128xf32>
    %95 = arith.addf %94, %7 : vector<1x128xf32>
    %cst_48 = arith.constant dense<0.000000e+00> : vector<1x128xf32>
    %96 = tpu.matmul %77, %1, %cst_48 {dimension_numbers = #tpu.dot_dimension_numbers<[1], [0], [0], [1], [0, 0, 1, 1], [], []>} : vector<1x32xf32>, vector<32x128xf32>, vector<1x128xf32> -> vector<1x128xf32>
    %97 = arith.addf %96, %8 : vector<1x128xf32>
    %cst_49 = arith.constant dense<0.000000e+00> : vector<1x128xf32>
    %98 = tpu.matmul %93, %2, %cst_49 {dimension_numbers = #tpu.dot_dimension_numbers<[1], [0], [0], [1], [0, 0, 1, 1], [], []>} : vector<1x32xf32>, vector<32x128xf32>, vector<1x128xf32> -> vector<1x128xf32>
    %99 = arith.addf %98, %9 : vector<1x128xf32>
    %100 = vector.extract_strided_slice %99 {offsets = [0, 0], sizes = [1, 10], strides = [1, 1]} : vector<1x128xf32> to vector<1x10xf32>
    %101 = vector.extract_strided_slice %95 {offsets = [0, 0], sizes = [1, 10], strides = [1, 1]} : vector<1x128xf32> to vector<1x10xf32>
    %102 = arith.addf %100, %101 : vector<1x10xf32>
    %cst_50 = arith.constant dense<0xFF800000> : vector<1xf32>
    %103 = vector.multi_reduction <maximumf>, %102, %cst_50 [1] : vector<1x10xf32> to vector<1xf32>
    %104 = vector.shape_cast %103 : vector<1xf32> to vector<1x1xf32>
    %105 = vector.broadcast %104 : vector<1x1xf32> to vector<1x10xf32>
    %106 = arith.subf %102, %105 : vector<1x10xf32>
    %107 = math.exp %106 : vector<1x10xf32>
    %cst_51 = arith.constant dense<0.000000e+00> : vector<1xf32>
    %108 = vector.multi_reduction <add>, %107, %cst_51 [1] : vector<1x10xf32> to vector<1xf32>
    %109 = vector.shape_cast %108 : vector<1xf32> to vector<1x1xf32>
    %110 = tpu.reciprocal %109 {approx = true} : vector<1x1xf32> -> vector<1x1xf32>
    %111 = arith.mulf %109, %110 : vector<1x1xf32>
    %cst_52 = arith.constant 2.000000e+00 : f32
    %112 = vector.broadcast %cst_52 : f32 to vector<1x1xf32>
    %113 = arith.subf %112, %111 : vector<1x1xf32>
    %114 = arith.mulf %110, %113 : vector<1x1xf32>
    %115 = vector.broadcast %114 : vector<1x1xf32> to vector<1x10xf32>
    %116 = arith.mulf %107, %115 : vector<1x10xf32>
    %cst_53 = arith.constant dense<0.000000e+00> : vector<1x32xf32>
    %117 = tpu.matmul %116, %12, %cst_53 {dimension_numbers = #tpu.dot_dimension_numbers<[1], [0], [0], [1], [0, 0, 1, 1], [], []>} : vector<1x10xf32>, vector<10x32xf32>, vector<1x32xf32> -> vector<1x32xf32>
    %c64_i32_54 = arith.constant 64 : i32
    %118 = tpu.dynamic_rotate %99 by %c64_i32_54 dim 1 : vector<1x128xf32>, i32 -> vector<1x128xf32>
    %119 = vector.extract_strided_slice %118 {offsets = [0, 0], sizes = [1, 32], strides = [1, 1]} : vector<1x128xf32> to vector<1x32xf32>
    %cst_55 = arith.constant dense<0.000000e+00> : vector<1x32xf32>
    %120 = tpu.matmul %117, %5, %cst_55 {dimension_numbers = #tpu.dot_dimension_numbers<[1], [0], [0], [1], [0, 0, 1, 1], [], []>} : vector<1x32xf32>, vector<32x32xf32>, vector<1x32xf32> -> vector<1x32xf32>
    %121 = arith.addf %119, %120 : vector<1x32xf32>
    %cst_56 = arith.constant 0.000000e+00 : f32
    %122 = vector.broadcast %cst_56 : f32 to vector<1x32xf32>
    %123 = arith.maximumf %121, %122 : vector<1x32xf32>
    %cst_57 = arith.constant dense<0.000000e+00> : vector<1x128xf32>
    %124 = tpu.matmul %123, %3, %cst_57 {dimension_numbers = #tpu.dot_dimension_numbers<[1], [0], [0], [1], [0, 0, 1, 1], [], []>} : vector<1x32xf32>, vector<32x128xf32>, vector<1x128xf32> -> vector<1x128xf32>
    %cst_58 = arith.constant dense<0.000000e+00> : vector<1x32xf32>
    %125 = tpu.matmul %123, %4, %cst_58 {dimension_numbers = #tpu.dot_dimension_numbers<[1], [0], [0], [1], [0, 0, 1, 1], [], []>} : vector<1x32xf32>, vector<32x32xf32>, vector<1x32xf32> -> vector<1x32xf32>
    %126 = arith.addf %125, %10 : vector<1x32xf32>
    %127 = vector.extract_strided_slice %124 {offsets = [0, 0], sizes = [1, 32], strides = [1, 1]} : vector<1x128xf32> to vector<1x32xf32>
    %c64_i32_59 = arith.constant 64 : i32
    %128 = tpu.dynamic_rotate %95 by %c64_i32_59 dim 1 : vector<1x128xf32>, i32 -> vector<1x128xf32>
    %129 = vector.extract_strided_slice %128 {offsets = [0, 0], sizes = [1, 32], strides = [1, 1]} : vector<1x128xf32> to vector<1x32xf32>
    %130 = arith.addf %127, %129 : vector<1x32xf32>
    %131 = arith.negf %130 : vector<1x32xf32>
    %132 = math.exp %131 : vector<1x32xf32>
    %cst_60 = arith.constant 1.000000e+00 : f32
    %133 = vector.broadcast %cst_60 : f32 to vector<1x32xf32>
    %134 = arith.addf %133, %132 : vector<1x32xf32>
    %135 = arith.divf %133, %134 : vector<1x32xf32>
    %c64_i32_61 = arith.constant 64 : i32
    %136 = tpu.dynamic_rotate %124 by %c64_i32_61 dim 1 : vector<1x128xf32>, i32 -> vector<1x128xf32>
    %137 = vector.extract_strided_slice %136 {offsets = [0, 0], sizes = [1, 32], strides = [1, 1]} : vector<1x128xf32> to vector<1x32xf32>
    %138 = vector.extract_strided_slice %97 {offsets = [0, 0], sizes = [1, 32], strides = [1, 1]} : vector<1x128xf32> to vector<1x32xf32>
    %139 = arith.addf %137, %138 : vector<1x32xf32>
    %140 = arith.negf %139 : vector<1x32xf32>
    %141 = math.exp %140 : vector<1x32xf32>
    %cst_62 = arith.constant 1.000000e+00 : f32
    %142 = vector.broadcast %cst_62 : f32 to vector<1x32xf32>
    %143 = arith.addf %142, %141 : vector<1x32xf32>
    %144 = arith.divf %142, %143 : vector<1x32xf32>
    %c64_i32_63 = arith.constant 64 : i32
    %145 = tpu.dynamic_rotate %97 by %c64_i32_63 dim 1 : vector<1x128xf32>, i32 -> vector<1x128xf32>
    %146 = vector.extract_strided_slice %145 {offsets = [0, 0], sizes = [1, 32], strides = [1, 1]} : vector<1x128xf32> to vector<1x32xf32>
    %147 = arith.mulf %135, %146 : vector<1x32xf32>
    %148 = arith.addf %126, %147 : vector<1x32xf32>
    %149 = math.tanh %148 : vector<1x32xf32>
    %cst_64 = arith.constant 1.000000e+00 : f32
    %150 = vector.broadcast %cst_64 : f32 to vector<1x32xf32>
    %151 = arith.subf %150, %144 : vector<1x32xf32>
    %152 = arith.mulf %151, %149 : vector<1x32xf32>
    %153 = arith.mulf %144, %77 : vector<1x32xf32>
    %154 = arith.addf %152, %153 : vector<1x32xf32>
    %cst_65 = arith.constant dense<0.000000e+00> : vector<1x20xf32>
    %155 = tpu.matmul %154, %6, %cst_65 {dimension_numbers = #tpu.dot_dimension_numbers<[1], [0], [0], [1], [0, 0, 1, 1], [], []>} : vector<1x32xf32>, vector<32x20xf32>, vector<1x20xf32> -> vector<1x20xf32>
    %156 = arith.addf %155, %11 : vector<1x20xf32>
    %cst_66 = arith.constant dense<0xFF800000> : vector<1xf32>
    %157 = vector.multi_reduction <maximumf>, %156, %cst_66 [1] : vector<1x20xf32> to vector<1xf32>
    %158 = vector.shape_cast %157 : vector<1xf32> to vector<1x1xf32>
    %159 = vector.broadcast %158 : vector<1x1xf32> to vector<1x20xf32>
    %160 = arith.subf %156, %159 : vector<1x20xf32>
    %161 = math.exp %160 : vector<1x20xf32>
    %cst_67 = arith.constant dense<0.000000e+00> : vector<1xf32>
    %162 = vector.multi_reduction <add>, %161, %cst_67 [1] : vector<1x20xf32> to vector<1xf32>
    %163 = vector.shape_cast %162 : vector<1xf32> to vector<1x1xf32>
    %164 = math.log %163 : vector<1x1xf32>
    %165 = vector.broadcast %164 : vector<1x1xf32> to vector<1x20xf32>
    %166 = arith.subf %160, %165 : vector<1x20xf32>
    %c1_68 = arith.constant 1 : index
    %c0_69 = arith.constant 0 : index
    %167 = vector.load %arg5[%c1_68, %c0_69] : memref<8x128xf32, #tpu.memory_space<vmem>>, vector<1x20xf32>
    tpu.vector_store %arg5[%c1_68, %c0_69], %166 {strides = array<i32>} : memref<8x128xf32, #tpu.memory_space<vmem>>, vector<1x20xf32>,
    %c1_70 = arith.constant 1 : index
    %c32_71 = arith.constant 32 : index
    %168 = vector.load %arg5[%c1_70, %c32_71] : memref<8x128xf32, #tpu.memory_space<vmem>>, vector<1x32xf32>
    tpu.vector_store %arg5[%c1_70, %c32_71], %154 {strides = array<i32>} : memref<8x128xf32, #tpu.memory_space<vmem>>, vector<1x32xf32>,
    %c1_72 = arith.constant 1 : index
    %c64_73 = arith.constant 64 : index
    %169 = vector.load %arg5[%c1_72, %c64_73] : memref<8x128xf32, #tpu.memory_space<vmem>>, vector<1x10xf32>
    tpu.vector_store %arg5[%c1_72, %c64_73], %116 {strides = array<i32>} : memref<8x128xf32, #tpu.memory_space<vmem>>, vector<1x10xf32>,
    %c2 = arith.constant 2 : index
    %c0_74 = arith.constant 0 : index
    %170 = vector.load %arg1[%c2, %c0_74] : memref<8x32xf32, #tpu.memory_space<vmem>>, vector<1x32xf32>
    %cst_75 = arith.constant dense<0.000000e+00> : vector<1x128xf32>
    %171 = tpu.matmul %154, %0, %cst_75 {dimension_numbers = #tpu.dot_dimension_numbers<[1], [0], [0], [1], [0, 0, 1, 1], [], []>} : vector<1x32xf32>, vector<32x128xf32>, vector<1x128xf32> -> vector<1x128xf32>
    %172 = arith.addf %171, %7 : vector<1x128xf32>
    %cst_76 = arith.constant dense<0.000000e+00> : vector<1x128xf32>
    %173 = tpu.matmul %154, %1, %cst_76 {dimension_numbers = #tpu.dot_dimension_numbers<[1], [0], [0], [1], [0, 0, 1, 1], [], []>} : vector<1x32xf32>, vector<32x128xf32>, vector<1x128xf32> -> vector<1x128xf32>
    %174 = arith.addf %173, %8 : vector<1x128xf32>
    %cst_77 = arith.constant dense<0.000000e+00> : vector<1x128xf32>
    %175 = tpu.matmul %170, %2, %cst_77 {dimension_numbers = #tpu.dot_dimension_numbers<[1], [0], [0], [1], [0, 0, 1, 1], [], []>} : vector<1x32xf32>, vector<32x128xf32>, vector<1x128xf32> -> vector<1x128xf32>
    %176 = arith.addf %175, %9 : vector<1x128xf32>
    %177 = vector.extract_strided_slice %176 {offsets = [0, 0], sizes = [1, 10], strides = [1, 1]} : vector<1x128xf32> to vector<1x10xf32>
    %178 = vector.extract_strided_slice %172 {offsets = [0, 0], sizes = [1, 10], strides = [1, 1]} : vector<1x128xf32> to vector<1x10xf32>
    %179 = arith.addf %177, %178 : vector<1x10xf32>
    %cst_78 = arith.constant dense<0xFF800000> : vector<1xf32>
    %180 = vector.multi_reduction <maximumf>, %179, %cst_78 [1] : vector<1x10xf32> to vector<1xf32>
    %181 = vector.shape_cast %180 : vector<1xf32> to vector<1x1xf32>
    %182 = vector.broadcast %181 : vector<1x1xf32> to vector<1x10xf32>
    %183 = arith.subf %179, %182 : vector<1x10xf32>
    %184 = math.exp %183 : vector<1x10xf32>
    %cst_79 = arith.constant dense<0.000000e+00> : vector<1xf32>
    %185 = vector.multi_reduction <add>, %184, %cst_79 [1] : vector<1x10xf32> to vector<1xf32>
    %186 = vector.shape_cast %185 : vector<1xf32> to vector<1x1xf32>
    %187 = tpu.reciprocal %186 {approx = true} : vector<1x1xf32> -> vector<1x1xf32>
    %188 = arith.mulf %186, %187 : vector<1x1xf32>
    %cst_80 = arith.constant 2.000000e+00 : f32
    %189 = vector.broadcast %cst_80 : f32 to vector<1x1xf32>
    %190 = arith.subf %189, %188 : vector<1x1xf32>
    %191 = arith.mulf %187, %190 : vector<1x1xf32>
    %192 = vector.broadcast %191 : vector<1x1xf32> to vector<1x10xf32>
    %193 = arith.mulf %184, %192 : vector<1x10xf32>
    %cst_81 = arith.constant dense<0.000000e+00> : vector<1x32xf32>
    %194 = tpu.matmul %193, %12, %cst_81 {dimension_numbers = #tpu.dot_dimension_numbers<[1], [0], [0], [1], [0, 0, 1, 1], [], []>} : vector<1x10xf32>, vector<10x32xf32>, vector<1x32xf32> -> vector<1x32xf32>
    %c64_i32_82 = arith.constant 64 : i32
    %195 = tpu.dynamic_rotate %176 by %c64_i32_82 dim 1 : vector<1x128xf32>, i32 -> vector<1x128xf32>
    %196 = vector.extract_strided_slice %195 {offsets = [0, 0], sizes = [1, 32], strides = [1, 1]} : vector<1x128xf32> to vector<1x32xf32>
    %cst_83 = arith.constant dense<0.000000e+00> : vector<1x32xf32>
    %197 = tpu.matmul %194, %5, %cst_83 {dimension_numbers = #tpu.dot_dimension_numbers<[1], [0], [0], [1], [0, 0, 1, 1], [], []>} : vector<1x32xf32>, vector<32x32xf32>, vector<1x32xf32> -> vector<1x32xf32>
    %198 = arith.addf %196, %197 : vector<1x32xf32>
    %cst_84 = arith.constant 0.000000e+00 : f32
    %199 = vector.broadcast %cst_84 : f32 to vector<1x32xf32>
    %200 = arith.maximumf %198, %199 : vector<1x32xf32>
    %cst_85 = arith.constant dense<0.000000e+00> : vector<1x128xf32>
    %201 = tpu.matmul %200, %3, %cst_85 {dimension_numbers = #tpu.dot_dimension_numbers<[1], [0], [0], [1], [0, 0, 1, 1], [], []>} : vector<1x32xf32>, vector<32x128xf32>, vector<1x128xf32> -> vector<1x128xf32>
    %cst_86 = arith.constant dense<0.000000e+00> : vector<1x32xf32>
    %202 = tpu.matmul %200, %4, %cst_86 {dimension_numbers = #tpu.dot_dimension_numbers<[1], [0], [0], [1], [0, 0, 1, 1], [], []>} : vector<1x32xf32>, vector<32x32xf32>, vector<1x32xf32> -> vector<1x32xf32>
    %203 = arith.addf %202, %10 : vector<1x32xf32>
    %204 = vector.extract_strided_slice %201 {offsets = [0, 0], sizes = [1, 32], strides = [1, 1]} : vector<1x128xf32> to vector<1x32xf32>
    %c64_i32_87 = arith.constant 64 : i32
    %205 = tpu.dynamic_rotate %172 by %c64_i32_87 dim 1 : vector<1x128xf32>, i32 -> vector<1x128xf32>
    %206 = vector.extract_strided_slice %205 {offsets = [0, 0], sizes = [1, 32], strides = [1, 1]} : vector<1x128xf32> to vector<1x32xf32>
    %207 = arith.addf %204, %206 : vector<1x32xf32>
    %208 = arith.negf %207 : vector<1x32xf32>
    %209 = math.exp %208 : vector<1x32xf32>
    %cst_88 = arith.constant 1.000000e+00 : f32
    %210 = vector.broadcast %cst_88 : f32 to vector<1x32xf32>
    %211 = arith.addf %210, %209 : vector<1x32xf32>
    %212 = arith.divf %210, %211 : vector<1x32xf32>
    %c64_i32_89 = arith.constant 64 : i32
    %213 = tpu.dynamic_rotate %201 by %c64_i32_89 dim 1 : vector<1x128xf32>, i32 -> vector<1x128xf32>
    %214 = vector.extract_strided_slice %213 {offsets = [0, 0], sizes = [1, 32], strides = [1, 1]} : vector<1x128xf32> to vector<1x32xf32>
    %215 = vector.extract_strided_slice %174 {offsets = [0, 0], sizes = [1, 32], strides = [1, 1]} : vector<1x128xf32> to vector<1x32xf32>
    %216 = arith.addf %214, %215 : vector<1x32xf32>
    %217 = arith.negf %216 : vector<1x32xf32>
    %218 = math.exp %217 : vector<1x32xf32>
    %cst_90 = arith.constant 1.000000e+00 : f32
    %219 = vector.broadcast %cst_90 : f32 to vector<1x32xf32>
    %220 = arith.addf %219, %218 : vector<1x32xf32>
    %221 = arith.divf %219, %220 : vector<1x32xf32>
    %c64_i32_91 = arith.constant 64 : i32
    %222 = tpu.dynamic_rotate %174 by %c64_i32_91 dim 1 : vector<1x128xf32>, i32 -> vector<1x128xf32>
    %223 = vector.extract_strided_slice %222 {offsets = [0, 0], sizes = [1, 32], strides = [1, 1]} : vector<1x128xf32> to vector<1x32xf32>
    %224 = arith.mulf %212, %223 : vector<1x32xf32>
    %225 = arith.addf %203, %224 : vector<1x32xf32>
    %226 = math.tanh %225 : vector<1x32xf32>
    %cst_92 = arith.constant 1.000000e+00 : f32
    %227 = vector.broadcast %cst_92 : f32 to vector<1x32xf32>
    %228 = arith.subf %227, %221 : vector<1x32xf32>
    %229 = arith.mulf %228, %226 : vector<1x32xf32>
    %230 = arith.mulf %221, %154 : vector<1x32xf32>
    %231 = arith.addf %229, %230 : vector<1x32xf32>
    %cst_93 = arith.constant dense<0.000000e+00> : vector<1x20xf32>
    %232 = tpu.matmul %231, %6, %cst_93 {dimension_numbers = #tpu.dot_dimension_numbers<[1], [0], [0], [1], [0, 0, 1, 1], [], []>} : vector<1x32xf32>, vector<32x20xf32>, vector<1x20xf32> -> vector<1x20xf32>
    %233 = arith.addf %232, %11 : vector<1x20xf32>
    %cst_94 = arith.constant dense<0xFF800000> : vector<1xf32>
    %234 = vector.multi_reduction <maximumf>, %233, %cst_94 [1] : vector<1x20xf32> to vector<1xf32>
    %235 = vector.shape_cast %234 : vector<1xf32> to vector<1x1xf32>
    %236 = vector.broadcast %235 : vector<1x1xf32> to vector<1x20xf32>
    %237 = arith.subf %233, %236 : vector<1x20xf32>
    %238 = math.exp %237 : vector<1x20xf32>
    %cst_95 = arith.constant dense<0.000000e+00> : vector<1xf32>
    %239 = vector.multi_reduction <add>, %238, %cst_95 [1] : vector<1x20xf32> to vector<1xf32>
    %240 = vector.shape_cast %239 : vector<1xf32> to vector<1x1xf32>
    %241 = math.log %240 : vector<1x1xf32>
    %242 = vector.broadcast %241 : vector<1x1xf32> to vector<1x20xf32>
    %243 = arith.subf %237, %242 : vector<1x20xf32>
    %c2_96 = arith.constant 2 : index
    %c0_97 = arith.constant 0 : index
    %244 = vector.load %arg5[%c2_96, %c0_97] : memref<8x128xf32, #tpu.memory_space<vmem>>, vector<1x20xf32>
    tpu.vector_store %arg5[%c2_96, %c0_97], %243 {strides = array<i32>} : memref<8x128xf32, #tpu.memory_space<vmem>>, vector<1x20xf32>,
    %c2_98 = arith.constant 2 : index
    %c32_99 = arith.constant 32 : index
    %245 = vector.load %arg5[%c2_98, %c32_99] : memref<8x128xf32, #tpu.memory_space<vmem>>, vector<1x32xf32>
    tpu.vector_store %arg5[%c2_98, %c32_99], %231 {strides = array<i32>} : memref<8x128xf32, #tpu.memory_space<vmem>>, vector<1x32xf32>,
    %c2_100 = arith.constant 2 : index
    %c64_101 = arith.constant 64 : index
    %246 = vector.load %arg5[%c2_100, %c64_101] : memref<8x128xf32, #tpu.memory_space<vmem>>, vector<1x10xf32>
    tpu.vector_store %arg5[%c2_100, %c64_101], %193 {strides = array<i32>} : memref<8x128xf32, #tpu.memory_space<vmem>>, vector<1x10xf32>,
    %c3 = arith.constant 3 : index
    %c0_102 = arith.constant 0 : index
    %247 = vector.load %arg1[%c3, %c0_102] : memref<8x32xf32, #tpu.memory_space<vmem>>, vector<1x32xf32>
    %cst_103 = arith.constant dense<0.000000e+00> : vector<1x128xf32>
    %248 = tpu.matmul %231, %0, %cst_103 {dimension_numbers = #tpu.dot_dimension_numbers<[1], [0], [0], [1], [0, 0, 1, 1], [], []>} : vector<1x32xf32>, vector<32x128xf32>, vector<1x128xf32> -> vector<1x128xf32>
    %249 = arith.addf %248, %7 : vector<1x128xf32>
    %cst_104 = arith.constant dense<0.000000e+00> : vector<1x128xf32>
    %250 = tpu.matmul %231, %1, %cst_104 {dimension_numbers = #tpu.dot_dimension_numbers<[1], [0], [0], [1], [0, 0, 1, 1], [], []>} : vector<1x32xf32>, vector<32x128xf32>, vector<1x128xf32> -> vector<1x128xf32>
    %251 = arith.addf %250, %8 : vector<1x128xf32>
    %cst_105 = arith.constant dense<0.000000e+00> : vector<1x128xf32>
    %252 = tpu.matmul %247, %2, %cst_105 {dimension_numbers = #tpu.dot_dimension_numbers<[1], [0], [0], [1], [0, 0, 1, 1], [], []>} : vector<1x32xf32>, vector<32x128xf32>, vector<1x128xf32> -> vector<1x128xf32>
    %253 = arith.addf %252, %9 : vector<1x128xf32>
    %254 = vector.extract_strided_slice %253 {offsets = [0, 0], sizes = [1, 10], strides = [1, 1]} : vector<1x128xf32> to vector<1x10xf32>
    %255 = vector.extract_strided_slice %249 {offsets = [0, 0], sizes = [1, 10], strides = [1, 1]} : vector<1x128xf32> to vector<1x10xf32>
    %256 = arith.addf %254, %255 : vector<1x10xf32>
    %cst_106 = arith.constant dense<0xFF800000> : vector<1xf32>
    %257 = vector.multi_reduction <maximumf>, %256, %cst_106 [1] : vector<1x10xf32> to vector<1xf32>
    %258 = vector.shape_cast %257 : vector<1xf32> to vector<1x1xf32>
    %259 = vector.broadcast %258 : vector<1x1xf32> to vector<1x10xf32>
    %260 = arith.subf %256, %259 : vector<1x10xf32>
    %261 = math.exp %260 : vector<1x10xf32>
    %cst_107 = arith.constant dense<0.000000e+00> : vector<1xf32>
    %262 = vector.multi_reduction <add>, %261, %cst_107 [1] : vector<1x10xf32> to vector<1xf32>
    %263 = vector.shape_cast %262 : vector<1xf32> to vector<1x1xf32>
    %264 = tpu.reciprocal %263 {approx = true} : vector<1x1xf32> -> vector<1x1xf32>
    %265 = arith.mulf %263, %264 : vector<1x1xf32>
    %cst_108 = arith.constant 2.000000e+00 : f32
    %266 = vector.broadcast %cst_108 : f32 to vector<1x1xf32>
    %267 = arith.subf %266, %265 : vector<1x1xf32>
    %268 = arith.mulf %264, %267 : vector<1x1xf32>
    %269 = vector.broadcast %268 : vector<1x1xf32> to vector<1x10xf32>
    %270 = arith.mulf %261, %269 : vector<1x10xf32>
    %cst_109 = arith.constant dense<0.000000e+00> : vector<1x32xf32>
    %271 = tpu.matmul %270, %12, %cst_109 {dimension_numbers = #tpu.dot_dimension_numbers<[1], [0], [0], [1], [0, 0, 1, 1], [], []>} : vector<1x10xf32>, vector<10x32xf32>, vector<1x32xf32> -> vector<1x32xf32>
    %c64_i32_110 = arith.constant 64 : i32
    %272 = tpu.dynamic_rotate %253 by %c64_i32_110 dim 1 : vector<1x128xf32>, i32 -> vector<1x128xf32>
    %273 = vector.extract_strided_slice %272 {offsets = [0, 0], sizes = [1, 32], strides = [1, 1]} : vector<1x128xf32> to vector<1x32xf32>
    %cst_111 = arith.constant dense<0.000000e+00> : vector<1x32xf32>
    %274 = tpu.matmul %271, %5, %cst_111 {dimension_numbers = #tpu.dot_dimension_numbers<[1], [0], [0], [1], [0, 0, 1, 1], [], []>} : vector<1x32xf32>, vector<32x32xf32>, vector<1x32xf32> -> vector<1x32xf32>
    %275 = arith.addf %273, %274 : vector<1x32xf32>
    %cst_112 = arith.constant 0.000000e+00 : f32
    %276 = vector.broadcast %cst_112 : f32 to vector<1x32xf32>
    %277 = arith.maximumf %275, %276 : vector<1x32xf32>
    %cst_113 = arith.constant dense<0.000000e+00> : vector<1x128xf32>
    %278 = tpu.matmul %277, %3, %cst_113 {dimension_numbers = #tpu.dot_dimension_numbers<[1], [0], [0], [1], [0, 0, 1, 1], [], []>} : vector<1x32xf32>, vector<32x128xf32>, vector<1x128xf32> -> vector<1x128xf32>
    %cst_114 = arith.constant dense<0.000000e+00> : vector<1x32xf32>
    %279 = tpu.matmul %277, %4, %cst_114 {dimension_numbers = #tpu.dot_dimension_numbers<[1], [0], [0], [1], [0, 0, 1, 1], [], []>} : vector<1x32xf32>, vector<32x32xf32>, vector<1x32xf32> -> vector<1x32xf32>
    %280 = arith.addf %279, %10 : vector<1x32xf32>
    %281 = vector.extract_strided_slice %278 {offsets = [0, 0], sizes = [1, 32], strides = [1, 1]} : vector<1x128xf32> to vector<1x32xf32>
    %c64_i32_115 = arith.constant 64 : i32
    %282 = tpu.dynamic_rotate %249 by %c64_i32_115 dim 1 : vector<1x128xf32>, i32 -> vector<1x128xf32>
    %283 = vector.extract_strided_slice %282 {offsets = [0, 0], sizes = [1, 32], strides = [1, 1]} : vector<1x128xf32> to vector<1x32xf32>
    %284 = arith.addf %281, %283 : vector<1x32xf32>
    %285 = arith.negf %284 : vector<1x32xf32>
    %286 = math.exp %285 : vector<1x32xf32>
    %cst_116 = arith.constant 1.000000e+00 : f32
    %287 = vector.broadcast %cst_116 : f32 to vector<1x32xf32>
    %288 = arith.addf %287, %286 : vector<1x32xf32>
    %289 = arith.divf %287, %288 : vector<1x32xf32>
    %c64_i32_117 = arith.constant 64 : i32
    %290 = tpu.dynamic_rotate %278 by %c64_i32_117 dim 1 : vector<1x128xf32>, i32 -> vector<1x128xf32>
    %291 = vector.extract_strided_slice %290 {offsets = [0, 0], sizes = [1, 32], strides = [1, 1]} : vector<1x128xf32> to vector<1x32xf32>
    %292 = vector.extract_strided_slice %251 {offsets = [0, 0], sizes = [1, 32], strides = [1, 1]} : vector<1x128xf32> to vector<1x32xf32>
    %293 = arith.addf %291, %292 : vector<1x32xf32>
    %294 = arith.negf %293 : vector<1x32xf32>
    %295 = math.exp %294 : vector<1x32xf32>
    %cst_118 = arith.constant 1.000000e+00 : f32
    %296 = vector.broadcast %cst_118 : f32 to vector<1x32xf32>
    %297 = arith.addf %296, %295 : vector<1x32xf32>
    %298 = arith.divf %296, %297 : vector<1x32xf32>
    %c64_i32_119 = arith.constant 64 : i32
    %299 = tpu.dynamic_rotate %251 by %c64_i32_119 dim 1 : vector<1x128xf32>, i32 -> vector<1x128xf32>
    %300 = vector.extract_strided_slice %299 {offsets = [0, 0], sizes = [1, 32], strides = [1, 1]} : vector<1x128xf32> to vector<1x32xf32>
    %301 = arith.mulf %289, %300 : vector<1x32xf32>
    %302 = arith.addf %280, %301 : vector<1x32xf32>
    %303 = math.tanh %302 : vector<1x32xf32>
    %cst_120 = arith.constant 1.000000e+00 : f32
    %304 = vector.broadcast %cst_120 : f32 to vector<1x32xf32>
    %305 = arith.subf %304, %298 : vector<1x32xf32>
    %306 = arith.mulf %305, %303 : vector<1x32xf32>
    %307 = arith.mulf %298, %231 : vector<1x32xf32>
    %308 = arith.addf %306, %307 : vector<1x32xf32>
    %cst_121 = arith.constant dense<0.000000e+00> : vector<1x20xf32>
    %309 = tpu.matmul %308, %6, %cst_121 {dimension_numbers = #tpu.dot_dimension_numbers<[1], [0], [0], [1], [0, 0, 1, 1], [], []>} : vector<1x32xf32>, vector<32x20xf32>, vector<1x20xf32> -> vector<1x20xf32>
    %310 = arith.addf %309, %11 : vector<1x20xf32>
    %cst_122 = arith.constant dense<0xFF800000> : vector<1xf32>
    %311 = vector.multi_reduction <maximumf>, %310, %cst_122 [1] : vector<1x20xf32> to vector<1xf32>
    %312 = vector.shape_cast %311 : vector<1xf32> to vector<1x1xf32>
    %313 = vector.broadcast %312 : vector<1x1xf32> to vector<1x20xf32>
    %314 = arith.subf %310, %313 : vector<1x20xf32>
    %315 = math.exp %314 : vector<1x20xf32>
    %cst_123 = arith.constant dense<0.000000e+00> : vector<1xf32>
    %316 = vector.multi_reduction <add>, %315, %cst_123 [1] : vector<1x20xf32> to vector<1xf32>
    %317 = vector.shape_cast %316 : vector<1xf32> to vector<1x1xf32>
    %318 = math.log %317 : vector<1x1xf32>
    %319 = vector.broadcast %318 : vector<1x1xf32> to vector<1x20xf32>
    %320 = arith.subf %314, %319 : vector<1x20xf32>
    %c3_124 = arith.constant 3 : index
    %c0_125 = arith.constant 0 : index
    %321 = vector.load %arg5[%c3_124, %c0_125] : memref<8x128xf32, #tpu.memory_space<vmem>>, vector<1x20xf32>
    tpu.vector_store %arg5[%c3_124, %c0_125], %320 {strides = array<i32>} : memref<8x128xf32, #tpu.memory_space<vmem>>, vector<1x20xf32>,
    %c3_126 = arith.constant 3 : index
    %c32_127 = arith.constant 32 : index
    %322 = vector.load %arg5[%c3_126, %c32_127] : memref<8x128xf32, #tpu.memory_space<vmem>>, vector<1x32xf32>
    tpu.vector_store %arg5[%c3_126, %c32_127], %308 {strides = array<i32>} : memref<8x128xf32, #tpu.memory_space<vmem>>, vector<1x32xf32>,
    %c3_128 = arith.constant 3 : index
    %c64_129 = arith.constant 64 : index
    %323 = vector.load %arg5[%c3_128, %c64_129] : memref<8x128xf32, #tpu.memory_space<vmem>>, vector<1x10xf32>
    tpu.vector_store %arg5[%c3_128, %c64_129], %270 {strides = array<i32>} : memref<8x128xf32, #tpu.memory_space<vmem>>, vector<1x10xf32>,
    %c4 = arith.constant 4 : index
    %c0_130 = arith.constant 0 : index
    %324 = vector.load %arg1[%c4, %c0_130] : memref<8x32xf32, #tpu.memory_space<vmem>>, vector<1x32xf32>
    %cst_131 = arith.constant dense<0.000000e+00> : vector<1x128xf32>
    %325 = tpu.matmul %308, %0, %cst_131 {dimension_numbers = #tpu.dot_dimension_numbers<[1], [0], [0], [1], [0, 0, 1, 1], [], []>} : vector<1x32xf32>, vector<32x128xf32>, vector<1x128xf32> -> vector<1x128xf32>
    %326 = arith.addf %325, %7 : vector<1x128xf32>
    %cst_132 = arith.constant dense<0.000000e+00> : vector<1x128xf32>
    %327 = tpu.matmul %308, %1, %cst_132 {dimension_numbers = #tpu.dot_dimension_numbers<[1], [0], [0], [1], [0, 0, 1, 1], [], []>} : vector<1x32xf32>, vector<32x128xf32>, vector<1x128xf32> -> vector<1x128xf32>
    %328 = arith.addf %327, %8 : vector<1x128xf32>
    %cst_133 = arith.constant dense<0.000000e+00> : vector<1x128xf32>
    %329 = tpu.matmul %324, %2, %cst_133 {dimension_numbers = #tpu.dot_dimension_numbers<[1], [0], [0], [1], [0, 0, 1, 1], [], []>} : vector<1x32xf32>, vector<32x128xf32>, vector<1x128xf32> -> vector<1x128xf32>
    %330 = arith.addf %329, %9 : vector<1x128xf32>
    %331 = vector.extract_strided_slice %330 {offsets = [0, 0], sizes = [1, 10], strides = [1, 1]} : vector<1x128xf32> to vector<1x10xf32>
    %332 = vector.extract_strided_slice %326 {offsets = [0, 0], sizes = [1, 10], strides = [1, 1]} : vector<1x128xf32> to vector<1x10xf32>
    %333 = arith.addf %331, %332 : vector<1x10xf32>
    %cst_134 = arith.constant dense<0xFF800000> : vector<1xf32>
    %334 = vector.multi_reduction <maximumf>, %333, %cst_134 [1] : vector<1x10xf32> to vector<1xf32>
    %335 = vector.shape_cast %334 : vector<1xf32> to vector<1x1xf32>
    %336 = vector.broadcast %335 : vector<1x1xf32> to vector<1x10xf32>
    %337 = arith.subf %333, %336 : vector<1x10xf32>
    %338 = math.exp %337 : vector<1x10xf32>
    %cst_135 = arith.constant dense<0.000000e+00> : vector<1xf32>
    %339 = vector.multi_reduction <add>, %338, %cst_135 [1] : vector<1x10xf32> to vector<1xf32>
    %340 = vector.shape_cast %339 : vector<1xf32> to vector<1x1xf32>
    %341 = tpu.reciprocal %340 {approx = true} : vector<1x1xf32> -> vector<1x1xf32>
    %342 = arith.mulf %340, %341 : vector<1x1xf32>
    %cst_136 = arith.constant 2.000000e+00 : f32
    %343 = vector.broadcast %cst_136 : f32 to vector<1x1xf32>
    %344 = arith.subf %343, %342 : vector<1x1xf32>
    %345 = arith.mulf %341, %344 : vector<1x1xf32>
    %346 = vector.broadcast %345 : vector<1x1xf32> to vector<1x10xf32>
    %347 = arith.mulf %338, %346 : vector<1x10xf32>
    %cst_137 = arith.constant dense<0.000000e+00> : vector<1x32xf32>
    %348 = tpu.matmul %347, %12, %cst_137 {dimension_numbers = #tpu.dot_dimension_numbers<[1], [0], [0], [1], [0, 0, 1, 1], [], []>} : vector<1x10xf32>, vector<10x32xf32>, vector<1x32xf32> -> vector<1x32xf32>
    %c64_i32_138 = arith.constant 64 : i32
    %349 = tpu.dynamic_rotate %330 by %c64_i32_138 dim 1 : vector<1x128xf32>, i32 -> vector<1x128xf32>
    %350 = vector.extract_strided_slice %349 {offsets = [0, 0], sizes = [1, 32], strides = [1, 1]} : vector<1x128xf32> to vector<1x32xf32>
    %cst_139 = arith.constant dense<0.000000e+00> : vector<1x32xf32>
    %351 = tpu.matmul %348, %5, %cst_139 {dimension_numbers = #tpu.dot_dimension_numbers<[1], [0], [0], [1], [0, 0, 1, 1], [], []>} : vector<1x32xf32>, vector<32x32xf32>, vector<1x32xf32> -> vector<1x32xf32>
    %352 = arith.addf %350, %351 : vector<1x32xf32>
    %cst_140 = arith.constant 0.000000e+00 : f32
    %353 = vector.broadcast %cst_140 : f32 to vector<1x32xf32>
    %354 = arith.maximumf %352, %353 : vector<1x32xf32>
    %cst_141 = arith.constant dense<0.000000e+00> : vector<1x128xf32>
    %355 = tpu.matmul %354, %3, %cst_141 {dimension_numbers = #tpu.dot_dimension_numbers<[1], [0], [0], [1], [0, 0, 1, 1], [], []>} : vector<1x32xf32>, vector<32x128xf32>, vector<1x128xf32> -> vector<1x128xf32>
    %cst_142 = arith.constant dense<0.000000e+00> : vector<1x32xf32>
    %356 = tpu.matmul %354, %4, %cst_142 {dimension_numbers = #tpu.dot_dimension_numbers<[1], [0], [0], [1], [0, 0, 1, 1], [], []>} : vector<1x32xf32>, vector<32x32xf32>, vector<1x32xf32> -> vector<1x32xf32>
    %357 = arith.addf %356, %10 : vector<1x32xf32>
    %358 = vector.extract_strided_slice %355 {offsets = [0, 0], sizes = [1, 32], strides = [1, 1]} : vector<1x128xf32> to vector<1x32xf32>
    %c64_i32_143 = arith.constant 64 : i32
    %359 = tpu.dynamic_rotate %326 by %c64_i32_143 dim 1 : vector<1x128xf32>, i32 -> vector<1x128xf32>
    %360 = vector.extract_strided_slice %359 {offsets = [0, 0], sizes = [1, 32], strides = [1, 1]} : vector<1x128xf32> to vector<1x32xf32>
    %361 = arith.addf %358, %360 : vector<1x32xf32>
    %362 = arith.negf %361 : vector<1x32xf32>
    %363 = math.exp %362 : vector<1x32xf32>
    %cst_144 = arith.constant 1.000000e+00 : f32
    %364 = vector.broadcast %cst_144 : f32 to vector<1x32xf32>
    %365 = arith.addf %364, %363 : vector<1x32xf32>
    %366 = arith.divf %364, %365 : vector<1x32xf32>
    %c64_i32_145 = arith.constant 64 : i32
    %367 = tpu.dynamic_rotate %355 by %c64_i32_145 dim 1 : vector<1x128xf32>, i32 -> vector<1x128xf32>
    %368 = vector.extract_strided_slice %367 {offsets = [0, 0], sizes = [1, 32], strides = [1, 1]} : vector<1x128xf32> to vector<1x32xf32>
    %369 = vector.extract_strided_slice %328 {offsets = [0, 0], sizes = [1, 32], strides = [1, 1]} : vector<1x128xf32> to vector<1x32xf32>
    %370 = arith.addf %368, %369 : vector<1x32xf32>
    %371 = arith.negf %370 : vector<1x32xf32>
    %372 = math.exp %371 : vector<1x32xf32>
    %cst_146 = arith.constant 1.000000e+00 : f32
    %373 = vector.broadcast %cst_146 : f32 to vector<1x32xf32>
    %374 = arith.addf %373, %372 : vector<1x32xf32>
    %375 = arith.divf %373, %374 : vector<1x32xf32>
    %c64_i32_147 = arith.constant 64 : i32
    %376 = tpu.dynamic_rotate %328 by %c64_i32_147 dim 1 : vector<1x128xf32>, i32 -> vector<1x128xf32>
    %377 = vector.extract_strided_slice %376 {offsets = [0, 0], sizes = [1, 32], strides = [1, 1]} : vector<1x128xf32> to vector<1x32xf32>
    %378 = arith.mulf %366, %377 : vector<1x32xf32>
    %379 = arith.addf %357, %378 : vector<1x32xf32>
    %380 = math.tanh %379 : vector<1x32xf32>
    %cst_148 = arith.constant 1.000000e+00 : f32
    %381 = vector.broadcast %cst_148 : f32 to vector<1x32xf32>
    %382 = arith.subf %381, %375 : vector<1x32xf32>
    %383 = arith.mulf %382, %380 : vector<1x32xf32>
    %384 = arith.mulf %375, %308 : vector<1x32xf32>
    %385 = arith.addf %383, %384 : vector<1x32xf32>
    %cst_149 = arith.constant dense<0.000000e+00> : vector<1x20xf32>
    %386 = tpu.matmul %385, %6, %cst_149 {dimension_numbers = #tpu.dot_dimension_numbers<[1], [0], [0], [1], [0, 0, 1, 1], [], []>} : vector<1x32xf32>, vector<32x20xf32>, vector<1x20xf32> -> vector<1x20xf32>
    %387 = arith.addf %386, %11 : vector<1x20xf32>
    %cst_150 = arith.constant dense<0xFF800000> : vector<1xf32>
    %388 = vector.multi_reduction <maximumf>, %387, %cst_150 [1] : vector<1x20xf32> to vector<1xf32>
    %389 = vector.shape_cast %388 : vector<1xf32> to vector<1x1xf32>
    %390 = vector.broadcast %389 : vector<1x1xf32> to vector<1x20xf32>
    %391 = arith.subf %387, %390 : vector<1x20xf32>
    %392 = math.exp %391 : vector<1x20xf32>
    %cst_151 = arith.constant dense<0.000000e+00> : vector<1xf32>
    %393 = vector.multi_reduction <add>, %392, %cst_151 [1] : vector<1x20xf32> to vector<1xf32>
    %394 = vector.shape_cast %393 : vector<1xf32> to vector<1x1xf32>
    %395 = math.log %394 : vector<1x1xf32>
    %396 = vector.broadcast %395 : vector<1x1xf32> to vector<1x20xf32>
    %397 = arith.subf %391, %396 : vector<1x20xf32>
    %c4_152 = arith.constant 4 : index
    %c0_153 = arith.constant 0 : index
    %398 = vector.load %arg5[%c4_152, %c0_153] : memref<8x128xf32, #tpu.memory_space<vmem>>, vector<1x20xf32>
    tpu.vector_store %arg5[%c4_152, %c0_153], %397 {strides = array<i32>} : memref<8x128xf32, #tpu.memory_space<vmem>>, vector<1x20xf32>,
    %c4_154 = arith.constant 4 : index
    %c32_155 = arith.constant 32 : index
    %399 = vector.load %arg5[%c4_154, %c32_155] : memref<8x128xf32, #tpu.memory_space<vmem>>, vector<1x32xf32>
    tpu.vector_store %arg5[%c4_154, %c32_155], %385 {strides = array<i32>} : memref<8x128xf32, #tpu.memory_space<vmem>>, vector<1x32xf32>,
    %c4_156 = arith.constant 4 : index
    %c64_157 = arith.constant 64 : index
    %400 = vector.load %arg5[%c4_156, %c64_157] : memref<8x128xf32, #tpu.memory_space<vmem>>, vector<1x10xf32>
    tpu.vector_store %arg5[%c4_156, %c64_157], %347 {strides = array<i32>} : memref<8x128xf32, #tpu.memory_space<vmem>>, vector<1x10xf32>,
    %c5 = arith.constant 5 : index
    %c0_158 = arith.constant 0 : index
    %401 = vector.load %arg1[%c5, %c0_158] : memref<8x32xf32, #tpu.memory_space<vmem>>, vector<1x32xf32>
    %cst_159 = arith.constant dense<0.000000e+00> : vector<1x128xf32>
    %402 = tpu.matmul %385, %0, %cst_159 {dimension_numbers = #tpu.dot_dimension_numbers<[1], [0], [0], [1], [0, 0, 1, 1], [], []>} : vector<1x32xf32>, vector<32x128xf32>, vector<1x128xf32> -> vector<1x128xf32>
    %403 = arith.addf %402, %7 : vector<1x128xf32>
    %cst_160 = arith.constant dense<0.000000e+00> : vector<1x128xf32>
    %404 = tpu.matmul %385, %1, %cst_160 {dimension_numbers = #tpu.dot_dimension_numbers<[1], [0], [0], [1], [0, 0, 1, 1], [], []>} : vector<1x32xf32>, vector<32x128xf32>, vector<1x128xf32> -> vector<1x128xf32>
    %405 = arith.addf %404, %8 : vector<1x128xf32>
    %cst_161 = arith.constant dense<0.000000e+00> : vector<1x128xf32>
    %406 = tpu.matmul %401, %2, %cst_161 {dimension_numbers = #tpu.dot_dimension_numbers<[1], [0], [0], [1], [0, 0, 1, 1], [], []>} : vector<1x32xf32>, vector<32x128xf32>, vector<1x128xf32> -> vector<1x128xf32>
    %407 = arith.addf %406, %9 : vector<1x128xf32>
    %408 = vector.extract_strided_slice %407 {offsets = [0, 0], sizes = [1, 10], strides = [1, 1]} : vector<1x128xf32> to vector<1x10xf32>
    %409 = vector.extract_strided_slice %403 {offsets = [0, 0], sizes = [1, 10], strides = [1, 1]} : vector<1x128xf32> to vector<1x10xf32>
    %410 = arith.addf %408, %409 : vector<1x10xf32>
    %cst_162 = arith.constant dense<0xFF800000> : vector<1xf32>
    %411 = vector.multi_reduction <maximumf>, %410, %cst_162 [1] : vector<1x10xf32> to vector<1xf32>
    %412 = vector.shape_cast %411 : vector<1xf32> to vector<1x1xf32>
    %413 = vector.broadcast %412 : vector<1x1xf32> to vector<1x10xf32>
    %414 = arith.subf %410, %413 : vector<1x10xf32>
    %415 = math.exp %414 : vector<1x10xf32>
    %cst_163 = arith.constant dense<0.000000e+00> : vector<1xf32>
    %416 = vector.multi_reduction <add>, %415, %cst_163 [1] : vector<1x10xf32> to vector<1xf32>
    %417 = vector.shape_cast %416 : vector<1xf32> to vector<1x1xf32>
    %418 = tpu.reciprocal %417 {approx = true} : vector<1x1xf32> -> vector<1x1xf32>
    %419 = arith.mulf %417, %418 : vector<1x1xf32>
    %cst_164 = arith.constant 2.000000e+00 : f32
    %420 = vector.broadcast %cst_164 : f32 to vector<1x1xf32>
    %421 = arith.subf %420, %419 : vector<1x1xf32>
    %422 = arith.mulf %418, %421 : vector<1x1xf32>
    %423 = vector.broadcast %422 : vector<1x1xf32> to vector<1x10xf32>
    %424 = arith.mulf %415, %423 : vector<1x10xf32>
    %cst_165 = arith.constant dense<0.000000e+00> : vector<1x32xf32>
    %425 = tpu.matmul %424, %12, %cst_165 {dimension_numbers = #tpu.dot_dimension_numbers<[1], [0], [0], [1], [0, 0, 1, 1], [], []>} : vector<1x10xf32>, vector<10x32xf32>, vector<1x32xf32> -> vector<1x32xf32>
    %c64_i32_166 = arith.constant 64 : i32
    %426 = tpu.dynamic_rotate %407 by %c64_i32_166 dim 1 : vector<1x128xf32>, i32 -> vector<1x128xf32>
    %427 = vector.extract_strided_slice %426 {offsets = [0, 0], sizes = [1, 32], strides = [1, 1]} : vector<1x128xf32> to vector<1x32xf32>
    %cst_167 = arith.constant dense<0.000000e+00> : vector<1x32xf32>
    %428 = tpu.matmul %425, %5, %cst_167 {dimension_numbers = #tpu.dot_dimension_numbers<[1], [0], [0], [1], [0, 0, 1, 1], [], []>} : vector<1x32xf32>, vector<32x32xf32>, vector<1x32xf32> -> vector<1x32xf32>
    %429 = arith.addf %427, %428 : vector<1x32xf32>
    %cst_168 = arith.constant 0.000000e+00 : f32
    %430 = vector.broadcast %cst_168 : f32 to vector<1x32xf32>
    %431 = arith.maximumf %429, %430 : vector<1x32xf32>
    %cst_169 = arith.constant dense<0.000000e+00> : vector<1x128xf32>
    %432 = tpu.matmul %431, %3, %cst_169 {dimension_numbers = #tpu.dot_dimension_numbers<[1], [0], [0], [1], [0, 0, 1, 1], [], []>} : vector<1x32xf32>, vector<32x128xf32>, vector<1x128xf32> -> vector<1x128xf32>
    %cst_170 = arith.constant dense<0.000000e+00> : vector<1x32xf32>
    %433 = tpu.matmul %431, %4, %cst_170 {dimension_numbers = #tpu.dot_dimension_numbers<[1], [0], [0], [1], [0, 0, 1, 1], [], []>} : vector<1x32xf32>, vector<32x32xf32>, vector<1x32xf32> -> vector<1x32xf32>
    %434 = arith.addf %433, %10 : vector<1x32xf32>
    %435 = vector.extract_strided_slice %432 {offsets = [0, 0], sizes = [1, 32], strides = [1, 1]} : vector<1x128xf32> to vector<1x32xf32>
    %c64_i32_171 = arith.constant 64 : i32
    %436 = tpu.dynamic_rotate %403 by %c64_i32_171 dim 1 : vector<1x128xf32>, i32 -> vector<1x128xf32>
    %437 = vector.extract_strided_slice %436 {offsets = [0, 0], sizes = [1, 32], strides = [1, 1]} : vector<1x128xf32> to vector<1x32xf32>
    %438 = arith.addf %435, %437 : vector<1x32xf32>
    %439 = arith.negf %438 : vector<1x32xf32>
    %440 = math.exp %439 : vector<1x32xf32>
    %cst_172 = arith.constant 1.000000e+00 : f32
    %441 = vector.broadcast %cst_172 : f32 to vector<1x32xf32>
    %442 = arith.addf %441, %440 : vector<1x32xf32>
    %443 = arith.divf %441, %442 : vector<1x32xf32>
    %c64_i32_173 = arith.constant 64 : i32
    %444 = tpu.dynamic_rotate %432 by %c64_i32_173 dim 1 : vector<1x128xf32>, i32 -> vector<1x128xf32>
    %445 = vector.extract_strided_slice %444 {offsets = [0, 0], sizes = [1, 32], strides = [1, 1]} : vector<1x128xf32> to vector<1x32xf32>
    %446 = vector.extract_strided_slice %405 {offsets = [0, 0], sizes = [1, 32], strides = [1, 1]} : vector<1x128xf32> to vector<1x32xf32>
    %447 = arith.addf %445, %446 : vector<1x32xf32>
    %448 = arith.negf %447 : vector<1x32xf32>
    %449 = math.exp %448 : vector<1x32xf32>
    %cst_174 = arith.constant 1.000000e+00 : f32
    %450 = vector.broadcast %cst_174 : f32 to vector<1x32xf32>
    %451 = arith.addf %450, %449 : vector<1x32xf32>
    %452 = arith.divf %450, %451 : vector<1x32xf32>
    %c64_i32_175 = arith.constant 64 : i32
    %453 = tpu.dynamic_rotate %405 by %c64_i32_175 dim 1 : vector<1x128xf32>, i32 -> vector<1x128xf32>
    %454 = vector.extract_strided_slice %453 {offsets = [0, 0], sizes = [1, 32], strides = [1, 1]} : vector<1x128xf32> to vector<1x32xf32>
    %455 = arith.mulf %443, %454 : vector<1x32xf32>
    %456 = arith.addf %434, %455 : vector<1x32xf32>
    %457 = math.tanh %456 : vector<1x32xf32>
    %cst_176 = arith.constant 1.000000e+00 : f32
    %458 = vector.broadcast %cst_176 : f32 to vector<1x32xf32>
    %459 = arith.subf %458, %452 : vector<1x32xf32>
    %460 = arith.mulf %459, %457 : vector<1x32xf32>
    %461 = arith.mulf %452, %385 : vector<1x32xf32>
    %462 = arith.addf %460, %461 : vector<1x32xf32>
    %cst_177 = arith.constant dense<0.000000e+00> : vector<1x20xf32>
    %463 = tpu.matmul %462, %6, %cst_177 {dimension_numbers = #tpu.dot_dimension_numbers<[1], [0], [0], [1], [0, 0, 1, 1], [], []>} : vector<1x32xf32>, vector<32x20xf32>, vector<1x20xf32> -> vector<1x20xf32>
    %464 = arith.addf %463, %11 : vector<1x20xf32>
    %cst_178 = arith.constant dense<0xFF800000> : vector<1xf32>
    %465 = vector.multi_reduction <maximumf>, %464, %cst_178 [1] : vector<1x20xf32> to vector<1xf32>
    %466 = vector.shape_cast %465 : vector<1xf32> to vector<1x1xf32>
    %467 = vector.broadcast %466 : vector<1x1xf32> to vector<1x20xf32>
    %468 = arith.subf %464, %467 : vector<1x20xf32>
    %469 = math.exp %468 : vector<1x20xf32>
    %cst_179 = arith.constant dense<0.000000e+00> : vector<1xf32>
    %470 = vector.multi_reduction <add>, %469, %cst_179 [1] : vector<1x20xf32> to vector<1xf32>
    %471 = vector.shape_cast %470 : vector<1xf32> to vector<1x1xf32>
    %472 = math.log %471 : vector<1x1xf32>
    %473 = vector.broadcast %472 : vector<1x1xf32> to vector<1x20xf32>
    %474 = arith.subf %468, %473 : vector<1x20xf32>
    %c5_180 = arith.constant 5 : index
    %c0_181 = arith.constant 0 : index
    %475 = vector.load %arg5[%c5_180, %c0_181] : memref<8x128xf32, #tpu.memory_space<vmem>>, vector<1x20xf32>
    tpu.vector_store %arg5[%c5_180, %c0_181], %474 {strides = array<i32>} : memref<8x128xf32, #tpu.memory_space<vmem>>, vector<1x20xf32>,
    %c5_182 = arith.constant 5 : index
    %c32_183 = arith.constant 32 : index
    %476 = vector.load %arg5[%c5_182, %c32_183] : memref<8x128xf32, #tpu.memory_space<vmem>>, vector<1x32xf32>
    tpu.vector_store %arg5[%c5_182, %c32_183], %462 {strides = array<i32>} : memref<8x128xf32, #tpu.memory_space<vmem>>, vector<1x32xf32>,
    %c5_184 = arith.constant 5 : index
    %c64_185 = arith.constant 64 : index
    %477 = vector.load %arg5[%c5_184, %c64_185] : memref<8x128xf32, #tpu.memory_space<vmem>>, vector<1x10xf32>
    tpu.vector_store %arg5[%c5_184, %c64_185], %424 {strides = array<i32>} : memref<8x128xf32, #tpu.memory_space<vmem>>, vector<1x10xf32>,
    %c6 = arith.constant 6 : index
    %c0_186 = arith.constant 0 : index
    %478 = vector.load %arg1[%c6, %c0_186] : memref<8x32xf32, #tpu.memory_space<vmem>>, vector<1x32xf32>
    %cst_187 = arith.constant dense<0.000000e+00> : vector<1x128xf32>
    %479 = tpu.matmul %462, %0, %cst_187 {dimension_numbers = #tpu.dot_dimension_numbers<[1], [0], [0], [1], [0, 0, 1, 1], [], []>} : vector<1x32xf32>, vector<32x128xf32>, vector<1x128xf32> -> vector<1x128xf32>
    %480 = arith.addf %479, %7 : vector<1x128xf32>
    %cst_188 = arith.constant dense<0.000000e+00> : vector<1x128xf32>
    %481 = tpu.matmul %462, %1, %cst_188 {dimension_numbers = #tpu.dot_dimension_numbers<[1], [0], [0], [1], [0, 0, 1, 1], [], []>} : vector<1x32xf32>, vector<32x128xf32>, vector<1x128xf32> -> vector<1x128xf32>
    %482 = arith.addf %481, %8 : vector<1x128xf32>
    %cst_189 = arith.constant dense<0.000000e+00> : vector<1x128xf32>
    %483 = tpu.matmul %478, %2, %cst_189 {dimension_numbers = #tpu.dot_dimension_numbers<[1], [0], [0], [1], [0, 0, 1, 1], [], []>} : vector<1x32xf32>, vector<32x128xf32>, vector<1x128xf32> -> vector<1x128xf32>
    %484 = arith.addf %483, %9 : vector<1x128xf32>
    %485 = vector.extract_strided_slice %484 {offsets = [0, 0], sizes = [1, 10], strides = [1, 1]} : vector<1x128xf32> to vector<1x10xf32>
    %486 = vector.extract_strided_slice %480 {offsets = [0, 0], sizes = [1, 10], strides = [1, 1]} : vector<1x128xf32> to vector<1x10xf32>
    %487 = arith.addf %485, %486 : vector<1x10xf32>
    %cst_190 = arith.constant dense<0xFF800000> : vector<1xf32>
    %488 = vector.multi_reduction <maximumf>, %487, %cst_190 [1] : vector<1x10xf32> to vector<1xf32>
    %489 = vector.shape_cast %488 : vector<1xf32> to vector<1x1xf32>
    %490 = vector.broadcast %489 : vector<1x1xf32> to vector<1x10xf32>
    %491 = arith.subf %487, %490 : vector<1x10xf32>
    %492 = math.exp %491 : vector<1x10xf32>
    %cst_191 = arith.constant dense<0.000000e+00> : vector<1xf32>
    %493 = vector.multi_reduction <add>, %492, %cst_191 [1] : vector<1x10xf32> to vector<1xf32>
    %494 = vector.shape_cast %493 : vector<1xf32> to vector<1x1xf32>
    %495 = tpu.reciprocal %494 {approx = true} : vector<1x1xf32> -> vector<1x1xf32>
    %496 = arith.mulf %494, %495 : vector<1x1xf32>
    %cst_192 = arith.constant 2.000000e+00 : f32
    %497 = vector.broadcast %cst_192 : f32 to vector<1x1xf32>
    %498 = arith.subf %497, %496 : vector<1x1xf32>
    %499 = arith.mulf %495, %498 : vector<1x1xf32>
    %500 = vector.broadcast %499 : vector<1x1xf32> to vector<1x10xf32>
    %501 = arith.mulf %492, %500 : vector<1x10xf32>
    %cst_193 = arith.constant dense<0.000000e+00> : vector<1x32xf32>
    %502 = tpu.matmul %501, %12, %cst_193 {dimension_numbers = #tpu.dot_dimension_numbers<[1], [0], [0], [1], [0, 0, 1, 1], [], []>} : vector<1x10xf32>, vector<10x32xf32>, vector<1x32xf32> -> vector<1x32xf32>
    %c64_i32_194 = arith.constant 64 : i32
    %503 = tpu.dynamic_rotate %484 by %c64_i32_194 dim 1 : vector<1x128xf32>, i32 -> vector<1x128xf32>
    %504 = vector.extract_strided_slice %503 {offsets = [0, 0], sizes = [1, 32], strides = [1, 1]} : vector<1x128xf32> to vector<1x32xf32>
    %cst_195 = arith.constant dense<0.000000e+00> : vector<1x32xf32>
    %505 = tpu.matmul %502, %5, %cst_195 {dimension_numbers = #tpu.dot_dimension_numbers<[1], [0], [0], [1], [0, 0, 1, 1], [], []>} : vector<1x32xf32>, vector<32x32xf32>, vector<1x32xf32> -> vector<1x32xf32>
    %506 = arith.addf %504, %505 : vector<1x32xf32>
    %cst_196 = arith.constant 0.000000e+00 : f32
    %507 = vector.broadcast %cst_196 : f32 to vector<1x32xf32>
    %508 = arith.maximumf %506, %507 : vector<1x32xf32>
    %cst_197 = arith.constant dense<0.000000e+00> : vector<1x128xf32>
    %509 = tpu.matmul %508, %3, %cst_197 {dimension_numbers = #tpu.dot_dimension_numbers<[1], [0], [0], [1], [0, 0, 1, 1], [], []>} : vector<1x32xf32>, vector<32x128xf32>, vector<1x128xf32> -> vector<1x128xf32>
    %cst_198 = arith.constant dense<0.000000e+00> : vector<1x32xf32>
    %510 = tpu.matmul %508, %4, %cst_198 {dimension_numbers = #tpu.dot_dimension_numbers<[1], [0], [0], [1], [0, 0, 1, 1], [], []>} : vector<1x32xf32>, vector<32x32xf32>, vector<1x32xf32> -> vector<1x32xf32>
    %511 = arith.addf %510, %10 : vector<1x32xf32>
    %512 = vector.extract_strided_slice %509 {offsets = [0, 0], sizes = [1, 32], strides = [1, 1]} : vector<1x128xf32> to vector<1x32xf32>
    %c64_i32_199 = arith.constant 64 : i32
    %513 = tpu.dynamic_rotate %480 by %c64_i32_199 dim 1 : vector<1x128xf32>, i32 -> vector<1x128xf32>
    %514 = vector.extract_strided_slice %513 {offsets = [0, 0], sizes = [1, 32], strides = [1, 1]} : vector<1x128xf32> to vector<1x32xf32>
    %515 = arith.addf %512, %514 : vector<1x32xf32>
    %516 = arith.negf %515 : vector<1x32xf32>
    %517 = math.exp %516 : vector<1x32xf32>
    %cst_200 = arith.constant 1.000000e+00 : f32
    %518 = vector.broadcast %cst_200 : f32 to vector<1x32xf32>
    %519 = arith.addf %518, %517 : vector<1x32xf32>
    %520 = arith.divf %518, %519 : vector<1x32xf32>
    %c64_i32_201 = arith.constant 64 : i32
    %521 = tpu.dynamic_rotate %509 by %c64_i32_201 dim 1 : vector<1x128xf32>, i32 -> vector<1x128xf32>
    %522 = vector.extract_strided_slice %521 {offsets = [0, 0], sizes = [1, 32], strides = [1, 1]} : vector<1x128xf32> to vector<1x32xf32>
    %523 = vector.extract_strided_slice %482 {offsets = [0, 0], sizes = [1, 32], strides = [1, 1]} : vector<1x128xf32> to vector<1x32xf32>
    %524 = arith.addf %522, %523 : vector<1x32xf32>
    %525 = arith.negf %524 : vector<1x32xf32>
    %526 = math.exp %525 : vector<1x32xf32>
    %cst_202 = arith.constant 1.000000e+00 : f32
    %527 = vector.broadcast %cst_202 : f32 to vector<1x32xf32>
    %528 = arith.addf %527, %526 : vector<1x32xf32>
    %529 = arith.divf %527, %528 : vector<1x32xf32>
    %c64_i32_203 = arith.constant 64 : i32
    %530 = tpu.dynamic_rotate %482 by %c64_i32_203 dim 1 : vector<1x128xf32>, i32 -> vector<1x128xf32>
    %531 = vector.extract_strided_slice %530 {offsets = [0, 0], sizes = [1, 32], strides = [1, 1]} : vector<1x128xf32> to vector<1x32xf32>
    %532 = arith.mulf %520, %531 : vector<1x32xf32>
    %533 = arith.addf %511, %532 : vector<1x32xf32>
    %534 = math.tanh %533 : vector<1x32xf32>
    %cst_204 = arith.constant 1.000000e+00 : f32
    %535 = vector.broadcast %cst_204 : f32 to vector<1x32xf32>
    %536 = arith.subf %535, %529 : vector<1x32xf32>
    %537 = arith.mulf %536, %534 : vector<1x32xf32>
    %538 = arith.mulf %529, %462 : vector<1x32xf32>
    %539 = arith.addf %537, %538 : vector<1x32xf32>
    %cst_205 = arith.constant dense<0.000000e+00> : vector<1x20xf32>
    %540 = tpu.matmul %539, %6, %cst_205 {dimension_numbers = #tpu.dot_dimension_numbers<[1], [0], [0], [1], [0, 0, 1, 1], [], []>} : vector<1x32xf32>, vector<32x20xf32>, vector<1x20xf32> -> vector<1x20xf32>
    %541 = arith.addf %540, %11 : vector<1x20xf32>
    %cst_206 = arith.constant dense<0xFF800000> : vector<1xf32>
    %542 = vector.multi_reduction <maximumf>, %541, %cst_206 [1] : vector<1x20xf32> to vector<1xf32>
    %543 = vector.shape_cast %542 : vector<1xf32> to vector<1x1xf32>
    %544 = vector.broadcast %543 : vector<1x1xf32> to vector<1x20xf32>
    %545 = arith.subf %541, %544 : vector<1x20xf32>
    %546 = math.exp %545 : vector<1x20xf32>
    %cst_207 = arith.constant dense<0.000000e+00> : vector<1xf32>
    %547 = vector.multi_reduction <add>, %546, %cst_207 [1] : vector<1x20xf32> to vector<1xf32>
    %548 = vector.shape_cast %547 : vector<1xf32> to vector<1x1xf32>
    %549 = math.log %548 : vector<1x1xf32>
    %550 = vector.broadcast %549 : vector<1x1xf32> to vector<1x20xf32>
    %551 = arith.subf %545, %550 : vector<1x20xf32>
    %c6_208 = arith.constant 6 : index
    %c0_209 = arith.constant 0 : index
    %552 = vector.load %arg5[%c6_208, %c0_209] : memref<8x128xf32, #tpu.memory_space<vmem>>, vector<1x20xf32>
    tpu.vector_store %arg5[%c6_208, %c0_209], %551 {strides = array<i32>} : memref<8x128xf32, #tpu.memory_space<vmem>>, vector<1x20xf32>,
    %c6_210 = arith.constant 6 : index
    %c32_211 = arith.constant 32 : index
    %553 = vector.load %arg5[%c6_210, %c32_211] : memref<8x128xf32, #tpu.memory_space<vmem>>, vector<1x32xf32>
    tpu.vector_store %arg5[%c6_210, %c32_211], %539 {strides = array<i32>} : memref<8x128xf32, #tpu.memory_space<vmem>>, vector<1x32xf32>,
    %c6_212 = arith.constant 6 : index
    %c64_213 = arith.constant 64 : index
    %554 = vector.load %arg5[%c6_212, %c64_213] : memref<8x128xf32, #tpu.memory_space<vmem>>, vector<1x10xf32>
    tpu.vector_store %arg5[%c6_212, %c64_213], %501 {strides = array<i32>} : memref<8x128xf32, #tpu.memory_space<vmem>>, vector<1x10xf32>,
    %c7 = arith.constant 7 : index
    %c0_214 = arith.constant 0 : index
    %555 = vector.load %arg1[%c7, %c0_214] : memref<8x32xf32, #tpu.memory_space<vmem>>, vector<1x32xf32>
    %cst_215 = arith.constant dense<0.000000e+00> : vector<1x128xf32>
    %556 = tpu.matmul %539, %0, %cst_215 {dimension_numbers = #tpu.dot_dimension_numbers<[1], [0], [0], [1], [0, 0, 1, 1], [], []>} : vector<1x32xf32>, vector<32x128xf32>, vector<1x128xf32> -> vector<1x128xf32>
    %557 = arith.addf %556, %7 : vector<1x128xf32>
    %cst_216 = arith.constant dense<0.000000e+00> : vector<1x128xf32>
    %558 = tpu.matmul %539, %1, %cst_216 {dimension_numbers = #tpu.dot_dimension_numbers<[1], [0], [0], [1], [0, 0, 1, 1], [], []>} : vector<1x32xf32>, vector<32x128xf32>, vector<1x128xf32> -> vector<1x128xf32>
    %559 = arith.addf %558, %8 : vector<1x128xf32>
    %cst_217 = arith.constant dense<0.000000e+00> : vector<1x128xf32>
    %560 = tpu.matmul %555, %2, %cst_217 {dimension_numbers = #tpu.dot_dimension_numbers<[1], [0], [0], [1], [0, 0, 1, 1], [], []>} : vector<1x32xf32>, vector<32x128xf32>, vector<1x128xf32> -> vector<1x128xf32>
    %561 = arith.addf %560, %9 : vector<1x128xf32>
    %562 = vector.extract_strided_slice %561 {offsets = [0, 0], sizes = [1, 10], strides = [1, 1]} : vector<1x128xf32> to vector<1x10xf32>
    %563 = vector.extract_strided_slice %557 {offsets = [0, 0], sizes = [1, 10], strides = [1, 1]} : vector<1x128xf32> to vector<1x10xf32>
    %564 = arith.addf %562, %563 : vector<1x10xf32>
    %cst_218 = arith.constant dense<0xFF800000> : vector<1xf32>
    %565 = vector.multi_reduction <maximumf>, %564, %cst_218 [1] : vector<1x10xf32> to vector<1xf32>
    %566 = vector.shape_cast %565 : vector<1xf32> to vector<1x1xf32>
    %567 = vector.broadcast %566 : vector<1x1xf32> to vector<1x10xf32>
    %568 = arith.subf %564, %567 : vector<1x10xf32>
    %569 = math.exp %568 : vector<1x10xf32>
    %cst_219 = arith.constant dense<0.000000e+00> : vector<1xf32>
    %570 = vector.multi_reduction <add>, %569, %cst_219 [1] : vector<1x10xf32> to vector<1xf32>
    %571 = vector.shape_cast %570 : vector<1xf32> to vector<1x1xf32>
    %572 = tpu.reciprocal %571 {approx = true} : vector<1x1xf32> -> vector<1x1xf32>
    %573 = arith.mulf %571, %572 : vector<1x1xf32>
    %cst_220 = arith.constant 2.000000e+00 : f32
    %574 = vector.broadcast %cst_220 : f32 to vector<1x1xf32>
    %575 = arith.subf %574, %573 : vector<1x1xf32>
    %576 = arith.mulf %572, %575 : vector<1x1xf32>
    %577 = vector.broadcast %576 : vector<1x1xf32> to vector<1x10xf32>
    %578 = arith.mulf %569, %577 : vector<1x10xf32>
    %cst_221 = arith.constant dense<0.000000e+00> : vector<1x32xf32>
    %579 = tpu.matmul %578, %12, %cst_221 {dimension_numbers = #tpu.dot_dimension_numbers<[1], [0], [0], [1], [0, 0, 1, 1], [], []>} : vector<1x10xf32>, vector<10x32xf32>, vector<1x32xf32> -> vector<1x32xf32>
    %c64_i32_222 = arith.constant 64 : i32
    %580 = tpu.dynamic_rotate %561 by %c64_i32_222 dim 1 : vector<1x128xf32>, i32 -> vector<1x128xf32>
    %581 = vector.extract_strided_slice %580 {offsets = [0, 0], sizes = [1, 32], strides = [1, 1]} : vector<1x128xf32> to vector<1x32xf32>
    %cst_223 = arith.constant dense<0.000000e+00> : vector<1x32xf32>
    %582 = tpu.matmul %579, %5, %cst_223 {dimension_numbers = #tpu.dot_dimension_numbers<[1], [0], [0], [1], [0, 0, 1, 1], [], []>} : vector<1x32xf32>, vector<32x32xf32>, vector<1x32xf32> -> vector<1x32xf32>
    %583 = arith.addf %581, %582 : vector<1x32xf32>
    %cst_224 = arith.constant 0.000000e+00 : f32
    %584 = vector.broadcast %cst_224 : f32 to vector<1x32xf32>
    %585 = arith.maximumf %583, %584 : vector<1x32xf32>
    %cst_225 = arith.constant dense<0.000000e+00> : vector<1x128xf32>
    %586 = tpu.matmul %585, %3, %cst_225 {dimension_numbers = #tpu.dot_dimension_numbers<[1], [0], [0], [1], [0, 0, 1, 1], [], []>} : vector<1x32xf32>, vector<32x128xf32>, vector<1x128xf32> -> vector<1x128xf32>
    %cst_226 = arith.constant dense<0.000000e+00> : vector<1x32xf32>
    %587 = tpu.matmul %585, %4, %cst_226 {dimension_numbers = #tpu.dot_dimension_numbers<[1], [0], [0], [1], [0, 0, 1, 1], [], []>} : vector<1x32xf32>, vector<32x32xf32>, vector<1x32xf32> -> vector<1x32xf32>
    %588 = arith.addf %587, %10 : vector<1x32xf32>
    %589 = vector.extract_strided_slice %586 {offsets = [0, 0], sizes = [1, 32], strides = [1, 1]} : vector<1x128xf32> to vector<1x32xf32>
    %c64_i32_227 = arith.constant 64 : i32
    %590 = tpu.dynamic_rotate %557 by %c64_i32_227 dim 1 : vector<1x128xf32>, i32 -> vector<1x128xf32>
    %591 = vector.extract_strided_slice %590 {offsets = [0, 0], sizes = [1, 32], strides = [1, 1]} : vector<1x128xf32> to vector<1x32xf32>
    %592 = arith.addf %589, %591 : vector<1x32xf32>
    %593 = arith.negf %592 : vector<1x32xf32>
    %594 = math.exp %593 : vector<1x32xf32>
    %cst_228 = arith.constant 1.000000e+00 : f32
    %595 = vector.broadcast %cst_228 : f32 to vector<1x32xf32>
    %596 = arith.addf %595, %594 : vector<1x32xf32>
    %597 = arith.divf %595, %596 : vector<1x32xf32>
    %c64_i32_229 = arith.constant 64 : i32
    %598 = tpu.dynamic_rotate %586 by %c64_i32_229 dim 1 : vector<1x128xf32>, i32 -> vector<1x128xf32>
    %599 = vector.extract_strided_slice %598 {offsets = [0, 0], sizes = [1, 32], strides = [1, 1]} : vector<1x128xf32> to vector<1x32xf32>
    %600 = vector.extract_strided_slice %559 {offsets = [0, 0], sizes = [1, 32], strides = [1, 1]} : vector<1x128xf32> to vector<1x32xf32>
    %601 = arith.addf %599, %600 : vector<1x32xf32>
    %602 = arith.negf %601 : vector<1x32xf32>
    %603 = math.exp %602 : vector<1x32xf32>
    %cst_230 = arith.constant 1.000000e+00 : f32
    %604 = vector.broadcast %cst_230 : f32 to vector<1x32xf32>
    %605 = arith.addf %604, %603 : vector<1x32xf32>
    %606 = arith.divf %604, %605 : vector<1x32xf32>
    %c64_i32_231 = arith.constant 64 : i32
    %607 = tpu.dynamic_rotate %559 by %c64_i32_231 dim 1 : vector<1x128xf32>, i32 -> vector<1x128xf32>
    %608 = vector.extract_strided_slice %607 {offsets = [0, 0], sizes = [1, 32], strides = [1, 1]} : vector<1x128xf32> to vector<1x32xf32>
    %609 = arith.mulf %597, %608 : vector<1x32xf32>
    %610 = arith.addf %588, %609 : vector<1x32xf32>
    %611 = math.tanh %610 : vector<1x32xf32>
    %cst_232 = arith.constant 1.000000e+00 : f32
    %612 = vector.broadcast %cst_232 : f32 to vector<1x32xf32>
    %613 = arith.subf %612, %606 : vector<1x32xf32>
    %614 = arith.mulf %613, %611 : vector<1x32xf32>
    %615 = arith.mulf %606, %539 : vector<1x32xf32>
    %616 = arith.addf %614, %615 : vector<1x32xf32>
    %cst_233 = arith.constant dense<0.000000e+00> : vector<1x20xf32>
    %617 = tpu.matmul %616, %6, %cst_233 {dimension_numbers = #tpu.dot_dimension_numbers<[1], [0], [0], [1], [0, 0, 1, 1], [], []>} : vector<1x32xf32>, vector<32x20xf32>, vector<1x20xf32> -> vector<1x20xf32>
    %618 = arith.addf %617, %11 : vector<1x20xf32>
    %cst_234 = arith.constant dense<0xFF800000> : vector<1xf32>
    %619 = vector.multi_reduction <maximumf>, %618, %cst_234 [1] : vector<1x20xf32> to vector<1xf32>
    %620 = vector.shape_cast %619 : vector<1xf32> to vector<1x1xf32>
    %621 = vector.broadcast %620 : vector<1x1xf32> to vector<1x20xf32>
    %622 = arith.subf %618, %621 : vector<1x20xf32>
    %623 = math.exp %622 : vector<1x20xf32>
    %cst_235 = arith.constant dense<0.000000e+00> : vector<1xf32>
    %624 = vector.multi_reduction <add>, %623, %cst_235 [1] : vector<1x20xf32> to vector<1xf32>
    %625 = vector.shape_cast %624 : vector<1xf32> to vector<1x1xf32>
    %626 = math.log %625 : vector<1x1xf32>
    %627 = vector.broadcast %626 : vector<1x1xf32> to vector<1x20xf32>
    %628 = arith.subf %622, %627 : vector<1x20xf32>
    %c7_236 = arith.constant 7 : index
    %c0_237 = arith.constant 0 : index
    %629 = vector.load %arg5[%c7_236, %c0_237] : memref<8x128xf32, #tpu.memory_space<vmem>>, vector<1x20xf32>
    tpu.vector_store %arg5[%c7_236, %c0_237], %628 {strides = array<i32>} : memref<8x128xf32, #tpu.memory_space<vmem>>, vector<1x20xf32>,
    %c7_238 = arith.constant 7 : index
    %c32_239 = arith.constant 32 : index
    %630 = vector.load %arg5[%c7_238, %c32_239] : memref<8x128xf32, #tpu.memory_space<vmem>>, vector<1x32xf32>
    tpu.vector_store %arg5[%c7_238, %c32_239], %616 {strides = array<i32>} : memref<8x128xf32, #tpu.memory_space<vmem>>, vector<1x32xf32>,
    %c7_240 = arith.constant 7 : index
    %c64_241 = arith.constant 64 : index
    %631 = vector.load %arg5[%c7_240, %c64_241] : memref<8x128xf32, #tpu.memory_space<vmem>>, vector<1x10xf32>
    tpu.vector_store %arg5[%c7_240, %c64_241], %578 {strides = array<i32>} : memref<8x128xf32, #tpu.memory_space<vmem>>, vector<1x10xf32>,
    return
  }
  func.func @transform_0(%arg0: i32) -> (i32, i32) {
    %c0_i32 = arith.constant 0 : i32
    %c0_i32_0 = arith.constant 0 : i32
    %c0_i32_1 = arith.constant 0 : i32
    return %c0_i32, %c0_i32_0 : i32, i32
  }
  func.func @transform_1(%arg0: i32) -> (i32, i32) {
    %c0_i32 = arith.constant 0 : i32
    %c0_i32_0 = arith.constant 0 : i32
    %c0_i32_1 = arith.constant 0 : i32
    return %c0_i32, %c0_i32_0 : i32, i32
  }
  func.func @transform_2(%arg0: i32) -> (i32, i32) {
    %c0_i32 = arith.constant 0 : i32
    %c0_i32_0 = arith.constant 0 : i32
    %c0_i32_1 = arith.constant 0 : i32
    return %c0_i32, %c0_i32_0 : i32, i32
  }
  func.func @transform_3(%arg0: i32) -> (i32, i32) {
    %c0_i32 = arith.constant 0 : i32
    %c0_i32_0 = arith.constant 0 : i32
    %c0_i32_1 = arith.constant 0 : i32
    return %c0_i32, %c0_i32_0 : i32, i32
  }
  func.func @transform_4(%arg0: i32) -> (i32, i32) {
    %c0_i32 = arith.constant 0 : i32
    %c0_i32_0 = arith.constant 0 : i32
    %c0_i32_1 = arith.constant 0 : i32
    return %c0_i32, %c0_i32_0 : i32, i32
  }
}

</mosaic_0001>

<llo_original>
// kernel: attn_decoder_decode.1
$region0: #{attn_decoder_decode.1}
  #allocation0 [shape = 'u32[]', space=smem, size = 0x4, offset = 0x4, fixed_abs, tag = 'smem constant byte address 0x4 - core index']
  #allocation1 [shape = 'u32[144,128]{1,0:T(1,128)}', space=vmem, size = 0x12000, scoped, tag = 'internal scratch']
  %s0 = inlined_call_operand.vmem [shape: f32[8,32], index: 0, kind: input, shape index: {}]
  %s1 = inlined_call_operand.vmem [shape: f32[1,32], index: 1, kind: input, shape index: {}]
  %s2 = inlined_call_operand.vmem [shape: f32[10,32], index: 2, kind: input, shape index: {}]
  %s3 = inlined_call_operand.hbm [shape: f32[232,128], index: 3, kind: input, shape index: {}]
  %s4 = inlined_call_operand.vmem [shape: f32[8,128], index: 4, kind: output, shape index: {}]
  %s5 = sld [smem:[#allocation0]]
  $region30: #{attn_decoder_decode.1} parent=0
    _
  %s7 = ssub.s32 1, %s5
  %s8 = scalar_select 0, %s7, %s5
  $region1: #{attn_decoder_decode.1} parent=0
    #allocation2 [shape = 'u8[118784]{0}', space=vmem, size = 0x1d000, scoped, tag = 'input window, operand 3, single buffered']
    #allocation3 [shape = 's32[1]{0}', space=sflag, size = 0x4, scoped, tag = 'scoped memory for attn_decoder_decode.1']
    %9 = vsyncpa [#allocation3], 0
    // Predicated region
    $region2: #{attn_decoder_decode.1} parent=1 // pred_check
      _
    $region3: #{attn_decoder_decode.1} parent=1 // pred_check_branch
      %11 = sbr.rel (0) target = $region5
    $region4: #{attn_decoder_decode.1} parent=1 // pred_region
      _
    $region5: #{attn_decoder_decode.1} parent=1 // pred_fallthru
      _
    // Predicated region
    $region6: #{attn_decoder_decode.1} parent=1 // pred_check
      _
    $region7: #{attn_decoder_decode.1} parent=1 // pred_check_branch
      %13 = sbr.rel (0) target = $region9
    $region8: #{attn_decoder_decode.1} parent=1 // pred_region
      _
    $region9: #{attn_decoder_decode.1} parent=1 // pred_fallthru
      _
    // Predicated region
    $region10: #{attn_decoder_decode.1} parent=1 // pred_check
      _
    $region11: #{attn_decoder_decode.1} parent=1 // pred_check_branch
      %15 = sbr.rel (0) target = $region13
    $region12: #{attn_decoder_decode.1} parent=1 // pred_region
      _
    $region13: #{attn_decoder_decode.1} parent=1 // pred_fallthru
      _
    // Predicated region
    $region14: #{attn_decoder_decode.1} parent=1 // pred_check
      _
    $region15: #{attn_decoder_decode.1} parent=1 // pred_check_branch
      %17 = sbr.rel (0) target = $region17
    $region16: #{attn_decoder_decode.1} parent=1 // pred_region
      %s19 = ssub.s32 3712, 3712
      %20 = vsyncadd [#allocation3], %s19
      %s21 = sshll.u32 [#allocation2], 4
      %s22 = int_to_ptr.vmem [resolvable:$true] %s21
      %27 = dma.hbm_to_vmem [thread:$0]  %s3, 3712, %s22, [#allocation3], 128, 128, 8
    $region17: #{attn_decoder_decode.1} parent=1 // pred_fallthru
      _
    // Predicated region
    $region18: #{attn_decoder_decode.1} parent=1 // pred_check
      _
    $region19: #{attn_decoder_decode.1} parent=1 // pred_check_branch
      %29 = sbr.rel (0) target = $region21
    $region20: #{attn_decoder_decode.1} parent=1 // pred_region
      %30 = dma.done [#allocation3], 3712
    $region21: #{attn_decoder_decode.1} parent=1 // pred_fallthru
      _
    %v31 = vld [vmem:[#allocation2] sm:$0xff]
    %v32 = vld [vmem:[#allocation2 + $0x8] sm:$0xff]
    %v33 = vld [vmem:[#allocation2 + $0x10] sm:$0xff]
    %v34 = vld [vmem:[#allocation2 + $0x18] sm:$0xff]
    %v35 = vld [vmem:[#allocation2 + $0x20] sm:$0xff]
    %v36 = vld [vmem:[#allocation2 + $0x28] sm:$0xff]
    %v37 = vld [vmem:[#allocation2 + $0x30] sm:$0xff]
    %v38 = vld [vmem:[#allocation2 + $0x38] sm:$0xff]
    %v39 = vld [vmem:[#allocation2 + $0x40] sm:$0xff]
    %v40 = vld [vmem:[#allocation2 + $0x48] sm:$0xff]
    %v41 = vld [vmem:[#allocation2 + $0x50] sm:$0xff]
    %v42 = vld [vmem:[#allocation2 + $0x58] sm:$0xff]
    %v43 = vld [vmem:[#allocation2 + $0x60] sm:$0xff]
    %v44 = vld [vmem:[#allocation2 + $0x68] sm:$0xff]
    %v45 = vld [vmem:[#allocation2 + $0x70] sm:$0xff]
    %v46 = vld [vmem:[#allocation2 + $0x78] sm:$0xff]
    %v47 = vld [vmem:[#allocation2 + $0x80] sm:$0xff]
    %v48 = vld [vmem:[#allocation2 + $0x88] sm:$0xff]
    %v49 = vld [vmem:[#allocation2 + $0x90] sm:$0xff]
    %v50 = vld [vmem:[#allocation2 + $0x98] sm:$0xff]
    %v51 = vld [vmem:[#allocation2 + $0xa0] sm:$0xff]
    %v52 = vld [vmem:[#allocation2 + $0xa8] sm:$0xff]
    %v53 = vld [vmem:[#allocation2 + $0xb0] sm:$0xff]
    %v54 = vld [vmem:[#allocation2 + $0xb8] sm:$0xff]
    %v55 = vld [vmem:[#allocation2 + $0xc0] sm:$0xff]
    %v56 = vld [vmem:[#allocation2 + $0xc8] sm:$0xff]
    %v57 = vld [vmem:[#allocation2 + $0xd0] sm:$0xff]
    %v58 = vld [vmem:[#allocation2 + $0xd8] sm:$0xff]
    %v59 = vld [vmem:[#allocation2 + $0xe0] sm:$0x1]
    %v60 = vld [vmem:[#allocation2 + $0xe1] sm:$0x1]
    %v61 = vld [vmem:[#allocation2 + $0xe2] sm:$0x1]
    %v62 = vld [vmem:[#allocation2 + $0xe3] sm:$0x1]
    %v63 = vld [vmem:[#allocation2 + $0xe4] sm:$0x1]
    %v64 = vld [vmem:[%s2] sm:$0xff]
    %v65 = vld [vmem:[%s2 + $0x8] sm:$0x3]
    %66 = vst [vmem:[%s4] sm:$0xff] 0.0
    %v67 = vld [vmem:[%s1] sm:$0x1]
    %v68 = vld [vmem:[%s0] sm:$0x1]
    %vm69 = vcmask 261120
    %v71 = vsel %vm69, %v67, 0
    %73 = vmatprep.subr.mxu0 0.0
    %74 = vmatpush1.msra.mxu0 0.0
    %75 = vmatprep.subr.mxu0 0.0
    %76 = vmatpush1.msra.mxu0 0.0
    %77 = vmatprep.subr.mxu0 0.0
    %78 = vmatpush1.msra.mxu0 0.0
    %79 = vmatprep.subr.mxu0 0.0
    %80 = vmatpush1.msra.mxu0 0.0
    %81 = vmatprep.subr.mxu0 0.0
    %82 = vmatpush1.msra.mxu0 0.0
    %83 = vmatprep.subr.mxu0 0.0
    %84 = vmatpush1.msra.mxu0 0.0
    %85 = vmatprep.subr.mxu0 0.0
    %86 = vmatpush1.msra.mxu0 0.0
    %87 = vmatprep.subr.mxu0 0.0
    %88 = vmatpush1.msra.mxu0 0.0
    %89 = vmatprep.subr.mxu0 0.0
    %90 = vmatpush1.msra.mxu0 0.0
    %91 = vmatprep.subr.mxu0 0.0
    %92 = vmatpush1.msra.mxu0 0.0
    %93 = vmatprep.subr.mxu0 0.0
    %94 = vmatpush1.msra.mxu0 0.0
    %95 = vmatprep.subr.mxu0 0.0
    %96 = vmatpush1.msra.mxu0 0.0
    %97 = vmatprep.subr.mxu0 0.0
    %98 = vmatpush1.msra.mxu0 %v34
    %99 = vmatprep.subr.mxu0 0.0
    %100 = vmatpush1.msra.mxu0 %v33
    %101 = vmatprep.subr.mxu0 0.0
    %102 = vmatpush1.msra.mxu0 %v32
    %103 = vmatprep.subr.mxu0 0.0
    %104 = vmatpush1.msra.mxu0 %v31
    %105 = vmatprep.subr.mxu0 0.0
    %106 = vmatpush2.msra.mxu0 0.0
    %107 = vmatprep.subr.mxu0 0.0
    %108 = vmatpush2.msra.mxu0 0.0
    %109 = vmatprep.subr.mxu0 0.0
    %110 = vmatpush2.msra.mxu0 0.0
    %111 = vmatprep.subr.mxu0 0.0
    %112 = vmatpush2.msra.mxu0 0.0
    %113 = vmatprep.subr.mxu0 0.0
    %114 = vmatpush2.msra.mxu0 0.0
    %115 = vmatprep.subr.mxu0 0.0
    %116 = vmatpush2.msra.mxu0 0.0
    %117 = vmatprep.subr.mxu0 0.0
    %118 = vmatpush2.msra.mxu0 0.0
    %119 = vmatprep.subr.mxu0 0.0
    %120 = vmatpush2.msra.mxu0 0.0
    %121 = vmatprep.subr.mxu0 0.0
    %122 = vmatpush2.msra.mxu0 0.0
    %123 = vmatprep.subr.mxu0 0.0
    %124 = vmatpush2.msra.mxu0 0.0
    %125 = vmatprep.subr.mxu0 0.0
    %126 = vmatpush2.msra.mxu0 0.0
    %127 = vmatprep.subr.mxu0 0.0
    %128 = vmatpush2.msra.mxu0 0.0
    %129 = vmatprep.subr.mxu0 0.0
    %130 = vmatpush2.msra.mxu0 0.0
    %131 = vmatprep.subr.mxu0 0.0
    %132 = vmatpush2.msra.mxu0 0.0
    %133 = vmatprep.subr.mxu0 0.0
    %134 = vmatpush2.msra.mxu0 0.0
    %135 = vmatprep.subr.mxu0 0.0
    %136 = vmatpush2.msra.mxu0 0.0
    %137 = vmatprep.mubr.f32.mxu0 0.0
    %138 = vmatmul.mubr.f32.gmra.mxu0 %v71
    %v139 = vpop.f32.mrf.mxu0
    %v140 = vadd.f32 %v59, %v139
    %v141 = vpop.f32.mrf.mxu0
    %142 = vdwg.mxu0
    %143 = vmatprep.subr.mxu0 0.0
    %144 = vmatpush1.msra.mxu0 0.0
    %145 = vmatprep.subr.mxu0 0.0
    %146 = vmatpush1.msra.mxu0 0.0
    %147 = vmatprep.subr.mxu0 0.0
    %148 = vmatpush1.msra.mxu0 0.0
    %149 = vmatprep.subr.mxu0 0.0
    %150 = vmatpush1.msra.mxu0 0.0
    %151 = vmatprep.subr.mxu0 0.0
    %152 = vmatpush1.msra.mxu0 0.0
    %153 = vmatprep.subr.mxu0 0.0
    %154 = vmatpush1.msra.mxu0 0.0
    %155 = vmatprep.subr.mxu0 0.0
    %156 = vmatpush1.msra.mxu0 0.0
    %157 = vmatprep.subr.mxu0 0.0
    %158 = vmatpush1.msra.mxu0 0.0
    %159 = vmatprep.subr.mxu0 0.0
    %160 = vmatpush1.msra.mxu0 0.0
    %161 = vmatprep.subr.mxu0 0.0
    %162 = vmatpush1.msra.mxu0 0.0
    %163 = vmatprep.subr.mxu0 0.0
    %164 = vmatpush1.msra.mxu0 0.0
    %165 = vmatprep.subr.mxu0 0.0
    %166 = vmatpush1.msra.mxu0 0.0
    %167 = vmatprep.subr.mxu0 0.0
    %168 = vmatpush1.msra.mxu0 %v38
    %169 = vmatprep.subr.mxu0 0.0
    %170 = vmatpush1.msra.mxu0 %v37
    %171 = vmatprep.subr.mxu0 0.0
    %172 = vmatpush1.msra.mxu0 %v36
    %173 = vmatprep.subr.mxu0 0.0
    %174 = vmatpush1.msra.mxu0 %v35
    %175 = vmatprep.subr.mxu0 0.0
    %176 = vmatpush2.msra.mxu0 0.0
    %177 = vmatprep.subr.mxu0 0.0
    %178 = vmatpush2.msra.mxu0 0.0
    %179 = vmatprep.subr.mxu0 0.0
    %180 = vmatpush2.msra.mxu0 0.0
    %181 = vmatprep.subr.mxu0 0.0
    %182 = vmatpush2.msra.mxu0 0.0
    %183 = vmatprep.subr.mxu0 0.0
    %184 = vmatpush2.msra.mxu0 0.0
    %185 = vmatprep.subr.mxu0 0.0
    %186 = vmatpush2.msra.mxu0 0.0
    %187 = vmatprep.subr.mxu0 0.0
    %188 = vmatpush2.msra.mxu0 0.0
    %189 = vmatprep.subr.mxu0 0.0
    %190 = vmatpush2.msra.mxu0 0.0
    %191 = vmatprep.subr.mxu0 0.0
    %192 = vmatpush2.msra.mxu0 0.0
    %193 = vmatprep.subr.mxu0 0.0
    %194 = vmatpush2.msra.mxu0 0.0
    %195 = vmatprep.subr.mxu0 0.0
    %196 = vmatpush2.msra.mxu0 0.0
    %197 = vmatprep.subr.mxu0 0.0
    %198 = vmatpush2.msra.mxu0 0.0
    %199 = vmatprep.subr.mxu0 0.0
    %200 = vmatpush2.msra.mxu0 0.0
    %201 = vmatprep.subr.mxu0 0.0
    %202 = vmatpush2.msra.mxu0 0.0
    %203 = vmatprep.subr.mxu0 0.0
    %204 = vmatpush2.msra.mxu0 0.0
    %205 = vmatprep.subr.mxu0 0.0
    %206 = vmatpush2.msra.mxu0 0.0
    %207 = vmatprep.mubr.f32.mxu0 0.0
    %208 = vmatmul.mubr.f32.gmra.mxu0 %v71
    %v209 = vpop.f32.mrf.mxu0
    %v210 = vadd.f32 %v60, %v209
    %v211 = vpop.f32.mrf.mxu0
    %212 = vdwg.mxu0
    %v214 = vsel %vm69, %v68, 0
    %216 = vmatprep.subr.mxu0 0.0
    %217 = vmatpush1.msra.mxu0 0.0
    %218 = vmatprep.subr.mxu0 0.0
    %219 = vmatpush1.msra.mxu0 0.0
    %220 = vmatprep.subr.mxu0 0.0
    %221 = vmatpush1.msra.mxu0 0.0
    %222 = vmatprep.subr.mxu0 0.0
    %223 = vmatpush1.msra.mxu0 0.0
    %224 = vmatprep.subr.mxu0 0.0
    %225 = vmatpush1.msra.mxu0 0.0
    %226 = vmatprep.subr.mxu0 0.0
    %227 = vmatpush1.msra.mxu0 0.0
    %228 = vmatprep.subr.mxu0 0.0
    %229 = vmatpush1.msra.mxu0 0.0
    %230 = vmatprep.subr.mxu0 0.0
    %231 = vmatpush1.msra.mxu0 0.0
    %232 = vmatprep.subr.mxu0 0.0
    %233 = vmatpush1.msra.mxu0 0.0
    %234 = vmatprep.subr.mxu0 0.0
    %235 = vmatpush1.msra.mxu0 0.0
    %236 = vmatprep.subr.mxu0 0.0
    %237 = vmatpush1.msra.mxu0 0.0
    %238 = vmatprep.subr.mxu0 0.0
    %239 = vmatpush1.msra.mxu0 0.0
    %240 = vmatprep.subr.mxu0 0.0
    %241 = vmatpush1.msra.mxu0 %v42
    %242 = vmatprep.subr.mxu0 0.0
    %243 = vmatpush1.msra.mxu0 %v41
    %244 = vmatprep.subr.mxu0 0.0
    %245 = vmatpush1.msra.mxu0 %v40
    %246 = vmatprep.subr.mxu0 0.0
    %247 = vmatpush1.msra.mxu0 %v39
    %248 = vmatprep.subr.mxu0 0.0
    %249 = vmatpush2.msra.mxu0 0.0
    %250 = vmatprep.subr.mxu0 0.0
    %251 = vmatpush2.msra.mxu0 0.0
    %252 = vmatprep.subr.mxu0 0.0
    %253 = vmatpush2.msra.mxu0 0.0
    %254 = vmatprep.subr.mxu0 0.0
    %255 = vmatpush2.msra.mxu0 0.0
    %256 = vmatprep.subr.mxu0 0.0
    %257 = vmatpush2.msra.mxu0 0.0
    %258 = vmatprep.subr.mxu0 0.0
    %259 = vmatpush2.msra.mxu0 0.0
    %260 = vmatprep.subr.mxu0 0.0
    %261 = vmatpush2.msra.mxu0 0.0
    %262 = vmatprep.subr.mxu0 0.0
    %263 = vmatpush2.msra.mxu0 0.0
    %264 = vmatprep.subr.mxu0 0.0
    %265 = vmatpush2.msra.mxu0 0.0
    %266 = vmatprep.subr.mxu0 0.0
    %267 = vmatpush2.msra.mxu0 0.0
    %268 = vmatprep.subr.mxu0 0.0
    %269 = vmatpush2.msra.mxu0 0.0
    %270 = vmatprep.subr.mxu0 0.0
    %271 = vmatpush2.msra.mxu0 0.0
    %272 = vmatprep.subr.mxu0 0.0
    %273 = vmatpush2.msra.mxu0 0.0
    %274 = vmatprep.subr.mxu0 0.0
    %275 = vmatpush2.msra.mxu0 0.0
    %276 = vmatprep.subr.mxu0 0.0
    %277 = vmatpush2.msra.mxu0 0.0
    %278 = vmatprep.subr.mxu0 0.0
    %279 = vmatpush2.msra.mxu0 0.0
    %280 = vmatprep.mubr.f32.mxu0 0.0
    %281 = vmatmul.mubr.f32.gmra.mxu0 %v214
    %v282 = vpop.f32.mrf.mxu0
    %v283 = vadd.f32 %v61, %v282
    %v284 = vpop.f32.mrf.mxu0
    %285 = vdwg.mxu0
    %v286 = vadd.f32 %v283, %v140
    %vm287 = vcmask 73728
    %v288 = vsel %vm287, %v286, -inf
    %289 = vmax.xlane.f32.xlu0 %v288
    %v290 = vpop.xlane.xlu0 %289
    %v291 = vsub.f32 %v286, %v290
    %v292 = vmul.f32 %v291, 1.442695
    %v293 = vpow.pop %v292
    %v294 = vsel %vm287, %v293, 0.0
    %295 = vadd.xlane.f32.xlu0 %v294
    %v296 = vpop.xlane.xlu0 %295
    %v297 = vrcp.pop %v296
    %v298 = vmul.f32 %v296, %v297
    %v299 = vsub.f32 2.0, %v298
    %v300 = vmul.f32 %v297, %v299
    %v301 = vmul.f32 %v293, %v300
    %vm302 = vcmask 80896
    %v304 = vsel %vm302, %v301, 0
    %vm306 = vcmask 1041408
    %v308 = vsel %vm306, %v65, 0
    %310 = vmatprep.subr.mxu0 0.0
    %311 = vmatpush1.msra.mxu0 0.0
    %312 = vmatprep.subr.mxu0 0.0
    %313 = vmatpush1.msra.mxu0 0.0
    %314 = vmatprep.subr.mxu0 0.0
    %315 = vmatpush1.msra.mxu0 0.0
    %316 = vmatprep.subr.mxu0 0.0
    %317 = vmatpush1.msra.mxu0 0.0
    %318 = vmatprep.subr.mxu0 0.0
    %319 = vmatpush1.msra.mxu0 0.0
    %320 = vmatprep.subr.mxu0 0.0
    %321 = vmatpush1.msra.mxu0 0.0
    %322 = vmatprep.subr.mxu0 0.0
    %323 = vmatpush1.msra.mxu0 0.0
    %324 = vmatprep.subr.mxu0 0.0
    %325 = vmatpush1.msra.mxu0 0.0
    %326 = vmatprep.subr.mxu0 0.0
    %327 = vmatpush1.msra.mxu0 0.0
    %328 = vmatprep.subr.mxu0 0.0
    %329 = vmatpush1.msra.mxu0 0.0
    %330 = vmatprep.subr.mxu0 0.0
    %331 = vmatpush1.msra.mxu0 0.0
    %332 = vmatprep.subr.mxu0 0.0
    %333 = vmatpush1.msra.mxu0 0.0
    %334 = vmatprep.subr.mxu0 0.0
    %335 = vmatpush1.msra.mxu0 0.0
    %336 = vmatprep.subr.mxu0 0.0
    %337 = vmatpush1.msra.mxu0 0.0
    %338 = vmatprep.subr.mxu0 0.0
    %339 = vmatpush1.msra.mxu0 %v308
    %340 = vmatprep.subr.mxu0 0.0
    %341 = vmatpush1.msra.mxu0 %v64
    %342 = vmatprep.subr.mxu0 0.0
    %343 = vmatpush2.msra.mxu0 0.0
    %344 = vmatprep.subr.mxu0 0.0
    %345 = vmatpush2.msra.mxu0 0.0
    %346 = vmatprep.subr.mxu0 0.0
    %347 = vmatpush2.msra.mxu0 0.0
    %348 = vmatprep.subr.mxu0 0.0
    %349 = vmatpush2.msra.mxu0 0.0
    %350 = vmatprep.subr.mxu0 0.0
    %351 = vmatpush2.msra.mxu0 0.0
    %352 = vmatprep.subr.mxu0 0.0
    %353 = vmatpush2.msra.mxu0 0.0
    %354 = vmatprep.subr.mxu0 0.0
    %355 = vmatpush2.msra.mxu0 0.0
    %356 = vmatprep.subr.mxu0 0.0
    %357 = vmatpush2.msra.mxu0 0.0
    %358 = vmatprep.subr.mxu0 0.0
    %359 = vmatpush2.msra.mxu0 0.0
    %360 = vmatprep.subr.mxu0 0.0
    %361 = vmatpush2.msra.mxu0 0.0
    %362 = vmatprep.subr.mxu0 0.0
    %363 = vmatpush2.msra.mxu0 0.0
    %364 = vmatprep.subr.mxu0 0.0
    %365 = vmatpush2.msra.mxu0 0.0
    %366 = vmatprep.subr.mxu0 0.0
    %367 = vmatpush2.msra.mxu0 0.0
    %368 = vmatprep.subr.mxu0 0.0
    %369 = vmatpush2.msra.mxu0 0.0
    %370 = vmatprep.subr.mxu0 0.0
    %371 = vmatpush2.msra.mxu0 0.0
    %372 = vmatprep.subr.mxu0 0.0
    %373 = vmatpush2.msra.mxu0 0.0
    %374 = vmatprep.mubr.f32.mxu0 0.0
    %375 = vmatmul.mubr.f32.gmra.mxu0 %v304
    %v376 = vpop.f32.mrf.mxu0
    %v377 = vadd.f32 0.0, %v376
    %v378 = vpop.f32.mrf.mxu0
    %379 = vdwg.mxu0
    %380 = vrot.lane.b32.xlu0 %v283, 64
    %v381 = vpop.permute.xlu0 %380
    %v383 = vsel %vm69, %v377, 0
    %385 = vmatprep.subr.mxu0 0.0
    %386 = vmatpush1.msra.mxu0 0.0
    %387 = vmatprep.subr.mxu0 0.0
    %388 = vmatpush1.msra.mxu0 0.0
    %389 = vmatprep.subr.mxu0 0.0
    %390 = vmatpush1.msra.mxu0 0.0
    %391 = vmatprep.subr.mxu0 0.0
    %392 = vmatpush1.msra.mxu0 0.0
    %393 = vmatprep.subr.mxu0 0.0
    %394 = vmatpush1.msra.mxu0 0.0
    %395 = vmatprep.subr.mxu0 0.0
    %396 = vmatpush1.msra.mxu0 0.0
    %397 = vmatprep.subr.mxu0 0.0
    %398 = vmatpush1.msra.mxu0 0.0
    %399 = vmatprep.subr.mxu0 0.0
    %400 = vmatpush1.msra.mxu0 0.0
    %401 = vmatprep.subr.mxu0 0.0
    %402 = vmatpush1.msra.mxu0 0.0
    %403 = vmatprep.subr.mxu0 0.0
    %404 = vmatpush1.msra.mxu0 0.0
    %405 = vmatprep.subr.mxu0 0.0
    %406 = vmatpush1.msra.mxu0 0.0
    %407 = vmatprep.subr.mxu0 0.0
    %408 = vmatpush1.msra.mxu0 0.0
    %409 = vmatprep.subr.mxu0 0.0
    %410 = vmatpush1.msra.mxu0 %v54
    %411 = vmatprep.subr.mxu0 0.0
    %412 = vmatpush1.msra.mxu0 %v53
    %413 = vmatprep.subr.mxu0 0.0
    %414 = vmatpush1.msra.mxu0 %v52
    %415 = vmatprep.subr.mxu0 0.0
    %416 = vmatpush1.msra.mxu0 %v51
    %417 = vmatprep.subr.mxu0 0.0
    %418 = vmatpush2.msra.mxu0 0.0
    %419 = vmatprep.subr.mxu0 0.0
    %420 = vmatpush2.msra.mxu0 0.0
    %421 = vmatprep.subr.mxu0 0.0
    %422 = vmatpush2.msra.mxu0 0.0
    %423 = vmatprep.subr.mxu0 0.0
    %424 = vmatpush2.msra.mxu0 0.0
    %425 = vmatprep.subr.mxu0 0.0
    %426 = vmatpush2.msra.mxu0 0.0
    %427 = vmatprep.subr.mxu0 0.0
    %428 = vmatpush2.msra.mxu0 0.0
    %429 = vmatprep.subr.mxu0 0.0
    %430 = vmatpush2.msra.mxu0 0.0
    %431 = vmatprep.subr.mxu0 0.0
    %432 = vmatpush2.msra.mxu0 0.0
    %433 = vmatprep.subr.mxu0 0.0
    %434 = vmatpush2.msra.mxu0 0.0
    %435 = vmatprep.subr.mxu0 0.0
    %436 = vmatpush2.msra.mxu0 0.0
    %437 = vmatprep.subr.mxu0 0.0
    %438 = vmatpush2.msra.mxu0 0.0
    %439 = vmatprep.subr.mxu0 0.0
    %440 = vmatpush2.msra.mxu0 0.0
    %441 = vmatprep.subr.mxu0 0.0
    %442 = vmatpush2.msra.mxu0 0.0
    %443 = vmatprep.subr.mxu0 0.0
    %444 = vmatpush2.msra.mxu0 0.0
    %445 = vmatprep.subr.mxu0 0.0
    %446 = vmatpush2.msra.mxu0 0.0
    %447 = vmatprep.subr.mxu0 0.0
    %448 = vmatpush2.msra.mxu0 0.0
    %449 = vmatprep.mubr.f32.mxu0 0.0
    %450 = vmatmul.mubr.f32.gmra.mxu0 %v383
    %v451 = vpop.f32.mrf.mxu0
    %v452 = vadd.f32 0.0, %v451
    %v453 = vpop.f32.mrf.mxu0
    %454 = vdwg.mxu0
    %v455 = vadd.f32 %v381, %v452
    %v456 = vmax.f32 %v455, 0.0
    %v458 = vsel %vm69, %v456, 0
    %460 = vmatprep.subr.mxu0 0.0
    %461 = vmatpush1.msra.mxu0 0.0
    %462 = vmatprep.subr.mxu0 0.0
    %463 = vmatpush1.msra.mxu0 0.0
    %464 = vmatprep.subr.mxu0 0.0
    %465 = vmatpush1.msra.mxu0 0.0
    %466 = vmatprep.subr.mxu0 0.0
    %467 = vmatpush1.msra.mxu0 0.0
    %468 = vmatprep.subr.mxu0 0.0
    %469 = vmatpush1.msra.mxu0 0.0
    %470 = vmatprep.subr.mxu0 0.0
    %471 = vmatpush1.msra.mxu0 0.0
    %472 = vmatprep.subr.mxu0 0.0
    %473 = vmatpush1.msra.mxu0 0.0
    %474 = vmatprep.subr.mxu0 0.0
    %475 = vmatpush1.msra.mxu0 0.0
    %476 = vmatprep.subr.mxu0 0.0
    %477 = vmatpush1.msra.mxu0 0.0
    %478 = vmatprep.subr.mxu0 0.0
    %479 = vmatpush1.msra.mxu0 0.0
    %480 = vmatprep.subr.mxu0 0.0
    %481 = vmatpush1.msra.mxu0 0.0
    %482 = vmatprep.subr.mxu0 0.0
    %483 = vmatpush1.msra.mxu0 0.0
    %484 = vmatprep.subr.mxu0 0.0
    %485 = vmatpush1.msra.mxu0 %v46
    %486 = vmatprep.subr.mxu0 0.0
    %487 = vmatpush1.msra.mxu0 %v45
    %488 = vmatprep.subr.mxu0 0.0
    %489 = vmatpush1.msra.mxu0 %v44
    %490 = vmatprep.subr.mxu0 0.0
    %491 = vmatpush1.msra.mxu0 %v43
    %492 = vmatprep.subr.mxu0 0.0
    %493 = vmatpush2.msra.mxu0 0.0
    %494 = vmatprep.subr.mxu0 0.0
    %495 = vmatpush2.msra.mxu0 0.0
    %496 = vmatprep.subr.mxu0 0.0
    %497 = vmatpush2.msra.mxu0 0.0
    %498 = vmatprep.subr.mxu0 0.0
    %499 = vmatpush2.msra.mxu0 0.0
    %500 = vmatprep.subr.mxu0 0.0
    %501 = vmatpush2.msra.mxu0 0.0
    %502 = vmatprep.subr.mxu0 0.0
    %503 = vmatpush2.msra.mxu0 0.0
    %504 = vmatprep.subr.mxu0 0.0
    %505 = vmatpush2.msra.mxu0 0.0
    %506 = vmatprep.subr.mxu0 0.0
    %507 = vmatpush2.msra.mxu0 0.0
    %508 = vmatprep.subr.mxu0 0.0
    %509 = vmatpush2.msra.mxu0 0.0
    %510 = vmatprep.subr.mxu0 0.0
    %511 = vmatpush2.msra.mxu0 0.0
    %512 = vmatprep.subr.mxu0 0.0
    %513 = vmatpush2.msra.mxu0 0.0
    %514 = vmatprep.subr.mxu0 0.0
    %515 = vmatpush2.msra.mxu0 0.0
    %516 = vmatprep.subr.mxu0 0.0
    %517 = vmatpush2.msra.mxu0 0.0
    %518 = vmatprep.subr.mxu0 0.0
    %519 = vmatpush2.msra.mxu0 0.0
    %520 = vmatprep.subr.mxu0 0.0
    %521 = vmatpush2.msra.mxu0 0.0
    %522 = vmatprep.subr.mxu0 0.0
    %523 = vmatpush2.msra.mxu0 0.0
    %524 = vmatprep.mubr.f32.mxu0 0.0
    %525 = vmatmul.mubr.f32.gmra.mxu0 %v458
    %v526 = vpop.f32.mrf.mxu0
    %v527 = vadd.f32 0.0, %v526
    %v528 = vpop.f32.mrf.mxu0
    %529 = vdwg.mxu0
    %530 = vmatprep.subr.mxu0 0.0
    %531 = vmatpush1.msra.mxu0 0.0
    %532 = vmatprep.subr.mxu0 0.0
    %533 = vmatpush1.msra.mxu0 0.0
    %534 = vmatprep.subr.mxu0 0.0
    %535 = vmatpush1.msra.mxu0 0.0
    %536 = vmatprep.subr.mxu0 0.0
    %537 = vmatpush1.msra.mxu0 0.0
    %538 = vmatprep.subr.mxu0 0.0
    %539 = vmatpush1.msra.mxu0 0.0
    %540 = vmatprep.subr.mxu0 0.0
    %541 = vmatpush1.msra.mxu0 0.0
    %542 = vmatprep.subr.mxu0 0.0
    %543 = vmatpush1.msra.mxu0 0.0
    %544 = vmatprep.subr.mxu0 0.0
    %545 = vmatpush1.msra.mxu0 0.0
    %546 = vmatprep.subr.mxu0 0.0
    %547 = vmatpush1.msra.mxu0 0.0
    %548 = vmatprep.subr.mxu0 0.0
    %549 = vmatpush1.msra.mxu0 0.0
    %550 = vmatprep.subr.mxu0 0.0
    %551 = vmatpush1.msra.mxu0 0.0
    %552 = vmatprep.subr.mxu0 0.0
    %553 = vmatpush1.msra.mxu0 0.0
    %554 = vmatprep.subr.mxu0 0.0
    %555 = vmatpush1.msra.mxu0 %v50
    %556 = vmatprep.subr.mxu0 0.0
    %557 = vmatpush1.msra.mxu0 %v49
    %558 = vmatprep.subr.mxu0 0.0
    %559 = vmatpush1.msra.mxu0 %v48
    %560 = vmatprep.subr.mxu0 0.0
    %561 = vmatpush1.msra.mxu0 %v47
    %562 = vmatprep.subr.mxu0 0.0
    %563 = vmatpush2.msra.mxu0 0.0
    %564 = vmatprep.subr.mxu0 0.0
    %565 = vmatpush2.msra.mxu0 0.0
    %566 = vmatprep.subr.mxu0 0.0
    %567 = vmatpush2.msra.mxu0 0.0
    %568 = vmatprep.subr.mxu0 0.0
    %569 = vmatpush2.msra.mxu0 0.0
    %570 = vmatprep.subr.mxu0 0.0
    %571 = vmatpush2.msra.mxu0 0.0
    %572 = vmatprep.subr.mxu0 0.0
    %573 = vmatpush2.msra.mxu0 0.0
    %574 = vmatprep.subr.mxu0 0.0
    %575 = vmatpush2.msra.mxu0 0.0
    %576 = vmatprep.subr.mxu0 0.0
    %577 = vmatpush2.msra.mxu0 0.0
    %578 = vmatprep.subr.mxu0 0.0
    %579 = vmatpush2.msra.mxu0 0.0
    %580 = vmatprep.subr.mxu0 0.0
    %581 = vmatpush2.msra.mxu0 0.0
    %582 = vmatprep.subr.mxu0 0.0
    %583 = vmatpush2.msra.mxu0 0.0
    %584 = vmatprep.subr.mxu0 0.0
    %585 = vmatpush2.msra.mxu0 0.0
    %586 = vmatprep.subr.mxu0 0.0
    %587 = vmatpush2.msra.mxu0 0.0
    %588 = vmatprep.subr.mxu0 0.0
    %589 = vmatpush2.msra.mxu0 0.0
    %590 = vmatprep.subr.mxu0 0.0
    %591 = vmatpush2.msra.mxu0 0.0
    %592 = vmatprep.subr.mxu0 0.0
    %593 = vmatpush2.msra.mxu0 0.0
    %594 = vmatprep.mubr.f32.mxu0 0.0
    %595 = vmatmul.mubr.f32.gmra.mxu0 %v458
    %v596 = vpop.f32.mrf.mxu0
    %v597 = vadd.f32 %v62, %v596
    %v598 = vpop.f32.mrf.mxu0
    %599 = vdwg.mxu0
    %600 = vrot.lane.b32.xlu0 %v140, 64
    %v601 = vpop.permute.xlu0 %600
    %v602 = vadd.f32 %v527, %v601
    %v603 = vxor.u32 %v602, 2147483648
    %v604 = vmul.f32 %v603, 1.442695
    %v605 = vpow.pop %v604
    %v606 = vadd.f32 %v605, 1.0
    %v607 = vrcp.pop %v606
    %v608 = vmul.f32 1.0, %v607
    %609 = vrot.lane.b32.xlu0 %v527, 64
    %v610 = vpop.permute.xlu0 %609
    %v611 = vadd.f32 %v610, %v210
    %v612 = vxor.u32 %v611, 2147483648
    %v613 = vmul.f32 %v612, 1.442695
    %v614 = vpow.pop %v613
    %v615 = vadd.f32 %v614, 1.0
    %v616 = vrcp.pop %v615
    %v617 = vmul.f32 1.0, %v616
    %618 = vrot.lane.b32.xlu0 %v210, 64
    %v619 = vpop.permute.xlu0 %618
    %v620 = vmul.f32 %v608, %v619
    %v621 = vadd.f32 %v597, %v620
    %v622 = vtanh.pop %v621
    %v623 = vsub.f32 1.0, %v617
    %v624 = vmul.f32 %v623, %v622
    %v625 = vmul.f32 %v617, %v67
    %v626 = vadd.f32 %v624, %v625
    %v628 = vsel %vm69, %v626, 0
    %630 = vmatprep.subr.mxu0 0.0
    %631 = vmatpush1.msra.mxu0 0.0
    %632 = vmatprep.subr.mxu0 0.0
    %633 = vmatpush1.msra.mxu0 0.0
    %634 = vmatprep.subr.mxu0 0.0
    %635 = vmatpush1.msra.mxu0 0.0
    %636 = vmatprep.subr.mxu0 0.0
    %637 = vmatpush1.msra.mxu0 0.0
    %638 = vmatprep.subr.mxu0 0.0
    %639 = vmatpush1.msra.mxu0 0.0
    %640 = vmatprep.subr.mxu0 0.0
    %641 = vmatpush1.msra.mxu0 0.0
    %642 = vmatprep.subr.mxu0 0.0
    %643 = vmatpush1.msra.mxu0 0.0
    %644 = vmatprep.subr.mxu0 0.0
    %645 = vmatpush1.msra.mxu0 0.0
    %646 = vmatprep.subr.mxu0 0.0
    %647 = vmatpush1.msra.mxu0 0.0
    %648 = vmatprep.subr.mxu0 0.0
    %649 = vmatpush1.msra.mxu0 0.0
    %650 = vmatprep.subr.mxu0 0.0
    %651 = vmatpush1.msra.mxu0 0.0
    %652 = vmatprep.subr.mxu0 0.0
    %653 = vmatpush1.msra.mxu0 0.0
    %654 = vmatprep.subr.mxu0 0.0
    %655 = vmatpush1.msra.mxu0 %v58
    %656 = vmatprep.subr.mxu0 0.0
    %657 = vmatpush1.msra.mxu0 %v57
    %658 = vmatprep.subr.mxu0 0.0
    %659 = vmatpush1.msra.mxu0 %v56
    %660 = vmatprep.subr.mxu0 0.0
    %661 = vmatpush1.msra.mxu0 %v55
    %662 = vmatprep.subr.mxu0 0.0
    %663 = vmatpush2.msra.mxu0 0.0
    %664 = vmatprep.subr.mxu0 0.0
    %665 = vmatpush2.msra.mxu0 0.0
    %666 = vmatprep.subr.mxu0 0.0
    %667 = vmatpush2.msra.mxu0 0.0
    %668 = vmatprep.subr.mxu0 0.0
    %669 = vmatpush2.msra.mxu0 0.0
    %670 = vmatprep.subr.mxu0 0.0
    %671 = vmatpush2.msra.mxu0 0.0
    %672 = vmatprep.subr.mxu0 0.0
    %673 = vmatpush2.msra.mxu0 0.0
    %674 = vmatprep.subr.mxu0 0.0
    %675 = vmatpush2.msra.mxu0 0.0
    %676 = vmatprep.subr.mxu0 0.0
    %677 = vmatpush2.msra.mxu0 0.0
    %678 = vmatprep.subr.mxu0 0.0
    %679 = vmatpush2.msra.mxu0 0.0
    %680 = vmatprep.subr.mxu0 0.0
    %681 = vmatpush2.msra.mxu0 0.0
    %682 = vmatprep.subr.mxu0 0.0
    %683 = vmatpush2.msra.mxu0 0.0
    %684 = vmatprep.subr.mxu0 0.0
    %685 = vmatpush2.msra.mxu0 0.0
    %686 = vmatprep.subr.mxu0 0.0
    %687 = vmatpush2.msra.mxu0 0.0
    %688 = vmatprep.subr.mxu0 0.0
    %689 = vmatpush2.msra.mxu0 0.0
    %690 = vmatprep.subr.mxu0 0.0
    %691 = vmatpush2.msra.mxu0 0.0
    %692 = vmatprep.subr.mxu0 0.0
    %693 = vmatpush2.msra.mxu0 0.0
    %694 = vmatprep.mubr.f32.mxu0 0.0
    %695 = vmatmul.mubr.f32.gmra.mxu0 %v628
    %v696 = vpop.f32.mrf.mxu0
    %v697 = vadd.f32 %v63, %v696
    %v698 = vpop.f32.mrf.mxu0
    %699 = vdwg.mxu0
    %vm700 = vcmask 155648
    %v701 = vsel %vm700, %v697, -inf
    %702 = vmax.xlane.f32.xlu0 %v701
    %v703 = vpop.xlane.xlu0 %702
    %v704 = vsub.f32 %v697, %v703
    %v705 = vmul.f32 %v704, 1.442695
    %v706 = vpow.pop %v705
    %v707 = vsel %vm700, %v706, 0.0
    %708 = vadd.xlane.f32.xlu0 %v707
    %v709 = vpop.xlane.xlu0 %708
    %v710 = vlog2.pop %v709
    %v711 = vmul.f32 %v710, 0.6931472
    %v712 = vsub.f32 %v704, %v711
    %713 = vst.msk [vmem:[%s4] sm:$0x1] %vm700, %v712
    %714 = vrot.lane.b32.xlu0 %v626, 32
    %v715 = vpop.permute.xlu0 %714
    %vm717 = vcmask 516352
    %718 = vst.msk [vmem:[%s4] sm:$0x1] %vm717, %v715
    %719 = vrot.lane.b32.xlu0 %v301, 64
    %v720 = vpop.permute.xlu0 %719
    %vm722 = vcmask 598528
    %723 = vst.msk [vmem:[%s4] sm:$0x1] %vm722, %v720
    %v724 = vld [vmem:[%s0 + $0x1] sm:$0x1]
    %725 = vmatprep.subr.mxu0 0.0
    %726 = vmatpush1.msra.mxu0 0.0
    %727 = vmatprep.subr.mxu0 0.0
    %728 = vmatpush1.msra.mxu0 0.0
    %729 = vmatprep.subr.mxu0 0.0
    %730 = vmatpush1.msra.mxu0 0.0
    %731 = vmatprep.subr.mxu0 0.0
    %732 = vmatpush1.msra.mxu0 0.0
    %733 = vmatprep.subr.mxu0 0.0
    %734 = vmatpush1.msra.mxu0 0.0
    %735 = vmatprep.subr.mxu0 0.0
    %736 = vmatpush1.msra.mxu0 0.0
    %737 = vmatprep.subr.mxu0 0.0
    %738 = vmatpush1.msra.mxu0 0.0
    %739 = vmatprep.subr.mxu0 0.0
    %740 = vmatpush1.msra.mxu0 0.0
    %741 = vmatprep.subr.mxu0 0.0
    %742 = vmatpush1.msra.mxu0 0.0
    %743 = vmatprep.subr.mxu0 0.0
    %744 = vmatpush1.msra.mxu0 0.0
    %745 = vmatprep.subr.mxu0 0.0
    %746 = vmatpush1.msra.mxu0 0.0
    %747 = vmatprep.subr.mxu0 0.0
    %748 = vmatpush1.msra.mxu0 0.0
    %749 = vmatprep.subr.mxu0 0.0
    %750 = vmatpush1.msra.mxu0 %v34
    %751 = vmatprep.subr.mxu0 0.0
    %752 = vmatpush1.msra.mxu0 %v33
    %753 = vmatprep.subr.mxu0 0.0
    %754 = vmatpush1.msra.mxu0 %v32
    %755 = vmatprep.subr.mxu0 0.0
    %756 = vmatpush1.msra.mxu0 %v31
    %757 = vmatprep.subr.mxu0 0.0
    %758 = vmatpush2.msra.mxu0 0.0
    %759 = vmatprep.subr.mxu0 0.0
    %760 = vmatpush2.msra.mxu0 0.0
    %761 = vmatprep.subr.mxu0 0.0
    %762 = vmatpush2.msra.mxu0 0.0
    %763 = vmatprep.subr.mxu0 0.0
    %764 = vmatpush2.msra.mxu0 0.0
    %765 = vmatprep.subr.mxu0 0.0
    %766 = vmatpush2.msra.mxu0 0.0
    %767 = vmatprep.subr.mxu0 0.0
    %768 = vmatpush2.msra.mxu0 0.0
    %769 = vmatprep.subr.mxu0 0.0
    %770 = vmatpush2.msra.mxu0 0.0
    %771 = vmatprep.subr.mxu0 0.0
    %772 = vmatpush2.msra.mxu0 0.0
    %773 = vmatprep.subr.mxu0 0.0
    %774 = vmatpush2.msra.mxu0 0.0
    %775 = vmatprep.subr.mxu0 0.0
    %776 = vmatpush2.msra.mxu0 0.0
    %777 = vmatprep.subr.mxu0 0.0
    %778 = vmatpush2.msra.mxu0 0.0
    %779 = vmatprep.subr.mxu0 0.0
    %780 = vmatpush2.msra.mxu0 0.0
    %781 = vmatprep.subr.mxu0 0.0
    %782 = vmatpush2.msra.mxu0 0.0
    %783 = vmatprep.subr.mxu0 0.0
    %784 = vmatpush2.msra.mxu0 0.0
    %785 = vmatprep.subr.mxu0 0.0
    %786 = vmatpush2.msra.mxu0 0.0
    %787 = vmatprep.subr.mxu0 0.0
    %788 = vmatpush2.msra.mxu0 0.0
    %789 = vmatprep.mubr.f32.mxu0 0.0
    %790 = vmatmul.mubr.f32.gmra.mxu0 %v628
    %v791 = vpop.f32.mrf.mxu0
    %v792 = vadd.f32 %v59, %v791
    %v793 = vpop.f32.mrf.mxu0
    %794 = vdwg.mxu0
    %795 = vmatprep.subr.mxu0 0.0
    %796 = vmatpush1.msra.mxu0 0.0
    %797 = vmatprep.subr.mxu0 0.0
    %798 = vmatpush1.msra.mxu0 0.0
    %799 = vmatprep.subr.mxu0 0.0
    %800 = vmatpush1.msra.mxu0 0.0
    %801 = vmatprep.subr.mxu0 0.0
    %802 = vmatpush1.msra.mxu0 0.0
    %803 = vmatprep.subr.mxu0 0.0
    %804 = vmatpush1.msra.mxu0 0.0
    %805 = vmatprep.subr.mxu0 0.0
    %806 = vmatpush1.msra.mxu0 0.0
    %807 = vmatprep.subr.mxu0 0.0
    %808 = vmatpush1.msra.mxu0 0.0
    %809 = vmatprep.subr.mxu0 0.0
    %810 = vmatpush1.msra.mxu0 0.0
    %811 = vmatprep.subr.mxu0 0.0
    %812 = vmatpush1.msra.mxu0 0.0
    %813 = vmatprep.subr.mxu0 0.0
    %814 = vmatpush1.msra.mxu0 0.0
    %815 = vmatprep.subr.mxu0 0.0
    %816 = vmatpush1.msra.mxu0 0.0
    %817 = vmatprep.subr.mxu0 0.0
    %818 = vmatpush1.msra.mxu0 0.0
    %819 = vmatprep.subr.mxu0 0.0
    %820 = vmatpush1.msra.mxu0 %v38
    %821 = vmatprep.subr.mxu0 0.0
    %822 = vmatpush1.msra.mxu0 %v37
    %823 = vmatprep.subr.mxu0 0.0
    %824 = vmatpush1.msra.mxu0 %v36
    %825 = vmatprep.subr.mxu0 0.0
    %826 = vmatpush1.msra.mxu0 %v35
    %827 = vmatprep.subr.mxu0 0.0
    %828 = vmatpush2.msra.mxu0 0.0
    %829 = vmatprep.subr.mxu0 0.0
    %830 = vmatpush2.msra.mxu0 0.0
    %831 = vmatprep.subr.mxu0 0.0
    %832 = vmatpush2.msra.mxu0 0.0
    %833 = vmatprep.subr.mxu0 0.0
    %834 = vmatpush2.msra.mxu0 0.0
    %835 = vmatprep.subr.mxu0 0.0
    %836 = vmatpush2.msra.mxu0 0.0
    %837 = vmatprep.subr.mxu0 0.0
    %838 = vmatpush2.msra.mxu0 0.0
    %839 = vmatprep.subr.mxu0 0.0
    %840 = vmatpush2.msra.mxu0 0.0
    %841 = vmatprep.subr.mxu0 0.0
    %842 = vmatpush2.msra.mxu0 0.0
    %843 = vmatprep.subr.mxu0 0.0
    %844 = vmatpush2.msra.mxu0 0.0
    %845 = vmatprep.subr.mxu0 0.0
    %846 = vmatpush2.msra.mxu0 0.0
    %847 = vmatprep.subr.mxu0 0.0
    %848 = vmatpush2.msra.mxu0 0.0
    %849 = vmatprep.subr.mxu0 0.0
    %850 = vmatpush2.msra.mxu0 0.0
    %851 = vmatprep.subr.mxu0 0.0
    %852 = vmatpush2.msra.mxu0 0.0
    %853 = vmatprep.subr.mxu0 0.0
    %854 = vmatpush2.msra.mxu0 0.0
    %855 = vmatprep.subr.mxu0 0.0
    %856 = vmatpush2.msra.mxu0 0.0
    %857 = vmatprep.subr.mxu0 0.0
    %858 = vmatpush2.msra.mxu0 0.0
    %859 = vmatprep.mubr.f32.mxu0 0.0
    %860 = vmatmul.mubr.f32.gmra.mxu0 %v628
    %v861 = vpop.f32.mrf.mxu0
    %v862 = vadd.f32 %v60, %v861
    %v863 = vpop.f32.mrf.mxu0
    %864 = vdwg.mxu0
    %v866 = vsel %vm69, %v724, 0
    %868 = vmatprep.subr.mxu0 0.0
    %869 = vmatpush1.msra.mxu0 0.0
    %870 = vmatprep.subr.mxu0 0.0
    %871 = vmatpush1.msra.mxu0 0.0
    %872 = vmatprep.subr.mxu0 0.0
    %873 = vmatpush1.msra.mxu0 0.0
    %874 = vmatprep.subr.mxu0 0.0
    %875 = vmatpush1.msra.mxu0 0.0
    %876 = vmatprep.subr.mxu0 0.0
    %877 = vmatpush1.msra.mxu0 0.0
    %878 = vmatprep.subr.mxu0 0.0
    %879 = vmatpush1.msra.mxu0 0.0
    %880 = vmatprep.subr.mxu0 0.0
    %881 = vmatpush1.msra.mxu0 0.0
    %882 = vmatprep.subr.mxu0 0.0
    %883 = vmatpush1.msra.mxu0 0.0
    %884 = vmatprep.subr.mxu0 0.0
    %885 = vmatpush1.msra.mxu0 0.0
    %886 = vmatprep.subr.mxu0 0.0
    %887 = vmatpush1.msra.mxu0 0.0
    %888 = vmatprep.subr.mxu0 0.0
    %889 = vmatpush1.msra.mxu0 0.0
    %890 = vmatprep.subr.mxu0 0.0
    %891 = vmatpush1.msra.mxu0 0.0
    %892 = vmatprep.subr.mxu0 0.0
    %893 = vmatpush1.msra.mxu0 %v42
    %894 = vmatprep.subr.mxu0 0.0
    %895 = vmatpush1.msra.mxu0 %v41
    %896 = vmatprep.subr.mxu0 0.0
    %897 = vmatpush1.msra.mxu0 %v40
    %898 = vmatprep.subr.mxu0 0.0
    %899 = vmatpush1.msra.mxu0 %v39
    %900 = vmatprep.subr.mxu0 0.0
    %901 = vmatpush2.msra.mxu0 0.0
    %902 = vmatprep.subr.mxu0 0.0
    %903 = vmatpush2.msra.mxu0 0.0
    %904 = vmatprep.subr.mxu0 0.0
    %905 = vmatpush2.msra.mxu0 0.0
    %906 = vmatprep.subr.mxu0 0.0
    %907 = vmatpush2.msra.mxu0 0.0
    %908 = vmatprep.subr.mxu0 0.0
    %909 = vmatpush2.msra.mxu0 0.0
    %910 = vmatprep.subr.mxu0 0.0
    %911 = vmatpush2.msra.mxu0 0.0
    %912 = vmatprep.subr.mxu0 0.0
    %913 = vmatpush2.msra.mxu0 0.0
    %914 = vmatprep.subr.mxu0 0.0
    %915 = vmatpush2.msra.mxu0 0.0
    %916 = vmatprep.subr.mxu0 0.0
    %917 = vmatpush2.msra.mxu0 0.0
    %918 = vmatprep.subr.mxu0 0.0
    %919 = vmatpush2.msra.mxu0 0.0
    %920 = vmatprep.subr.mxu0 0.0
    %921 = vmatpush2.msra.mxu0 0.0
    %922 = vmatprep.subr.mxu0 0.0
    %923 = vmatpush2.msra.mxu0 0.0
    %924 = vmatprep.subr.mxu0 0.0
    %925 = vmatpush2.msra.mxu0 0.0
    %926 = vmatprep.subr.mxu0 0.0
    %927 = vmatpush2.msra.mxu0 0.0
    %928 = vmatprep.subr.mxu0 0.0
    %929 = vmatpush2.msra.mxu0 0.0
    %930 = vmatprep.subr.mxu0 0.0
    %931 = vmatpush2.msra.mxu0 0.0
    %932 = vmatprep.mubr.f32.mxu0 0.0
    %933 = vmatmul.mubr.f32.gmra.mxu0 %v866
    %v934 = vpop.f32.mrf.mxu0
    %v935 = vadd.f32 %v61, %v934
    %v936 = vpop.f32.mrf.mxu0
    %937 = vdwg.mxu0
    %v938 = vadd.f32 %v935, %v792
    %v939 = vsel %vm287, %v938, -inf
    %940 = vmax.xlane.f32.xlu0 %v939
    %v941 = vpop.xlane.xlu0 %940
    %v942 = vsub.f32 %v938, %v941
    %v943 = vmul.f32 %v942, 1.442695
    %v944 = vpow.pop %v943
    %v945 = vsel %vm287, %v944, 0.0
    %946 = vadd.xlane.f32.xlu0 %v945
    %v947 = vpop.xlane.xlu0 %946
    %v948 = vrcp.pop %v947
    %v949 = vmul.f32 %v947, %v948
    %v950 = vsub.f32 2.0, %v949
    %v951 = vmul.f32 %v948, %v950
    %v952 = vmul.f32 %v944, %v951
    %v954 = vsel %vm302, %v952, 0
    %956 = vmatprep.subr.mxu0 0.0
    %957 = vmatpush1.msra.mxu0 0.0
    %958 = vmatprep.subr.mxu0 0.0
    %959 = vmatpush1.msra.mxu0 0.0
    %960 = vmatprep.subr.mxu0 0.0
    %961 = vmatpush1.msra.mxu0 0.0
    %962 = vmatprep.subr.mxu0 0.0
    %963 = vmatpush1.msra.mxu0 0.0
    %964 = vmatprep.subr.mxu0 0.0
    %965 = vmatpush1.msra.mxu0 0.0
    %966 = vmatprep.subr.mxu0 0.0
    %967 = vmatpush1.msra.mxu0 0.0
    %968 = vmatprep.subr.mxu0 0.0
    %969 = vmatpush1.msra.mxu0 0.0
    %970 = vmatprep.subr.mxu0 0.0
    %971 = vmatpush1.msra.mxu0 0.0
    %972 = vmatprep.subr.mxu0 0.0
    %973 = vmatpush1.msra.mxu0 0.0
    %974 = vmatprep.subr.mxu0 0.0
    %975 = vmatpush1.msra.mxu0 0.0
    %976 = vmatprep.subr.mxu0 0.0
    %977 = vmatpush1.msra.mxu0 0.0
    %978 = vmatprep.subr.mxu0 0.0
    %979 = vmatpush1.msra.mxu0 0.0
    %980 = vmatprep.subr.mxu0 0.0
    %981 = vmatpush1.msra.mxu0 0.0
    %982 = vmatprep.subr.mxu0 0.0
    %983 = vmatpush1.msra.mxu0 0.0
    %984 = vmatprep.subr.mxu0 0.0
    %985 = vmatpush1.msra.mxu0 %v308
    %986 = vmatprep.subr.mxu0 0.0
    %987 = vmatpush1.msra.mxu0 %v64
    %988 = vmatprep.subr.mxu0 0.0
    %989 = vmatpush2.msra.mxu0 0.0
    %990 = vmatprep.subr.mxu0 0.0
    %991 = vmatpush2.msra.mxu0 0.0
    %992 = vmatprep.subr.mxu0 0.0
    %993 = vmatpush2.msra.mxu0 0.0
    %994 = vmatprep.subr.mxu0 0.0
    %995 = vmatpush2.msra.mxu0 0.0
    %996 = vmatprep.subr.mxu0 0.0
    %997 = vmatpush2.msra.mxu0 0.0
    %998 = vmatprep.subr.mxu0 0.0
    %999 = vmatpush2.msra.mxu0 0.0
    %1000 = vmatprep.subr.mxu0 0.0
    %1001 = vmatpush2.msra.mxu0 0.0
    %1002 = vmatprep.subr.mxu0 0.0
    %1003 = vmatpush2.msra.mxu0 0.0
    %1004 = vmatprep.subr.mxu0 0.0
    %1005 = vmatpush2.msra.mxu0 0.0
    %1006 = vmatprep.subr.mxu0 0.0
    %1007 = vmatpush2.msra.mxu0 0.0
    %1008 = vmatprep.subr.mxu0 0.0
    %1009 = vmatpush2.msra.mxu0 0.0
    %1010 = vmatprep.subr.mxu0 0.0
    %1011 = vmatpush2.msra.mxu0 0.0
    %1012 = vmatprep.subr.mxu0 0.0
    %1013 = vmatpush2.msra.mxu0 0.0
    %1014 = vmatprep.subr.mxu0 0.0
    %1015 = vmatpush2.msra.mxu0 0.0
    %1016 = vmatprep.subr.mxu0 0.0
    %1017 = vmatpush2.msra.mxu0 0.0
    %1018 = vmatprep.subr.mxu0 0.0
    %1019 = vmatpush2.msra.mxu0 0.0
    %1020 = vmatprep.mubr.f32.mxu0 0.0
    %1021 = vmatmul.mubr.f32.gmra.mxu0 %v954
    %v1022 = vpop.f32.mrf.mxu0
    %v1023 = vadd.f32 0.0, %v1022
    %v1024 = vpop.f32.mrf.mxu0
    %1025 = vdwg.mxu0
    %1026 = vrot.lane.b32.xlu0 %v935, 64
    %v1027 = vpop.permute.xlu0 %1026
    %v1029 = vsel %vm69, %v1023, 0
    %1031 = vmatprep.subr.mxu0 0.0
    %1032 = vmatpush1.msra.mxu0 0.0
    %1033 = vmatprep.subr.mxu0 0.0
    %1034 = vmatpush1.msra.mxu0 0.0
    %1035 = vmatprep.subr.mxu0 0.0
    %1036 = vmatpush1.msra.mxu0 0.0
    %1037 = vmatprep.subr.mxu0 0.0
    %1038 = vmatpush1.msra.mxu0 0.0
    %1039 = vmatprep.subr.mxu0 0.0
    %1040 = vmatpush1.msra.mxu0 0.0
    %1041 = vmatprep.subr.mxu0 0.0
    %1042 = vmatpush1.msra.mxu0 0.0
    %1043 = vmatprep.subr.mxu0 0.0
    %1044 = vmatpush1.msra.mxu0 0.0
    %1045 = vmatprep.subr.mxu0 0.0
    %1046 = vmatpush1.msra.mxu0 0.0
    %1047 = vmatprep.subr.mxu0 0.0
    %1048 = vmatpush1.msra.mxu0 0.0
    %1049 = vmatprep.subr.mxu0 0.0
    %1050 = vmatpush1.msra.mxu0 0.0
    %1051 = vmatprep.subr.mxu0 0.0
    %1052 = vmatpush1.msra.mxu0 0.0
    %1053 = vmatprep.subr.mxu0 0.0
    %1054 = vmatpush1.msra.mxu0 0.0
    %1055 = vmatprep.subr.mxu0 0.0
    %1056 = vmatpush1.msra.mxu0 %v54
    %1057 = vmatprep.subr.mxu0 0.0
    %1058 = vmatpush1.msra.mxu0 %v53
    %1059 = vmatprep.subr.mxu0 0.0
    %1060 = vmatpush1.msra.mxu0 %v52
    %1061 = vmatprep.subr.mxu0 0.0
    %1062 = vmatpush1.msra.mxu0 %v51
    %1063 = vmatprep.subr.mxu0 0.0
    %1064 = vmatpush2.msra.mxu0 0.0
    %1065 = vmatprep.subr.mxu0 0.0
    %1066 = vmatpush2.msra.mxu0 0.0
    %1067 = vmatprep.subr.mxu0 0.0
    %1068 = vmatpush2.msra.mxu0 0.0
    %1069 = vmatprep.subr.mxu0 0.0
    %1070 = vmatpush2.msra.mxu0 0.0
    %1071 = vmatprep.subr.mxu0 0.0
    %1072 = vmatpush2.msra.mxu0 0.0
    %1073 = vmatprep.subr.mxu0 0.0
    %1074 = vmatpush2.msra.mxu0 0.0
    %1075 = vmatprep.subr.mxu0 0.0
    %1076 = vmatpush2.msra.mxu0 0.0
    %1077 = vmatprep.subr.mxu0 0.0
    %1078 = vmatpush2.msra.mxu0 0.0
    %1079 = vmatprep.subr.mxu0 0.0
    %1080 = vmatpush2.msra.mxu0 0.0
    %1081 = vmatprep.subr.mxu0 0.0
    %1082 = vmatpush2.msra.mxu0 0.0
    %1083 = vmatprep.subr.mxu0 0.0
    %1084 = vmatpush2.msra.mxu0 0.0
    %1085 = vmatprep.subr.mxu0 0.0
    %1086 = vmatpush2.msra.mxu0 0.0
    %1087 = vmatprep.subr.mxu0 0.0
    %1088 = vmatpush2.msra.mxu0 0.0
    %1089 = vmatprep.subr.mxu0 0.0
    %1090 = vmatpush2.msra.mxu0 0.0
    %1091 = vmatprep.subr.mxu0 0.0
    %1092 = vmatpush2.msra.mxu0 0.0
    %1093 = vmatprep.subr.mxu0 0.0
    %1094 = vmatpush2.msra.mxu0 0.0
    %1095 = vmatprep.mubr.f32.mxu0 0.0
    %1096 = vmatmul.mubr.f32.gmra.mxu0 %v1029
    %v1097 = vpop.f32.mrf.mxu0
    %v1098 = vadd.f32 0.0, %v1097
    %v1099 = vpop.f32.mrf.mxu0
    %1100 = vdwg.mxu0
    %v1101 = vadd.f32 %v1027, %v1098
    %v1102 = vmax.f32 %v1101, 0.0
    %v1104 = vsel %vm69, %v1102, 0
    %1106 = vmatprep.subr.mxu0 0.0
    %1107 = vmatpush1.msra.mxu0 0.0
    %1108 = vmatprep.subr.mxu0 0.0
    %1109 = vmatpush1.msra.mxu0 0.0
    %1110 = vmatprep.subr.mxu0 0.0
    %1111 = vmatpush1.msra.mxu0 0.0
    %1112 = vmatprep.subr.mxu0 0.0
    %1113 = vmatpush1.msra.mxu0 0.0
    %1114 = vmatprep.subr.mxu0 0.0
    %1115 = vmatpush1.msra.mxu0 0.0
    %1116 = vmatprep.subr.mxu0 0.0
    %1117 = vmatpush1.msra.mxu0 0.0
    %1118 = vmatprep.subr.mxu0 0.0
    %1119 = vmatpush1.msra.mxu0 0.0
    %1120 = vmatprep.subr.mxu0 0.0
    %1121 = vmatpush1.msra.mxu0 0.0
    %1122 = vmatprep.subr.mxu0 0.0
    %1123 = vmatpush1.msra.mxu0 0.0
    %1124 = vmatprep.subr.mxu0 0.0
    %1125 = vmatpush1.msra.mxu0 0.0
    %1126 = vmatprep.subr.mxu0 0.0
    %1127 = vmatpush1.msra.mxu0 0.0
    %1128 = vmatprep.subr.mxu0 0.0
    %1129 = vmatpush1.msra.mxu0 0.0
    %1130 = vmatprep.subr.mxu0 0.0
    %1131 = vmatpush1.msra.mxu0 %v46
    %1132 = vmatprep.subr.mxu0 0.0
    %1133 = vmatpush1.msra.mxu0 %v45
    %1134 = vmatprep.subr.mxu0 0.0
    %1135 = vmatpush1.msra.mxu0 %v44
    %1136 = vmatprep.subr.mxu0 0.0
    %1137 = vmatpush1.msra.mxu0 %v43
    %1138 = vmatprep.subr.mxu0 0.0
    %1139 = vmatpush2.msra.mxu0 0.0
    %1140 = vmatprep.subr.mxu0 0.0
    %1141 = vmatpush2.msra.mxu0 0.0
    %1142 = vmatprep.subr.mxu0 0.0
    %1143 = vmatpush2.msra.mxu0 0.0
    %1144 = vmatprep.subr.mxu0 0.0
    %1145 = vmatpush2.msra.mxu0 0.0
    %1146 = vmatprep.subr.mxu0 0.0
    %1147 = vmatpush2.msra.mxu0 0.0
    %1148 = vmatprep.subr.mxu0 0.0
    %1149 = vmatpush2.msra.mxu0 0.0
    %1150 = vmatprep.subr.mxu0 0.0
    %1151 = vmatpush2.msra.mxu0 0.0
    %1152 = vmatprep.subr.mxu0 0.0
    %1153 = vmatpush2.msra.mxu0 0.0
    %1154 = vmatprep.subr.mxu0 0.0
    %1155 = vmatpush2.msra.mxu0 0.0
    %1156 = vmatprep.subr.mxu0 0.0
    %1157 = vmatpush2.msra.mxu0 0.0
    %1158 = vmatprep.subr.mxu0 0.0
    %1159 = vmatpush2.msra.mxu0 0.0
    %1160 = vmatprep.subr.mxu0 0.0
    %1161 = vmatpush2.msra.mxu0 0.0
    %1162 = vmatprep.subr.mxu0 0.0
    %1163 = vmatpush2.msra.mxu0 0.0
    %1164 = vmatprep.subr.mxu0 0.0
    %1165 = vmatpush2.msra.mxu0 0.0
    %1166 = vmatprep.subr.mxu0 0.0
    %1167 = vmatpush2.msra.mxu0 0.0
    %1168 = vmatprep.subr.mxu0 0.0
    %1169 = vmatpush2.msra.mxu0 0.0
    %1170 = vmatprep.mubr.f32.mxu0 0.0
    %1171 = vmatmul.mubr.f32.gmra.mxu0 %v1104
    %v1172 = vpop.f32.mrf.mxu0
    %v1173 = vadd.f32 0.0, %v1172
    %v1174 = vpop.f32.mrf.mxu0
    %1175 = vdwg.mxu0
    %1176 = vmatprep.subr.mxu0 0.0
    %1177 = vmatpush1.msra.mxu0 0.0
    %1178 = vmatprep.subr.mxu0 0.0
    %1179 = vmatpush1.msra.mxu0 0.0
    %1180 = vmatprep.subr.mxu0 0.0
    %1181 = vmatpush1.msra.mxu0 0.0
    %1182 = vmatprep.subr.mxu0 0.0
    %1183 = vmatpush1.msra.mxu0 0.0
    %1184 = vmatprep.subr.mxu0 0.0
    %1185 = vmatpush1.msra.mxu0 0.0
    %1186 = vmatprep.subr.mxu0 0.0
    %1187 = vmatpush1.msra.mxu0 0.0
    %1188 = vmatprep.subr.mxu0 0.0
    %1189 = vmatpush1.msra.mxu0 0.0
    %1190 = vmatprep.subr.mxu0 0.0
    %1191 = vmatpush1.msra.mxu0 0.0
    %1192 = vmatprep.subr.mxu0 0.0
    %1193 = vmatpush1.msra.mxu0 0.0
    %1194 = vmatprep.subr.mxu0 0.0
    %1195 = vmatpush1.msra.mxu0 0.0
    %1196 = vmatprep.subr.mxu0 0.0
    %1197 = vmatpush1.msra.mxu0 0.0
    %1198 = vmatprep.subr.mxu0 0.0
    %1199 = vmatpush1.msra.mxu0 0.0
    %1200 = vmatprep.subr.mxu0 0.0
    %1201 = vmatpush1.msra.mxu0 %v50
    %1202 = vmatprep.subr.mxu0 0.0
    %1203 = vmatpush1.msra.mxu0 %v49
    %1204 = vmatprep.subr.mxu0 0.0
    %1205 = vmatpush1.msra.mxu0 %v48
    %1206 = vmatprep.subr.mxu0 0.0
    %1207 = vmatpush1.msra.mxu0 %v47
    %1208 = vmatprep.subr.mxu0 0.0
    %1209 = vmatpush2.msra.mxu0 0.0
    %1210 = vmatprep.subr.mxu0 0.0
    %1211 = vmatpush2.msra.mxu0 0.0
    %1212 = vmatprep.subr.mxu0 0.0
    %1213 = vmatpush2.msra.mxu0 0.0
    %1214 = vmatprep.subr.mxu0 0.0
    %1215 = vmatpush2.msra.mxu0 0.0
    %1216 = vmatprep.subr.mxu0 0.0
    %1217 = vmatpush2.msra.mxu0 0.0
    %1218 = vmatprep.subr.mxu0 0.0
    %1219 = vmatpush2.msra.mxu0 0.0
    %1220 = vmatprep.subr.mxu0 0.0
    %1221 = vmatpush2.msra.mxu0 0.0
    %1222 = vmatprep.subr.mxu0 0.0
    %1223 = vmatpush2.msra.mxu0 0.0
    %1224 = vmatprep.subr.mxu0 0.0
    %1225 = vmatpush2.msra.mxu0 0.0
    %1226 = vmatprep.subr.mxu0 0.0
    %1227 = vmatpush2.msra.mxu0 0.0
    %1228 = vmatprep.subr.mxu0 0.0
    %1229 = vmatpush2.msra.mxu0 0.0
    %1230 = vmatprep.subr.mxu0 0.0
    %1231 = vmatpush2.msra.mxu0 0.0
    %1232 = vmatprep.subr.mxu0 0.0
    %1233 = vmatpush2.msra.mxu0 0.0
    %1234 = vmatprep.subr.mxu0 0.0
    %1235 = vmatpush2.msra.mxu0 0.0
    %1236 = vmatprep.subr.mxu0 0.0
    %1237 = vmatpush2.msra.mxu0 0.0
    %1238 = vmatprep.subr.mxu0 0.0
    %1239 = vmatpush2.msra.mxu0 0.0
    %1240 = vmatprep.mubr.f32.mxu0 0.0
    %1241 = vmatmul.mubr.f32.gmra.mxu0 %v1104
    %v1242 = vpop.f32.mrf.mxu0
    %v1243 = vadd.f32 %v62, %v1242
    %v1244 = vpop.f32.mrf.mxu0
    %1245 = vdwg.mxu0
    %1246 = vrot.lane.b32.xlu0 %v792, 64
    %v1247 = vpop.permute.xlu0 %1246
    %v1248 = vadd.f32 %v1173, %v1247
    %v1249 = vxor.u32 %v1248, 2147483648
    %v1250 = vmul.f32 %v1249, 1.442695
    %v1251 = vpow.pop %v1250
    %v1252 = vadd.f32 %v1251, 1.0
    %v1253 = vrcp.pop %v1252
    %v1254 = vmul.f32 1.0, %v1253
    %1255 = vrot.lane.b32.xlu0 %v1173, 64
    %v1256 = vpop.permute.xlu0 %1255
    %v1257 = vadd.f32 %v1256, %v862
    %v1258 = vxor.u32 %v1257, 2147483648
    %v1259 = vmul.f32 %v1258, 1.442695
    %v1260 = vpow.pop %v1259
    %v1261 = vadd.f32 %v1260, 1.0
    %v1262 = vrcp.pop %v1261
    %v1263 = vmul.f32 1.0, %v1262
    %1264 = vrot.lane.b32.xlu0 %v862, 64
    %v1265 = vpop.permute.xlu0 %1264
    %v1266 = vmul.f32 %v1254, %v1265
    %v1267 = vadd.f32 %v1243, %v1266
    %v1268 = vtanh.pop %v1267
    %v1269 = vsub.f32 1.0, %v1263
    %v1270 = vmul.f32 %v1269, %v1268
    %v1271 = vmul.f32 %v1263, %v626
    %v1272 = vadd.f32 %v1270, %v1271
    %v1274 = vsel %vm69, %v1272, 0
    %1276 = vmatprep.subr.mxu0 0.0
    %1277 = vmatpush1.msra.mxu0 0.0
    %1278 = vmatprep.subr.mxu0 0.0
    %1279 = vmatpush1.msra.mxu0 0.0
    %1280 = vmatprep.subr.mxu0 0.0
    %1281 = vmatpush1.msra.mxu0 0.0
    %1282 = vmatprep.subr.mxu0 0.0
    %1283 = vmatpush1.msra.mxu0 0.0
    %1284 = vmatprep.subr.mxu0 0.0
    %1285 = vmatpush1.msra.mxu0 0.0
    %1286 = vmatprep.subr.mxu0 0.0
    %1287 = vmatpush1.msra.mxu0 0.0
    %1288 = vmatprep.subr.mxu0 0.0
    %1289 = vmatpush1.msra.mxu0 0.0
    %1290 = vmatprep.subr.mxu0 0.0
    %1291 = vmatpush1.msra.mxu0 0.0
    %1292 = vmatprep.subr.mxu0 0.0
    %1293 = vmatpush1.msra.mxu0 0.0
    %1294 = vmatprep.subr.mxu0 0.0
    %1295 = vmatpush1.msra.mxu0 0.0
    %1296 = vmatprep.subr.mxu0 0.0
    %1297 = vmatpush1.msra.mxu0 0.0
    %1298 = vmatprep.subr.mxu0 0.0
    %1299 = vmatpush1.msra.mxu0 0.0
    %1300 = vmatprep.subr.mxu0 0.0
    %1301 = vmatpush1.msra.mxu0 %v58
    %1302 = vmatprep.subr.mxu0 0.0
    %1303 = vmatpush1.msra.mxu0 %v57
    %1304 = vmatprep.subr.mxu0 0.0
    %1305 = vmatpush1.msra.mxu0 %v56
    %1306 = vmatprep.subr.mxu0 0.0
    %1307 = vmatpush1.msra.mxu0 %v55
    %1308 = vmatprep.subr.mxu0 0.0
    %1309 = vmatpush2.msra.mxu0 0.0
    %1310 = vmatprep.subr.mxu0 0.0
    %1311 = vmatpush2.msra.mxu0 0.0
    %1312 = vmatprep.subr.mxu0 0.0
    %1313 = vmatpush2.msra.mxu0 0.0
    %1314 = vmatprep.subr.mxu0 0.0
    %1315 = vmatpush2.msra.mxu0 0.0
    %1316 = vmatprep.subr.mxu0 0.0
    %1317 = vmatpush2.msra.mxu0 0.0
    %1318 = vmatprep.subr.mxu0 0.0
    %1319 = vmatpush2.msra.mxu0 0.0
    %1320 = vmatprep.subr.mxu0 0.0
    %1321 = vmatpush2.msra.mxu0 0.0
    %1322 = vmatprep.subr.mxu0 0.0
    %1323 = vmatpush2.msra.mxu0 0.0
    %1324 = vmatprep.subr.mxu0 0.0
    %1325 = vmatpush2.msra.mxu0 0.0
    %1326 = vmatprep.subr.mxu0 0.0
    %1327 = vmatpush2.msra.mxu0 0.0
    %1328 = vmatprep.subr.mxu0 0.0
    %1329 = vmatpush2.msra.mxu0 0.0
    %1330 = vmatprep.subr.mxu0 0.0
    %1331 = vmatpush2.msra.mxu0 0.0
    %1332 = vmatprep.subr.mxu0 0.0
    %1333 = vmatpush2.msra.mxu0 0.0
    %1334 = vmatprep.subr.mxu0 0.0
    %1335 = vmatpush2.msra.mxu0 0.0
    %1336 = vmatprep.subr.mxu0 0.0
    %1337 = vmatpush2.msra.mxu0 0.0
    %1338 = vmatprep.subr.mxu0 0.0
    %1339 = vmatpush2.msra.mxu0 0.0
    %1340 = vmatprep.mubr.f32.mxu0 0.0
    %1341 = vmatmul.mubr.f32.gmra.mxu0 %v1274
    %v1342 = vpop.f32.mrf.mxu0
    %v1343 = vadd.f32 %v63, %v1342
    %v1344 = vpop.f32.mrf.mxu0
    %1345 = vdwg.mxu0
    %v1346 = vsel %vm700, %v1343, -inf
    %1347 = vmax.xlane.f32.xlu0 %v1346
    %v1348 = vpop.xlane.xlu0 %1347
    %v1349 = vsub.f32 %v1343, %v1348
    %v1350 = vmul.f32 %v1349, 1.442695
    %v1351 = vpow.pop %v1350
    %v1352 = vsel %vm700, %v1351, 0.0
    %1353 = vadd.xlane.f32.xlu0 %v1352
    %v1354 = vpop.xlane.xlu0 %1353
    %v1355 = vlog2.pop %v1354
    %v1356 = vmul.f32 %v1355, 0.6931472
    %v1357 = vsub.f32 %v1349, %v1356
    %1358 = vst.msk [vmem:[%s4 + $0x1] sm:$0x1] %vm700, %v1357
    %1359 = vrot.lane.b32.xlu0 %v1272, 32
    %v1360 = vpop.permute.xlu0 %1359
    %1362 = vst.msk [vmem:[%s4 + $0x1] sm:$0x1] %vm717, %v1360
    %1363 = vrot.lane.b32.xlu0 %v952, 64
    %v1364 = vpop.permute.xlu0 %1363
    %1366 = vst.msk [vmem:[%s4 + $0x1] sm:$0x1] %vm722, %v1364
    %v1367 = vld [vmem:[%s0 + $0x2] sm:$0x1]
    %1368 = vmatprep.subr.mxu0 0.0
    %1369 = vmatpush1.msra.mxu0 0.0
    %1370 = vmatprep.subr.mxu0 0.0
    %1371 = vmatpush1.msra.mxu0 0.0
    %1372 = vmatprep.subr.mxu0 0.0
    %1373 = vmatpush1.msra.mxu0 0.0
    %1374 = vmatprep.subr.mxu0 0.0
    %1375 = vmatpush1.msra.mxu0 0.0
    %1376 = vmatprep.subr.mxu0 0.0
    %1377 = vmatpush1.msra.mxu0 0.0
    %1378 = vmatprep.subr.mxu0 0.0
    %1379 = vmatpush1.msra.mxu0 0.0
    %1380 = vmatprep.subr.mxu0 0.0
    %1381 = vmatpush1.msra.mxu0 0.0
    %1382 = vmatprep.subr.mxu0 0.0
    %1383 = vmatpush1.msra.mxu0 0.0
    %1384 = vmatprep.subr.mxu0 0.0
    %1385 = vmatpush1.msra.mxu0 0.0
    %1386 = vmatprep.subr.mxu0 0.0
    %1387 = vmatpush1.msra.mxu0 0.0
    %1388 = vmatprep.subr.mxu0 0.0
    %1389 = vmatpush1.msra.mxu0 0.0
    %1390 = vmatprep.subr.mxu0 0.0
    %1391 = vmatpush1.msra.mxu0 0.0
    %1392 = vmatprep.subr.mxu0 0.0
    %1393 = vmatpush1.msra.mxu0 %v34
    %1394 = vmatprep.subr.mxu0 0.0
    %1395 = vmatpush1.msra.mxu0 %v33
    %1396 = vmatprep.subr.mxu0 0.0
    %1397 = vmatpush1.msra.mxu0 %v32
    %1398 = vmatprep.subr.mxu0 0.0
    %1399 = vmatpush1.msra.mxu0 %v31
    %1400 = vmatprep.subr.mxu0 0.0
    %1401 = vmatpush2.msra.mxu0 0.0
    %1402 = vmatprep.subr.mxu0 0.0
    %1403 = vmatpush2.msra.mxu0 0.0
    %1404 = vmatprep.subr.mxu0 0.0
    %1405 = vmatpush2.msra.mxu0 0.0
    %1406 = vmatprep.subr.mxu0 0.0
    %1407 = vmatpush2.msra.mxu0 0.0
    %1408 = vmatprep.subr.mxu0 0.0
    %1409 = vmatpush2.msra.mxu0 0.0
    %1410 = vmatprep.subr.mxu0 0.0
    %1411 = vmatpush2.msra.mxu0 0.0
    %1412 = vmatprep.subr.mxu0 0.0
    %1413 = vmatpush2.msra.mxu0 0.0
    %1414 = vmatprep.subr.mxu0 0.0
    %1415 = vmatpush2.msra.mxu0 0.0
    %1416 = vmatprep.subr.mxu0 0.0
    %1417 = vmatpush2.msra.mxu0 0.0
    %1418 = vmatprep.subr.mxu0 0.0
    %1419 = vmatpush2.msra.mxu0 0.0
    %1420 = vmatprep.subr.mxu0 0.0
    %1421 = vmatpush2.msra.mxu0 0.0
    %1422 = vmatprep.subr.mxu0 0.0
    %1423 = vmatpush2.msra.mxu0 0.0
    %1424 = vmatprep.subr.mxu0 0.0
    %1425 = vmatpush2.msra.mxu0 0.0
    %1426 = vmatprep.subr.mxu0 0.0
    %1427 = vmatpush2.msra.mxu0 0.0
    %1428 = vmatprep.subr.mxu0 0.0
    %1429 = vmatpush2.msra.mxu0 0.0
    %1430 = vmatprep.subr.mxu0 0.0
    %1431 = vmatpush2.msra.mxu0 0.0
    %1432 = vmatprep.mubr.f32.mxu0 0.0
    %1433 = vmatmul.mubr.f32.gmra.mxu0 %v1274
    %v1434 = vpop.f32.mrf.mxu0
    %v1435 = vadd.f32 %v59, %v1434
    %v1436 = vpop.f32.mrf.mxu0
    %1437 = vdwg.mxu0
    %1438 = vmatprep.subr.mxu0 0.0
    %1439 = vmatpush1.msra.mxu0 0.0
    %1440 = vmatprep.subr.mxu0 0.0
    %1441 = vmatpush1.msra.mxu0 0.0
    %1442 = vmatprep.subr.mxu0 0.0
    %1443 = vmatpush1.msra.mxu0 0.0
    %1444 = vmatprep.subr.mxu0 0.0
    %1445 = vmatpush1.msra.mxu0 0.0
    %1446 = vmatprep.subr.mxu0 0.0
    %1447 = vmatpush1.msra.mxu0 0.0
    %1448 = vmatprep.subr.mxu0 0.0
    %1449 = vmatpush1.msra.mxu0 0.0
    %1450 = vmatprep.subr.mxu0 0.0
    %1451 = vmatpush1.msra.mxu0 0.0
    %1452 = vmatprep.subr.mxu0 0.0
    %1453 = vmatpush1.msra.mxu0 0.0
    %1454 = vmatprep.subr.mxu0 0.0
    %1455 = vmatpush1.msra.mxu0 0.0
    %1456 = vmatprep.subr.mxu0 0.0
    %1457 = vmatpush1.msra.mxu0 0.0
    %1458 = vmatprep.subr.mxu0 0.0
    %1459 = vmatpush1.msra.mxu0 0.0
    %1460 = vmatprep.subr.mxu0 0.0
    %1461 = vmatpush1.msra.mxu0 0.0
    %1462 = vmatprep.subr.mxu0 0.0
    %1463 = vmatpush1.msra.mxu0 %v38
    %1464 = vmatprep.subr.mxu0 0.0
    %1465 = vmatpush1.msra.mxu0 %v37
    %1466 = vmatprep.subr.mxu0 0.0
    %1467 = vmatpush1.msra.mxu0 %v36
    %1468 = vmatprep.subr.mxu0 0.0
    %1469 = vmatpush1.msra.mxu0 %v35
    %1470 = vmatprep.subr.mxu0 0.0
    %1471 = vmatpush2.msra.mxu0 0.0
    %1472 = vmatprep.subr.mxu0 0.0
    %1473 = vmatpush2.msra.mxu0 0.0
    %1474 = vmatprep.subr.mxu0 0.0
    %1475 = vmatpush2.msra.mxu0 0.0
    %1476 = vmatprep.subr.mxu0 0.0
    %1477 = vmatpush2.msra.mxu0 0.0
    %1478 = vmatprep.subr.mxu0 0.0
    %1479 = vmatpush2.msra.mxu0 0.0
    %1480 = vmatprep.subr.mxu0 0.0
    %1481 = vmatpush2.msra.mxu0 0.0
    %1482 = vmatprep.subr.mxu0 0.0
    %1483 = vmatpush2.msra.mxu0 0.0
    %1484 = vmatprep.subr.mxu0 0.0
    %1485 = vmatpush2.msra.mxu0 0.0
    %1486 = vmatprep.subr.mxu0 0.0
    %1487 = vmatpush2.msra.mxu0 0.0
    %1488 = vmatprep.subr.mxu0 0.0
    %1489 = vmatpush2.msra.mxu0 0.0
    %1490 = vmatprep.subr.mxu0 0.0
    %1491 = vmatpush2.msra.mxu0 0.0
    %1492 = vmatprep.subr.mxu0 0.0
    %1493 = vmatpush2.msra.mxu0 0.0
    %1494 = vmatprep.subr.mxu0 0.0
    %1495 = vmatpush2.msra.mxu0 0.0
    %1496 = vmatprep.subr.mxu0 0.0
    %1497 = vmatpush2.msra.mxu0 0.0
    %1498 = vmatprep.subr.mxu0 0.0
    %1499 = vmatpush2.msra.mxu0 0.0
    %1500 = vmatprep.subr.mxu0 0.0
    %1501 = vmatpush2.msra.mxu0 0.0
    %1502 = vmatprep.mubr.f32.mxu0 0.0
    %1503 = vmatmul.mubr.f32.gmra.mxu0 %v1274
    %v1504 = vpop.f32.mrf.mxu0
    %v1505 = vadd.f32 %v60, %v1504
    %v1506 = vpop.f32.mrf.mxu0
    %1507 = vdwg.mxu0
    %v1509 = vsel %vm69, %v1367, 0
    %1511 = vmatprep.subr.mxu0 0.0
    %1512 = vmatpush1.msra.mxu0 0.0
    %1513 = vmatprep.subr.mxu0 0.0
    %1514 = vmatpush1.msra.mxu0 0.0
    %1515 = vmatprep.subr.mxu0 0.0
    %1516 = vmatpush1.msra.mxu0 0.0
    %1517 = vmatprep.subr.mxu0 0.0
    %1518 = vmatpush1.msra.mxu0 0.0
    %1519 = vmatprep.subr.mxu0 0.0
    %1520 = vmatpush1.msra.mxu0 0.0
    %1521 = vmatprep.subr.mxu0 0.0
    %1522 = vmatpush1.msra.mxu0 0.0
    %1523 = vmatprep.subr.mxu0 0.0
    %1524 = vmatpush1.msra.mxu0 0.0
    %1525 = vmatprep.subr.mxu0 0.0
    %1526 = vmatpush1.msra.mxu0 0.0
    %1527 = vmatprep.subr.mxu0 0.0
    %1528 = vmatpush1.msra.mxu0 0.0
    %1529 = vmatprep.subr.mxu0 0.0
    %1530 = vmatpush1.msra.mxu0 0.0
    %1531 = vmatprep.subr.mxu0 0.0
    %1532 = vmatpush1.msra.mxu0 0.0
    %1533 = vmatprep.subr.mxu0 0.0
    %1534 = vmatpush1.msra.mxu0 0.0
    %1535 = vmatprep.subr.mxu0 0.0
    %1536 = vmatpush1.msra.mxu0 %v42
    %1537 = vmatprep.subr.mxu0 0.0
    %1538 = vmatpush1.msra.mxu0 %v41
    %1539 = vmatprep.subr.mxu0 0.0
    %1540 = vmatpush1.msra.mxu0 %v40
    %1541 = vmatprep.subr.mxu0 0.0
    %1542 = vmatpush1.msra.mxu0 %v39
    %1543 = vmatprep.subr.mxu0 0.0
    %1544 = vmatpush2.msra.mxu0 0.0
    %1545 = vmatprep.subr.mxu0 0.0
    %1546 = vmatpush2.msra.mxu0 0.0
    %1547 = vmatprep.subr.mxu0 0.0
    %1548 = vmatpush2.msra.mxu0 0.0
    %1549 = vmatprep.subr.mxu0 0.0
    %1550 = vmatpush2.msra.mxu0 0.0
    %1551 = vmatprep.subr.mxu0 0.0
    %1552 = vmatpush2.msra.mxu0 0.0
    %1553 = vmatprep.subr.mxu0 0.0
    %1554 = vmatpush2.msra.mxu0 0.0
    %1555 = vmatprep.subr.mxu0 0.0
    %1556 = vmatpush2.msra.mxu0 0.0
    %1557 = vmatprep.subr.mxu0 0.0
    %1558 = vmatpush2.msra.mxu0 0.0
    %1559 = vmatprep.subr.mxu0 0.0
    %1560 = vmatpush2.msra.mxu0 0.0
    %1561 = vmatprep.subr.mxu0 0.0
    %1562 = vmatpush2.msra.mxu0 0.0
    %1563 = vmatprep.subr.mxu0 0.0
    %1564 = vmatpush2.msra.mxu0 0.0
    %1565 = vmatprep.subr.mxu0 0.0
    %1566 = vmatpush2.msra.mxu0 0.0
    %1567 = vmatprep.subr.mxu0 0.0
    %1568 = vmatpush2.msra.mxu0 0.0
    %1569 = vmatprep.subr.mxu0 0.0
    %1570 = vmatpush2.msra.mxu0 0.0
    %1571 = vmatprep.subr.mxu0 0.0
    %1572 = vmatpush2.msra.mxu0 0.0
    %1573 = vmatprep.subr.mxu0 0.0
    %1574 = vmatpush2.msra.mxu0 0.0
    %1575 = vmatprep.mubr.f32.mxu0 0.0
    %1576 = vmatmul.mubr.f32.gmra.mxu0 %v1509
    %v1577 = vpop.f32.mrf.mxu0
    %v1578 = vadd.f32 %v61, %v1577
    %v1579 = vpop.f32.mrf.mxu0
    %1580 = vdwg.mxu0
    %v1581 = vadd.f32 %v1578, %v1435
    %v1582 = vsel %vm287, %v1581, -inf
    %1583 = vmax.xlane.f32.xlu0 %v1582
    %v1584 = vpop.xlane.xlu0 %1583
    %v1585 = vsub.f32 %v1581, %v1584
    %v1586 = vmul.f32 %v1585, 1.442695
    %v1587 = vpow.pop %v1586
    %v1588 = vsel %vm287, %v1587, 0.0
    %1589 = vadd.xlane.f32.xlu0 %v1588
    %v1590 = vpop.xlane.xlu0 %1589
    %v1591 = vrcp.pop %v1590
    %v1592 = vmul.f32 %v1590, %v1591
    %v1593 = vsub.f32 2.0, %v1592
    %v1594 = vmul.f32 %v1591, %v1593
    %v1595 = vmul.f32 %v1587, %v1594
    %v1597 = vsel %vm302, %v1595, 0
    %1599 = vmatprep.subr.mxu0 0.0
    %1600 = vmatpush1.msra.mxu0 0.0
    %1601 = vmatprep.subr.mxu0 0.0
    %1602 = vmatpush1.msra.mxu0 0.0
    %1603 = vmatprep.subr.mxu0 0.0
    %1604 = vmatpush1.msra.mxu0 0.0
    %1605 = vmatprep.subr.mxu0 0.0
    %1606 = vmatpush1.msra.mxu0 0.0
    %1607 = vmatprep.subr.mxu0 0.0
    %1608 = vmatpush1.msra.mxu0 0.0
    %1609 = vmatprep.subr.mxu0 0.0
    %1610 = vmatpush1.msra.mxu0 0.0
    %1611 = vmatprep.subr.mxu0 0.0
    %1612 = vmatpush1.msra.mxu0 0.0
    %1613 = vmatprep.subr.mxu0 0.0
    %1614 = vmatpush1.msra.mxu0 0.0
    %1615 = vmatprep.subr.mxu0 0.0
    %1616 = vmatpush1.msra.mxu0 0.0
    %1617 = vmatprep.subr.mxu0 0.0
    %1618 = vmatpush1.msra.mxu0 0.0
    %1619 = vmatprep.subr.mxu0 0.0
    %1620 = vmatpush1.msra.mxu0 0.0
    %1621 = vmatprep.subr.mxu0 0.0
    %1622 = vmatpush1.msra.mxu0 0.0
    %1623 = vmatprep.subr.mxu0 0.0
    %1624 = vmatpush1.msra.mxu0 0.0
    %1625 = vmatprep.subr.mxu0 0.0
    %1626 = vmatpush1.msra.mxu0 0.0
    %1627 = vmatprep.subr.mxu0 0.0
    %1628 = vmatpush1.msra.mxu0 %v308
    %1629 = vmatprep.subr.mxu0 0.0
    %1630 = vmatpush1.msra.mxu0 %v64
    %1631 = vmatprep.subr.mxu0 0.0
    %1632 = vmatpush2.msra.mxu0 0.0
    %1633 = vmatprep.subr.mxu0 0.0
    %1634 = vmatpush2.msra.mxu0 0.0
    %1635 = vmatprep.subr.mxu0 0.0
    %1636 = vmatpush2.msra.mxu0 0.0
    %1637 = vmatprep.subr.mxu0 0.0
    %1638 = vmatpush2.msra.mxu0 0.0
    %1639 = vmatprep.subr.mxu0 0.0
    %1640 = vmatpush2.msra.mxu0 0.0
    %1641 = vmatprep.subr.mxu0 0.0
    %1642 = vmatpush2.msra.mxu0 0.0
    %1643 = vmatprep.subr.mxu0 0.0
    %1644 = vmatpush2.msra.mxu0 0.0
    %1645 = vmatprep.subr.mxu0 0.0
    %1646 = vmatpush2.msra.mxu0 0.0
    %1647 = vmatprep.subr.mxu0 0.0
    %1648 = vmatpush2.msra.mxu0 0.0
    %1649 = vmatprep.subr.mxu0 0.0
    %1650 = vmatpush2.msra.mxu0 0.0
    %1651 = vmatprep.subr.mxu0 0.0
    %1652 = vmatpush2.msra.mxu0 0.0
    %1653 = vmatprep.subr.mxu0 0.0
    %1654 = vmatpush2.msra.mxu0 0.0
    %1655 = vmatprep.subr.mxu0 0.0
    %1656 = vmatpush2.msra.mxu0 0.0
    %1657 = vmatprep.subr.mxu0 0.0
    %1658 = vmatpush2.msra.mxu0 0.0
    %1659 = vmatprep.subr.mxu0 0.0
    %1660 = vmatpush2.msra.mxu0 0.0
    %1661 = vmatprep.subr.mxu0 0.0
    %1662 = vmatpush2.msra.mxu0 0.0
    %1663 = vmatprep.mubr.f32.mxu0 0.0
    %1664 = vmatmul.mubr.f32.gmra.mxu0 %v1597
    %v1665 = vpop.f32.mrf.mxu0
    %v1666 = vadd.f32 0.0, %v1665
    %v1667 = vpop.f32.mrf.mxu0
    %1668 = vdwg.mxu0
    %1669 = vrot.lane.b32.xlu0 %v1578, 64
    %v1670 = vpop.permute.xlu0 %1669
    %v1672 = vsel %vm69, %v1666, 0
    %1674 = vmatprep.subr.mxu0 0.0
    %1675 = vmatpush1.msra.mxu0 0.0
    %1676 = vmatprep.subr.mxu0 0.0
    %1677 = vmatpush1.msra.mxu0 0.0
    %1678 = vmatprep.subr.mxu0 0.0
    %1679 = vmatpush1.msra.mxu0 0.0
    %1680 = vmatprep.subr.mxu0 0.0
    %1681 = vmatpush1.msra.mxu0 0.0
    %1682 = vmatprep.subr.mxu0 0.0
    %1683 = vmatpush1.msra.mxu0 0.0
    %1684 = vmatprep.subr.mxu0 0.0
    %1685 = vmatpush1.msra.mxu0 0.0
    %1686 = vmatprep.subr.mxu0 0.0
    %1687 = vmatpush1.msra.mxu0 0.0
    %1688 = vmatprep.subr.mxu0 0.0
    %1689 = vmatpush1.msra.mxu0 0.0
    %1690 = vmatprep.subr.mxu0 0.0
    %1691 = vmatpush1.msra.mxu0 0.0
    %1692 = vmatprep.subr.mxu0 0.0
    %1693 = vmatpush1.msra.mxu0 0.0
    %1694 = vmatprep.subr.mxu0 0.0
    %1695 = vmatpush1.msra.mxu0 0.0
    %1696 = vmatprep.subr.mxu0 0.0
    %1697 = vmatpush1.msra.mxu0 0.0
    %1698 = vmatprep.subr.mxu0 0.0
    %1699 = vmatpush1.msra.mxu0 %v54
    %1700 = vmatprep.subr.mxu0 0.0
    %1701 = vmatpush1.msra.mxu0 %v53
    %1702 = vmatprep.subr.mxu0 0.0
    %1703 = vmatpush1.msra.mxu0 %v52
    %1704 = vmatprep.subr.mxu0 0.0
    %1705 = vmatpush1.msra.mxu0 %v51
    %1706 = vmatprep.subr.mxu0 0.0
    %1707 = vmatpush2.msra.mxu0 0.0
    %1708 = vmatprep.subr.mxu0 0.0
    %1709 = vmatpush2.msra.mxu0 0.0
    %1710 = vmatprep.subr.mxu0 0.0
    %1711 = vmatpush2.msra.mxu0 0.0
    %1712 = vmatprep.subr.mxu0 0.0
    %1713 = vmatpush2.msra.mxu0 0.0
    %1714 = vmatprep.subr.mxu0 0.0
    %1715 = vmatpush2.msra.mxu0 0.0
    %1716 = vmatprep.subr.mxu0 0.0
    %1717 = vmatpush2.msra.mxu0 0.0
    %1718 = vmatprep.subr.mxu0 0.0
    %1719 = vmatpush2.msra.mxu0 0.0
    %1720 = vmatprep.subr.mxu0 0.0
    %1721 = vmatpush2.msra.mxu0 0.0
    %1722 = vmatprep.subr.mxu0 0.0
    %1723 = vmatpush2.msra.mxu0 0.0
    %1724 = vmatprep.subr.mxu0 0.0
    %1725 = vmatpush2.msra.mxu0 0.0
    %1726 = vmatprep.subr.mxu0 0.0
    %1727 = vmatpush2.msra.mxu0 0.0
    %1728 = vmatprep.subr.mxu0 0.0
    %1729 = vmatpush2.msra.mxu0 0.0
    %1730 = vmatprep.subr.mxu0 0.0
    %1731 = vmatpush2.msra.mxu0 0.0
    %1732 = vmatprep.subr.mxu0 0.0
    %1733 = vmatpush2.msra.mxu0 0.0
    %1734 = vmatprep.subr.mxu0 0.0
    %1735 = vmatpush2.msra.mxu0 0.0
    %1736 = vmatprep.subr.mxu0 0.0
    %1737 = vmatpush2.msra.mxu0 0.0
    %1738 = vmatprep.mubr.f32.mxu0 0.0
    %1739 = vmatmul.mubr.f32.gmra.mxu0 %v1672
    %v1740 = vpop.f32.mrf.mxu0
    %v1741 = vadd.f32 0.0, %v1740
    %v1742 = vpop.f32.mrf.mxu0
    %1743 = vdwg.mxu0
    %v1744 = vadd.f32 %v1670, %v1741
    %v1745 = vmax.f32 %v1744, 0.0
    %v1747 = vsel %vm69, %v1745, 0
    %1749 = vmatprep.subr.mxu0 0.0
    %1750 = vmatpush1.msra.mxu0 0.0
    %1751 = vmatprep.subr.mxu0 0.0
    %1752 = vmatpush1.msra.mxu0 0.0
    %1753 = vmatprep.subr.mxu0 0.0
    %1754 = vmatpush1.msra.mxu0 0.0
    %1755 = vmatprep.subr.mxu0 0.0
    %1756 = vmatpush1.msra.mxu0 0.0
    %1757 = vmatprep.subr.mxu0 0.0
    %1758 = vmatpush1.msra.mxu0 0.0
    %1759 = vmatprep.subr.mxu0 0.0
    %1760 = vmatpush1.msra.mxu0 0.0
    %1761 = vmatprep.subr.mxu0 0.0
    %1762 = vmatpush1.msra.mxu0 0.0
    %1763 = vmatprep.subr.mxu0 0.0
    %1764 = vmatpush1.msra.mxu0 0.0
    %1765 = vmatprep.subr.mxu0 0.0
    %1766 = vmatpush1.msra.mxu0 0.0
    %1767 = vmatprep.subr.mxu0 0.0
    %1768 = vmatpush1.msra.mxu0 0.0
    %1769 = vmatprep.subr.mxu0 0.0
    %1770 = vmatpush1.msra.mxu0 0.0
    %1771 = vmatprep.subr.mxu0 0.0
    %1772 = vmatpush1.msra.mxu0 0.0
    %1773 = vmatprep.subr.mxu0 0.0
    %1774 = vmatpush1.msra.mxu0 %v46
    %1775 = vmatprep.subr.mxu0 0.0
    %1776 = vmatpush1.msra.mxu0 %v45
    %1777 = vmatprep.subr.mxu0 0.0
    %1778 = vmatpush1.msra.mxu0 %v44
    %1779 = vmatprep.subr.mxu0 0.0
    %1780 = vmatpush1.msra.mxu0 %v43
    %1781 = vmatprep.subr.mxu0 0.0
    %1782 = vmatpush2.msra.mxu0 0.0
    %1783 = vmatprep.subr.mxu0 0.0
    %1784 = vmatpush2.msra.mxu0 0.0
    %1785 = vmatprep.subr.mxu0 0.0
    %1786 = vmatpush2.msra.mxu0 0.0
    %1787 = vmatprep.subr.mxu0 0.0
    %1788 = vmatpush2.msra.mxu0 0.0
    %1789 = vmatprep.subr.mxu0 0.0
    %1790 = vmatpush2.msra.mxu0 0.0
    %1791 = vmatprep.subr.mxu0 0.0
    %1792 = vmatpush2.msra.mxu0 0.0
    %1793 = vmatprep.subr.mxu0 0.0
    %1794 = vmatpush2.msra.mxu0 0.0
    %1795 = vmatprep.subr.mxu0 0.0
    %1796 = vmatpush2.msra.mxu0 0.0
    %1797 = vmatprep.subr.mxu0 0.0
    %1798 = vmatpush2.msra.mxu0 0.0
    %1799 = vmatprep.subr.mxu0 0.0
    %1800 = vmatpush2.msra.mxu0 0.0
    %1801 = vmatprep.subr.mxu0 0.0
    %1802 = vmatpush2.msra.mxu0 0.0
    %1803 = vmatprep.subr.mxu0 0.0
    %1804 = vmatpush2.msra.mxu0 0.0
    %1805 = vmatprep.subr.mxu0 0.0
    %1806 = vmatpush2.msra.mxu0 0.0
    %1807 = vmatprep.subr.mxu0 0.0
    %1808 = vmatpush2.msra.mxu0 0.0
    %1809 = vmatprep.subr.mxu0 0.0
    %1810 = vmatpush2.msra.mxu0 0.0
    %1811 = vmatprep.subr.mxu0 0.0
    %1812 = vmatpush2.msra.mxu0 0.0
    %1813 = vmatprep.mubr.f32.mxu0 0.0
    %1814 = vmatmul.mubr.f32.gmra.mxu0 %v1747
    %v1815 = vpop.f32.mrf.mxu0
    %v1816 = vadd.f32 0.0, %v1815
    %v1817 = vpop.f32.mrf.mxu0
    %1818 = vdwg.mxu0
    %1819 = vmatprep.subr.mxu0 0.0
    %1820 = vmatpush1.msra.mxu0 0.0
    %1821 = vmatprep.subr.mxu0 0.0
    %1822 = vmatpush1.msra.mxu0 0.0
    %1823 = vmatprep.subr.mxu0 0.0
    %1824 = vmatpush1.msra.mxu0 0.0
    %1825 = vmatprep.subr.mxu0 0.0
    %1826 = vmatpush1.msra.mxu0 0.0
    %1827 = vmatprep.subr.mxu0 0.0
    %1828 = vmatpush1.msra.mxu0 0.0
    %1829 = vmatprep.subr.mxu0 0.0
    %1830 = vmatpush1.msra.mxu0 0.0
    %1831 = vmatprep.subr.mxu0 0.0
    %1832 = vmatpush1.msra.mxu0 0.0
    %1833 = vmatprep.subr.mxu0 0.0
    %1834 = vmatpush1.msra.mxu0 0.0
    %1835 = vmatprep.subr.mxu0 0.0
    %1836 = vmatpush1.msra.mxu0 0.0
    %1837 = vmatprep.subr.mxu0 0.0
    %1838 = vmatpush1.msra.mxu0 0.0
    %1839 = vmatprep.subr.mxu0 0.0
    %1840 = vmatpush1.msra.mxu0 0.0
    %1841 = vmatprep.subr.mxu0 0.0
    %1842 = vmatpush1.msra.mxu0 0.0
    %1843 = vmatprep.subr.mxu0 0.0
    %1844 = vmatpush1.msra.mxu0 %v50
    %1845 = vmatprep.subr.mxu0 0.0
    %1846 = vmatpush1.msra.mxu0 %v49
    %1847 = vmatprep.subr.mxu0 0.0
    %1848 = vmatpush1.msra.mxu0 %v48
    %1849 = vmatprep.subr.mxu0 0.0
    %1850 = vmatpush1.msra.mxu0 %v47
    %1851 = vmatprep.subr.mxu0 0.0
    %1852 = vmatpush2.msra.mxu0 0.0
    %1853 = vmatprep.subr.mxu0 0.0
    %1854 = vmatpush2.msra.mxu0 0.0
    %1855 = vmatprep.subr.mxu0 0.0
    %1856 = vmatpush2.msra.mxu0 0.0
    %1857 = vmatprep.subr.mxu0 0.0
    %1858 = vmatpush2.msra.mxu0 0.0
    %1859 = vmatprep.subr.mxu0 0.0
    %1860 = vmatpush2.msra.mxu0 0.0
    %1861 = vmatprep.subr.mxu0 0.0
    %1862 = vmatpush2.msra.mxu0 0.0
    %1863 = vmatprep.subr.mxu0 0.0
    %1864 = vmatpush2.msra.mxu0 0.0
    %1865 = vmatprep.subr.mxu0 0.0
    %1866 = vmatpush2.msra.mxu0 0.0
    %1867 = vmatprep.subr.mxu0 0.0
    %1868 = vmatpush2.msra.mxu0 0.0
    %1869 = vmatprep.subr.mxu0 0.0
    %1870 = vmatpush2.msra.mxu0 0.0
    %1871 = vmatprep.subr.mxu0 0.0
    %1872 = vmatpush2.msra.mxu0 0.0
    %1873 = vmatprep.subr.mxu0 0.0
    %1874 = vmatpush2.msra.mxu0 0.0
    %1875 = vmatprep.subr.mxu0 0.0
    %1876 = vmatpush2.msra.mxu0 0.0
    %1877 = vmatprep.subr.mxu0 0.0
    %1878 = vmatpush2.msra.mxu0 0.0
    %1879 = vmatprep.subr.mxu0 0.0
    %1880 = vmatpush2.msra.mxu0 0.0
    %1881 = vmatprep.subr.mxu0 0.0
    %1882 = vmatpush2.msra.mxu0 0.0
    %1883 = vmatprep.mubr.f32.mxu0 0.0
    %1884 = vmatmul.mubr.f32.gmra.mxu0 %v1747
    %v1885 = vpop.f32.mrf.mxu0
    %v1886 = vadd.f32 %v62, %v1885
    %v1887 = vpop.f32.mrf.mxu0
    %1888 = vdwg.mxu0
    %1889 = vrot.lane.b32.xlu0 %v1435, 64
    %v1890 = vpop.permute.xlu0 %1889
    %v1891 = vadd.f32 %v1816, %v1890
    %v1892 = vxor.u32 %v1891, 2147483648
    %v1893 = vmul.f32 %v1892, 1.442695
    %v1894 = vpow.pop %v1893
    %v1895 = vadd.f32 %v1894, 1.0
    %v1896 = vrcp.pop %v1895
    %v1897 = vmul.f32 1.0, %v1896
    %1898 = vrot.lane.b32.xlu0 %v1816, 64
    %v1899 = vpop.permute.xlu0 %1898
    %v1900 = vadd.f32 %v1899, %v1505
    %v1901 = vxor.u32 %v1900, 2147483648
    %v1902 = vmul.f32 %v1901, 1.442695
    %v1903 = vpow.pop %v1902
    %v1904 = vadd.f32 %v1903, 1.0
    %v1905 = vrcp.pop %v1904
    %v1906 = vmul.f32 1.0, %v1905
    %1907 = vrot.lane.b32.xlu0 %v1505, 64
    %v1908 = vpop.permute.xlu0 %1907
    %v1909 = vmul.f32 %v1897, %v1908
    %v1910 = vadd.f32 %v1886, %v1909
    %v1911 = vtanh.pop %v1910
    %v1912 = vsub.f32 1.0, %v1906
    %v1913 = vmul.f32 %v1912, %v1911
    %v1914 = vmul.f32 %v1906, %v1272
    %v1915 = vadd.f32 %v1913, %v1914
    %v1917 = vsel %vm69, %v1915, 0
    %1919 = vmatprep.subr.mxu0 0.0
    %1920 = vmatpush1.msra.mxu0 0.0
    %1921 = vmatprep.subr.mxu0 0.0
    %1922 = vmatpush1.msra.mxu0 0.0
    %1923 = vmatprep.subr.mxu0 0.0
    %1924 = vmatpush1.msra.mxu0 0.0
    %1925 = vmatprep.subr.mxu0 0.0
    %1926 = vmatpush1.msra.mxu0 0.0
    %1927 = vmatprep.subr.mxu0 0.0
    %1928 = vmatpush1.msra.mxu0 0.0
    %1929 = vmatprep.subr.mxu0 0.0
    %1930 = vmatpush1.msra.mxu0 0.0
    %1931 = vmatprep.subr.mxu0 0.0
    %1932 = vmatpush1.msra.mxu0 0.0
    %1933 = vmatprep.subr.mxu0 0.0
    %1934 = vmatpush1.msra.mxu0 0.0
    %1935 = vmatprep.subr.mxu0 0.0
    %1936 = vmatpush1.msra.mxu0 0.0
    %1937 = vmatprep.subr.mxu0 0.0
    %1938 = vmatpush1.msra.mxu0 0.0
    %1939 = vmatprep.subr.mxu0 0.0
    %1940 = vmatpush1.msra.mxu0 0.0
    %1941 = vmatprep.subr.mxu0 0.0
    %1942 = vmatpush1.msra.mxu0 0.0
    %1943 = vmatprep.subr.mxu0 0.0
    %1944 = vmatpush1.msra.mxu0 %v58
    %1945 = vmatprep.subr.mxu0 0.0
    %1946 = vmatpush1.msra.mxu0 %v57
    %1947 = vmatprep.subr.mxu0 0.0
    %1948 = vmatpush1.msra.mxu0 %v56
    %1949 = vmatprep.subr.mxu0 0.0
    %1950 = vmatpush1.msra.mxu0 %v55
    %1951 = vmatprep.subr.mxu0 0.0
    %1952 = vmatpush2.msra.mxu0 0.0
    %1953 = vmatprep.subr.mxu0 0.0
    %1954 = vmatpush2.msra.mxu0 0.0
    %1955 = vmatprep.subr.mxu0 0.0
    %1956 = vmatpush2.msra.mxu0 0.0
    %1957 = vmatprep.subr.mxu0 0.0
    %1958 = vmatpush2.msra.mxu0 0.0
    %1959 = vmatprep.subr.mxu0 0.0
    %1960 = vmatpush2.msra.mxu0 0.0
    %1961 = vmatprep.subr.mxu0 0.0
    %1962 = vmatpush2.msra.mxu0 0.0
    %1963 = vmatprep.subr.mxu0 0.0
    %1964 = vmatpush2.msra.mxu0 0.0
    %1965 = vmatprep.subr.mxu0 0.0
    %1966 = vmatpush2.msra.mxu0 0.0
    %1967 = vmatprep.subr.mxu0 0.0
    %1968 = vmatpush2.msra.mxu0 0.0
    %1969 = vmatprep.subr.mxu0 0.0
    %1970 = vmatpush2.msra.mxu0 0.0
    %1971 = vmatprep.subr.mxu0 0.0
    %1972 = vmatpush2.msra.mxu0 0.0
    %1973 = vmatprep.subr.mxu0 0.0
    %1974 = vmatpush2.msra.mxu0 0.0
    %1975 = vmatprep.subr.mxu0 0.0
    %1976 = vmatpush2.msra.mxu0 0.0
    %1977 = vmatprep.subr.mxu0 0.0
    %1978 = vmatpush2.msra.mxu0 0.0
    %1979 = vmatprep.subr.mxu0 0.0
    %1980 = vmatpush2.msra.mxu0 0.0
    %1981 = vmatprep.subr.mxu0 0.0
    %1982 = vmatpush2.msra.mxu0 0.0
    %1983 = vmatprep.mubr.f32.mxu0 0.0
    %1984 = vmatmul.mubr.f32.gmra.mxu0 %v1917
    %v1985 = vpop.f32.mrf.mxu0
    %v1986 = vadd.f32 %v63, %v1985
    %v1987 = vpop.f32.mrf.mxu0
    %1988 = vdwg.mxu0
    %v1989 = vsel %vm700, %v1986, -inf
    %1990 = vmax.xlane.f32.xlu0 %v1989
    %v1991 = vpop.xlane.xlu0 %1990
    %v1992 = vsub.f32 %v1986, %v1991
    %v1993 = vmul.f32 %v1992, 1.442695
    %v1994 = vpow.pop %v1993
    %v1995 = vsel %vm700, %v1994, 0.0
    %1996 = vadd.xlane.f32.xlu0 %v1995
    %v1997 = vpop.xlane.xlu0 %1996
    %v1998 = vlog2.pop %v1997
    %v1999 = vmul.f32 %v1998, 0.6931472
    %v2000 = vsub.f32 %v1992, %v1999
    %2001 = vst.msk [vmem:[%s4 + $0x2] sm:$0x1] %vm700, %v2000
    %2002 = vrot.lane.b32.xlu0 %v1915, 32
    %v2003 = vpop.permute.xlu0 %2002
    %2005 = vst.msk [vmem:[%s4 + $0x2] sm:$0x1] %vm717, %v2003
    %2006 = vrot.lane.b32.xlu0 %v1595, 64
    %v2007 = vpop.permute.xlu0 %2006
    %2009 = vst.msk [vmem:[%s4 + $0x2] sm:$0x1] %vm722, %v2007
    %v2010 = vld [vmem:[%s0 + $0x3] sm:$0x1]
    %2011 = vmatprep.subr.mxu0 0.0
    %2012 = vmatpush1.msra.mxu0 0.0
    %2013 = vmatprep.subr.mxu0 0.0
    %2014 = vmatpush1.msra.mxu0 0.0
    %2015 = vmatprep.subr.mxu0 0.0
    %2016 = vmatpush1.msra.mxu0 0.0
    %2017 = vmatprep.subr.mxu0 0.0
    %2018 = vmatpush1.msra.mxu0 0.0
    %2019 = vmatprep.subr.mxu0 0.0
    %2020 = vmatpush1.msra.mxu0 0.0
    %2021 = vmatprep.subr.mxu0 0.0
    %2022 = vmatpush1.msra.mxu0 0.0
    %2023 = vmatprep.subr.mxu0 0.0
    %2024 = vmatpush1.msra.mxu0 0.0
    %2025 = vmatprep.subr.mxu0 0.0
    %2026 = vmatpush1.msra.mxu0 0.0
    %2027 = vmatprep.subr.mxu0 0.0
    %2028 = vmatpush1.msra.mxu0 0.0
    %2029 = vmatprep.subr.mxu0 0.0
    %2030 = vmatpush1.msra.mxu0 0.0
    %2031 = vmatprep.subr.mxu0 0.0
    %2032 = vmatpush1.msra.mxu0 0.0
    %2033 = vmatprep.subr.mxu0 0.0
    %2034 = vmatpush1.msra.mxu0 0.0
    %2035 = vmatprep.subr.mxu0 0.0
    %2036 = vmatpush1.msra.mxu0 %v34
    %2037 = vmatprep.subr.mxu0 0.0
    %2038 = vmatpush1.msra.mxu0 %v33
    %2039 = vmatprep.subr.mxu0 0.0
    %2040 = vmatpush1.msra.mxu0 %v32
    %2041 = vmatprep.subr.mxu0 0.0
    %2042 = vmatpush1.msra.mxu0 %v31
    %2043 = vmatprep.subr.mxu0 0.0
    %2044 = vmatpush2.msra.mxu0 0.0
    %2045 = vmatprep.subr.mxu0 0.0
    %2046 = vmatpush2.msra.mxu0 0.0
    %2047 = vmatprep.subr.mxu0 0.0
    %2048 = vmatpush2.msra.mxu0 0.0
    %2049 = vmatprep.subr.mxu0 0.0
    %2050 = vmatpush2.msra.mxu0 0.0
    %2051 = vmatprep.subr.mxu0 0.0
    %2052 = vmatpush2.msra.mxu0 0.0
    %2053 = vmatprep.subr.mxu0 0.0
    %2054 = vmatpush2.msra.mxu0 0.0
    %2055 = vmatprep.subr.mxu0 0.0
    %2056 = vmatpush2.msra.mxu0 0.0
    %2057 = vmatprep.subr.mxu0 0.0
    %2058 = vmatpush2.msra.mxu0 0.0
    %2059 = vmatprep.subr.mxu0 0.0
    %2060 = vmatpush2.msra.mxu0 0.0
    %2061 = vmatprep.subr.mxu0 0.0
    %2062 = vmatpush2.msra.mxu0 0.0
    %2063 = vmatprep.subr.mxu0 0.0
    %2064 = vmatpush2.msra.mxu0 0.0
    %2065 = vmatprep.subr.mxu0 0.0
    %2066 = vmatpush2.msra.mxu0 0.0
    %2067 = vmatprep.subr.mxu0 0.0
    %2068 = vmatpush2.msra.mxu0 0.0
    %2069 = vmatprep.subr.mxu0 0.0
    %2070 = vmatpush2.msra.mxu0 0.0
    %2071 = vmatprep.subr.mxu0 0.0
    %2072 = vmatpush2.msra.mxu0 0.0
    %2073 = vmatprep.subr.mxu0 0.0
    %2074 = vmatpush2.msra.mxu0 0.0
    %2075 = vmatprep.mubr.f32.mxu0 0.0
    %2076 = vmatmul.mubr.f32.gmra.mxu0 %v1917
    %v2077 = vpop.f32.mrf.mxu0
    %v2078 = vadd.f32 %v59, %v2077
    %v2079 = vpop.f32.mrf.mxu0
    %2080 = vdwg.mxu0
    %2081 = vmatprep.subr.mxu0 0.0
    %2082 = vmatpush1.msra.mxu0 0.0
    %2083 = vmatprep.subr.mxu0 0.0
    %2084 = vmatpush1.msra.mxu0 0.0
    %2085 = vmatprep.subr.mxu0 0.0
    %2086 = vmatpush1.msra.mxu0 0.0
    %2087 = vmatprep.subr.mxu0 0.0
    %2088 = vmatpush1.msra.mxu0 0.0
    %2089 = vmatprep.subr.mxu0 0.0
    %2090 = vmatpush1.msra.mxu0 0.0
    %2091 = vmatprep.subr.mxu0 0.0
    %2092 = vmatpush1.msra.mxu0 0.0
    %2093 = vmatprep.subr.mxu0 0.0
    %2094 = vmatpush1.msra.mxu0 0.0
    %2095 = vmatprep.subr.mxu0 0.0
    %2096 = vmatpush1.msra.mxu0 0.0
    %2097 = vmatprep.subr.mxu0 0.0
    %2098 = vmatpush1.msra.mxu0 0.0
    %2099 = vmatprep.subr.mxu0 0.0
    %2100 = vmatpush1.msra.mxu0 0.0
    %2101 = vmatprep.subr.mxu0 0.0
    %2102 = vmatpush1.msra.mxu0 0.0
    %2103 = vmatprep.subr.mxu0 0.0
    %2104 = vmatpush1.msra.mxu0 0.0
    %2105 = vmatprep.subr.mxu0 0.0
    %2106 = vmatpush1.msra.mxu0 %v38
    %2107 = vmatprep.subr.mxu0 0.0
    %2108 = vmatpush1.msra.mxu0 %v37
    %2109 = vmatprep.subr.mxu0 0.0
    %2110 = vmatpush1.msra.mxu0 %v36
    %2111 = vmatprep.subr.mxu0 0.0
    %2112 = vmatpush1.msra.mxu0 %v35
    %2113 = vmatprep.subr.mxu0 0.0
    %2114 = vmatpush2.msra.mxu0 0.0
    %2115 = vmatprep.subr.mxu0 0.0
    %2116 = vmatpush2.msra.mxu0 0.0
    %2117 = vmatprep.subr.mxu0 0.0
    %2118 = vmatpush2.msra.mxu0 0.0
    %2119 = vmatprep.subr.mxu0 0.0
    %2120 = vmatpush2.msra.mxu0 0.0
    %2121 = vmatprep.subr.mxu0 0.0
    %2122 = vmatpush2.msra.mxu0 0.0
    %2123 = vmatprep.subr.mxu0 0.0
    %2124 = vmatpush2.msra.mxu0 0.0
    %2125 = vmatprep.subr.mxu0 0.0
    %2126 = vmatpush2.msra.mxu0 0.0
    %2127 = vmatprep.subr.mxu0 0.0
    %2128 = vmatpush2.msra.mxu0 0.0
    %2129 = vmatprep.subr.mxu0 0.0
    %2130 = vmatpush2.msra.mxu0 0.0
    %2131 = vmatprep.subr.mxu0 0.0
    %2132 = vmatpush2.msra.mxu0 0.0
    %2133 = vmatprep.subr.mxu0 0.0
    %2134 = vmatpush2.msra.mxu0 0.0
    %2135 = vmatprep.subr.mxu0 0.0
    %2136 = vmatpush2.msra.mxu0 0.0
    %2137 = vmatprep.subr.mxu0 0.0
    %2138 = vmatpush2.msra.mxu0 0.0
    %2139 = vmatprep.subr.mxu0 0.0
    %2140 = vmatpush2.msra.mxu0 0.0
    %2141 = vmatprep.subr.mxu0 0.0
    %2142 = vmatpush2.msra.mxu0 0.0
    %2143 = vmatprep.subr.mxu0 0.0
    %2144 = vmatpush2.msra.mxu0 0.0
    %2145 = vmatprep.mubr.f32.mxu0 0.0
    %2146 = vmatmul.mubr.f32.gmra.mxu0 %v1917
    %v2147 = vpop.f32.mrf.mxu0
    %v2148 = vadd.f32 %v60, %v2147
    %v2149 = vpop.f32.mrf.mxu0
    %2150 = vdwg.mxu0
    %v2152 = vsel %vm69, %v2010, 0
    %2154 = vmatprep.subr.mxu0 0.0
    %2155 = vmatpush1.msra.mxu0 0.0
    %2156 = vmatprep.subr.mxu0 0.0
    %2157 = vmatpush1.msra.mxu0 0.0
    %2158 = vmatprep.subr.mxu0 0.0
    %2159 = vmatpush1.msra.mxu0 0.0
    %2160 = vmatprep.subr.mxu0 0.0
    %2161 = vmatpush1.msra.mxu0 0.0
    %2162 = vmatprep.subr.mxu0 0.0
    %2163 = vmatpush1.msra.mxu0 0.0
    %2164 = vmatprep.subr.mxu0 0.0
    %2165 = vmatpush1.msra.mxu0 0.0
    %2166 = vmatprep.subr.mxu0 0.0
    %2167 = vmatpush1.msra.mxu0 0.0
    %2168 = vmatprep.subr.mxu0 0.0
    %2169 = vmatpush1.msra.mxu0 0.0
    %2170 = vmatprep.subr.mxu0 0.0
    %2171 = vmatpush1.msra.mxu0 0.0
    %2172 = vmatprep.subr.mxu0 0.0
    %2173 = vmatpush1.msra.mxu0 0.0
    %2174 = vmatprep.subr.mxu0 0.0
    %2175 = vmatpush1.msra.mxu0 0.0
    %2176 = vmatprep.subr.mxu0 0.0
    %2177 = vmatpush1.msra.mxu0 0.0
    %2178 = vmatprep.subr.mxu0 0.0
    %2179 = vmatpush1.msra.mxu0 %v42
    %2180 = vmatprep.subr.mxu0 0.0
    %2181 = vmatpush1.msra.mxu0 %v41
    %2182 = vmatprep.subr.mxu0 0.0
    %2183 = vmatpush1.msra.mxu0 %v40
    %2184 = vmatprep.subr.mxu0 0.0
    %2185 = vmatpush1.msra.mxu0 %v39
    %2186 = vmatprep.subr.mxu0 0.0
    %2187 = vmatpush2.msra.mxu0 0.0
    %2188 = vmatprep.subr.mxu0 0.0
    %2189 = vmatpush2.msra.mxu0 0.0
    %2190 = vmatprep.subr.mxu0 0.0
    %2191 = vmatpush2.msra.mxu0 0.0
    %2192 = vmatprep.subr.mxu0 0.0
    %2193 = vmatpush2.msra.mxu0 0.0
    %2194 = vmatprep.subr.mxu0 0.0
    %2195 = vmatpush2.msra.mxu0 0.0
    %2196 = vmatprep.subr.mxu0 0.0
    %2197 = vmatpush2.msra.mxu0 0.0
    %2198 = vmatprep.subr.mxu0 0.0
    %2199 = vmatpush2.msra.mxu0 0.0
    %2200 = vmatprep.subr.mxu0 0.0
    %2201 = vmatpush2.msra.mxu0 0.0
    %2202 = vmatprep.subr.mxu0 0.0
    %2203 = vmatpush2.msra.mxu0 0.0
    %2204 = vmatprep.subr.mxu0 0.0
    %2205 = vmatpush2.msra.mxu0 0.0
    %2206 = vmatprep.subr.mxu0 0.0
    %2207 = vmatpush2.msra.mxu0 0.0
    %2208 = vmatprep.subr.mxu0 0.0
    %2209 = vmatpush2.msra.mxu0 0.0
    %2210 = vmatprep.subr.mxu0 0.0
    %2211 = vmatpush2.msra.mxu0 0.0
    %2212 = vmatprep.subr.mxu0 0.0
    %2213 = vmatpush2.msra.mxu0 0.0
    %2214 = vmatprep.subr.mxu0 0.0
    %2215 = vmatpush2.msra.mxu0 0.0
    %2216 = vmatprep.subr.mxu0 0.0
    %2217 = vmatpush2.msra.mxu0 0.0
    %2218 = vmatprep.mubr.f32.mxu0 0.0
    %2219 = vmatmul.mubr.f32.gmra.mxu0 %v2152
    %v2220 = vpop.f32.mrf.mxu0
    %v2221 = vadd.f32 %v61, %v2220
    %v2222 = vpop.f32.mrf.mxu0
    %2223 = vdwg.mxu0
    %v2224 = vadd.f32 %v2221, %v2078
    %v2225 = vsel %vm287, %v2224, -inf
    %2226 = vmax.xlane.f32.xlu0 %v2225
    %v2227 = vpop.xlane.xlu0 %2226
    %v2228 = vsub.f32 %v2224, %v2227
    %v2229 = vmul.f32 %v2228, 1.442695
    %v2230 = vpow.pop %v2229
    %v2231 = vsel %vm287, %v2230, 0.0
    %2232 = vadd.xlane.f32.xlu0 %v2231
    %v2233 = vpop.xlane.xlu0 %2232
    %v2234 = vrcp.pop %v2233
    %v2235 = vmul.f32 %v2233, %v2234
    %v2236 = vsub.f32 2.0, %v2235
    %v2237 = vmul.f32 %v2234, %v2236
    %v2238 = vmul.f32 %v2230, %v2237
    %v2240 = vsel %vm302, %v2238, 0
    %2242 = vmatprep.subr.mxu0 0.0
    %2243 = vmatpush1.msra.mxu0 0.0
    %2244 = vmatprep.subr.mxu0 0.0
    %2245 = vmatpush1.msra.mxu0 0.0
    %2246 = vmatprep.subr.mxu0 0.0
    %2247 = vmatpush1.msra.mxu0 0.0
    %2248 = vmatprep.subr.mxu0 0.0
    %2249 = vmatpush1.msra.mxu0 0.0
    %2250 = vmatprep.subr.mxu0 0.0
    %2251 = vmatpush1.msra.mxu0 0.0
    %2252 = vmatprep.subr.mxu0 0.0
    %2253 = vmatpush1.msra.mxu0 0.0
    %2254 = vmatprep.subr.mxu0 0.0
    %2255 = vmatpush1.msra.mxu0 0.0
    %2256 = vmatprep.subr.mxu0 0.0
    %2257 = vmatpush1.msra.mxu0 0.0
    %2258 = vmatprep.subr.mxu0 0.0
    %2259 = vmatpush1.msra.mxu0 0.0
    %2260 = vmatprep.subr.mxu0 0.0
    %2261 = vmatpush1.msra.mxu0 0.0
    %2262 = vmatprep.subr.mxu0 0.0
    %2263 = vmatpush1.msra.mxu0 0.0
    %2264 = vmatprep.subr.mxu0 0.0
    %2265 = vmatpush1.msra.mxu0 0.0
    %2266 = vmatprep.subr.mxu0 0.0
    %2267 = vmatpush1.msra.mxu0 0.0
    %2268 = vmatprep.subr.mxu0 0.0
    %2269 = vmatpush1.msra.mxu0 0.0
    %2270 = vmatprep.subr.mxu0 0.0
    %2271 = vmatpush1.msra.mxu0 %v308
    %2272 = vmatprep.subr.mxu0 0.0
    %2273 = vmatpush1.msra.mxu0 %v64
    %2274 = vmatprep.subr.mxu0 0.0
    %2275 = vmatpush2.msra.mxu0 0.0
    %2276 = vmatprep.subr.mxu0 0.0
    %2277 = vmatpush2.msra.mxu0 0.0
    %2278 = vmatprep.subr.mxu0 0.0
    %2279 = vmatpush2.msra.mxu0 0.0
    %2280 = vmatprep.subr.mxu0 0.0
    %2281 = vmatpush2.msra.mxu0 0.0
    %2282 = vmatprep.subr.mxu0 0.0
    %2283 = vmatpush2.msra.mxu0 0.0
    %2284 = vmatprep.subr.mxu0 0.0
    %2285 = vmatpush2.msra.mxu0 0.0
    %2286 = vmatprep.subr.mxu0 0.0
    %2287 = vmatpush2.msra.mxu0 0.0
    %2288 = vmatprep.subr.mxu0 0.0
    %2289 = vmatpush2.msra.mxu0 0.0
    %2290 = vmatprep.subr.mxu0 0.0
    %2291 = vmatpush2.msra.mxu0 0.0
    %2292 = vmatprep.subr.mxu0 0.0
    %2293 = vmatpush2.msra.mxu0 0.0
    %2294 = vmatprep.subr.mxu0 0.0
    %2295 = vmatpush2.msra.mxu0 0.0
    %2296 = vmatprep.subr.mxu0 0.0
    %2297 = vmatpush2.msra.mxu0 0.0
    %2298 = vmatprep.subr.mxu0 0.0
    %2299 = vmatpush2.msra.mxu0 0.0
    %2300 = vmatprep.subr.mxu0 0.0
    %2301 = vmatpush2.msra.mxu0 0.0
    %2302 = vmatprep.subr.mxu0 0.0
    %2303 = vmatpush2.msra.mxu0 0.0
    %2304 = vmatprep.subr.mxu0 0.0
    %2305 = vmatpush2.msra.mxu0 0.0
    %2306 = vmatprep.mubr.f32.mxu0 0.0
    %2307 = vmatmul.mubr.f32.gmra.mxu0 %v2240
    %v2308 = vpop.f32.mrf.mxu0
    %v2309 = vadd.f32 0.0, %v2308
    %v2310 = vpop.f32.mrf.mxu0
    %2311 = vdwg.mxu0
    %2312 = vrot.lane.b32.xlu0 %v2221, 64
    %v2313 = vpop.permute.xlu0 %2312
    %v2315 = vsel %vm69, %v2309, 0
    %2317 = vmatprep.subr.mxu0 0.0
    %2318 = vmatpush1.msra.mxu0 0.0
    %2319 = vmatprep.subr.mxu0 0.0
    %2320 = vmatpush1.msra.mxu0 0.0
    %2321 = vmatprep.subr.mxu0 0.0
    %2322 = vmatpush1.msra.mxu0 0.0
    %2323 = vmatprep.subr.mxu0 0.0
    %2324 = vmatpush1.msra.mxu0 0.0
    %2325 = vmatprep.subr.mxu0 0.0
    %2326 = vmatpush1.msra.mxu0 0.0
    %2327 = vmatprep.subr.mxu0 0.0
    %2328 = vmatpush1.msra.mxu0 0.0
    %2329 = vmatprep.subr.mxu0 0.0
    %2330 = vmatpush1.msra.mxu0 0.0
    %2331 = vmatprep.subr.mxu0 0.0
    %2332 = vmatpush1.msra.mxu0 0.0
    %2333 = vmatprep.subr.mxu0 0.0
    %2334 = vmatpush1.msra.mxu0 0.0
    %2335 = vmatprep.subr.mxu0 0.0
    %2336 = vmatpush1.msra.mxu0 0.0
    %2337 = vmatprep.subr.mxu0 0.0
    %2338 = vmatpush1.msra.mxu0 0.0
    %2339 = vmatprep.subr.mxu0 0.0
    %2340 = vmatpush1.msra.mxu0 0.0
    %2341 = vmatprep.subr.mxu0 0.0
    %2342 = vmatpush1.msra.mxu0 %v54
    %2343 = vmatprep.subr.mxu0 0.0
    %2344 = vmatpush1.msra.mxu0 %v53
    %2345 = vmatprep.subr.mxu0 0.0
    %2346 = vmatpush1.msra.mxu0 %v52
    %2347 = vmatprep.subr.mxu0 0.0
    %2348 = vmatpush1.msra.mxu0 %v51
    %2349 = vmatprep.subr.mxu0 0.0
    %2350 = vmatpush2.msra.mxu0 0.0
    %2351 = vmatprep.subr.mxu0 0.0
    %2352 = vmatpush2.msra.mxu0 0.0
    %2353 = vmatprep.subr.mxu0 0.0
    %2354 = vmatpush2.msra.mxu0 0.0
    %2355 = vmatprep.subr.mxu0 0.0
    %2356 = vmatpush2.msra.mxu0 0.0
    %2357 = vmatprep.subr.mxu0 0.0
    %2358 = vmatpush2.msra.mxu0 0.0
    %2359 = vmatprep.subr.mxu0 0.0
    %2360 = vmatpush2.msra.mxu0 0.0
    %2361 = vmatprep.subr.mxu0 0.0
    %2362 = vmatpush2.msra.mxu0 0.0
    %2363 = vmatprep.subr.mxu0 0.0
    %2364 = vmatpush2.msra.mxu0 0.0
    %2365 = vmatprep.subr.mxu0 0.0
    %2366 = vmatpush2.msra.mxu0 0.0
    %2367 = vmatprep.subr.mxu0 0.0
    %2368 = vmatpush2.msra.mxu0 0.0
    %2369 = vmatprep.subr.mxu0 0.0
    %2370 = vmatpush2.msra.mxu0 0.0
    %2371 = vmatprep.subr.mxu0 0.0
    %2372 = vmatpush2.msra.mxu0 0.0
    %2373 = vmatprep.subr.mxu0 0.0
    %2374 = vmatpush2.msra.mxu0 0.0
    %2375 = vmatprep.subr.mxu0 0.0
    %2376 = vmatpush2.msra.mxu0 0.0
    %2377 = vmatprep.subr.mxu0 0.0
    %2378 = vmatpush2.msra.mxu0 0.0
    %2379 = vmatprep.subr.mxu0 0.0
    %2380 = vmatpush2.msra.mxu0 0.0
    %2381 = vmatprep.mubr.f32.mxu0 0.0
    %2382 = vmatmul.mubr.f32.gmra.mxu0 %v2315
    %v2383 = vpop.f32.mrf.mxu0
    %v2384 = vadd.f32 0.0, %v2383
    %v2385 = vpop.f32.mrf.mxu0
    %2386 = vdwg.mxu0
    %v2387 = vadd.f32 %v2313, %v2384
    %v2388 = vmax.f32 %v2387, 0.0
    %v2390 = vsel %vm69, %v2388, 0
    %2392 = vmatprep.subr.mxu0 0.0
    %2393 = vmatpush1.msra.mxu0 0.0
    %2394 = vmatprep.subr.mxu0 0.0
    %2395 = vmatpush1.msra.mxu0 0.0
    %2396 = vmatprep.subr.mxu0 0.0
    %2397 = vmatpush1.msra.mxu0 0.0
    %2398 = vmatprep.subr.mxu0 0.0
    %2399 = vmatpush1.msra.mxu0 0.0
    %2400 = vmatprep.subr.mxu0 0.0
    %2401 = vmatpush1.msra.mxu0 0.0
    %2402 = vmatprep.subr.mxu0 0.0
    %2403 = vmatpush1.msra.mxu0 0.0
    %2404 = vmatprep.subr.mxu0 0.0
    %2405 = vmatpush1.msra.mxu0 0.0
    %2406 = vmatprep.subr.mxu0 0.0
    %2407 = vmatpush1.msra.mxu0 0.0
    %2408 = vmatprep.subr.mxu0 0.0
    %2409 = vmatpush1.msra.mxu0 0.0
    %2410 = vmatprep.subr.mxu0 0.0
    %2411 = vmatpush1.msra.mxu0 0.0
    %2412 = vmatprep.subr.mxu0 0.0
    %2413 = vmatpush1.msra.mxu0 0.0
    %2414 = vmatprep.subr.mxu0 0.0
    %2415 = vmatpush1.msra.mxu0 0.0
    %2416 = vmatprep.subr.mxu0 0.0
    %2417 = vmatpush1.msra.mxu0 %v46
    %2418 = vmatprep.subr.mxu0 0.0
    %2419 = vmatpush1.msra.mxu0 %v45
    %2420 = vmatprep.subr.mxu0 0.0
    %2421 = vmatpush1.msra.mxu0 %v44
    %2422 = vmatprep.subr.mxu0 0.0
    %2423 = vmatpush1.msra.mxu0 %v43
    %2424 = vmatprep.subr.mxu0 0.0
    %2425 = vmatpush2.msra.mxu0 0.0
    %2426 = vmatprep.subr.mxu0 0.0
    %2427 = vmatpush2.msra.mxu0 0.0
    %2428 = vmatprep.subr.mxu0 0.0
    %2429 = vmatpush2.msra.mxu0 0.0
    %2430 = vmatprep.subr.mxu0 0.0
    %2431 = vmatpush2.msra.mxu0 0.0
    %2432 = vmatprep.subr.mxu0 0.0
    %2433 = vmatpush2.msra.mxu0 0.0
    %2434 = vmatprep.subr.mxu0 0.0
    %2435 = vmatpush2.msra.mxu0 0.0
    %2436 = vmatprep.subr.mxu0 0.0
    %2437 = vmatpush2.msra.mxu0 0.0
    %2438 = vmatprep.subr.mxu0 0.0
    %2439 = vmatpush2.msra.mxu0 0.0
    %2440 = vmatprep.subr.mxu0 0.0
    %2441 = vmatpush2.msra.mxu0 0.0
    %2442 = vmatprep.subr.mxu0 0.0
    %2443 = vmatpush2.msra.mxu0 0.0
    %2444 = vmatprep.subr.mxu0 0.0
    %2445 = vmatpush2.msra.mxu0 0.0
    %2446 = vmatprep.subr.mxu0 0.0
    %2447 = vmatpush2.msra.mxu0 0.0
    %2448 = vmatprep.subr.mxu0 0.0
    %2449 = vmatpush2.msra.mxu0 0.0
    %2450 = vmatprep.subr.mxu0 0.0
    %2451 = vmatpush2.msra.mxu0 0.0
    %2452 = vmatprep.subr.mxu0 0.0
    %2453 = vmatpush2.msra.mxu0 0.0
    %2454 = vmatprep.subr.mxu0 0.0
    %2455 = vmatpush2.msra.mxu0 0.0
    %2456 = vmatprep.mubr.f32.mxu0 0.0
    %2457 = vmatmul.mubr.f32.gmra.mxu0 %v2390
    %v2458 = vpop.f32.mrf.mxu0
    %v2459 = vadd.f32 0.0, %v2458
    %v2460 = vpop.f32.mrf.mxu0
    %2461 = vdwg.mxu0
    %2462 = vmatprep.subr.mxu0 0.0
    %2463 = vmatpush1.msra.mxu0 0.0
    %2464 = vmatprep.subr.mxu0 0.0
    %2465 = vmatpush1.msra.mxu0 0.0
    %2466 = vmatprep.subr.mxu0 0.0
    %2467 = vmatpush1.msra.mxu0 0.0
    %2468 = vmatprep.subr.mxu0 0.0
    %2469 = vmatpush1.msra.mxu0 0.0
    %2470 = vmatprep.subr.mxu0 0.0
    %2471 = vmatpush1.msra.mxu0 0.0
    %2472 = vmatprep.subr.mxu0 0.0
    %2473 = vmatpush1.msra.mxu0 0.0
    %2474 = vmatprep.subr.mxu0 0.0
    %2475 = vmatpush1.msra.mxu0 0.0
    %2476 = vmatprep.subr.mxu0 0.0
    %2477 = vmatpush1.msra.mxu0 0.0
    %2478 = vmatprep.subr.mxu0 0.0
    %2479 = vmatpush1.msra.mxu0 0.0
    %2480 = vmatprep.subr.mxu0 0.0
    %2481 = vmatpush1.msra.mxu0 0.0
    %2482 = vmatprep.subr.mxu0 0.0
    %2483 = vmatpush1.msra.mxu0 0.0
    %2484 = vmatprep.subr.mxu0 0.0
    %2485 = vmatpush1.msra.mxu0 0.0
    %2486 = vmatprep.subr.mxu0 0.0
    %2487 = vmatpush1.msra.mxu0 %v50
    %2488 = vmatprep.subr.mxu0 0.0
    %2489 = vmatpush1.msra.mxu0 %v49
    %2490 = vmatprep.subr.mxu0 0.0
    %2491 = vmatpush1.msra.mxu0 %v48
    %2492 = vmatprep.subr.mxu0 0.0
    %2493 = vmatpush1.msra.mxu0 %v47
    %2494 = vmatprep.subr.mxu0 0.0
    %2495 = vmatpush2.msra.mxu0 0.0
    %2496 = vmatprep.subr.mxu0 0.0
    %2497 = vmatpush2.msra.mxu0 0.0
    %2498 = vmatprep.subr.mxu0 0.0
    %2499 = vmatpush2.msra.mxu0 0.0
    %2500 = vmatprep.subr.mxu0 0.0
    %2501 = vmatpush2.msra.mxu0 0.0
    %2502 = vmatprep.subr.mxu0 0.0
    %2503 = vmatpush2.msra.mxu0 0.0
    %2504 = vmatprep.subr.mxu0 0.0
    %2505 = vmatpush2.msra.mxu0 0.0
    %2506 = vmatprep.subr.mxu0 0.0
    %2507 = vmatpush2.msra.mxu0 0.0
    %2508 = vmatprep.subr.mxu0 0.0
    %2509 = vmatpush2.msra.mxu0 0.0
    %2510 = vmatprep.subr.mxu0 0.0
    %2511 = vmatpush2.msra.mxu0 0.0
    %2512 = vmatprep.subr.mxu0 0.0
    %2513 = vmatpush2.msra.mxu0 0.0
    %2514 = vmatprep.subr.mxu0 0.0
    %2515 = vmatpush2.msra.mxu0 0.0
    %2516 = vmatprep.subr.mxu0 0.0
    %2517 = vmatpush2.msra.mxu0 0.0
    %2518 = vmatprep.subr.mxu0 0.0
    %2519 = vmatpush2.msra.mxu0 0.0
    %2520 = vmatprep.subr.mxu0 0.0
    %2521 = vmatpush2.msra.mxu0 0.0
    %2522 = vmatprep.subr.mxu0 0.0
    %2523 = vmatpush2.msra.mxu0 0.0
    %2524 = vmatprep.subr.mxu0 0.0
    %2525 = vmatpush2.msra.mxu0 0.0
    %2526 = vmatprep.mubr.f32.mxu0 0.0
    %2527 = vmatmul.mubr.f32.gmra.mxu0 %v2390
    %v2528 = vpop.f32.mrf.mxu0
    %v2529 = vadd.f32 %v62, %v2528
    %v2530 = vpop.f32.mrf.mxu0
    %2531 = vdwg.mxu0
    %2532 = vrot.lane.b32.xlu0 %v2078, 64
    %v2533 = vpop.permute.xlu0 %2532
    %v2534 = vadd.f32 %v2459, %v2533
    %v2535 = vxor.u32 %v2534, 2147483648
    %v2536 = vmul.f32 %v2535, 1.442695
    %v2537 = vpow.pop %v2536
    %v2538 = vadd.f32 %v2537, 1.0
    %v2539 = vrcp.pop %v2538
    %v2540 = vmul.f32 1.0, %v2539
    %2541 = vrot.lane.b32.xlu0 %v2459, 64
    %v2542 = vpop.permute.xlu0 %2541
    %v2543 = vadd.f32 %v2542, %v2148
    %v2544 = vxor.u32 %v2543, 2147483648
    %v2545 = vmul.f32 %v2544, 1.442695
    %v2546 = vpow.pop %v2545
    %v2547 = vadd.f32 %v2546, 1.0
    %v2548 = vrcp.pop %v2547
    %v2549 = vmul.f32 1.0, %v2548
    %2550 = vrot.lane.b32.xlu0 %v2148, 64
    %v2551 = vpop.permute.xlu0 %2550
    %v2552 = vmul.f32 %v2540, %v2551
    %v2553 = vadd.f32 %v2529, %v2552
    %v2554 = vtanh.pop %v2553
    %v2555 = vsub.f32 1.0, %v2549
    %v2556 = vmul.f32 %v2555, %v2554
    %v2557 = vmul.f32 %v2549, %v1915
    %v2558 = vadd.f32 %v2556, %v2557
    %v2560 = vsel %vm69, %v2558, 0
    %2562 = vmatprep.subr.mxu0 0.0
    %2563 = vmatpush1.msra.mxu0 0.0
    %2564 = vmatprep.subr.mxu0 0.0
    %2565 = vmatpush1.msra.mxu0 0.0
    %2566 = vmatprep.subr.mxu0 0.0
    %2567 = vmatpush1.msra.mxu0 0.0
    %2568 = vmatprep.subr.mxu0 0.0
    %2569 = vmatpush1.msra.mxu0 0.0
    %2570 = vmatprep.subr.mxu0 0.0
    %2571 = vmatpush1.msra.mxu0 0.0
    %2572 = vmatprep.subr.mxu0 0.0
    %2573 = vmatpush1.msra.mxu0 0.0
    %2574 = vmatprep.subr.mxu0 0.0
    %2575 = vmatpush1.msra.mxu0 0.0
    %2576 = vmatprep.subr.mxu0 0.0
    %2577 = vmatpush1.msra.mxu0 0.0
    %2578 = vmatprep.subr.mxu0 0.0
    %2579 = vmatpush1.msra.mxu0 0.0
    %2580 = vmatprep.subr.mxu0 0.0
    %2581 = vmatpush1.msra.mxu0 0.0
    %2582 = vmatprep.subr.mxu0 0.0
    %2583 = vmatpush1.msra.mxu0 0.0
    %2584 = vmatprep.subr.mxu0 0.0
    %2585 = vmatpush1.msra.mxu0 0.0
    %2586 = vmatprep.subr.mxu0 0.0
    %2587 = vmatpush1.msra.mxu0 %v58
    %2588 = vmatprep.subr.mxu0 0.0
    %2589 = vmatpush1.msra.mxu0 %v57
    %2590 = vmatprep.subr.mxu0 0.0
    %2591 = vmatpush1.msra.mxu0 %v56
    %2592 = vmatprep.subr.mxu0 0.0
    %2593 = vmatpush1.msra.mxu0 %v55
    %2594 = vmatprep.subr.mxu0 0.0
    %2595 = vmatpush2.msra.mxu0 0.0
    %2596 = vmatprep.subr.mxu0 0.0
    %2597 = vmatpush2.msra.mxu0 0.0
    %2598 = vmatprep.subr.mxu0 0.0
    %2599 = vmatpush2.msra.mxu0 0.0
    %2600 = vmatprep.subr.mxu0 0.0
    %2601 = vmatpush2.msra.mxu0 0.0
    %2602 = vmatprep.subr.mxu0 0.0
    %2603 = vmatpush2.msra.mxu0 0.0
    %2604 = vmatprep.subr.mxu0 0.0
    %2605 = vmatpush2.msra.mxu0 0.0
    %2606 = vmatprep.subr.mxu0 0.0
    %2607 = vmatpush2.msra.mxu0 0.0
    %2608 = vmatprep.subr.mxu0 0.0
    %2609 = vmatpush2.msra.mxu0 0.0
    %2610 = vmatprep.subr.mxu0 0.0
    %2611 = vmatpush2.msra.mxu0 0.0
    %2612 = vmatprep.subr.mxu0 0.0
    %2613 = vmatpush2.msra.mxu0 0.0
    %2614 = vmatprep.subr.mxu0 0.0
    %2615 = vmatpush2.msra.mxu0 0.0
    %2616 = vmatprep.subr.mxu0 0.0
    %2617 = vmatpush2.msra.mxu0 0.0
    %2618 = vmatprep.subr.mxu0 0.0
    %2619 = vmatpush2.msra.mxu0 0.0
    %2620 = vmatprep.subr.mxu0 0.0
    %2621 = vmatpush2.msra.mxu0 0.0
    %2622 = vmatprep.subr.mxu0 0.0
    %2623 = vmatpush2.msra.mxu0 0.0
    %2624 = vmatprep.subr.mxu0 0.0
    %2625 = vmatpush2.msra.mxu0 0.0
    %2626 = vmatprep.mubr.f32.mxu0 0.0
    %2627 = vmatmul.mubr.f32.gmra.mxu0 %v2560
    %v2628 = vpop.f32.mrf.mxu0
    %v2629 = vadd.f32 %v63, %v2628
    %v2630 = vpop.f32.mrf.mxu0
    %2631 = vdwg.mxu0
    %v2632 = vsel %vm700, %v2629, -inf
    %2633 = vmax.xlane.f32.xlu0 %v2632
    %v2634 = vpop.xlane.xlu0 %2633
    %v2635 = vsub.f32 %v2629, %v2634
    %v2636 = vmul.f32 %v2635, 1.442695
    %v2637 = vpow.pop %v2636
    %v2638 = vsel %vm700, %v2637, 0.0
    %2639 = vadd.xlane.f32.xlu0 %v2638
    %v2640 = vpop.xlane.xlu0 %2639
    %v2641 = vlog2.pop %v2640
    %v2642 = vmul.f32 %v2641, 0.6931472
    %v2643 = vsub.f32 %v2635, %v2642
    %2644 = vst.msk [vmem:[%s4 + $0x3] sm:$0x1] %vm700, %v2643
    %2645 = vrot.lane.b32.xlu0 %v2558, 32
    %v2646 = vpop.permute.xlu0 %2645
    %2648 = vst.msk [vmem:[%s4 + $0x3] sm:$0x1] %vm717, %v2646
    %2649 = vrot.lane.b32.xlu0 %v2238, 64
    %v2650 = vpop.permute.xlu0 %2649
    %2652 = vst.msk [vmem:[%s4 + $0x3] sm:$0x1] %vm722, %v2650
    %v2653 = vld [vmem:[%s0 + $0x4] sm:$0x1]
    %2654 = vmatprep.subr.mxu0 0.0
    %2655 = vmatpush1.msra.mxu0 0.0
    %2656 = vmatprep.subr.mxu0 0.0
    %2657 = vmatpush1.msra.mxu0 0.0
    %2658 = vmatprep.subr.mxu0 0.0
    %2659 = vmatpush1.msra.mxu0 0.0
    %2660 = vmatprep.subr.mxu0 0.0
    %2661 = vmatpush1.msra.mxu0 0.0
    %2662 = vmatprep.subr.mxu0 0.0
    %2663 = vmatpush1.msra.mxu0 0.0
    %2664 = vmatprep.subr.mxu0 0.0
    %2665 = vmatpush1.msra.mxu0 0.0
    %2666 = vmatprep.subr.mxu0 0.0
    %2667 = vmatpush1.msra.mxu0 0.0
    %2668 = vmatprep.subr.mxu0 0.0
    %2669 = vmatpush1.msra.mxu0 0.0
    %2670 = vmatprep.subr.mxu0 0.0
    %2671 = vmatpush1.msra.mxu0 0.0
    %2672 = vmatprep.subr.mxu0 0.0
    %2673 = vmatpush1.msra.mxu0 0.0
    %2674 = vmatprep.subr.mxu0 0.0
    %2675 = vmatpush1.msra.mxu0 0.0
    %2676 = vmatprep.subr.mxu0 0.0
    %2677 = vmatpush1.msra.mxu0 0.0
    %2678 = vmatprep.subr.mxu0 0.0
    %2679 = vmatpush1.msra.mxu0 %v34
    %2680 = vmatprep.subr.mxu0 0.0
    %2681 = vmatpush1.msra.mxu0 %v33
    %2682 = vmatprep.subr.mxu0 0.0
    %2683 = vmatpush1.msra.mxu0 %v32
    %2684 = vmatprep.subr.mxu0 0.0
    %2685 = vmatpush1.msra.mxu0 %v31
    %2686 = vmatprep.subr.mxu0 0.0
    %2687 = vmatpush2.msra.mxu0 0.0
    %2688 = vmatprep.subr.mxu0 0.0
    %2689 = vmatpush2.msra.mxu0 0.0
    %2690 = vmatprep.subr.mxu0 0.0
    %2691 = vmatpush2.msra.mxu0 0.0
    %2692 = vmatprep.subr.mxu0 0.0
    %2693 = vmatpush2.msra.mxu0 0.0
    %2694 = vmatprep.subr.mxu0 0.0
    %2695 = vmatpush2.msra.mxu0 0.0
    %2696 = vmatprep.subr.mxu0 0.0
    %2697 = vmatpush2.msra.mxu0 0.0
    %2698 = vmatprep.subr.mxu0 0.0
    %2699 = vmatpush2.msra.mxu0 0.0
    %2700 = vmatprep.subr.mxu0 0.0
    %2701 = vmatpush2.msra.mxu0 0.0
    %2702 = vmatprep.subr.mxu0 0.0
    %2703 = vmatpush2.msra.mxu0 0.0
    %2704 = vmatprep.subr.mxu0 0.0
    %2705 = vmatpush2.msra.mxu0 0.0
    %2706 = vmatprep.subr.mxu0 0.0
    %2707 = vmatpush2.msra.mxu0 0.0
    %2708 = vmatprep.subr.mxu0 0.0
    %2709 = vmatpush2.msra.mxu0 0.0
    %2710 = vmatprep.subr.mxu0 0.0
    %2711 = vmatpush2.msra.mxu0 0.0
    %2712 = vmatprep.subr.mxu0 0.0
    %2713 = vmatpush2.msra.mxu0 0.0
    %2714 = vmatprep.subr.mxu0 0.0
    %2715 = vmatpush2.msra.mxu0 0.0
    %2716 = vmatprep.subr.mxu0 0.0
    %2717 = vmatpush2.msra.mxu0 0.0
    %2718 = vmatprep.mubr.f32.mxu0 0.0
    %2719 = vmatmul.mubr.f32.gmra.mxu0 %v2560
    %v2720 = vpop.f32.mrf.mxu0
    %v2721 = vadd.f32 %v59, %v2720
    %v2722 = vpop.f32.mrf.mxu0
    %2723 = vdwg.mxu0
    %2724 = vmatprep.subr.mxu0 0.0
    %2725 = vmatpush1.msra.mxu0 0.0
    %2726 = vmatprep.subr.mxu0 0.0
    %2727 = vmatpush1.msra.mxu0 0.0
    %2728 = vmatprep.subr.mxu0 0.0
    %2729 = vmatpush1.msra.mxu0 0.0
    %2730 = vmatprep.subr.mxu0 0.0
    %2731 = vmatpush1.msra.mxu0 0.0
    %2732 = vmatprep.subr.mxu0 0.0
    %2733 = vmatpush1.msra.mxu0 0.0
    %2734 = vmatprep.subr.mxu0 0.0
    %2735 = vmatpush1.msra.mxu0 0.0
    %2736 = vmatprep.subr.mxu0 0.0
    %2737 = vmatpush1.msra.mxu0 0.0
    %2738 = vmatprep.subr.mxu0 0.0
    %2739 = vmatpush1.msra.mxu0 0.0
    %2740 = vmatprep.subr.mxu0 0.0
    %2741 = vmatpush1.msra.mxu0 0.0
    %2742 = vmatprep.subr.mxu0 0.0
    %2743 = vmatpush1.msra.mxu0 0.0
    %2744 = vmatprep.subr.mxu0 0.0
    %2745 = vmatpush1.msra.mxu0 0.0
    %2746 = vmatprep.subr.mxu0 0.0
    %2747 = vmatpush1.msra.mxu0 0.0
    %2748 = vmatprep.subr.mxu0 0.0
    %2749 = vmatpush1.msra.mxu0 %v38
    %2750 = vmatprep.subr.mxu0 0.0
    %2751 = vmatpush1.msra.mxu0 %v37
    %2752 = vmatprep.subr.mxu0 0.0
    %2753 = vmatpush1.msra.mxu0 %v36
    %2754 = vmatprep.subr.mxu0 0.0
    %2755 = vmatpush1.msra.mxu0 %v35
    %2756 = vmatprep.subr.mxu0 0.0
    %2757 = vmatpush2.msra.mxu0 0.0
    %2758 = vmatprep.subr.mxu0 0.0
    %2759 = vmatpush2.msra.mxu0 0.0
    %2760 = vmatprep.subr.mxu0 0.0
    %2761 = vmatpush2.msra.mxu0 0.0
    %2762 = vmatprep.subr.mxu0 0.0
    %2763 = vmatpush2.msra.mxu0 0.0
    %2764 = vmatprep.subr.mxu0 0.0
    %2765 = vmatpush2.msra.mxu0 0.0
    %2766 = vmatprep.subr.mxu0 0.0
    %2767 = vmatpush2.msra.mxu0 0.0
    %2768 = vmatprep.subr.mxu0 0.0
    %2769 = vmatpush2.msra.mxu0 0.0
    %2770 = vmatprep.subr.mxu0 0.0
    %2771 = vmatpush2.msra.mxu0 0.0
    %2772 = vmatprep.subr.mxu0 0.0
    %2773 = vmatpush2.msra.mxu0 0.0
    %2774 = vmatprep.subr.mxu0 0.0
    %2775 = vmatpush2.msra.mxu0 0.0
    %2776 = vmatprep.subr.mxu0 0.0
    %2777 = vmatpush2.msra.mxu0 0.0
    %2778 = vmatprep.subr.mxu0 0.0
    %2779 = vmatpush2.msra.mxu0 0.0
    %2780 = vmatprep.subr.mxu0 0.0
    %2781 = vmatpush2.msra.mxu0 0.0
    %2782 = vmatprep.subr.mxu0 0.0
    %2783 = vmatpush2.msra.mxu0 0.0
    %2784 = vmatprep.subr.mxu0 0.0
    %2785 = vmatpush2.msra.mxu0 0.0
    %2786 = vmatprep.subr.mxu0 0.0
    %2787 = vmatpush2.msra.mxu0 0.0
    %2788 = vmatprep.mubr.f32.mxu0 0.0
    %2789 = vmatmul.mubr.f32.gmra.mxu0 %v2560
    %v2790 = vpop.f32.mrf.mxu0
    %v2791 = vadd.f32 %v60, %v2790
    %v2792 = vpop.f32.mrf.mxu0
    %2793 = vdwg.mxu0
    %v2795 = vsel %vm69, %v2653, 0
    %2797 = vmatprep.subr.mxu0 0.0
    %2798 = vmatpush1.msra.mxu0 0.0
    %2799 = vmatprep.subr.mxu0 0.0
    %2800 = vmatpush1.msra.mxu0 0.0
    %2801 = vmatprep.subr.mxu0 0.0
    %2802 = vmatpush1.msra.mxu0 0.0
    %2803 = vmatprep.subr.mxu0 0.0
    %2804 = vmatpush1.msra.mxu0 0.0
    %2805 = vmatprep.subr.mxu0 0.0
    %2806 = vmatpush1.msra.mxu0 0.0
    %2807 = vmatprep.subr.mxu0 0.0
    %2808 = vmatpush1.msra.mxu0 0.0
    %2809 = vmatprep.subr.mxu0 0.0
    %2810 = vmatpush1.msra.mxu0 0.0
    %2811 = vmatprep.subr.mxu0 0.0
    %2812 = vmatpush1.msra.mxu0 0.0
    %2813 = vmatprep.subr.mxu0 0.0
    %2814 = vmatpush1.msra.mxu0 0.0
    %2815 = vmatprep.subr.mxu0 0.0
    %2816 = vmatpush1.msra.mxu0 0.0
    %2817 = vmatprep.subr.mxu0 0.0
    %2818 = vmatpush1.msra.mxu0 0.0
    %2819 = vmatprep.subr.mxu0 0.0
    %2820 = vmatpush1.msra.mxu0 0.0
    %2821 = vmatprep.subr.mxu0 0.0
    %2822 = vmatpush1.msra.mxu0 %v42
    %2823 = vmatprep.subr.mxu0 0.0
    %2824 = vmatpush1.msra.mxu0 %v41
    %2825 = vmatprep.subr.mxu0 0.0
    %2826 = vmatpush1.msra.mxu0 %v40
    %2827 = vmatprep.subr.mxu0 0.0
    %2828 = vmatpush1.msra.mxu0 %v39
    %2829 = vmatprep.subr.mxu0 0.0
    %2830 = vmatpush2.msra.mxu0 0.0
    %2831 = vmatprep.subr.mxu0 0.0
    %2832 = vmatpush2.msra.mxu0 0.0
    %2833 = vmatprep.subr.mxu0 0.0
    %2834 = vmatpush2.msra.mxu0 0.0
    %2835 = vmatprep.subr.mxu0 0.0
    %2836 = vmatpush2.msra.mxu0 0.0
    %2837 = vmatprep.subr.mxu0 0.0
    %2838 = vmatpush2.msra.mxu0 0.0
    %2839 = vmatprep.subr.mxu0 0.0
    %2840 = vmatpush2.msra.mxu0 0.0
    %2841 = vmatprep.subr.mxu0 0.0
    %2842 = vmatpush2.msra.mxu0 0.0
    %2843 = vmatprep.subr.mxu0 0.0
    %2844 = vmatpush2.msra.mxu0 0.0
    %2845 = vmatprep.subr.mxu0 0.0
    %2846 = vmatpush2.msra.mxu0 0.0
    %2847 = vmatprep.subr.mxu0 0.0
    %2848 = vmatpush2.msra.mxu0 0.0
    %2849 = vmatprep.subr.mxu0 0.0
    %2850 = vmatpush2.msra.mxu0 0.0
    %2851 = vmatprep.subr.mxu0 0.0
    %2852 = vmatpush2.msra.mxu0 0.0
    %2853 = vmatprep.subr.mxu0 0.0
    %2854 = vmatpush2.msra.mxu0 0.0
    %2855 = vmatprep.subr.mxu0 0.0
    %2856 = vmatpush2.msra.mxu0 0.0
    %2857 = vmatprep.subr.mxu0 0.0
    %2858 = vmatpush2.msra.mxu0 0.0
    %2859 = vmatprep.subr.mxu0 0.0
    %2860 = vmatpush2.msra.mxu0 0.0
    %2861 = vmatprep.mubr.f32.mxu0 0.0
    %2862 = vmatmul.mubr.f32.gmra.mxu0 %v2795
    %v2863 = vpop.f32.mrf.mxu0
    %v2864 = vadd.f32 %v61, %v2863
    %v2865 = vpop.f32.mrf.mxu0
    %2866 = vdwg.mxu0
    %v2867 = vadd.f32 %v2864, %v2721
    %v2868 = vsel %vm287, %v2867, -inf
    %2869 = vmax.xlane.f32.xlu0 %v2868
    %v2870 = vpop.xlane.xlu0 %2869
    %v2871 = vsub.f32 %v2867, %v2870
    %v2872 = vmul.f32 %v2871, 1.442695
    %v2873 = vpow.pop %v2872
    %v2874 = vsel %vm287, %v2873, 0.0
    %2875 = vadd.xlane.f32.xlu0 %v2874
    %v2876 = vpop.xlane.xlu0 %2875
    %v2877 = vrcp.pop %v2876
    %v2878 = vmul.f32 %v2876, %v2877
    %v2879 = vsub.f32 2.0, %v2878
    %v2880 = vmul.f32 %v2877, %v2879
    %v2881 = vmul.f32 %v2873, %v2880
    %v2883 = vsel %vm302, %v2881, 0
    %2885 = vmatprep.subr.mxu0 0.0
    %2886 = vmatpush1.msra.mxu0 0.0
    %2887 = vmatprep.subr.mxu0 0.0
    %2888 = vmatpush1.msra.mxu0 0.0
    %2889 = vmatprep.subr.mxu0 0.0
    %2890 = vmatpush1.msra.mxu0 0.0
    %2891 = vmatprep.subr.mxu0 0.0
    %2892 = vmatpush1.msra.mxu0 0.0
    %2893 = vmatprep.subr.mxu0 0.0
    %2894 = vmatpush1.msra.mxu0 0.0
    %2895 = vmatprep.subr.mxu0 0.0
    %2896 = vmatpush1.msra.mxu0 0.0
    %2897 = vmatprep.subr.mxu0 0.0
    %2898 = vmatpush1.msra.mxu0 0.0
    %2899 = vmatprep.subr.mxu0 0.0
    %2900 = vmatpush1.msra.mxu0 0.0
    %2901 = vmatprep.subr.mxu0 0.0
    %2902 = vmatpush1.msra.mxu0 0.0
    %2903 = vmatprep.subr.mxu0 0.0
    %2904 = vmatpush1.msra.mxu0 0.0
    %2905 = vmatprep.subr.mxu0 0.0
    %2906 = vmatpush1.msra.mxu0 0.0
    %2907 = vmatprep.subr.mxu0 0.0
    %2908 = vmatpush1.msra.mxu0 0.0
    %2909 = vmatprep.subr.mxu0 0.0
    %2910 = vmatpush1.msra.mxu0 0.0
    %2911 = vmatprep.subr.mxu0 0.0
    %2912 = vmatpush1.msra.mxu0 0.0
    %2913 = vmatprep.subr.mxu0 0.0
    %2914 = vmatpush1.msra.mxu0 %v308
    %2915 = vmatprep.subr.mxu0 0.0
    %2916 = vmatpush1.msra.mxu0 %v64
    %2917 = vmatprep.subr.mxu0 0.0
    %2918 = vmatpush2.msra.mxu0 0.0
    %2919 = vmatprep.subr.mxu0 0.0
    %2920 = vmatpush2.msra.mxu0 0.0
    %2921 = vmatprep.subr.mxu0 0.0
    %2922 = vmatpush2.msra.mxu0 0.0
    %2923 = vmatprep.subr.mxu0 0.0
    %2924 = vmatpush2.msra.mxu0 0.0
    %2925 = vmatprep.subr.mxu0 0.0
    %2926 = vmatpush2.msra.mxu0 0.0
    %2927 = vmatprep.subr.mxu0 0.0
    %2928 = vmatpush2.msra.mxu0 0.0
    %2929 = vmatprep.subr.mxu0 0.0
    %2930 = vmatpush2.msra.mxu0 0.0
    %2931 = vmatprep.subr.mxu0 0.0
    %2932 = vmatpush2.msra.mxu0 0.0
    %2933 = vmatprep.subr.mxu0 0.0
    %2934 = vmatpush2.msra.mxu0 0.0
    %2935 = vmatprep.subr.mxu0 0.0
    %2936 = vmatpush2.msra.mxu0 0.0
    %2937 = vmatprep.subr.mxu0 0.0
    %2938 = vmatpush2.msra.mxu0 0.0
    %2939 = vmatprep.subr.mxu0 0.0
    %2940 = vmatpush2.msra.mxu0 0.0
    %2941 = vmatprep.subr.mxu0 0.0
    %2942 = vmatpush2.msra.mxu0 0.0
    %2943 = vmatprep.subr.mxu0 0.0
    %2944 = vmatpush2.msra.mxu0 0.0
    %2945 = vmatprep.subr.mxu0 0.0
    %2946 = vmatpush2.msra.mxu0 0.0
    %2947 = vmatprep.subr.mxu0 0.0
    %2948 = vmatpush2.msra.mxu0 0.0
    %2949 = vmatprep.mubr.f32.mxu0 0.0
    %2950 = vmatmul.mubr.f32.gmra.mxu0 %v2883
    %v2951 = vpop.f32.mrf.mxu0
    %v2952 = vadd.f32 0.0, %v2951
    %v2953 = vpop.f32.mrf.mxu0
    %2954 = vdwg.mxu0
    %2955 = vrot.lane.b32.xlu0 %v2864, 64
    %v2956 = vpop.permute.xlu0 %2955
    %v2958 = vsel %vm69, %v2952, 0
    %2960 = vmatprep.subr.mxu0 0.0
    %2961 = vmatpush1.msra.mxu0 0.0
    %2962 = vmatprep.subr.mxu0 0.0
    %2963 = vmatpush1.msra.mxu0 0.0
    %2964 = vmatprep.subr.mxu0 0.0
    %2965 = vmatpush1.msra.mxu0 0.0
    %2966 = vmatprep.subr.mxu0 0.0
    %2967 = vmatpush1.msra.mxu0 0.0
    %2968 = vmatprep.subr.mxu0 0.0
    %2969 = vmatpush1.msra.mxu0 0.0
    %2970 = vmatprep.subr.mxu0 0.0
    %2971 = vmatpush1.msra.mxu0 0.0
    %2972 = vmatprep.subr.mxu0 0.0
    %2973 = vmatpush1.msra.mxu0 0.0
    %2974 = vmatprep.subr.mxu0 0.0
    %2975 = vmatpush1.msra.mxu0 0.0
    %2976 = vmatprep.subr.mxu0 0.0
    %2977 = vmatpush1.msra.mxu0 0.0
    %2978 = vmatprep.subr.mxu0 0.0
    %2979 = vmatpush1.msra.mxu0 0.0
    %2980 = vmatprep.subr.mxu0 0.0
    %2981 = vmatpush1.msra.mxu0 0.0
    %2982 = vmatprep.subr.mxu0 0.0
    %2983 = vmatpush1.msra.mxu0 0.0
    %2984 = vmatprep.subr.mxu0 0.0
    %2985 = vmatpush1.msra.mxu0 %v54
    %2986 = vmatprep.subr.mxu0 0.0
    %2987 = vmatpush1.msra.mxu0 %v53
    %2988 = vmatprep.subr.mxu0 0.0
    %2989 = vmatpush1.msra.mxu0 %v52
    %2990 = vmatprep.subr.mxu0 0.0
    %2991 = vmatpush1.msra.mxu0 %v51
    %2992 = vmatprep.subr.mxu0 0.0
    %2993 = vmatpush2.msra.mxu0 0.0
    %2994 = vmatprep.subr.mxu0 0.0
    %2995 = vmatpush2.msra.mxu0 0.0
    %2996 = vmatprep.subr.mxu0 0.0
    %2997 = vmatpush2.msra.mxu0 0.0
    %2998 = vmatprep.subr.mxu0 0.0
    %2999 = vmatpush2.msra.mxu0 0.0
    %3000 = vmatprep.subr.mxu0 0.0
    %3001 = vmatpush2.msra.mxu0 0.0
    %3002 = vmatprep.subr.mxu0 0.0
    %3003 = vmatpush2.msra.mxu0 0.0
    %3004 = vmatprep.subr.mxu0 0.0
    %3005 = vmatpush2.msra.mxu0 0.0
    %3006 = vmatprep.subr.mxu0 0.0
    %3007 = vmatpush2.msra.mxu0 0.0
    %3008 = vmatprep.subr.mxu0 0.0
    %3009 = vmatpush2.msra.mxu0 0.0
    %3010 = vmatprep.subr.mxu0 0.0
    %3011 = vmatpush2.msra.mxu0 0.0
    %3012 = vmatprep.subr.mxu0 0.0
    %3013 = vmatpush2.msra.mxu0 0.0
    %3014 = vmatprep.subr.mxu0 0.0
    %3015 = vmatpush2.msra.mxu0 0.0
    %3016 = vmatprep.subr.mxu0 0.0
    %3017 = vmatpush2.msra.mxu0 0.0
    %3018 = vmatprep.subr.mxu0 0.0
    %3019 = vmatpush2.msra.mxu0 0.0
    %3020 = vmatprep.subr.mxu0 0.0
    %3021 = vmatpush2.msra.mxu0 0.0
    %3022 = vmatprep.subr.mxu0 0.0
    %3023 = vmatpush2.msra.mxu0 0.0
    %3024 = vmatprep.mubr.f32.mxu0 0.0
    %3025 = vmatmul.mubr.f32.gmra.mxu0 %v2958
    %v3026 = vpop.f32.mrf.mxu0
    %v3027 = vadd.f32 0.0, %v3026
    %v3028 = vpop.f32.mrf.mxu0
    %3029 = vdwg.mxu0
    %v3030 = vadd.f32 %v2956, %v3027
    %v3031 = vmax.f32 %v3030, 0.0
    %v3033 = vsel %vm69, %v3031, 0
    %3035 = vmatprep.subr.mxu0 0.0
    %3036 = vmatpush1.msra.mxu0 0.0
    %3037 = vmatprep.subr.mxu0 0.0
    %3038 = vmatpush1.msra.mxu0 0.0
    %3039 = vmatprep.subr.mxu0 0.0
    %3040 = vmatpush1.msra.mxu0 0.0
    %3041 = vmatprep.subr.mxu0 0.0
    %3042 = vmatpush1.msra.mxu0 0.0
    %3043 = vmatprep.subr.mxu0 0.0
    %3044 = vmatpush1.msra.mxu0 0.0
    %3045 = vmatprep.subr.mxu0 0.0
    %3046 = vmatpush1.msra.mxu0 0.0
    %3047 = vmatprep.subr.mxu0 0.0
    %3048 = vmatpush1.msra.mxu0 0.0
    %3049 = vmatprep.subr.mxu0 0.0
    %3050 = vmatpush1.msra.mxu0 0.0
    %3051 = vmatprep.subr.mxu0 0.0
    %3052 = vmatpush1.msra.mxu0 0.0
    %3053 = vmatprep.subr.mxu0 0.0
    %3054 = vmatpush1.msra.mxu0 0.0
    %3055 = vmatprep.subr.mxu0 0.0
    %3056 = vmatpush1.msra.mxu0 0.0
    %3057 = vmatprep.subr.mxu0 0.0
    %3058 = vmatpush1.msra.mxu0 0.0
    %3059 = vmatprep.subr.mxu0 0.0
    %3060 = vmatpush1.msra.mxu0 %v46
    %3061 = vmatprep.subr.mxu0 0.0
    %3062 = vmatpush1.msra.mxu0 %v45
    %3063 = vmatprep.subr.mxu0 0.0
    %3064 = vmatpush1.msra.mxu0 %v44
    %3065 = vmatprep.subr.mxu0 0.0
    %3066 = vmatpush1.msra.mxu0 %v43
    %3067 = vmatprep.subr.mxu0 0.0
    %3068 = vmatpush2.msra.mxu0 0.0
    %3069 = vmatprep.subr.mxu0 0.0
    %3070 = vmatpush2.msra.mxu0 0.0
    %3071 = vmatprep.subr.mxu0 0.0
    %3072 = vmatpush2.msra.mxu0 0.0
    %3073 = vmatprep.subr.mxu0 0.0
    %3074 = vmatpush2.msra.mxu0 0.0
    %3075 = vmatprep.subr.mxu0 0.0
    %3076 = vmatpush2.msra.mxu0 0.0
    %3077 = vmatprep.subr.mxu0 0.0
    %3078 = vmatpush2.msra.mxu0 0.0
    %3079 = vmatprep.subr.mxu0 0.0
    %3080 = vmatpush2.msra.mxu0 0.0
    %3081 = vmatprep.subr.mxu0 0.0
    %3082 = vmatpush2.msra.mxu0 0.0
    %3083 = vmatprep.subr.mxu0 0.0
    %3084 = vmatpush2.msra.mxu0 0.0
    %3085 = vmatprep.subr.mxu0 0.0
    %3086 = vmatpush2.msra.mxu0 0.0
    %3087 = vmatprep.subr.mxu0 0.0
    %3088 = vmatpush2.msra.mxu0 0.0
    %3089 = vmatprep.subr.mxu0 0.0
    %3090 = vmatpush2.msra.mxu0 0.0
    %3091 = vmatprep.subr.mxu0 0.0
    %3092 = vmatpush2.msra.mxu0 0.0
    %3093 = vmatprep.subr.mxu0 0.0
    %3094 = vmatpush2.msra.mxu0 0.0
    %3095 = vmatprep.subr.mxu0 0.0
    %3096 = vmatpush2.msra.mxu0 0.0
    %3097 = vmatprep.subr.mxu0 0.0
    %3098 = vmatpush2.msra.mxu0 0.0
    %3099 = vmatprep.mubr.f32.mxu0 0.0
    %3100 = vmatmul.mubr.f32.gmra.mxu0 %v3033
    %v3101 = vpop.f32.mrf.mxu0
    %v3102 = vadd.f32 0.0, %v3101
    %v3103 = vpop.f32.mrf.mxu0
    %3104 = vdwg.mxu0
    %3105 = vmatprep.subr.mxu0 0.0
    %3106 = vmatpush1.msra.mxu0 0.0
    %3107 = vmatprep.subr.mxu0 0.0
    %3108 = vmatpush1.msra.mxu0 0.0
    %3109 = vmatprep.subr.mxu0 0.0
    %3110 = vmatpush1.msra.mxu0 0.0
    %3111 = vmatprep.subr.mxu0 0.0
    %3112 = vmatpush1.msra.mxu0 0.0
    %3113 = vmatprep.subr.mxu0 0.0
    %3114 = vmatpush1.msra.mxu0 0.0
    %3115 = vmatprep.subr.mxu0 0.0
    %3116 = vmatpush1.msra.mxu0 0.0
    %3117 = vmatprep.subr.mxu0 0.0
    %3118 = vmatpush1.msra.mxu0 0.0
    %3119 = vmatprep.subr.mxu0 0.0
    %3120 = vmatpush1.msra.mxu0 0.0
    %3121 = vmatprep.subr.mxu0 0.0
    %3122 = vmatpush1.msra.mxu0 0.0
    %3123 = vmatprep.subr.mxu0 0.0
    %3124 = vmatpush1.msra.mxu0 0.0
    %3125 = vmatprep.subr.mxu0 0.0
    %3126 = vmatpush1.msra.mxu0 0.0
    %3127 = vmatprep.subr.mxu0 0.0
    %3128 = vmatpush1.msra.mxu0 0.0
    %3129 = vmatprep.subr.mxu0 0.0
    %3130 = vmatpush1.msra.mxu0 %v50
    %3131 = vmatprep.subr.mxu0 0.0
    %3132 = vmatpush1.msra.mxu0 %v49
    %3133 = vmatprep.subr.mxu0 0.0
    %3134 = vmatpush1.msra.mxu0 %v48
    %3135 = vmatprep.subr.mxu0 0.0
    %3136 = vmatpush1.msra.mxu0 %v47
    %3137 = vmatprep.subr.mxu0 0.0
    %3138 = vmatpush2.msra.mxu0 0.0
    %3139 = vmatprep.subr.mxu0 0.0
    %3140 = vmatpush2.msra.mxu0 0.0
    %3141 = vmatprep.subr.mxu0 0.0
    %3142 = vmatpush2.msra.mxu0 0.0
    %3143 = vmatprep.subr.mxu0 0.0
    %3144 = vmatpush2.msra.mxu0 0.0
    %3145 = vmatprep.subr.mxu0 0.0
    %3146 = vmatpush2.msra.mxu0 0.0
    %3147 = vmatprep.subr.mxu0 0.0
    %3148 = vmatpush2.msra.mxu0 0.0
    %3149 = vmatprep.subr.mxu0 0.0
    %3150 = vmatpush2.msra.mxu0 0.0
    %3151 = vmatprep.subr.mxu0 0.0
    %3152 = vmatpush2.msra.mxu0 0.0
    %3153 = vmatprep.subr.mxu0 0.0
    %3154 = vmatpush2.msra.mxu0 0.0
    %3155 = vmatprep.subr.mxu0 0.0
    %3156 = vmatpush2.msra.mxu0 0.0
    %3157 = vmatprep.subr.mxu0 0.0
    %3158 = vmatpush2.msra.mxu0 0.0
    %3159 = vmatprep.subr.mxu0 0.0
    %3160 = vmatpush2.msra.mxu0 0.0
    %3161 = vmatprep.subr.mxu0 0.0
    %3162 = vmatpush2.msra.mxu0 0.0
    %3163 = vmatprep.subr.mxu0 0.0
    %3164 = vmatpush2.msra.mxu0 0.0
    %3165 = vmatprep.subr.mxu0 0.0
    %3166 = vmatpush2.msra.mxu0 0.0
    %3167 = vmatprep.subr.mxu0 0.0
    %3168 = vmatpush2.msra.mxu0 0.0
    %3169 = vmatprep.mubr.f32.mxu0 0.0
    %3170 = vmatmul.mubr.f32.gmra.mxu0 %v3033
    %v3171 = vpop.f32.mrf.mxu0
    %v3172 = vadd.f32 %v62, %v3171
    %v3173 = vpop.f32.mrf.mxu0
    %3174 = vdwg.mxu0
    %3175 = vrot.lane.b32.xlu0 %v2721, 64
    %v3176 = vpop.permute.xlu0 %3175
    %v3177 = vadd.f32 %v3102, %v3176
    %v3178 = vxor.u32 %v3177, 2147483648
    %v3179 = vmul.f32 %v3178, 1.442695
    %v3180 = vpow.pop %v3179
    %v3181 = vadd.f32 %v3180, 1.0
    %v3182 = vrcp.pop %v3181
    %v3183 = vmul.f32 1.0, %v3182
    %3184 = vrot.lane.b32.xlu0 %v3102, 64
    %v3185 = vpop.permute.xlu0 %3184
    %v3186 = vadd.f32 %v3185, %v2791
    %v3187 = vxor.u32 %v3186, 2147483648
    %v3188 = vmul.f32 %v3187, 1.442695
    %v3189 = vpow.pop %v3188
    %v3190 = vadd.f32 %v3189, 1.0
    %v3191 = vrcp.pop %v3190
    %v3192 = vmul.f32 1.0, %v3191
    %3193 = vrot.lane.b32.xlu0 %v2791, 64
    %v3194 = vpop.permute.xlu0 %3193
    %v3195 = vmul.f32 %v3183, %v3194
    %v3196 = vadd.f32 %v3172, %v3195
    %v3197 = vtanh.pop %v3196
    %v3198 = vsub.f32 1.0, %v3192
    %v3199 = vmul.f32 %v3198, %v3197
    %v3200 = vmul.f32 %v3192, %v2558
    %v3201 = vadd.f32 %v3199, %v3200
    %v3203 = vsel %vm69, %v3201, 0
    %3205 = vmatprep.subr.mxu0 0.0
    %3206 = vmatpush1.msra.mxu0 0.0
    %3207 = vmatprep.subr.mxu0 0.0
    %3208 = vmatpush1.msra.mxu0 0.0
    %3209 = vmatprep.subr.mxu0 0.0
    %3210 = vmatpush1.msra.mxu0 0.0
    %3211 = vmatprep.subr.mxu0 0.0
    %3212 = vmatpush1.msra.mxu0 0.0
    %3213 = vmatprep.subr.mxu0 0.0
    %3214 = vmatpush1.msra.mxu0 0.0
    %3215 = vmatprep.subr.mxu0 0.0
    %3216 = vmatpush1.msra.mxu0 0.0
    %3217 = vmatprep.subr.mxu0 0.0
    %3218 = vmatpush1.msra.mxu0 0.0
    %3219 = vmatprep.subr.mxu0 0.0
    %3220 = vmatpush1.msra.mxu0 0.0
    %3221 = vmatprep.subr.mxu0 0.0
    %3222 = vmatpush1.msra.mxu0 0.0
    %3223 = vmatprep.subr.mxu0 0.0
    %3224 = vmatpush1.msra.mxu0 0.0
    %3225 = vmatprep.subr.mxu0 0.0
    %3226 = vmatpush1.msra.mxu0 0.0
    %3227 = vmatprep.subr.mxu0 0.0
    %3228 = vmatpush1.msra.mxu0 0.0
    %3229 = vmatprep.subr.mxu0 0.0
    %3230 = vmatpush1.msra.mxu0 %v58
    %3231 = vmatprep.subr.mxu0 0.0
    %3232 = vmatpush1.msra.mxu0 %v57
    %3233 = vmatprep.subr.mxu0 0.0
    %3234 = vmatpush1.msra.mxu0 %v56
    %3235 = vmatprep.subr.mxu0 0.0
    %3236 = vmatpush1.msra.mxu0 %v55
    %3237 = vmatprep.subr.mxu0 0.0
    %3238 = vmatpush2.msra.mxu0 0.0
    %3239 = vmatprep.subr.mxu0 0.0
    %3240 = vmatpush2.msra.mxu0 0.0
    %3241 = vmatprep.subr.mxu0 0.0
    %3242 = vmatpush2.msra.mxu0 0.0
    %3243 = vmatprep.subr.mxu0 0.0
    %3244 = vmatpush2.msra.mxu0 0.0
    %3245 = vmatprep.subr.mxu0 0.0
    %3246 = vmatpush2.msra.mxu0 0.0
    %3247 = vmatprep.subr.mxu0 0.0
    %3248 = vmatpush2.msra.mxu0 0.0
    %3249 = vmatprep.subr.mxu0 0.0
    %3250 = vmatpush2.msra.mxu0 0.0
    %3251 = vmatprep.subr.mxu0 0.0
    %3252 = vmatpush2.msra.mxu0 0.0
    %3253 = vmatprep.subr.mxu0 0.0
    %3254 = vmatpush2.msra.mxu0 0.0
    %3255 = vmatprep.subr.mxu0 0.0
    %3256 = vmatpush2.msra.mxu0 0.0
    %3257 = vmatprep.subr.mxu0 0.0
    %3258 = vmatpush2.msra.mxu0 0.0
    %3259 = vmatprep.subr.mxu0 0.0
    %3260 = vmatpush2.msra.mxu0 0.0
    %3261 = vmatprep.subr.mxu0 0.0
    %3262 = vmatpush2.msra.mxu0 0.0
    %3263 = vmatprep.subr.mxu0 0.0
    %3264 = vmatpush2.msra.mxu0 0.0
    %3265 = vmatprep.subr.mxu0 0.0
    %3266 = vmatpush2.msra.mxu0 0.0
    %3267 = vmatprep.subr.mxu0 0.0
    %3268 = vmatpush2.msra.mxu0 0.0
    %3269 = vmatprep.mubr.f32.mxu0 0.0
    %3270 = vmatmul.mubr.f32.gmra.mxu0 %v3203
    %v3271 = vpop.f32.mrf.mxu0
    %v3272 = vadd.f32 %v63, %v3271
    %v3273 = vpop.f32.mrf.mxu0
    %3274 = vdwg.mxu0
    %v3275 = vsel %vm700, %v3272, -inf
    %3276 = vmax.xlane.f32.xlu0 %v3275
    %v3277 = vpop.xlane.xlu0 %3276
    %v3278 = vsub.f32 %v3272, %v3277
    %v3279 = vmul.f32 %v3278, 1.442695
    %v3280 = vpow.pop %v3279
    %v3281 = vsel %vm700, %v3280, 0.0
    %3282 = vadd.xlane.f32.xlu0 %v3281
    %v3283 = vpop.xlane.xlu0 %3282
    %v3284 = vlog2.pop %v3283
    %v3285 = vmul.f32 %v3284, 0.6931472
    %v3286 = vsub.f32 %v3278, %v3285
    %3287 = vst.msk [vmem:[%s4 + $0x4] sm:$0x1] %vm700, %v3286
    %3288 = vrot.lane.b32.xlu0 %v3201, 32
    %v3289 = vpop.permute.xlu0 %3288
    %3291 = vst.msk [vmem:[%s4 + $0x4] sm:$0x1] %vm717, %v3289
    %3292 = vrot.lane.b32.xlu0 %v2881, 64
    %v3293 = vpop.permute.xlu0 %3292
    %3295 = vst.msk [vmem:[%s4 + $0x4] sm:$0x1] %vm722, %v3293
    %v3296 = vld [vmem:[%s0 + $0x5] sm:$0x1]
    %3297 = vmatprep.subr.mxu0 0.0
    %3298 = vmatpush1.msra.mxu0 0.0
    %3299 = vmatprep.subr.mxu0 0.0
    %3300 = vmatpush1.msra.mxu0 0.0
    %3301 = vmatprep.subr.mxu0 0.0
    %3302 = vmatpush1.msra.mxu0 0.0
    %3303 = vmatprep.subr.mxu0 0.0
    %3304 = vmatpush1.msra.mxu0 0.0
    %3305 = vmatprep.subr.mxu0 0.0
    %3306 = vmatpush1.msra.mxu0 0.0
    %3307 = vmatprep.subr.mxu0 0.0
    %3308 = vmatpush1.msra.mxu0 0.0
    %3309 = vmatprep.subr.mxu0 0.0
    %3310 = vmatpush1.msra.mxu0 0.0
    %3311 = vmatprep.subr.mxu0 0.0
    %3312 = vmatpush1.msra.mxu0 0.0
    %3313 = vmatprep.subr.mxu0 0.0
    %3314 = vmatpush1.msra.mxu0 0.0
    %3315 = vmatprep.subr.mxu0 0.0
    %3316 = vmatpush1.msra.mxu0 0.0
    %3317 = vmatprep.subr.mxu0 0.0
    %3318 = vmatpush1.msra.mxu0 0.0
    %3319 = vmatprep.subr.mxu0 0.0
    %3320 = vmatpush1.msra.mxu0 0.0
    %3321 = vmatprep.subr.mxu0 0.0
    %3322 = vmatpush1.msra.mxu0 %v34
    %3323 = vmatprep.subr.mxu0 0.0
    %3324 = vmatpush1.msra.mxu0 %v33
    %3325 = vmatprep.subr.mxu0 0.0
    %3326 = vmatpush1.msra.mxu0 %v32
    %3327 = vmatprep.subr.mxu0 0.0
    %3328 = vmatpush1.msra.mxu0 %v31
    %3329 = vmatprep.subr.mxu0 0.0
    %3330 = vmatpush2.msra.mxu0 0.0
    %3331 = vmatprep.subr.mxu0 0.0
    %3332 = vmatpush2.msra.mxu0 0.0
    %3333 = vmatprep.subr.mxu0 0.0
    %3334 = vmatpush2.msra.mxu0 0.0
    %3335 = vmatprep.subr.mxu0 0.0
    %3336 = vmatpush2.msra.mxu0 0.0
    %3337 = vmatprep.subr.mxu0 0.0
    %3338 = vmatpush2.msra.mxu0 0.0
    %3339 = vmatprep.subr.mxu0 0.0
    %3340 = vmatpush2.msra.mxu0 0.0
    %3341 = vmatprep.subr.mxu0 0.0
    %3342 = vmatpush2.msra.mxu0 0.0
    %3343 = vmatprep.subr.mxu0 0.0
    %3344 = vmatpush2.msra.mxu0 0.0
    %3345 = vmatprep.subr.mxu0 0.0
    %3346 = vmatpush2.msra.mxu0 0.0
    %3347 = vmatprep.subr.mxu0 0.0
    %3348 = vmatpush2.msra.mxu0 0.0
    %3349 = vmatprep.subr.mxu0 0.0
    %3350 = vmatpush2.msra.mxu0 0.0
    %3351 = vmatprep.subr.mxu0 0.0
    %3352 = vmatpush2.msra.mxu0 0.0
    %3353 = vmatprep.subr.mxu0 0.0
    %3354 = vmatpush2.msra.mxu0 0.0
    %3355 = vmatprep.subr.mxu0 0.0
    %3356 = vmatpush2.msra.mxu0 0.0
    %3357 = vmatprep.subr.mxu0 0.0
    %3358 = vmatpush2.msra.mxu0 0.0
    %3359 = vmatprep.subr.mxu0 0.0
    %3360 = vmatpush2.msra.mxu0 0.0
    %3361 = vmatprep.mubr.f32.mxu0 0.0
    %3362 = vmatmul.mubr.f32.gmra.mxu0 %v3203
    %v3363 = vpop.f32.mrf.mxu0
    %v3364 = vadd.f32 %v59, %v3363
    %v3365 = vpop.f32.mrf.mxu0
    %3366 = vdwg.mxu0
    %3367 = vmatprep.subr.mxu0 0.0
    %3368 = vmatpush1.msra.mxu0 0.0
    %3369 = vmatprep.subr.mxu0 0.0
    %3370 = vmatpush1.msra.mxu0 0.0
    %3371 = vmatprep.subr.mxu0 0.0
    %3372 = vmatpush1.msra.mxu0 0.0
    %3373 = vmatprep.subr.mxu0 0.0
    %3374 = vmatpush1.msra.mxu0 0.0
    %3375 = vmatprep.subr.mxu0 0.0
    %3376 = vmatpush1.msra.mxu0 0.0
    %3377 = vmatprep.subr.mxu0 0.0
    %3378 = vmatpush1.msra.mxu0 0.0
    %3379 = vmatprep.subr.mxu0 0.0
    %3380 = vmatpush1.msra.mxu0 0.0
    %3381 = vmatprep.subr.mxu0 0.0
    %3382 = vmatpush1.msra.mxu0 0.0
    %3383 = vmatprep.subr.mxu0 0.0
    %3384 = vmatpush1.msra.mxu0 0.0
    %3385 = vmatprep.subr.mxu0 0.0
    %3386 = vmatpush1.msra.mxu0 0.0
    %3387 = vmatprep.subr.mxu0 0.0
    %3388 = vmatpush1.msra.mxu0 0.0
    %3389 = vmatprep.subr.mxu0 0.0
    %3390 = vmatpush1.msra.mxu0 0.0
    %3391 = vmatprep.subr.mxu0 0.0
    %3392 = vmatpush1.msra.mxu0 %v38
    %3393 = vmatprep.subr.mxu0 0.0
    %3394 = vmatpush1.msra.mxu0 %v37
    %3395 = vmatprep.subr.mxu0 0.0
    %3396 = vmatpush1.msra.mxu0 %v36
    %3397 = vmatprep.subr.mxu0 0.0
    %3398 = vmatpush1.msra.mxu0 %v35
    %3399 = vmatprep.subr.mxu0 0.0
    %3400 = vmatpush2.msra.mxu0 0.0
    %3401 = vmatprep.subr.mxu0 0.0
    %3402 = vmatpush2.msra.mxu0 0.0
    %3403 = vmatprep.subr.mxu0 0.0
    %3404 = vmatpush2.msra.mxu0 0.0
    %3405 = vmatprep.subr.mxu0 0.0
    %3406 = vmatpush2.msra.mxu0 0.0
    %3407 = vmatprep.subr.mxu0 0.0
    %3408 = vmatpush2.msra.mxu0 0.0
    %3409 = vmatprep.subr.mxu0 0.0
    %3410 = vmatpush2.msra.mxu0 0.0
    %3411 = vmatprep.subr.mxu0 0.0
    %3412 = vmatpush2.msra.mxu0 0.0
    %3413 = vmatprep.subr.mxu0 0.0
    %3414 = vmatpush2.msra.mxu0 0.0
    %3415 = vmatprep.subr.mxu0 0.0
    %3416 = vmatpush2.msra.mxu0 0.0
    %3417 = vmatprep.subr.mxu0 0.0
    %3418 = vmatpush2.msra.mxu0 0.0
    %3419 = vmatprep.subr.mxu0 0.0
    %3420 = vmatpush2.msra.mxu0 0.0
    %3421 = vmatprep.subr.mxu0 0.0
    %3422 = vmatpush2.msra.mxu0 0.0
    %3423 = vmatprep.subr.mxu0 0.0
    %3424 = vmatpush2.msra.mxu0 0.0
    %3425 = vmatprep.subr.mxu0 0.0
    %3426 = vmatpush2.msra.mxu0 0.0
    %3427 = vmatprep.subr.mxu0 0.0
    %3428 = vmatpush2.msra.mxu0 0.0
    %3429 = vmatprep.subr.mxu0 0.0
    %3430 = vmatpush2.msra.mxu0 0.0
    %3431 = vmatprep.mubr.f32.mxu0 0.0
    %3432 = vmatmul.mubr.f32.gmra.mxu0 %v3203
    %v3433 = vpop.f32.mrf.mxu0
    %v3434 = vadd.f32 %v60, %v3433
    %v3435 = vpop.f32.mrf.mxu0
    %3436 = vdwg.mxu0
    %v3438 = vsel %vm69, %v3296, 0
    %3440 = vmatprep.subr.mxu0 0.0
    %3441 = vmatpush1.msra.mxu0 0.0
    %3442 = vmatprep.subr.mxu0 0.0
    %3443 = vmatpush1.msra.mxu0 0.0
    %3444 = vmatprep.subr.mxu0 0.0
    %3445 = vmatpush1.msra.mxu0 0.0
    %3446 = vmatprep.subr.mxu0 0.0
    %3447 = vmatpush1.msra.mxu0 0.0
    %3448 = vmatprep.subr.mxu0 0.0
    %3449 = vmatpush1.msra.mxu0 0.0
    %3450 = vmatprep.subr.mxu0 0.0
    %3451 = vmatpush1.msra.mxu0 0.0
    %3452 = vmatprep.subr.mxu0 0.0
    %3453 = vmatpush1.msra.mxu0 0.0
    %3454 = vmatprep.subr.mxu0 0.0
    %3455 = vmatpush1.msra.mxu0 0.0
    %3456 = vmatprep.subr.mxu0 0.0
    %3457 = vmatpush1.msra.mxu0 0.0
    %3458 = vmatprep.subr.mxu0 0.0
    %3459 = vmatpush1.msra.mxu0 0.0
    %3460 = vmatprep.subr.mxu0 0.0
    %3461 = vmatpush1.msra.mxu0 0.0
    %3462 = vmatprep.subr.mxu0 0.0
    %3463 = vmatpush1.msra.mxu0 0.0
    %3464 = vmatprep.subr.mxu0 0.0
    %3465 = vmatpush1.msra.mxu0 %v42
    %3466 = vmatprep.subr.mxu0 0.0
    %3467 = vmatpush1.msra.mxu0 %v41
    %3468 = vmatprep.subr.mxu0 0.0
    %3469 = vmatpush1.msra.mxu0 %v40
    %3470 = vmatprep.subr.mxu0 0.0
    %3471 = vmatpush1.msra.mxu0 %v39
    %3472 = vmatprep.subr.mxu0 0.0
    %3473 = vmatpush2.msra.mxu0 0.0
    %3474 = vmatprep.subr.mxu0 0.0
    %3475 = vmatpush2.msra.mxu0 0.0
    %3476 = vmatprep.subr.mxu0 0.0
    %3477 = vmatpush2.msra.mxu0 0.0
    %3478 = vmatprep.subr.mxu0 0.0
    %3479 = vmatpush2.msra.mxu0 0.0
    %3480 = vmatprep.subr.mxu0 0.0
    %3481 = vmatpush2.msra.mxu0 0.0
    %3482 = vmatprep.subr.mxu0 0.0
    %3483 = vmatpush2.msra.mxu0 0.0
    %3484 = vmatprep.subr.mxu0 0.0
    %3485 = vmatpush2.msra.mxu0 0.0
    %3486 = vmatprep.subr.mxu0 0.0
    %3487 = vmatpush2.msra.mxu0 0.0
    %3488 = vmatprep.subr.mxu0 0.0
    %3489 = vmatpush2.msra.mxu0 0.0
    %3490 = vmatprep.subr.mxu0 0.0
    %3491 = vmatpush2.msra.mxu0 0.0
    %3492 = vmatprep.subr.mxu0 0.0
    %3493 = vmatpush2.msra.mxu0 0.0
    %3494 = vmatprep.subr.mxu0 0.0
    %3495 = vmatpush2.msra.mxu0 0.0
    %3496 = vmatprep.subr.mxu0 0.0
    %3497 = vmatpush2.msra.mxu0 0.0
    %3498 = vmatprep.subr.mxu0 0.0
    %3499 = vmatpush2.msra.mxu0 0.0
    %3500 = vmatprep.subr.mxu0 0.0
    %3501 = vmatpush2.msra.mxu0 0.0
    %3502 = vmatprep.subr.mxu0 0.0
    %3503 = vmatpush2.msra.mxu0 0.0
    %3504 = vmatprep.mubr.f32.mxu0 0.0
    %3505 = vmatmul.mubr.f32.gmra.mxu0 %v3438
    %v3506 = vpop.f32.mrf.mxu0
    %v3507 = vadd.f32 %v61, %v3506
    %v3508 = vpop.f32.mrf.mxu0
    %3509 = vdwg.mxu0
    %v3510 = vadd.f32 %v3507, %v3364
    %v3511 = vsel %vm287, %v3510, -inf
    %3512 = vmax.xlane.f32.xlu0 %v3511
    %v3513 = vpop.xlane.xlu0 %3512
    %v3514 = vsub.f32 %v3510, %v3513
    %v3515 = vmul.f32 %v3514, 1.442695
    %v3516 = vpow.pop %v3515
    %v3517 = vsel %vm287, %v3516, 0.0
    %3518 = vadd.xlane.f32.xlu0 %v3517
    %v3519 = vpop.xlane.xlu0 %3518
    %v3520 = vrcp.pop %v3519
    %v3521 = vmul.f32 %v3519, %v3520
    %v3522 = vsub.f32 2.0, %v3521
    %v3523 = vmul.f32 %v3520, %v3522
    %v3524 = vmul.f32 %v3516, %v3523
    %v3526 = vsel %vm302, %v3524, 0
    %3528 = vmatprep.subr.mxu0 0.0
    %3529 = vmatpush1.msra.mxu0 0.0
    %3530 = vmatprep.subr.mxu0 0.0
    %3531 = vmatpush1.msra.mxu0 0.0
    %3532 = vmatprep.subr.mxu0 0.0
    %3533 = vmatpush1.msra.mxu0 0.0
    %3534 = vmatprep.subr.mxu0 0.0
    %3535 = vmatpush1.msra.mxu0 0.0
    %3536 = vmatprep.subr.mxu0 0.0
    %3537 = vmatpush1.msra.mxu0 0.0
    %3538 = vmatprep.subr.mxu0 0.0
    %3539 = vmatpush1.msra.mxu0 0.0
    %3540 = vmatprep.subr.mxu0 0.0
    %3541 = vmatpush1.msra.mxu0 0.0
    %3542 = vmatprep.subr.mxu0 0.0
    %3543 = vmatpush1.msra.mxu0 0.0
    %3544 = vmatprep.subr.mxu0 0.0
    %3545 = vmatpush1.msra.mxu0 0.0
    %3546 = vmatprep.subr.mxu0 0.0
    %3547 = vmatpush1.msra.mxu0 0.0
    %3548 = vmatprep.subr.mxu0 0.0
    %3549 = vmatpush1.msra.mxu0 0.0
    %3550 = vmatprep.subr.mxu0 0.0
    %3551 = vmatpush1.msra.mxu0 0.0
    %3552 = vmatprep.subr.mxu0 0.0
    %3553 = vmatpush1.msra.mxu0 0.0
    %3554 = vmatprep.subr.mxu0 0.0
    %3555 = vmatpush1.msra.mxu0 0.0
    %3556 = vmatprep.subr.mxu0 0.0
    %3557 = vmatpush1.msra.mxu0 %v308
    %3558 = vmatprep.subr.mxu0 0.0
    %3559 = vmatpush1.msra.mxu0 %v64
    %3560 = vmatprep.subr.mxu0 0.0
    %3561 = vmatpush2.msra.mxu0 0.0
    %3562 = vmatprep.subr.mxu0 0.0
    %3563 = vmatpush2.msra.mxu0 0.0
    %3564 = vmatprep.subr.mxu0 0.0
    %3565 = vmatpush2.msra.mxu0 0.0
    %3566 = vmatprep.subr.mxu0 0.0
    %3567 = vmatpush2.msra.mxu0 0.0
    %3568 = vmatprep.subr.mxu0 0.0
    %3569 = vmatpush2.msra.mxu0 0.0
    %3570 = vmatprep.subr.mxu0 0.0
    %3571 = vmatpush2.msra.mxu0 0.0
    %3572 = vmatprep.subr.mxu0 0.0
    %3573 = vmatpush2.msra.mxu0 0.0
    %3574 = vmatprep.subr.mxu0 0.0
    %3575 = vmatpush2.msra.mxu0 0.0
    %3576 = vmatprep.subr.mxu0 0.0
    %3577 = vmatpush2.msra.mxu0 0.0
    %3578 = vmatprep.subr.mxu0 0.0
    %3579 = vmatpush2.msra.mxu0 0.0
    %3580 = vmatprep.subr.mxu0 0.0
    %3581 = vmatpush2.msra.mxu0 0.0
    %3582 = vmatprep.subr.mxu0 0.0
    %3583 = vmatpush2.msra.mxu0 0.0
    %3584 = vmatprep.subr.mxu0 0.0
    %3585 = vmatpush2.msra.mxu0 0.0
    %3586 = vmatprep.subr.mxu0 0.0
    %3587 = vmatpush2.msra.mxu0 0.0
    %3588 = vmatprep.subr.mxu0 0.0
    %3589 = vmatpush2.msra.mxu0 0.0
    %3590 = vmatprep.subr.mxu0 0.0
    %3591 = vmatpush2.msra.mxu0 0.0
    %3592 = vmatprep.mubr.f32.mxu0 0.0
    %3593 = vmatmul.mubr.f32.gmra.mxu0 %v3526
    %v3594 = vpop.f32.mrf.mxu0
    %v3595 = vadd.f32 0.0, %v3594
    %v3596 = vpop.f32.mrf.mxu0
    %3597 = vdwg.mxu0
    %3598 = vrot.lane.b32.xlu0 %v3507, 64
    %v3599 = vpop.permute.xlu0 %3598
    %v3601 = vsel %vm69, %v3595, 0
    %3603 = vmatprep.subr.mxu0 0.0
    %3604 = vmatpush1.msra.mxu0 0.0
    %3605 = vmatprep.subr.mxu0 0.0
    %3606 = vmatpush1.msra.mxu0 0.0
    %3607 = vmatprep.subr.mxu0 0.0
    %3608 = vmatpush1.msra.mxu0 0.0
    %3609 = vmatprep.subr.mxu0 0.0
    %3610 = vmatpush1.msra.mxu0 0.0
    %3611 = vmatprep.subr.mxu0 0.0
    %3612 = vmatpush1.msra.mxu0 0.0
    %3613 = vmatprep.subr.mxu0 0.0
    %3614 = vmatpush1.msra.mxu0 0.0
    %3615 = vmatprep.subr.mxu0 0.0
    %3616 = vmatpush1.msra.mxu0 0.0
    %3617 = vmatprep.subr.mxu0 0.0
    %3618 = vmatpush1.msra.mxu0 0.0
    %3619 = vmatprep.subr.mxu0 0.0
    %3620 = vmatpush1.msra.mxu0 0.0
    %3621 = vmatprep.subr.mxu0 0.0
    %3622 = vmatpush1.msra.mxu0 0.0
    %3623 = vmatprep.subr.mxu0 0.0
    %3624 = vmatpush1.msra.mxu0 0.0
    %3625 = vmatprep.subr.mxu0 0.0
    %3626 = vmatpush1.msra.mxu0 0.0
    %3627 = vmatprep.subr.mxu0 0.0
    %3628 = vmatpush1.msra.mxu0 %v54
    %3629 = vmatprep.subr.mxu0 0.0
    %3630 = vmatpush1.msra.mxu0 %v53
    %3631 = vmatprep.subr.mxu0 0.0
    %3632 = vmatpush1.msra.mxu0 %v52
    %3633 = vmatprep.subr.mxu0 0.0
    %3634 = vmatpush1.msra.mxu0 %v51
    %3635 = vmatprep.subr.mxu0 0.0
    %3636 = vmatpush2.msra.mxu0 0.0
    %3637 = vmatprep.subr.mxu0 0.0
    %3638 = vmatpush2.msra.mxu0 0.0
    %3639 = vmatprep.subr.mxu0 0.0
    %3640 = vmatpush2.msra.mxu0 0.0
    %3641 = vmatprep.subr.mxu0 0.0
    %3642 = vmatpush2.msra.mxu0 0.0
    %3643 = vmatprep.subr.mxu0 0.0
    %3644 = vmatpush2.msra.mxu0 0.0
    %3645 = vmatprep.subr.mxu0 0.0
    %3646 = vmatpush2.msra.mxu0 0.0
    %3647 = vmatprep.subr.mxu0 0.0
    %3648 = vmatpush2.msra.mxu0 0.0
    %3649 = vmatprep.subr.mxu0 0.0
    %3650 = vmatpush2.msra.mxu0 0.0
    %3651 = vmatprep.subr.mxu0 0.0
    %3652 = vmatpush2.msra.mxu0 0.0
    %3653 = vmatprep.subr.mxu0 0.0
    %3654 = vmatpush2.msra.mxu0 0.0
    %3655 = vmatprep.subr.mxu0 0.0
    %3656 = vmatpush2.msra.mxu0 0.0
    %3657 = vmatprep.subr.mxu0 0.0
    %3658 = vmatpush2.msra.mxu0 0.0
    %3659 = vmatprep.subr.mxu0 0.0
    %3660 = vmatpush2.msra.mxu0 0.0
    %3661 = vmatprep.subr.mxu0 0.0
    %3662 = vmatpush2.msra.mxu0 0.0
    %3663 = vmatprep.subr.mxu0 0.0
    %3664 = vmatpush2.msra.mxu0 0.0
    %3665 = vmatprep.subr.mxu0 0.0
    %3666 = vmatpush2.msra.mxu0 0.0
    %3667 = vmatprep.mubr.f32.mxu0 0.0
    %3668 = vmatmul.mubr.f32.gmra.mxu0 %v3601
    %v3669 = vpop.f32.mrf.mxu0
    %v3670 = vadd.f32 0.0, %v3669
    %v3671 = vpop.f32.mrf.mxu0
    %3672 = vdwg.mxu0
    %v3673 = vadd.f32 %v3599, %v3670
    %v3674 = vmax.f32 %v3673, 0.0
    %v3676 = vsel %vm69, %v3674, 0
    %3678 = vmatprep.subr.mxu0 0.0
    %3679 = vmatpush1.msra.mxu0 0.0
    %3680 = vmatprep.subr.mxu0 0.0
    %3681 = vmatpush1.msra.mxu0 0.0
    %3682 = vmatprep.subr.mxu0 0.0
    %3683 = vmatpush1.msra.mxu0 0.0
    %3684 = vmatprep.subr.mxu0 0.0
    %3685 = vmatpush1.msra.mxu0 0.0
    %3686 = vmatprep.subr.mxu0 0.0
    %3687 = vmatpush1.msra.mxu0 0.0
    %3688 = vmatprep.subr.mxu0 0.0
    %3689 = vmatpush1.msra.mxu0 0.0
    %3690 = vmatprep.subr.mxu0 0.0
    %3691 = vmatpush1.msra.mxu0 0.0
    %3692 = vmatprep.subr.mxu0 0.0
    %3693 = vmatpush1.msra.mxu0 0.0
    %3694 = vmatprep.subr.mxu0 0.0
    %3695 = vmatpush1.msra.mxu0 0.0
    %3696 = vmatprep.subr.mxu0 0.0
    %3697 = vmatpush1.msra.mxu0 0.0
    %3698 = vmatprep.subr.mxu0 0.0
    %3699 = vmatpush1.msra.mxu0 0.0
    %3700 = vmatprep.subr.mxu0 0.0
    %3701 = vmatpush1.msra.mxu0 0.0
    %3702 = vmatprep.subr.mxu0 0.0
    %3703 = vmatpush1.msra.mxu0 %v46
    %3704 = vmatprep.subr.mxu0 0.0
    %3705 = vmatpush1.msra.mxu0 %v45
    %3706 = vmatprep.subr.mxu0 0.0
    %3707 = vmatpush1.msra.mxu0 %v44
    %3708 = vmatprep.subr.mxu0 0.0
    %3709 = vmatpush1.msra.mxu0 %v43
    %3710 = vmatprep.subr.mxu0 0.0
    %3711 = vmatpush2.msra.mxu0 0.0
    %3712 = vmatprep.subr.mxu0 0.0
    %3713 = vmatpush2.msra.mxu0 0.0
    %3714 = vmatprep.subr.mxu0 0.0
    %3715 = vmatpush2.msra.mxu0 0.0
    %3716 = vmatprep.subr.mxu0 0.0
    %3717 = vmatpush2.msra.mxu0 0.0
    %3718 = vmatprep.subr.mxu0 0.0
    %3719 = vmatpush2.msra.mxu0 0.0
    %3720 = vmatprep.subr.mxu0 0.0
    %3721 = vmatpush2.msra.mxu0 0.0
    %3722 = vmatprep.subr.mxu0 0.0
    %3723 = vmatpush2.msra.mxu0 0.0
    %3724 = vmatprep.subr.mxu0 0.0
    %3725 = vmatpush2.msra.mxu0 0.0
    %3726 = vmatprep.subr.mxu0 0.0
    %3727 = vmatpush2.msra.mxu0 0.0
    %3728 = vmatprep.subr.mxu0 0.0
    %3729 = vmatpush2.msra.mxu0 0.0
    %3730 = vmatprep.subr.mxu0 0.0
    %3731 = vmatpush2.msra.mxu0 0.0
    %3732 = vmatprep.subr.mxu0 0.0
    %3733 = vmatpush2.msra.mxu0 0.0
    %3734 = vmatprep.subr.mxu0 0.0
    %3735 = vmatpush2.msra.mxu0 0.0
    %3736 = vmatprep.subr.mxu0 0.0
    %3737 = vmatpush2.msra.mxu0 0.0
    %3738 = vmatprep.subr.mxu0 0.0
    %3739 = vmatpush2.msra.mxu0 0.0
    %3740 = vmatprep.subr.mxu0 0.0
    %3741 = vmatpush2.msra.mxu0 0.0
    %3742 = vmatprep.mubr.f32.mxu0 0.0
    %3743 = vmatmul.mubr.f32.gmra.mxu0 %v3676
    %v3744 = vpop.f32.mrf.mxu0
    %v3745 = vadd.f32 0.0, %v3744
    %v3746 = vpop.f32.mrf.mxu0
    %3747 = vdwg.mxu0
    %3748 = vmatprep.subr.mxu0 0.0
    %3749 = vmatpush1.msra.mxu0 0.0
    %3750 = vmatprep.subr.mxu0 0.0
    %3751 = vmatpush1.msra.mxu0 0.0
    %3752 = vmatprep.subr.mxu0 0.0
    %3753 = vmatpush1.msra.mxu0 0.0
    %3754 = vmatprep.subr.mxu0 0.0
    %3755 = vmatpush1.msra.mxu0 0.0
    %3756 = vmatprep.subr.mxu0 0.0
    %3757 = vmatpush1.msra.mxu0 0.0
    %3758 = vmatprep.subr.mxu0 0.0
    %3759 = vmatpush1.msra.mxu0 0.0
    %3760 = vmatprep.subr.mxu0 0.0
    %3761 = vmatpush1.msra.mxu0 0.0
    %3762 = vmatprep.subr.mxu0 0.0
    %3763 = vmatpush1.msra.mxu0 0.0
    %3764 = vmatprep.subr.mxu0 0.0
    %3765 = vmatpush1.msra.mxu0 0.0
    %3766 = vmatprep.subr.mxu0 0.0
    %3767 = vmatpush1.msra.mxu0 0.0
    %3768 = vmatprep.subr.mxu0 0.0
    %3769 = vmatpush1.msra.mxu0 0.0
    %3770 = vmatprep.subr.mxu0 0.0
    %3771 = vmatpush1.msra.mxu0 0.0
    %3772 = vmatprep.subr.mxu0 0.0
    %3773 = vmatpush1.msra.mxu0 %v50
    %3774 = vmatprep.subr.mxu0 0.0
    %3775 = vmatpush1.msra.mxu0 %v49
    %3776 = vmatprep.subr.mxu0 0.0
    %3777 = vmatpush1.msra.mxu0 %v48
    %3778 = vmatprep.subr.mxu0 0.0
    %3779 = vmatpush1.msra.mxu0 %v47
    %3780 = vmatprep.subr.mxu0 0.0
    %3781 = vmatpush2.msra.mxu0 0.0
    %3782 = vmatprep.subr.mxu0 0.0
    %3783 = vmatpush2.msra.mxu0 0.0
    %3784 = vmatprep.subr.mxu0 0.0
    %3785 = vmatpush2.msra.mxu0 0.0
    %3786 = vmatprep.subr.mxu0 0.0
    %3787 = vmatpush2.msra.mxu0 0.0
    %3788 = vmatprep.subr.mxu0 0.0
    %3789 = vmatpush2.msra.mxu0 0.0
    %3790 = vmatprep.subr.mxu0 0.0
    %3791 = vmatpush2.msra.mxu0 0.0
    %3792 = vmatprep.subr.mxu0 0.0
    %3793 = vmatpush2.msra.mxu0 0.0
    %3794 = vmatprep.subr.mxu0 0.0
    %3795 = vmatpush2.msra.mxu0 0.0
    %3796 = vmatprep.subr.mxu0 0.0
    %3797 = vmatpush2.msra.mxu0 0.0
    %3798 = vmatprep.subr.mxu0 0.0
    %3799 = vmatpush2.msra.mxu0 0.0
    %3800 = vmatprep.subr.mxu0 0.0
    %3801 = vmatpush2.msra.mxu0 0.0
    %3802 = vmatprep.subr.mxu0 0.0
    %3803 = vmatpush2.msra.mxu0 0.0
    %3804 = vmatprep.subr.mxu0 0.0
    %3805 = vmatpush2.msra.mxu0 0.0
    %3806 = vmatprep.subr.mxu0 0.0
    %3807 = vmatpush2.msra.mxu0 0.0
    %3808 = vmatprep.subr.mxu0 0.0
    %3809 = vmatpush2.msra.mxu0 0.0
    %3810 = vmatprep.subr.mxu0 0.0
    %3811 = vmatpush2.msra.mxu0 0.0
    %3812 = vmatprep.mubr.f32.mxu0 0.0
    %3813 = vmatmul.mubr.f32.gmra.mxu0 %v3676
    %v3814 = vpop.f32.mrf.mxu0
    %v3815 = vadd.f32 %v62, %v3814
    %v3816 = vpop.f32.mrf.mxu0
    %3817 = vdwg.mxu0
    %3818 = vrot.lane.b32.xlu0 %v3364, 64
    %v3819 = vpop.permute.xlu0 %3818
    %v3820 = vadd.f32 %v3745, %v3819
    %v3821 = vxor.u32 %v3820, 2147483648
    %v3822 = vmul.f32 %v3821, 1.442695
    %v3823 = vpow.pop %v3822
    %v3824 = vadd.f32 %v3823, 1.0
    %v3825 = vrcp.pop %v3824
    %v3826 = vmul.f32 1.0, %v3825
    %3827 = vrot.lane.b32.xlu0 %v3745, 64
    %v3828 = vpop.permute.xlu0 %3827
    %v3829 = vadd.f32 %v3828, %v3434
    %v3830 = vxor.u32 %v3829, 2147483648
    %v3831 = vmul.f32 %v3830, 1.442695
    %v3832 = vpow.pop %v3831
    %v3833 = vadd.f32 %v3832, 1.0
    %v3834 = vrcp.pop %v3833
    %v3835 = vmul.f32 1.0, %v3834
    %3836 = vrot.lane.b32.xlu0 %v3434, 64
    %v3837 = vpop.permute.xlu0 %3836
    %v3838 = vmul.f32 %v3826, %v3837
    %v3839 = vadd.f32 %v3815, %v3838
    %v3840 = vtanh.pop %v3839
    %v3841 = vsub.f32 1.0, %v3835
    %v3842 = vmul.f32 %v3841, %v3840
    %v3843 = vmul.f32 %v3835, %v3201
    %v3844 = vadd.f32 %v3842, %v3843
    %v3846 = vsel %vm69, %v3844, 0
    %3848 = vmatprep.subr.mxu0 0.0
    %3849 = vmatpush1.msra.mxu0 0.0
    %3850 = vmatprep.subr.mxu0 0.0
    %3851 = vmatpush1.msra.mxu0 0.0
    %3852 = vmatprep.subr.mxu0 0.0
    %3853 = vmatpush1.msra.mxu0 0.0
    %3854 = vmatprep.subr.mxu0 0.0
    %3855 = vmatpush1.msra.mxu0 0.0
    %3856 = vmatprep.subr.mxu0 0.0
    %3857 = vmatpush1.msra.mxu0 0.0
    %3858 = vmatprep.subr.mxu0 0.0
    %3859 = vmatpush1.msra.mxu0 0.0
    %3860 = vmatprep.subr.mxu0 0.0
    %3861 = vmatpush1.msra.mxu0 0.0
    %3862 = vmatprep.subr.mxu0 0.0
    %3863 = vmatpush1.msra.mxu0 0.0
    %3864 = vmatprep.subr.mxu0 0.0
    %3865 = vmatpush1.msra.mxu0 0.0
    %3866 = vmatprep.subr.mxu0 0.0
    %3867 = vmatpush1.msra.mxu0 0.0
    %3868 = vmatprep.subr.mxu0 0.0
    %3869 = vmatpush1.msra.mxu0 0.0
    %3870 = vmatprep.subr.mxu0 0.0
    %3871 = vmatpush1.msra.mxu0 0.0
    %3872 = vmatprep.subr.mxu0 0.0
    %3873 = vmatpush1.msra.mxu0 %v58
    %3874 = vmatprep.subr.mxu0 0.0
    %3875 = vmatpush1.msra.mxu0 %v57
    %3876 = vmatprep.subr.mxu0 0.0
    %3877 = vmatpush1.msra.mxu0 %v56
    %3878 = vmatprep.subr.mxu0 0.0
    %3879 = vmatpush1.msra.mxu0 %v55
    %3880 = vmatprep.subr.mxu0 0.0
    %3881 = vmatpush2.msra.mxu0 0.0
    %3882 = vmatprep.subr.mxu0 0.0
    %3883 = vmatpush2.msra.mxu0 0.0
    %3884 = vmatprep.subr.mxu0 0.0
    %3885 = vmatpush2.msra.mxu0 0.0
    %3886 = vmatprep.subr.mxu0 0.0
    %3887 = vmatpush2.msra.mxu0 0.0
    %3888 = vmatprep.subr.mxu0 0.0
    %3889 = vmatpush2.msra.mxu0 0.0
    %3890 = vmatprep.subr.mxu0 0.0
    %3891 = vmatpush2.msra.mxu0 0.0
    %3892 = vmatprep.subr.mxu0 0.0
    %3893 = vmatpush2.msra.mxu0 0.0
    %3894 = vmatprep.subr.mxu0 0.0
    %3895 = vmatpush2.msra.mxu0 0.0
    %3896 = vmatprep.subr.mxu0 0.0
    %3897 = vmatpush2.msra.mxu0 0.0
    %3898 = vmatprep.subr.mxu0 0.0
    %3899 = vmatpush2.msra.mxu0 0.0
    %3900 = vmatprep.subr.mxu0 0.0
    %3901 = vmatpush2.msra.mxu0 0.0
    %3902 = vmatprep.subr.mxu0 0.0
    %3903 = vmatpush2.msra.mxu0 0.0
    %3904 = vmatprep.subr.mxu0 0.0
    %3905 = vmatpush2.msra.mxu0 0.0
    %3906 = vmatprep.subr.mxu0 0.0
    %3907 = vmatpush2.msra.mxu0 0.0
    %3908 = vmatprep.subr.mxu0 0.0
    %3909 = vmatpush2.msra.mxu0 0.0
    %3910 = vmatprep.subr.mxu0 0.0
    %3911 = vmatpush2.msra.mxu0 0.0
    %3912 = vmatprep.mubr.f32.mxu0 0.0
    %3913 = vmatmul.mubr.f32.gmra.mxu0 %v3846
    %v3914 = vpop.f32.mrf.mxu0
    %v3915 = vadd.f32 %v63, %v3914
    %v3916 = vpop.f32.mrf.mxu0
    %3917 = vdwg.mxu0
    %v3918 = vsel %vm700, %v3915, -inf
    %3919 = vmax.xlane.f32.xlu0 %v3918
    %v3920 = vpop.xlane.xlu0 %3919
    %v3921 = vsub.f32 %v3915, %v3920
    %v3922 = vmul.f32 %v3921, 1.442695
    %v3923 = vpow.pop %v3922
    %v3924 = vsel %vm700, %v3923, 0.0
    %3925 = vadd.xlane.f32.xlu0 %v3924
    %v3926 = vpop.xlane.xlu0 %3925
    %v3927 = vlog2.pop %v3926
    %v3928 = vmul.f32 %v3927, 0.6931472
    %v3929 = vsub.f32 %v3921, %v3928
    %3930 = vst.msk [vmem:[%s4 + $0x5] sm:$0x1] %vm700, %v3929
    %3931 = vrot.lane.b32.xlu0 %v3844, 32
    %v3932 = vpop.permute.xlu0 %3931
    %3934 = vst.msk [vmem:[%s4 + $0x5] sm:$0x1] %vm717, %v3932
    %3935 = vrot.lane.b32.xlu0 %v3524, 64
    %v3936 = vpop.permute.xlu0 %3935
    %3938 = vst.msk [vmem:[%s4 + $0x5] sm:$0x1] %vm722, %v3936
    %v3939 = vld [vmem:[%s0 + $0x6] sm:$0x1]
    %3940 = vmatprep.subr.mxu0 0.0
    %3941 = vmatpush1.msra.mxu0 0.0
    %3942 = vmatprep.subr.mxu0 0.0
    %3943 = vmatpush1.msra.mxu0 0.0
    %3944 = vmatprep.subr.mxu0 0.0
    %3945 = vmatpush1.msra.mxu0 0.0
    %3946 = vmatprep.subr.mxu0 0.0
    %3947 = vmatpush1.msra.mxu0 0.0
    %3948 = vmatprep.subr.mxu0 0.0
    %3949 = vmatpush1.msra.mxu0 0.0
    %3950 = vmatprep.subr.mxu0 0.0
    %3951 = vmatpush1.msra.mxu0 0.0
    %3952 = vmatprep.subr.mxu0 0.0
    %3953 = vmatpush1.msra.mxu0 0.0
    %3954 = vmatprep.subr.mxu0 0.0
    %3955 = vmatpush1.msra.mxu0 0.0
    %3956 = vmatprep.subr.mxu0 0.0
    %3957 = vmatpush1.msra.mxu0 0.0
    %3958 = vmatprep.subr.mxu0 0.0
    %3959 = vmatpush1.msra.mxu0 0.0
    %3960 = vmatprep.subr.mxu0 0.0
    %3961 = vmatpush1.msra.mxu0 0.0
    %3962 = vmatprep.subr.mxu0 0.0
    %3963 = vmatpush1.msra.mxu0 0.0
    %3964 = vmatprep.subr.mxu0 0.0
    %3965 = vmatpush1.msra.mxu0 %v34
    %3966 = vmatprep.subr.mxu0 0.0
    %3967 = vmatpush1.msra.mxu0 %v33
    %3968 = vmatprep.subr.mxu0 0.0
    %3969 = vmatpush1.msra.mxu0 %v32
    %3970 = vmatprep.subr.mxu0 0.0
    %3971 = vmatpush1.msra.mxu0 %v31
    %3972 = vmatprep.subr.mxu0 0.0
    %3973 = vmatpush2.msra.mxu0 0.0
    %3974 = vmatprep.subr.mxu0 0.0
    %3975 = vmatpush2.msra.mxu0 0.0
    %3976 = vmatprep.subr.mxu0 0.0
    %3977 = vmatpush2.msra.mxu0 0.0
    %3978 = vmatprep.subr.mxu0 0.0
    %3979 = vmatpush2.msra.mxu0 0.0
    %3980 = vmatprep.subr.mxu0 0.0
    %3981 = vmatpush2.msra.mxu0 0.0
    %3982 = vmatprep.subr.mxu0 0.0
    %3983 = vmatpush2.msra.mxu0 0.0
    %3984 = vmatprep.subr.mxu0 0.0
    %3985 = vmatpush2.msra.mxu0 0.0
    %3986 = vmatprep.subr.mxu0 0.0
    %3987 = vmatpush2.msra.mxu0 0.0
    %3988 = vmatprep.subr.mxu0 0.0
    %3989 = vmatpush2.msra.mxu0 0.0
    %3990 = vmatprep.subr.mxu0 0.0
    %3991 = vmatpush2.msra.mxu0 0.0
    %3992 = vmatprep.subr.mxu0 0.0
    %3993 = vmatpush2.msra.mxu0 0.0
    %3994 = vmatprep.subr.mxu0 0.0
    %3995 = vmatpush2.msra.mxu0 0.0
    %3996 = vmatprep.subr.mxu0 0.0
    %3997 = vmatpush2.msra.mxu0 0.0
    %3998 = vmatprep.subr.mxu0 0.0
    %3999 = vmatpush2.msra.mxu0 0.0
    %4000 = vmatprep.subr.mxu0 0.0
    %4001 = vmatpush2.msra.mxu0 0.0
    %4002 = vmatprep.subr.mxu0 0.0
    %4003 = vmatpush2.msra.mxu0 0.0
    %4004 = vmatprep.mubr.f32.mxu0 0.0
    %4005 = vmatmul.mubr.f32.gmra.mxu0 %v3846
    %v4006 = vpop.f32.mrf.mxu0
    %v4007 = vadd.f32 %v59, %v4006
    %v4008 = vpop.f32.mrf.mxu0
    %4009 = vdwg.mxu0
    %4010 = vmatprep.subr.mxu0 0.0
    %4011 = vmatpush1.msra.mxu0 0.0
    %4012 = vmatprep.subr.mxu0 0.0
    %4013 = vmatpush1.msra.mxu0 0.0
    %4014 = vmatprep.subr.mxu0 0.0
    %4015 = vmatpush1.msra.mxu0 0.0
    %4016 = vmatprep.subr.mxu0 0.0
    %4017 = vmatpush1.msra.mxu0 0.0
    %4018 = vmatprep.subr.mxu0 0.0
    %4019 = vmatpush1.msra.mxu0 0.0
    %4020 = vmatprep.subr.mxu0 0.0
    %4021 = vmatpush1.msra.mxu0 0.0
    %4022 = vmatprep.subr.mxu0 0.0
    %4023 = vmatpush1.msra.mxu0 0.0
    %4024 = vmatprep.subr.mxu0 0.0
    %4025 = vmatpush1.msra.mxu0 0.0
    %4026 = vmatprep.subr.mxu0 0.0
    %4027 = vmatpush1.msra.mxu0 0.0
    %4028 = vmatprep.subr.mxu0 0.0
    %4029 = vmatpush1.msra.mxu0 0.0
    %4030 = vmatprep.subr.mxu0 0.0
    %4031 = vmatpush1.msra.mxu0 0.0
    %4032 = vmatprep.subr.mxu0 0.0
    %4033 = vmatpush1.msra.mxu0 0.0
    %4034 = vmatprep.subr.mxu0 0.0
    %4035 = vmatpush1.msra.mxu0 %v38
    %4036 = vmatprep.subr.mxu0 0.0
    %4037 = vmatpush1.msra.mxu0 %v37
    %4038 = vmatprep.subr.mxu0 0.0
    %4039 = vmatpush1.msra.mxu0 %v36
    %4040 = vmatprep.subr.mxu0 0.0
    %4041 = vmatpush1.msra.mxu0 %v35
    %4042 = vmatprep.subr.mxu0 0.0
    %4043 = vmatpush2.msra.mxu0 0.0
    %4044 = vmatprep.subr.mxu0 0.0
    %4045 = vmatpush2.msra.mxu0 0.0
    %4046 = vmatprep.subr.mxu0 0.0
    %4047 = vmatpush2.msra.mxu0 0.0
    %4048 = vmatprep.subr.mxu0 0.0
    %4049 = vmatpush2.msra.mxu0 0.0
    %4050 = vmatprep.subr.mxu0 0.0
    %4051 = vmatpush2.msra.mxu0 0.0
    %4052 = vmatprep.subr.mxu0 0.0
    %4053 = vmatpush2.msra.mxu0 0.0
    %4054 = vmatprep.subr.mxu0 0.0
    %4055 = vmatpush2.msra.mxu0 0.0
    %4056 = vmatprep.subr.mxu0 0.0
    %4057 = vmatpush2.msra.mxu0 0.0
    %4058 = vmatprep.subr.mxu0 0.0
    %4059 = vmatpush2.msra.mxu0 0.0
    %4060 = vmatprep.subr.mxu0 0.0
    %4061 = vmatpush2.msra.mxu0 0.0
    %4062 = vmatprep.subr.mxu0 0.0
    %4063 = vmatpush2.msra.mxu0 0.0
    %4064 = vmatprep.subr.mxu0 0.0
    %4065 = vmatpush2.msra.mxu0 0.0
    %4066 = vmatprep.subr.mxu0 0.0
    %4067 = vmatpush2.msra.mxu0 0.0
    %4068 = vmatprep.subr.mxu0 0.0
    %4069 = vmatpush2.msra.mxu0 0.0
    %4070 = vmatprep.subr.mxu0 0.0
    %4071 = vmatpush2.msra.mxu0 0.0
    %4072 = vmatprep.subr.mxu0 0.0
    %4073 = vmatpush2.msra.mxu0 0.0
    %4074 = vmatprep.mubr.f32.mxu0 0.0
    %4075 = vmatmul.mubr.f32.gmra.mxu0 %v3846
    %v4076 = vpop.f32.mrf.mxu0
    %v4077 = vadd.f32 %v60, %v4076
    %v4078 = vpop.f32.mrf.mxu0
    %4079 = vdwg.mxu0
    %v4081 = vsel %vm69, %v3939, 0
    %4083 = vmatprep.subr.mxu0 0.0
    %4084 = vmatpush1.msra.mxu0 0.0
    %4085 = vmatprep.subr.mxu0 0.0
    %4086 = vmatpush1.msra.mxu0 0.0
    %4087 = vmatprep.subr.mxu0 0.0
    %4088 = vmatpush1.msra.mxu0 0.0
    %4089 = vmatprep.subr.mxu0 0.0
    %4090 = vmatpush1.msra.mxu0 0.0
    %4091 = vmatprep.subr.mxu0 0.0
    %4092 = vmatpush1.msra.mxu0 0.0
    %4093 = vmatprep.subr.mxu0 0.0
    %4094 = vmatpush1.msra.mxu0 0.0
    %4095 = vmatprep.subr.mxu0 0.0
    %4096 = vmatpush1.msra.mxu0 0.0
    %4097 = vmatprep.subr.mxu0 0.0
    %4098 = vmatpush1.msra.mxu0 0.0
    %4099 = vmatprep.subr.mxu0 0.0
    %4100 = vmatpush1.msra.mxu0 0.0
    %4101 = vmatprep.subr.mxu0 0.0
    %4102 = vmatpush1.msra.mxu0 0.0
    %4103 = vmatprep.subr.mxu0 0.0
    %4104 = vmatpush1.msra.mxu0 0.0
    %4105 = vmatprep.subr.mxu0 0.0
    %4106 = vmatpush1.msra.mxu0 0.0
    %4107 = vmatprep.subr.mxu0 0.0
    %4108 = vmatpush1.msra.mxu0 %v42
    %4109 = vmatprep.subr.mxu0 0.0
    %4110 = vmatpush1.msra.mxu0 %v41
    %4111 = vmatprep.subr.mxu0 0.0
    %4112 = vmatpush1.msra.mxu0 %v40
    %4113 = vmatprep.subr.mxu0 0.0
    %4114 = vmatpush1.msra.mxu0 %v39
    %4115 = vmatprep.subr.mxu0 0.0
    %4116 = vmatpush2.msra.mxu0 0.0
    %4117 = vmatprep.subr.mxu0 0.0
    %4118 = vmatpush2.msra.mxu0 0.0
    %4119 = vmatprep.subr.mxu0 0.0
    %4120 = vmatpush2.msra.mxu0 0.0
    %4121 = vmatprep.subr.mxu0 0.0
    %4122 = vmatpush2.msra.mxu0 0.0
    %4123 = vmatprep.subr.mxu0 0.0
    %4124 = vmatpush2.msra.mxu0 0.0
    %4125 = vmatprep.subr.mxu0 0.0
    %4126 = vmatpush2.msra.mxu0 0.0
    %4127 = vmatprep.subr.mxu0 0.0
    %4128 = vmatpush2.msra.mxu0 0.0
    %4129 = vmatprep.subr.mxu0 0.0
    %4130 = vmatpush2.msra.mxu0 0.0
    %4131 = vmatprep.subr.mxu0 0.0
    %4132 = vmatpush2.msra.mxu0 0.0
    %4133 = vmatprep.subr.mxu0 0.0
    %4134 = vmatpush2.msra.mxu0 0.0
    %4135 = vmatprep.subr.mxu0 0.0
    %4136 = vmatpush2.msra.mxu0 0.0
    %4137 = vmatprep.subr.mxu0 0.0
    %4138 = vmatpush2.msra.mxu0 0.0
    %4139 = vmatprep.subr.mxu0 0.0
    %4140 = vmatpush2.msra.mxu0 0.0
    %4141 = vmatprep.subr.mxu0 0.0
    %4142 = vmatpush2.msra.mxu0 0.0
    %4143 = vmatprep.subr.mxu0 0.0
    %4144 = vmatpush2.msra.mxu0 0.0
    %4145 = vmatprep.subr.mxu0 0.0
    %4146 = vmatpush2.msra.mxu0 0.0
    %4147 = vmatprep.mubr.f32.mxu0 0.0
    %4148 = vmatmul.mubr.f32.gmra.mxu0 %v4081
    %v4149 = vpop.f32.mrf.mxu0
    %v4150 = vadd.f32 %v61, %v4149
    %v4151 = vpop.f32.mrf.mxu0
    %4152 = vdwg.mxu0
    %v4153 = vadd.f32 %v4150, %v4007
    %v4154 = vsel %vm287, %v4153, -inf
    %4155 = vmax.xlane.f32.xlu0 %v4154
    %v4156 = vpop.xlane.xlu0 %4155
    %v4157 = vsub.f32 %v4153, %v4156
    %v4158 = vmul.f32 %v4157, 1.442695
    %v4159 = vpow.pop %v4158
    %v4160 = vsel %vm287, %v4159, 0.0
    %4161 = vadd.xlane.f32.xlu0 %v4160
    %v4162 = vpop.xlane.xlu0 %4161
    %v4163 = vrcp.pop %v4162
    %v4164 = vmul.f32 %v4162, %v4163
    %v4165 = vsub.f32 2.0, %v4164
    %v4166 = vmul.f32 %v4163, %v4165
    %v4167 = vmul.f32 %v4159, %v4166
    %v4169 = vsel %vm302, %v4167, 0
    %4171 = vmatprep.subr.mxu0 0.0
    %4172 = vmatpush1.msra.mxu0 0.0
    %4173 = vmatprep.subr.mxu0 0.0
    %4174 = vmatpush1.msra.mxu0 0.0
    %4175 = vmatprep.subr.mxu0 0.0
    %4176 = vmatpush1.msra.mxu0 0.0
    %4177 = vmatprep.subr.mxu0 0.0
    %4178 = vmatpush1.msra.mxu0 0.0
    %4179 = vmatprep.subr.mxu0 0.0
    %4180 = vmatpush1.msra.mxu0 0.0
    %4181 = vmatprep.subr.mxu0 0.0
    %4182 = vmatpush1.msra.mxu0 0.0
    %4183 = vmatprep.subr.mxu0 0.0
    %4184 = vmatpush1.msra.mxu0 0.0
    %4185 = vmatprep.subr.mxu0 0.0
    %4186 = vmatpush1.msra.mxu0 0.0
    %4187 = vmatprep.subr.mxu0 0.0
    %4188 = vmatpush1.msra.mxu0 0.0
    %4189 = vmatprep.subr.mxu0 0.0
    %4190 = vmatpush1.msra.mxu0 0.0
    %4191 = vmatprep.subr.mxu0 0.0
    %4192 = vmatpush1.msra.mxu0 0.0
    %4193 = vmatprep.subr.mxu0 0.0
    %4194 = vmatpush1.msra.mxu0 0.0
    %4195 = vmatprep.subr.mxu0 0.0
    %4196 = vmatpush1.msra.mxu0 0.0
    %4197 = vmatprep.subr.mxu0 0.0
    %4198 = vmatpush1.msra.mxu0 0.0
    %4199 = vmatprep.subr.mxu0 0.0
    %4200 = vmatpush1.msra.mxu0 %v308
    %4201 = vmatprep.subr.mxu0 0.0
    %4202 = vmatpush1.msra.mxu0 %v64
    %4203 = vmatprep.subr.mxu0 0.0
    %4204 = vmatpush2.msra.mxu0 0.0
    %4205 = vmatprep.subr.mxu0 0.0
    %4206 = vmatpush2.msra.mxu0 0.0
    %4207 = vmatprep.subr.mxu0 0.0
    %4208 = vmatpush2.msra.mxu0 0.0
    %4209 = vmatprep.subr.mxu0 0.0
    %4210 = vmatpush2.msra.mxu0 0.0
    %4211 = vmatprep.subr.mxu0 0.0
    %4212 = vmatpush2.msra.mxu0 0.0
    %4213 = vmatprep.subr.mxu0 0.0
    %4214 = vmatpush2.msra.mxu0 0.0
    %4215 = vmatprep.subr.mxu0 0.0
    %4216 = vmatpush2.msra.mxu0 0.0
    %4217 = vmatprep.subr.mxu0 0.0
    %4218 = vmatpush2.msra.mxu0 0.0
    %4219 = vmatprep.subr.mxu0 0.0
    %4220 = vmatpush2.msra.mxu0 0.0
    %4221 = vmatprep.subr.mxu0 0.0
    %4222 = vmatpush2.msra.mxu0 0.0
    %4223 = vmatprep.subr.mxu0 0.0
    %4224 = vmatpush2.msra.mxu0 0.0
    %4225 = vmatprep.subr.mxu0 0.0
    %4226 = vmatpush2.msra.mxu0 0.0
    %4227 = vmatprep.subr.mxu0 0.0
    %4228 = vmatpush2.msra.mxu0 0.0
    %4229 = vmatprep.subr.mxu0 0.0
    %4230 = vmatpush2.msra.mxu0 0.0
    %4231 = vmatprep.subr.mxu0 0.0
    %4232 = vmatpush2.msra.mxu0 0.0
    %4233 = vmatprep.subr.mxu0 0.0
    %4234 = vmatpush2.msra.mxu0 0.0
    %4235 = vmatprep.mubr.f32.mxu0 0.0
    %4236 = vmatmul.mubr.f32.gmra.mxu0 %v4169
    %v4237 = vpop.f32.mrf.mxu0
    %v4238 = vadd.f32 0.0, %v4237
    %v4239 = vpop.f32.mrf.mxu0
    %4240 = vdwg.mxu0
    %4241 = vrot.lane.b32.xlu0 %v4150, 64
    %v4242 = vpop.permute.xlu0 %4241
    %v4244 = vsel %vm69, %v4238, 0
    %4246 = vmatprep.subr.mxu0 0.0
    %4247 = vmatpush1.msra.mxu0 0.0
    %4248 = vmatprep.subr.mxu0 0.0
    %4249 = vmatpush1.msra.mxu0 0.0
    %4250 = vmatprep.subr.mxu0 0.0
    %4251 = vmatpush1.msra.mxu0 0.0
    %4252 = vmatprep.subr.mxu0 0.0
    %4253 = vmatpush1.msra.mxu0 0.0
    %4254 = vmatprep.subr.mxu0 0.0
    %4255 = vmatpush1.msra.mxu0 0.0
    %4256 = vmatprep.subr.mxu0 0.0
    %4257 = vmatpush1.msra.mxu0 0.0
    %4258 = vmatprep.subr.mxu0 0.0
    %4259 = vmatpush1.msra.mxu0 0.0
    %4260 = vmatprep.subr.mxu0 0.0
    %4261 = vmatpush1.msra.mxu0 0.0
    %4262 = vmatprep.subr.mxu0 0.0
    %4263 = vmatpush1.msra.mxu0 0.0
    %4264 = vmatprep.subr.mxu0 0.0
    %4265 = vmatpush1.msra.mxu0 0.0
    %4266 = vmatprep.subr.mxu0 0.0
    %4267 = vmatpush1.msra.mxu0 0.0
    %4268 = vmatprep.subr.mxu0 0.0
    %4269 = vmatpush1.msra.mxu0 0.0
    %4270 = vmatprep.subr.mxu0 0.0
    %4271 = vmatpush1.msra.mxu0 %v54
    %4272 = vmatprep.subr.mxu0 0.0
    %4273 = vmatpush1.msra.mxu0 %v53
    %4274 = vmatprep.subr.mxu0 0.0
    %4275 = vmatpush1.msra.mxu0 %v52
    %4276 = vmatprep.subr.mxu0 0.0
    %4277 = vmatpush1.msra.mxu0 %v51
    %4278 = vmatprep.subr.mxu0 0.0
    %4279 = vmatpush2.msra.mxu0 0.0
    %4280 = vmatprep.subr.mxu0 0.0
    %4281 = vmatpush2.msra.mxu0 0.0
    %4282 = vmatprep.subr.mxu0 0.0
    %4283 = vmatpush2.msra.mxu0 0.0
    %4284 = vmatprep.subr.mxu0 0.0
    %4285 = vmatpush2.msra.mxu0 0.0
    %4286 = vmatprep.subr.mxu0 0.0
    %4287 = vmatpush2.msra.mxu0 0.0
    %4288 = vmatprep.subr.mxu0 0.0
    %4289 = vmatpush2.msra.mxu0 0.0
    %4290 = vmatprep.subr.mxu0 0.0
    %4291 = vmatpush2.msra.mxu0 0.0
    %4292 = vmatprep.subr.mxu0 0.0
    %4293 = vmatpush2.msra.mxu0 0.0
    %4294 = vmatprep.subr.mxu0 0.0
    %4295 = vmatpush2.msra.mxu0 0.0
    %4296 = vmatprep.subr.mxu0 0.0
    %4297 = vmatpush2.msra.mxu0 0.0
    %4298 = vmatprep.subr.mxu0 0.0
    %4299 = vmatpush2.msra.mxu0 0.0
    %4300 = vmatprep.subr.mxu0 0.0
    %4301 = vmatpush2.msra.mxu0 0.0
    %4302 = vmatprep.subr.mxu0 0.0
    %4303 = vmatpush2.msra.mxu0 0.0
    %4304 = vmatprep.subr.mxu0 0.0
    %4305 = vmatpush2.msra.mxu0 0.0
    %4306 = vmatprep.subr.mxu0 0.0
    %4307 = vmatpush2.msra.mxu0 0.0
    %4308 = vmatprep.subr.mxu0 0.0
    %4309 = vmatpush2.msra.mxu0 0.0
    %4310 = vmatprep.mubr.f32.mxu0 0.0
    %4311 = vmatmul.mubr.f32.gmra.mxu0 %v4244
    %v4312 = vpop.f32.mrf.mxu0
    %v4313 = vadd.f32 0.0, %v4312
    %v4314 = vpop.f32.mrf.mxu0
    %4315 = vdwg.mxu0
    %v4316 = vadd.f32 %v4242, %v4313
    %v4317 = vmax.f32 %v4316, 0.0
    %v4319 = vsel %vm69, %v4317, 0
    %4321 = vmatprep.subr.mxu0 0.0
    %4322 = vmatpush1.msra.mxu0 0.0
    %4323 = vmatprep.subr.mxu0 0.0
    %4324 = vmatpush1.msra.mxu0 0.0
    %4325 = vmatprep.subr.mxu0 0.0
    %4326 = vmatpush1.msra.mxu0 0.0
    %4327 = vmatprep.subr.mxu0 0.0
    %4328 = vmatpush1.msra.mxu0 0.0
    %4329 = vmatprep.subr.mxu0 0.0
    %4330 = vmatpush1.msra.mxu0 0.0
    %4331 = vmatprep.subr.mxu0 0.0
    %4332 = vmatpush1.msra.mxu0 0.0
    %4333 = vmatprep.subr.mxu0 0.0
    %4334 = vmatpush1.msra.mxu0 0.0
    %4335 = vmatprep.subr.mxu0 0.0
    %4336 = vmatpush1.msra.mxu0 0.0
    %4337 = vmatprep.subr.mxu0 0.0
    %4338 = vmatpush1.msra.mxu0 0.0
    %4339 = vmatprep.subr.mxu0 0.0
    %4340 = vmatpush1.msra.mxu0 0.0
    %4341 = vmatprep.subr.mxu0 0.0
    %4342 = vmatpush1.msra.mxu0 0.0
    %4343 = vmatprep.subr.mxu0 0.0
    %4344 = vmatpush1.msra.mxu0 0.0
    %4345 = vmatprep.subr.mxu0 0.0
    %4346 = vmatpush1.msra.mxu0 %v46
    %4347 = vmatprep.subr.mxu0 0.0
    %4348 = vmatpush1.msra.mxu0 %v45
    %4349 = vmatprep.subr.mxu0 0.0
    %4350 = vmatpush1.msra.mxu0 %v44
    %4351 = vmatprep.subr.mxu0 0.0
    %4352 = vmatpush1.msra.mxu0 %v43
    %4353 = vmatprep.subr.mxu0 0.0
    %4354 = vmatpush2.msra.mxu0 0.0
    %4355 = vmatprep.subr.mxu0 0.0
    %4356 = vmatpush2.msra.mxu0 0.0
    %4357 = vmatprep.subr.mxu0 0.0
    %4358 = vmatpush2.msra.mxu0 0.0
    %4359 = vmatprep.subr.mxu0 0.0
    %4360 = vmatpush2.msra.mxu0 0.0
    %4361 = vmatprep.subr.mxu0 0.0
    %4362 = vmatpush2.msra.mxu0 0.0
    %4363 = vmatprep.subr.mxu0 0.0
    %4364 = vmatpush2.msra.mxu0 0.0
    %4365 = vmatprep.subr.mxu0 0.0
    %4366 = vmatpush2.msra.mxu0 0.0
    %4367 = vmatprep.subr.mxu0 0.0
    %4368 = vmatpush2.msra.mxu0 0.0
    %4369 = vmatprep.subr.mxu0 0.0
    %4370 = vmatpush2.msra.mxu0 0.0
    %4371 = vmatprep.subr.mxu0 0.0
    %4372 = vmatpush2.msra.mxu0 0.0
    %4373 = vmatprep.subr.mxu0 0.0
    %4374 = vmatpush2.msra.mxu0 0.0
    %4375 = vmatprep.subr.mxu0 0.0
    %4376 = vmatpush2.msra.mxu0 0.0
    %4377 = vmatprep.subr.mxu0 0.0
    %4378 = vmatpush2.msra.mxu0 0.0
    %4379 = vmatprep.subr.mxu0 0.0
    %4380 = vmatpush2.msra.mxu0 0.0
    %4381 = vmatprep.subr.mxu0 0.0
    %4382 = vmatpush2.msra.mxu0 0.0
    %4383 = vmatprep.subr.mxu0 0.0
    %4384 = vmatpush2.msra.mxu0 0.0
    %4385 = vmatprep.mubr.f32.mxu0 0.0
    %4386 = vmatmul.mubr.f32.gmra.mxu0 %v4319
    %v4387 = vpop.f32.mrf.mxu0
    %v4388 = vadd.f32 0.0, %v4387
    %v4389 = vpop.f32.mrf.mxu0
    %4390 = vdwg.mxu0
    %4391 = vmatprep.subr.mxu0 0.0
    %4392 = vmatpush1.msra.mxu0 0.0
    %4393 = vmatprep.subr.mxu0 0.0
    %4394 = vmatpush1.msra.mxu0 0.0
    %4395 = vmatprep.subr.mxu0 0.0
    %4396 = vmatpush1.msra.mxu0 0.0
    %4397 = vmatprep.subr.mxu0 0.0
    %4398 = vmatpush1.msra.mxu0 0.0
    %4399 = vmatprep.subr.mxu0 0.0
    %4400 = vmatpush1.msra.mxu0 0.0
    %4401 = vmatprep.subr.mxu0 0.0
    %4402 = vmatpush1.msra.mxu0 0.0
    %4403 = vmatprep.subr.mxu0 0.0
    %4404 = vmatpush1.msra.mxu0 0.0
    %4405 = vmatprep.subr.mxu0 0.0
    %4406 = vmatpush1.msra.mxu0 0.0
    %4407 = vmatprep.subr.mxu0 0.0
    %4408 = vmatpush1.msra.mxu0 0.0
    %4409 = vmatprep.subr.mxu0 0.0
    %4410 = vmatpush1.msra.mxu0 0.0
    %4411 = vmatprep.subr.mxu0 0.0
    %4412 = vmatpush1.msra.mxu0 0.0
    %4413 = vmatprep.subr.mxu0 0.0
    %4414 = vmatpush1.msra.mxu0 0.0
    %4415 = vmatprep.subr.mxu0 0.0
    %4416 = vmatpush1.msra.mxu0 %v50
    %4417 = vmatprep.subr.mxu0 0.0
    %4418 = vmatpush1.msra.mxu0 %v49
    %4419 = vmatprep.subr.mxu0 0.0
    %4420 = vmatpush1.msra.mxu0 %v48
    %4421 = vmatprep.subr.mxu0 0.0
    %4422 = vmatpush1.msra.mxu0 %v47
    %4423 = vmatprep.subr.mxu0 0.0
    %4424 = vmatpush2.msra.mxu0 0.0
    %4425 = vmatprep.subr.mxu0 0.0
    %4426 = vmatpush2.msra.mxu0 0.0
    %4427 = vmatprep.subr.mxu0 0.0
    %4428 = vmatpush2.msra.mxu0 0.0
    %4429 = vmatprep.subr.mxu0 0.0
    %4430 = vmatpush2.msra.mxu0 0.0
    %4431 = vmatprep.subr.mxu0 0.0
    %4432 = vmatpush2.msra.mxu0 0.0
    %4433 = vmatprep.subr.mxu0 0.0
    %4434 = vmatpush2.msra.mxu0 0.0
    %4435 = vmatprep.subr.mxu0 0.0
    %4436 = vmatpush2.msra.mxu0 0.0
    %4437 = vmatprep.subr.mxu0 0.0
    %4438 = vmatpush2.msra.mxu0 0.0
    %4439 = vmatprep.subr.mxu0 0.0
    %4440 = vmatpush2.msra.mxu0 0.0
    %4441 = vmatprep.subr.mxu0 0.0
    %4442 = vmatpush2.msra.mxu0 0.0
    %4443 = vmatprep.subr.mxu0 0.0
    %4444 = vmatpush2.msra.mxu0 0.0
    %4445 = vmatprep.subr.mxu0 0.0
    %4446 = vmatpush2.msra.mxu0 0.0
    %4447 = vmatprep.subr.mxu0 0.0
    %4448 = vmatpush2.msra.mxu0 0.0
    %4449 = vmatprep.subr.mxu0 0.0
    %4450 = vmatpush2.msra.mxu0 0.0
    %4451 = vmatprep.subr.mxu0 0.0
    %4452 = vmatpush2.msra.mxu0 0.0
    %4453 = vmatprep.subr.mxu0 0.0
    %4454 = vmatpush2.msra.mxu0 0.0
    %4455 = vmatprep.mubr.f32.mxu0 0.0
    %4456 = vmatmul.mubr.f32.gmra.mxu0 %v4319
    %v4457 = vpop.f32.mrf.mxu0
    %v4458 = vadd.f32 %v62, %v4457
    %v4459 = vpop.f32.mrf.mxu0
    %4460 = vdwg.mxu0
    %4461 = vrot.lane.b32.xlu0 %v4007, 64
    %v4462 = vpop.permute.xlu0 %4461
    %v4463 = vadd.f32 %v4388, %v4462
    %v4464 = vxor.u32 %v4463, 2147483648
    %v4465 = vmul.f32 %v4464, 1.442695
    %v4466 = vpow.pop %v4465
    %v4467 = vadd.f32 %v4466, 1.0
    %v4468 = vrcp.pop %v4467
    %v4469 = vmul.f32 1.0, %v4468
    %4470 = vrot.lane.b32.xlu0 %v4388, 64
    %v4471 = vpop.permute.xlu0 %4470
    %v4472 = vadd.f32 %v4471, %v4077
    %v4473 = vxor.u32 %v4472, 2147483648
    %v4474 = vmul.f32 %v4473, 1.442695
    %v4475 = vpow.pop %v4474
    %v4476 = vadd.f32 %v4475, 1.0
    %v4477 = vrcp.pop %v4476
    %v4478 = vmul.f32 1.0, %v4477
    %4479 = vrot.lane.b32.xlu0 %v4077, 64
    %v4480 = vpop.permute.xlu0 %4479
    %v4481 = vmul.f32 %v4469, %v4480
    %v4482 = vadd.f32 %v4458, %v4481
    %v4483 = vtanh.pop %v4482
    %v4484 = vsub.f32 1.0, %v4478
    %v4485 = vmul.f32 %v4484, %v4483
    %v4486 = vmul.f32 %v4478, %v3844
    %v4487 = vadd.f32 %v4485, %v4486
    %v4489 = vsel %vm69, %v4487, 0
    %4491 = vmatprep.subr.mxu0 0.0
    %4492 = vmatpush1.msra.mxu0 0.0
    %4493 = vmatprep.subr.mxu0 0.0
    %4494 = vmatpush1.msra.mxu0 0.0
    %4495 = vmatprep.subr.mxu0 0.0
    %4496 = vmatpush1.msra.mxu0 0.0
    %4497 = vmatprep.subr.mxu0 0.0
    %4498 = vmatpush1.msra.mxu0 0.0
    %4499 = vmatprep.subr.mxu0 0.0
    %4500 = vmatpush1.msra.mxu0 0.0
    %4501 = vmatprep.subr.mxu0 0.0
    %4502 = vmatpush1.msra.mxu0 0.0
    %4503 = vmatprep.subr.mxu0 0.0
    %4504 = vmatpush1.msra.mxu0 0.0
    %4505 = vmatprep.subr.mxu0 0.0
    %4506 = vmatpush1.msra.mxu0 0.0
    %4507 = vmatprep.subr.mxu0 0.0
    %4508 = vmatpush1.msra.mxu0 0.0
    %4509 = vmatprep.subr.mxu0 0.0
    %4510 = vmatpush1.msra.mxu0 0.0
    %4511 = vmatprep.subr.mxu0 0.0
    %4512 = vmatpush1.msra.mxu0 0.0
    %4513 = vmatprep.subr.mxu0 0.0
    %4514 = vmatpush1.msra.mxu0 0.0
    %4515 = vmatprep.subr.mxu0 0.0
    %4516 = vmatpush1.msra.mxu0 %v58
    %4517 = vmatprep.subr.mxu0 0.0
    %4518 = vmatpush1.msra.mxu0 %v57
    %4519 = vmatprep.subr.mxu0 0.0
    %4520 = vmatpush1.msra.mxu0 %v56
    %4521 = vmatprep.subr.mxu0 0.0
    %4522 = vmatpush1.msra.mxu0 %v55
    %4523 = vmatprep.subr.mxu0 0.0
    %4524 = vmatpush2.msra.mxu0 0.0
    %4525 = vmatprep.subr.mxu0 0.0
    %4526 = vmatpush2.msra.mxu0 0.0
    %4527 = vmatprep.subr.mxu0 0.0
    %4528 = vmatpush2.msra.mxu0 0.0
    %4529 = vmatprep.subr.mxu0 0.0
    %4530 = vmatpush2.msra.mxu0 0.0
    %4531 = vmatprep.subr.mxu0 0.0
    %4532 = vmatpush2.msra.mxu0 0.0
    %4533 = vmatprep.subr.mxu0 0.0
    %4534 = vmatpush2.msra.mxu0 0.0
    %4535 = vmatprep.subr.mxu0 0.0
    %4536 = vmatpush2.msra.mxu0 0.0
    %4537 = vmatprep.subr.mxu0 0.0
    %4538 = vmatpush2.msra.mxu0 0.0
    %4539 = vmatprep.subr.mxu0 0.0
    %4540 = vmatpush2.msra.mxu0 0.0
    %4541 = vmatprep.subr.mxu0 0.0
    %4542 = vmatpush2.msra.mxu0 0.0
    %4543 = vmatprep.subr.mxu0 0.0
    %4544 = vmatpush2.msra.mxu0 0.0
    %4545 = vmatprep.subr.mxu0 0.0
    %4546 = vmatpush2.msra.mxu0 0.0
    %4547 = vmatprep.subr.mxu0 0.0
    %4548 = vmatpush2.msra.mxu0 0.0
    %4549 = vmatprep.subr.mxu0 0.0
    %4550 = vmatpush2.msra.mxu0 0.0
    %4551 = vmatprep.subr.mxu0 0.0
    %4552 = vmatpush2.msra.mxu0 0.0
    %4553 = vmatprep.subr.mxu0 0.0
    %4554 = vmatpush2.msra.mxu0 0.0
    %4555 = vmatprep.mubr.f32.mxu0 0.0
    %4556 = vmatmul.mubr.f32.gmra.mxu0 %v4489
    %v4557 = vpop.f32.mrf.mxu0
    %v4558 = vadd.f32 %v63, %v4557
    %v4559 = vpop.f32.mrf.mxu0
    %4560 = vdwg.mxu0
    %v4561 = vsel %vm700, %v4558, -inf
    %4562 = vmax.xlane.f32.xlu0 %v4561
    %v4563 = vpop.xlane.xlu0 %4562
    %v4564 = vsub.f32 %v4558, %v4563
    %v4565 = vmul.f32 %v4564, 1.442695
    %v4566 = vpow.pop %v4565
    %v4567 = vsel %vm700, %v4566, 0.0
    %4568 = vadd.xlane.f32.xlu0 %v4567
    %v4569 = vpop.xlane.xlu0 %4568
    %v4570 = vlog2.pop %v4569
    %v4571 = vmul.f32 %v4570, 0.6931472
    %v4572 = vsub.f32 %v4564, %v4571
    %4573 = vst.msk [vmem:[%s4 + $0x6] sm:$0x1] %vm700, %v4572
    %4574 = vrot.lane.b32.xlu0 %v4487, 32
    %v4575 = vpop.permute.xlu0 %4574
    %4577 = vst.msk [vmem:[%s4 + $0x6] sm:$0x1] %vm717, %v4575
    %4578 = vrot.lane.b32.xlu0 %v4167, 64
    %v4579 = vpop.permute.xlu0 %4578
    %4581 = vst.msk [vmem:[%s4 + $0x6] sm:$0x1] %vm722, %v4579
    %v4582 = vld [vmem:[%s0 + $0x7] sm:$0x1]
    %4583 = vmatprep.subr.mxu0 0.0
    %4584 = vmatpush1.msra.mxu0 0.0
    %4585 = vmatprep.subr.mxu0 0.0
    %4586 = vmatpush1.msra.mxu0 0.0
    %4587 = vmatprep.subr.mxu0 0.0
    %4588 = vmatpush1.msra.mxu0 0.0
    %4589 = vmatprep.subr.mxu0 0.0
    %4590 = vmatpush1.msra.mxu0 0.0
    %4591 = vmatprep.subr.mxu0 0.0
    %4592 = vmatpush1.msra.mxu0 0.0
    %4593 = vmatprep.subr.mxu0 0.0
    %4594 = vmatpush1.msra.mxu0 0.0
    %4595 = vmatprep.subr.mxu0 0.0
    %4596 = vmatpush1.msra.mxu0 0.0
    %4597 = vmatprep.subr.mxu0 0.0
    %4598 = vmatpush1.msra.mxu0 0.0
    %4599 = vmatprep.subr.mxu0 0.0
    %4600 = vmatpush1.msra.mxu0 0.0
    %4601 = vmatprep.subr.mxu0 0.0
    %4602 = vmatpush1.msra.mxu0 0.0
    %4603 = vmatprep.subr.mxu0 0.0
    %4604 = vmatpush1.msra.mxu0 0.0
    %4605 = vmatprep.subr.mxu0 0.0
    %4606 = vmatpush1.msra.mxu0 0.0
    %4607 = vmatprep.subr.mxu0 0.0
    %4608 = vmatpush1.msra.mxu0 %v34
    %4609 = vmatprep.subr.mxu0 0.0
    %4610 = vmatpush1.msra.mxu0 %v33
    %4611 = vmatprep.subr.mxu0 0.0
    %4612 = vmatpush1.msra.mxu0 %v32
    %4613 = vmatprep.subr.mxu0 0.0
    %4614 = vmatpush1.msra.mxu0 %v31
    %4615 = vmatprep.subr.mxu0 0.0
    %4616 = vmatpush2.msra.mxu0 0.0
    %4617 = vmatprep.subr.mxu0 0.0
    %4618 = vmatpush2.msra.mxu0 0.0
    %4619 = vmatprep.subr.mxu0 0.0
    %4620 = vmatpush2.msra.mxu0 0.0
    %4621 = vmatprep.subr.mxu0 0.0
    %4622 = vmatpush2.msra.mxu0 0.0
    %4623 = vmatprep.subr.mxu0 0.0
    %4624 = vmatpush2.msra.mxu0 0.0
    %4625 = vmatprep.subr.mxu0 0.0
    %4626 = vmatpush2.msra.mxu0 0.0
    %4627 = vmatprep.subr.mxu0 0.0
    %4628 = vmatpush2.msra.mxu0 0.0
    %4629 = vmatprep.subr.mxu0 0.0
    %4630 = vmatpush2.msra.mxu0 0.0
    %4631 = vmatprep.subr.mxu0 0.0
    %4632 = vmatpush2.msra.mxu0 0.0
    %4633 = vmatprep.subr.mxu0 0.0
    %4634 = vmatpush2.msra.mxu0 0.0
    %4635 = vmatprep.subr.mxu0 0.0
    %4636 = vmatpush2.msra.mxu0 0.0
    %4637 = vmatprep.subr.mxu0 0.0
    %4638 = vmatpush2.msra.mxu0 0.0
    %4639 = vmatprep.subr.mxu0 0.0
    %4640 = vmatpush2.msra.mxu0 0.0
    %4641 = vmatprep.subr.mxu0 0.0
    %4642 = vmatpush2.msra.mxu0 0.0
    %4643 = vmatprep.subr.mxu0 0.0
    %4644 = vmatpush2.msra.mxu0 0.0
    %4645 = vmatprep.subr.mxu0 0.0
    %4646 = vmatpush2.msra.mxu0 0.0
    %4647 = vmatprep.mubr.f32.mxu0 0.0
    %4648 = vmatmul.mubr.f32.gmra.mxu0 %v4489
    %v4649 = vpop.f32.mrf.mxu0
    %v4650 = vadd.f32 %v59, %v4649
    %v4651 = vpop.f32.mrf.mxu0
    %4652 = vdwg.mxu0
    %4653 = vmatprep.subr.mxu0 0.0
    %4654 = vmatpush1.msra.mxu0 0.0
    %4655 = vmatprep.subr.mxu0 0.0
    %4656 = vmatpush1.msra.mxu0 0.0
    %4657 = vmatprep.subr.mxu0 0.0
    %4658 = vmatpush1.msra.mxu0 0.0
    %4659 = vmatprep.subr.mxu0 0.0
    %4660 = vmatpush1.msra.mxu0 0.0
    %4661 = vmatprep.subr.mxu0 0.0
    %4662 = vmatpush1.msra.mxu0 0.0
    %4663 = vmatprep.subr.mxu0 0.0
    %4664 = vmatpush1.msra.mxu0 0.0
    %4665 = vmatprep.subr.mxu0 0.0
    %4666 = vmatpush1.msra.mxu0 0.0
    %4667 = vmatprep.subr.mxu0 0.0
    %4668 = vmatpush1.msra.mxu0 0.0
    %4669 = vmatprep.subr.mxu0 0.0
    %4670 = vmatpush1.msra.mxu0 0.0
    %4671 = vmatprep.subr.mxu0 0.0
    %4672 = vmatpush1.msra.mxu0 0.0
    %4673 = vmatprep.subr.mxu0 0.0
    %4674 = vmatpush1.msra.mxu0 0.0
    %4675 = vmatprep.subr.mxu0 0.0
    %4676 = vmatpush1.msra.mxu0 0.0
    %4677 = vmatprep.subr.mxu0 0.0
    %4678 = vmatpush1.msra.mxu0 %v38
    %4679 = vmatprep.subr.mxu0 0.0
    %4680 = vmatpush1.msra.mxu0 %v37
    %4681 = vmatprep.subr.mxu0 0.0
    %4682 = vmatpush1.msra.mxu0 %v36
    %4683 = vmatprep.subr.mxu0 0.0
    %4684 = vmatpush1.msra.mxu0 %v35
    %4685 = vmatprep.subr.mxu0 0.0
    %4686 = vmatpush2.msra.mxu0 0.0
    %4687 = vmatprep.subr.mxu0 0.0
    %4688 = vmatpush2.msra.mxu0 0.0
    %4689 = vmatprep.subr.mxu0 0.0
    %4690 = vmatpush2.msra.mxu0 0.0
    %4691 = vmatprep.subr.mxu0 0.0
    %4692 = vmatpush2.msra.mxu0 0.0
    %4693 = vmatprep.subr.mxu0 0.0
    %4694 = vmatpush2.msra.mxu0 0.0
    %4695 = vmatprep.subr.mxu0 0.0
    %4696 = vmatpush2.msra.mxu0 0.0
    %4697 = vmatprep.subr.mxu0 0.0
    %4698 = vmatpush2.msra.mxu0 0.0
    %4699 = vmatprep.subr.mxu0 0.0
    %4700 = vmatpush2.msra.mxu0 0.0
    %4701 = vmatprep.subr.mxu0 0.0
    %4702 = vmatpush2.msra.mxu0 0.0
    %4703 = vmatprep.subr.mxu0 0.0
    %4704 = vmatpush2.msra.mxu0 0.0
    %4705 = vmatprep.subr.mxu0 0.0
    %4706 = vmatpush2.msra.mxu0 0.0
    %4707 = vmatprep.subr.mxu0 0.0
    %4708 = vmatpush2.msra.mxu0 0.0
    %4709 = vmatprep.subr.mxu0 0.0
    %4710 = vmatpush2.msra.mxu0 0.0
    %4711 = vmatprep.subr.mxu0 0.0
    %4712 = vmatpush2.msra.mxu0 0.0
    %4713 = vmatprep.subr.mxu0 0.0
    %4714 = vmatpush2.msra.mxu0 0.0
    %4715 = vmatprep.subr.mxu0 0.0
    %4716 = vmatpush2.msra.mxu0 0.0
    %4717 = vmatprep.mubr.f32.mxu0 0.0
    %4718 = vmatmul.mubr.f32.gmra.mxu0 %v4489
    %v4719 = vpop.f32.mrf.mxu0
    %v4720 = vadd.f32 %v60, %v4719
    %v4721 = vpop.f32.mrf.mxu0
    %4722 = vdwg.mxu0
    %v4724 = vsel %vm69, %v4582, 0
    %4726 = vmatprep.subr.mxu0 0.0
    %4727 = vmatpush1.msra.mxu0 0.0
    %4728 = vmatprep.subr.mxu0 0.0
    %4729 = vmatpush1.msra.mxu0 0.0
    %4730 = vmatprep.subr.mxu0 0.0
    %4731 = vmatpush1.msra.mxu0 0.0
    %4732 = vmatprep.subr.mxu0 0.0
    %4733 = vmatpush1.msra.mxu0 0.0
    %4734 = vmatprep.subr.mxu0 0.0
    %4735 = vmatpush1.msra.mxu0 0.0
    %4736 = vmatprep.subr.mxu0 0.0
    %4737 = vmatpush1.msra.mxu0 0.0
    %4738 = vmatprep.subr.mxu0 0.0
    %4739 = vmatpush1.msra.mxu0 0.0
    %4740 = vmatprep.subr.mxu0 0.0
    %4741 = vmatpush1.msra.mxu0 0.0
    %4742 = vmatprep.subr.mxu0 0.0
    %4743 = vmatpush1.msra.mxu0 0.0
    %4744 = vmatprep.subr.mxu0 0.0
    %4745 = vmatpush1.msra.mxu0 0.0
    %4746 = vmatprep.subr.mxu0 0.0
    %4747 = vmatpush1.msra.mxu0 0.0
    %4748 = vmatprep.subr.mxu0 0.0
    %4749 = vmatpush1.msra.mxu0 0.0
    %4750 = vmatprep.subr.mxu0 0.0
    %4751 = vmatpush1.msra.mxu0 %v42
    %4752 = vmatprep.subr.mxu0 0.0
    %4753 = vmatpush1.msra.mxu0 %v41
    %4754 = vmatprep.subr.mxu0 0.0
    %4755 = vmatpush1.msra.mxu0 %v40
    %4756 = vmatprep.subr.mxu0 0.0
    %4757 = vmatpush1.msra.mxu0 %v39
    %4758 = vmatprep.subr.mxu0 0.0
    %4759 = vmatpush2.msra.mxu0 0.0
    %4760 = vmatprep.subr.mxu0 0.0
    %4761 = vmatpush2.msra.mxu0 0.0
    %4762 = vmatprep.subr.mxu0 0.0
    %4763 = vmatpush2.msra.mxu0 0.0
    %4764 = vmatprep.subr.mxu0 0.0
    %4765 = vmatpush2.msra.mxu0 0.0
    %4766 = vmatprep.subr.mxu0 0.0
    %4767 = vmatpush2.msra.mxu0 0.0
    %4768 = vmatprep.subr.mxu0 0.0
    %4769 = vmatpush2.msra.mxu0 0.0
    %4770 = vmatprep.subr.mxu0 0.0
    %4771 = vmatpush2.msra.mxu0 0.0
    %4772 = vmatprep.subr.mxu0 0.0
    %4773 = vmatpush2.msra.mxu0 0.0
    %4774 = vmatprep.subr.mxu0 0.0
    %4775 = vmatpush2.msra.mxu0 0.0
    %4776 = vmatprep.subr.mxu0 0.0
    %4777 = vmatpush2.msra.mxu0 0.0
    %4778 = vmatprep.subr.mxu0 0.0
    %4779 = vmatpush2.msra.mxu0 0.0
    %4780 = vmatprep.subr.mxu0 0.0
    %4781 = vmatpush2.msra.mxu0 0.0
    %4782 = vmatprep.subr.mxu0 0.0
    %4783 = vmatpush2.msra.mxu0 0.0
    %4784 = vmatprep.subr.mxu0 0.0
    %4785 = vmatpush2.msra.mxu0 0.0
    %4786 = vmatprep.subr.mxu0 0.0
    %4787 = vmatpush2.msra.mxu0 0.0
    %4788 = vmatprep.subr.mxu0 0.0
    %4789 = vmatpush2.msra.mxu0 0.0
    %4790 = vmatprep.mubr.f32.mxu0 0.0
    %4791 = vmatmul.mubr.f32.gmra.mxu0 %v4724
    %v4792 = vpop.f32.mrf.mxu0
    %v4793 = vadd.f32 %v61, %v4792
    %v4794 = vpop.f32.mrf.mxu0
    %4795 = vdwg.mxu0
    %v4796 = vadd.f32 %v4793, %v4650
    %v4797 = vsel %vm287, %v4796, -inf
    %4798 = vmax.xlane.f32.xlu0 %v4797
    %v4799 = vpop.xlane.xlu0 %4798
    %v4800 = vsub.f32 %v4796, %v4799
    %v4801 = vmul.f32 %v4800, 1.442695
    %v4802 = vpow.pop %v4801
    %v4803 = vsel %vm287, %v4802, 0.0
    %4804 = vadd.xlane.f32.xlu0 %v4803
    %v4805 = vpop.xlane.xlu0 %4804
    %v4806 = vrcp.pop %v4805
    %v4807 = vmul.f32 %v4805, %v4806
    %v4808 = vsub.f32 2.0, %v4807
    %v4809 = vmul.f32 %v4806, %v4808
    %v4810 = vmul.f32 %v4802, %v4809
    %v4812 = vsel %vm302, %v4810, 0
    %4814 = vmatprep.subr.mxu0 0.0
    %4815 = vmatpush1.msra.mxu0 0.0
    %4816 = vmatprep.subr.mxu0 0.0
    %4817 = vmatpush1.msra.mxu0 0.0
    %4818 = vmatprep.subr.mxu0 0.0
    %4819 = vmatpush1.msra.mxu0 0.0
    %4820 = vmatprep.subr.mxu0 0.0
    %4821 = vmatpush1.msra.mxu0 0.0
    %4822 = vmatprep.subr.mxu0 0.0
    %4823 = vmatpush1.msra.mxu0 0.0
    %4824 = vmatprep.subr.mxu0 0.0
    %4825 = vmatpush1.msra.mxu0 0.0
    %4826 = vmatprep.subr.mxu0 0.0
    %4827 = vmatpush1.msra.mxu0 0.0
    %4828 = vmatprep.subr.mxu0 0.0
    %4829 = vmatpush1.msra.mxu0 0.0
    %4830 = vmatprep.subr.mxu0 0.0
    %4831 = vmatpush1.msra.mxu0 0.0
    %4832 = vmatprep.subr.mxu0 0.0
    %4833 = vmatpush1.msra.mxu0 0.0
    %4834 = vmatprep.subr.mxu0 0.0
    %4835 = vmatpush1.msra.mxu0 0.0
    %4836 = vmatprep.subr.mxu0 0.0
    %4837 = vmatpush1.msra.mxu0 0.0
    %4838 = vmatprep.subr.mxu0 0.0
    %4839 = vmatpush1.msra.mxu0 0.0
    %4840 = vmatprep.subr.mxu0 0.0
    %4841 = vmatpush1.msra.mxu0 0.0
    %4842 = vmatprep.subr.mxu0 0.0
    %4843 = vmatpush1.msra.mxu0 %v308
    %4844 = vmatprep.subr.mxu0 0.0
    %4845 = vmatpush1.msra.mxu0 %v64
    %4846 = vmatprep.subr.mxu0 0.0
    %4847 = vmatpush2.msra.mxu0 0.0
    %4848 = vmatprep.subr.mxu0 0.0
    %4849 = vmatpush2.msra.mxu0 0.0
    %4850 = vmatprep.subr.mxu0 0.0
    %4851 = vmatpush2.msra.mxu0 0.0
    %4852 = vmatprep.subr.mxu0 0.0
    %4853 = vmatpush2.msra.mxu0 0.0
    %4854 = vmatprep.subr.mxu0 0.0
    %4855 = vmatpush2.msra.mxu0 0.0
    %4856 = vmatprep.subr.mxu0 0.0
    %4857 = vmatpush2.msra.mxu0 0.0
    %4858 = vmatprep.subr.mxu0 0.0
    %4859 = vmatpush2.msra.mxu0 0.0
    %4860 = vmatprep.subr.mxu0 0.0
    %4861 = vmatpush2.msra.mxu0 0.0
    %4862 = vmatprep.subr.mxu0 0.0
    %4863 = vmatpush2.msra.mxu0 0.0
    %4864 = vmatprep.subr.mxu0 0.0
    %4865 = vmatpush2.msra.mxu0 0.0
    %4866 = vmatprep.subr.mxu0 0.0
    %4867 = vmatpush2.msra.mxu0 0.0
    %4868 = vmatprep.subr.mxu0 0.0
    %4869 = vmatpush2.msra.mxu0 0.0
    %4870 = vmatprep.subr.mxu0 0.0
    %4871 = vmatpush2.msra.mxu0 0.0
    %4872 = vmatprep.subr.mxu0 0.0
    %4873 = vmatpush2.msra.mxu0 0.0
    %4874 = vmatprep.subr.mxu0 0.0
    %4875 = vmatpush2.msra.mxu0 0.0
    %4876 = vmatprep.subr.mxu0 0.0
    %4877 = vmatpush2.msra.mxu0 0.0
    %4878 = vmatprep.mubr.f32.mxu0 0.0
    %4879 = vmatmul.mubr.f32.gmra.mxu0 %v4812
    %v4880 = vpop.f32.mrf.mxu0
    %v4881 = vadd.f32 0.0, %v4880
    %v4882 = vpop.f32.mrf.mxu0
    %4883 = vdwg.mxu0
    %4884 = vrot.lane.b32.xlu0 %v4793, 64
    %v4885 = vpop.permute.xlu0 %4884
    %v4887 = vsel %vm69, %v4881, 0
    %4889 = vmatprep.subr.mxu0 0.0
    %4890 = vmatpush1.msra.mxu0 0.0
    %4891 = vmatprep.subr.mxu0 0.0
    %4892 = vmatpush1.msra.mxu0 0.0
    %4893 = vmatprep.subr.mxu0 0.0
    %4894 = vmatpush1.msra.mxu0 0.0
    %4895 = vmatprep.subr.mxu0 0.0
    %4896 = vmatpush1.msra.mxu0 0.0
    %4897 = vmatprep.subr.mxu0 0.0
    %4898 = vmatpush1.msra.mxu0 0.0
    %4899 = vmatprep.subr.mxu0 0.0
    %4900 = vmatpush1.msra.mxu0 0.0
    %4901 = vmatprep.subr.mxu0 0.0
    %4902 = vmatpush1.msra.mxu0 0.0
    %4903 = vmatprep.subr.mxu0 0.0
    %4904 = vmatpush1.msra.mxu0 0.0
    %4905 = vmatprep.subr.mxu0 0.0
    %4906 = vmatpush1.msra.mxu0 0.0
    %4907 = vmatprep.subr.mxu0 0.0
    %4908 = vmatpush1.msra.mxu0 0.0
    %4909 = vmatprep.subr.mxu0 0.0
    %4910 = vmatpush1.msra.mxu0 0.0
    %4911 = vmatprep.subr.mxu0 0.0
    %4912 = vmatpush1.msra.mxu0 0.0
    %4913 = vmatprep.subr.mxu0 0.0
    %4914 = vmatpush1.msra.mxu0 %v54
    %4915 = vmatprep.subr.mxu0 0.0
    %4916 = vmatpush1.msra.mxu0 %v53
    %4917 = vmatprep.subr.mxu0 0.0
    %4918 = vmatpush1.msra.mxu0 %v52
    %4919 = vmatprep.subr.mxu0 0.0
    %4920 = vmatpush1.msra.mxu0 %v51
    %4921 = vmatprep.subr.mxu0 0.0
    %4922 = vmatpush2.msra.mxu0 0.0
    %4923 = vmatprep.subr.mxu0 0.0
    %4924 = vmatpush2.msra.mxu0 0.0
    %4925 = vmatprep.subr.mxu0 0.0
    %4926 = vmatpush2.msra.mxu0 0.0
    %4927 = vmatprep.subr.mxu0 0.0
    %4928 = vmatpush2.msra.mxu0 0.0
    %4929 = vmatprep.subr.mxu0 0.0
    %4930 = vmatpush2.msra.mxu0 0.0
    %4931 = vmatprep.subr.mxu0 0.0
    %4932 = vmatpush2.msra.mxu0 0.0
    %4933 = vmatprep.subr.mxu0 0.0
    %4934 = vmatpush2.msra.mxu0 0.0
    %4935 = vmatprep.subr.mxu0 0.0
    %4936 = vmatpush2.msra.mxu0 0.0
    %4937 = vmatprep.subr.mxu0 0.0
    %4938 = vmatpush2.msra.mxu0 0.0
    %4939 = vmatprep.subr.mxu0 0.0
    %4940 = vmatpush2.msra.mxu0 0.0
    %4941 = vmatprep.subr.mxu0 0.0
    %4942 = vmatpush2.msra.mxu0 0.0
    %4943 = vmatprep.subr.mxu0 0.0
    %4944 = vmatpush2.msra.mxu0 0.0
    %4945 = vmatprep.subr.mxu0 0.0
    %4946 = vmatpush2.msra.mxu0 0.0
    %4947 = vmatprep.subr.mxu0 0.0
    %4948 = vmatpush2.msra.mxu0 0.0
    %4949 = vmatprep.subr.mxu0 0.0
    %4950 = vmatpush2.msra.mxu0 0.0
    %4951 = vmatprep.subr.mxu0 0.0
    %4952 = vmatpush2.msra.mxu0 0.0
    %4953 = vmatprep.mubr.f32.mxu0 0.0
    %4954 = vmatmul.mubr.f32.gmra.mxu0 %v4887
    %v4955 = vpop.f32.mrf.mxu0
    %v4956 = vadd.f32 0.0, %v4955
    %v4957 = vpop.f32.mrf.mxu0
    %4958 = vdwg.mxu0
    %v4959 = vadd.f32 %v4885, %v4956
    %v4960 = vmax.f32 %v4959, 0.0
    %v4962 = vsel %vm69, %v4960, 0
    %4964 = vmatprep.subr.mxu0 0.0
    %4965 = vmatpush1.msra.mxu0 0.0
    %4966 = vmatprep.subr.mxu0 0.0
    %4967 = vmatpush1.msra.mxu0 0.0
    %4968 = vmatprep.subr.mxu0 0.0
    %4969 = vmatpush1.msra.mxu0 0.0
    %4970 = vmatprep.subr.mxu0 0.0
    %4971 = vmatpush1.msra.mxu0 0.0
    %4972 = vmatprep.subr.mxu0 0.0
    %4973 = vmatpush1.msra.mxu0 0.0
    %4974 = vmatprep.subr.mxu0 0.0
    %4975 = vmatpush1.msra.mxu0 0.0
    %4976 = vmatprep.subr.mxu0 0.0
    %4977 = vmatpush1.msra.mxu0 0.0
    %4978 = vmatprep.subr.mxu0 0.0
    %4979 = vmatpush1.msra.mxu0 0.0
    %4980 = vmatprep.subr.mxu0 0.0
    %4981 = vmatpush1.msra.mxu0 0.0
    %4982 = vmatprep.subr.mxu0 0.0
    %4983 = vmatpush1.msra.mxu0 0.0
    %4984 = vmatprep.subr.mxu0 0.0
    %4985 = vmatpush1.msra.mxu0 0.0
    %4986 = vmatprep.subr.mxu0 0.0
    %4987 = vmatpush1.msra.mxu0 0.0
    %4988 = vmatprep.subr.mxu0 0.0
    %4989 = vmatpush1.msra.mxu0 %v46
    %4990 = vmatprep.subr.mxu0 0.0
    %4991 = vmatpush1.msra.mxu0 %v45
    %4992 = vmatprep.subr.mxu0 0.0
    %4993 = vmatpush1.msra.mxu0 %v44
    %4994 = vmatprep.subr.mxu0 0.0
    %4995 = vmatpush1.msra.mxu0 %v43
    %4996 = vmatprep.subr.mxu0 0.0
    %4997 = vmatpush2.msra.mxu0 0.0
    %4998 = vmatprep.subr.mxu0 0.0
    %4999 = vmatpush2.msra.mxu0 0.0
    %5000 = vmatprep.subr.mxu0 0.0
    %5001 = vmatpush2.msra.mxu0 0.0
    %5002 = vmatprep.subr.mxu0 0.0
    %5003 = vmatpush2.msra.mxu0 0.0
    %5004 = vmatprep.subr.mxu0 0.0
    %5005 = vmatpush2.msra.mxu0 0.0
    %5006 = vmatprep.subr.mxu0 0.0
    %5007 = vmatpush2.msra.mxu0 0.0
    %5008 = vmatprep.subr.mxu0 0.0
    %5009 = vmatpush2.msra.mxu0 0.0
    %5010 = vmatprep.subr.mxu0 0.0
    %5011 = vmatpush2.msra.mxu0 0.0
    %5012 = vmatprep.subr.mxu0 0.0
    %5013 = vmatpush2.msra.mxu0 0.0
    %5014 = vmatprep.subr.mxu0 0.0
    %5015 = vmatpush2.msra.mxu0 0.0
    %5016 = vmatprep.subr.mxu0 0.0
    %5017 = vmatpush2.msra.mxu0 0.0
    %5018 = vmatprep.subr.mxu0 0.0
    %5019 = vmatpush2.msra.mxu0 0.0
    %5020 = vmatprep.subr.mxu0 0.0
    %5021 = vmatpush2.msra.mxu0 0.0
    %5022 = vmatprep.subr.mxu0 0.0
    %5023 = vmatpush2.msra.mxu0 0.0
    %5024 = vmatprep.subr.mxu0 0.0
    %5025 = vmatpush2.msra.mxu0 0.0
    %5026 = vmatprep.subr.mxu0 0.0
    %5027 = vmatpush2.msra.mxu0 0.0
    %5028 = vmatprep.mubr.f32.mxu0 0.0
    %5029 = vmatmul.mubr.f32.gmra.mxu0 %v4962
    %v5030 = vpop.f32.mrf.mxu0
    %v5031 = vadd.f32 0.0, %v5030
    %v5032 = vpop.f32.mrf.mxu0
    %5033 = vdwg.mxu0
    %5034 = vmatprep.subr.mxu0 0.0
    %5035 = vmatpush1.msra.mxu0 0.0
    %5036 = vmatprep.subr.mxu0 0.0
    %5037 = vmatpush1.msra.mxu0 0.0
    %5038 = vmatprep.subr.mxu0 0.0
    %5039 = vmatpush1.msra.mxu0 0.0
    %5040 = vmatprep.subr.mxu0 0.0
    %5041 = vmatpush1.msra.mxu0 0.0
    %5042 = vmatprep.subr.mxu0 0.0
    %5043 = vmatpush1.msra.mxu0 0.0
    %5044 = vmatprep.subr.mxu0 0.0
    %5045 = vmatpush1.msra.mxu0 0.0
    %5046 = vmatprep.subr.mxu0 0.0
    %5047 = vmatpush1.msra.mxu0 0.0
    %5048 = vmatprep.subr.mxu0 0.0
    %5049 = vmatpush1.msra.mxu0 0.0
    %5050 = vmatprep.subr.mxu0 0.0
    %5051 = vmatpush1.msra.mxu0 0.0
    %5052 = vmatprep.subr.mxu0 0.0
    %5053 = vmatpush1.msra.mxu0 0.0
    %5054 = vmatprep.subr.mxu0 0.0
    %5055 = vmatpush1.msra.mxu0 0.0
    %5056 = vmatprep.subr.mxu0 0.0
    %5057 = vmatpush1.msra.mxu0 0.0
    %5058 = vmatprep.subr.mxu0 0.0
    %5059 = vmatpush1.msra.mxu0 %v50
    %5060 = vmatprep.subr.mxu0 0.0
    %5061 = vmatpush1.msra.mxu0 %v49
    %5062 = vmatprep.subr.mxu0 0.0
    %5063 = vmatpush1.msra.mxu0 %v48
    %5064 = vmatprep.subr.mxu0 0.0
    %5065 = vmatpush1.msra.mxu0 %v47
    %5066 = vmatprep.subr.mxu0 0.0
    %5067 = vmatpush2.msra.mxu0 0.0
    %5068 = vmatprep.subr.mxu0 0.0
    %5069 = vmatpush2.msra.mxu0 0.0
    %5070 = vmatprep.subr.mxu0 0.0
    %5071 = vmatpush2.msra.mxu0 0.0
    %5072 = vmatprep.subr.mxu0 0.0
    %5073 = vmatpush2.msra.mxu0 0.0
    %5074 = vmatprep.subr.mxu0 0.0
    %5075 = vmatpush2.msra.mxu0 0.0
    %5076 = vmatprep.subr.mxu0 0.0
    %5077 = vmatpush2.msra.mxu0 0.0
    %5078 = vmatprep.subr.mxu0 0.0
    %5079 = vmatpush2.msra.mxu0 0.0
    %5080 = vmatprep.subr.mxu0 0.0
    %5081 = vmatpush2.msra.mxu0 0.0
    %5082 = vmatprep.subr.mxu0 0.0
    %5083 = vmatpush2.msra.mxu0 0.0
    %5084 = vmatprep.subr.mxu0 0.0
    %5085 = vmatpush2.msra.mxu0 0.0
    %5086 = vmatprep.subr.mxu0 0.0
    %5087 = vmatpush2.msra.mxu0 0.0
    %5088 = vmatprep.subr.mxu0 0.0
    %5089 = vmatpush2.msra.mxu0 0.0
    %5090 = vmatprep.subr.mxu0 0.0
    %5091 = vmatpush2.msra.mxu0 0.0
    %5092 = vmatprep.subr.mxu0 0.0
    %5093 = vmatpush2.msra.mxu0 0.0
    %5094 = vmatprep.subr.mxu0 0.0
    %5095 = vmatpush2.msra.mxu0 0.0
    %5096 = vmatprep.subr.mxu0 0.0
    %5097 = vmatpush2.msra.mxu0 0.0
    %5098 = vmatprep.mubr.f32.mxu0 0.0
    %5099 = vmatmul.mubr.f32.gmra.mxu0 %v4962
    %v5100 = vpop.f32.mrf.mxu0
    %v5101 = vadd.f32 %v62, %v5100
    %v5102 = vpop.f32.mrf.mxu0
    %5103 = vdwg.mxu0
    %5104 = vrot.lane.b32.xlu0 %v4650, 64
    %v5105 = vpop.permute.xlu0 %5104
    %v5106 = vadd.f32 %v5031, %v5105
    %v5107 = vxor.u32 %v5106, 2147483648
    %v5108 = vmul.f32 %v5107, 1.442695
    %v5109 = vpow.pop %v5108
    %v5110 = vadd.f32 %v5109, 1.0
    %v5111 = vrcp.pop %v5110
    %v5112 = vmul.f32 1.0, %v5111
    %5113 = vrot.lane.b32.xlu0 %v5031, 64
    %v5114 = vpop.permute.xlu0 %5113
    %v5115 = vadd.f32 %v5114, %v4720
    %v5116 = vxor.u32 %v5115, 2147483648
    %v5117 = vmul.f32 %v5116, 1.442695
    %v5118 = vpow.pop %v5117
    %v5119 = vadd.f32 %v5118, 1.0
    %v5120 = vrcp.pop %v5119
    %v5121 = vmul.f32 1.0, %v5120
    %5122 = vrot.lane.b32.xlu0 %v4720, 64
    %v5123 = vpop.permute.xlu0 %5122
    %v5124 = vmul.f32 %v5112, %v5123
    %v5125 = vadd.f32 %v5101, %v5124
    %v5126 = vtanh.pop %v5125
    %v5127 = vsub.f32 1.0, %v5121
    %v5128 = vmul.f32 %v5127, %v5126
    %v5129 = vmul.f32 %v5121, %v4487
    %v5130 = vadd.f32 %v5128, %v5129
    %v5132 = vsel %vm69, %v5130, 0
    %5134 = vmatprep.subr.mxu0 0.0
    %5135 = vmatpush1.msra.mxu0 0.0
    %5136 = vmatprep.subr.mxu0 0.0
    %5137 = vmatpush1.msra.mxu0 0.0
    %5138 = vmatprep.subr.mxu0 0.0
    %5139 = vmatpush1.msra.mxu0 0.0
    %5140 = vmatprep.subr.mxu0 0.0
    %5141 = vmatpush1.msra.mxu0 0.0
    %5142 = vmatprep.subr.mxu0 0.0
    %5143 = vmatpush1.msra.mxu0 0.0
    %5144 = vmatprep.subr.mxu0 0.0
    %5145 = vmatpush1.msra.mxu0 0.0
    %5146 = vmatprep.subr.mxu0 0.0
    %5147 = vmatpush1.msra.mxu0 0.0
    %5148 = vmatprep.subr.mxu0 0.0
    %5149 = vmatpush1.msra.mxu0 0.0
    %5150 = vmatprep.subr.mxu0 0.0
    %5151 = vmatpush1.msra.mxu0 0.0
    %5152 = vmatprep.subr.mxu0 0.0
    %5153 = vmatpush1.msra.mxu0 0.0
    %5154 = vmatprep.subr.mxu0 0.0
    %5155 = vmatpush1.msra.mxu0 0.0
    %5156 = vmatprep.subr.mxu0 0.0
    %5157 = vmatpush1.msra.mxu0 0.0
    %5158 = vmatprep.subr.mxu0 0.0
    %5159 = vmatpush1.msra.mxu0 %v58
    %5160 = vmatprep.subr.mxu0 0.0
    %5161 = vmatpush1.msra.mxu0 %v57
    %5162 = vmatprep.subr.mxu0 0.0
    %5163 = vmatpush1.msra.mxu0 %v56
    %5164 = vmatprep.subr.mxu0 0.0
    %5165 = vmatpush1.msra.mxu0 %v55
    %5166 = vmatprep.subr.mxu0 0.0
    %5167 = vmatpush2.msra.mxu0 0.0
    %5168 = vmatprep.subr.mxu0 0.0
    %5169 = vmatpush2.msra.mxu0 0.0
    %5170 = vmatprep.subr.mxu0 0.0
    %5171 = vmatpush2.msra.mxu0 0.0
    %5172 = vmatprep.subr.mxu0 0.0
    %5173 = vmatpush2.msra.mxu0 0.0
    %5174 = vmatprep.subr.mxu0 0.0
    %5175 = vmatpush2.msra.mxu0 0.0
    %5176 = vmatprep.subr.mxu0 0.0
    %5177 = vmatpush2.msra.mxu0 0.0
    %5178 = vmatprep.subr.mxu0 0.0
    %5179 = vmatpush2.msra.mxu0 0.0
    %5180 = vmatprep.subr.mxu0 0.0
    %5181 = vmatpush2.msra.mxu0 0.0
    %5182 = vmatprep.subr.mxu0 0.0
    %5183 = vmatpush2.msra.mxu0 0.0
    %5184 = vmatprep.subr.mxu0 0.0
    %5185 = vmatpush2.msra.mxu0 0.0
    %5186 = vmatprep.subr.mxu0 0.0
    %5187 = vmatpush2.msra.mxu0 0.0
    %5188 = vmatprep.subr.mxu0 0.0
    %5189 = vmatpush2.msra.mxu0 0.0
    %5190 = vmatprep.subr.mxu0 0.0
    %5191 = vmatpush2.msra.mxu0 0.0
    %5192 = vmatprep.subr.mxu0 0.0
    %5193 = vmatpush2.msra.mxu0 0.0
    %5194 = vmatprep.subr.mxu0 0.0
    %5195 = vmatpush2.msra.mxu0 0.0
    %5196 = vmatprep.subr.mxu0 0.0
    %5197 = vmatpush2.msra.mxu0 0.0
    %5198 = vmatprep.mubr.f32.mxu0 0.0
    %5199 = vmatmul.mubr.f32.gmra.mxu0 %v5132
    %v5200 = vpop.f32.mrf.mxu0
    %v5201 = vadd.f32 %v63, %v5200
    %v5202 = vpop.f32.mrf.mxu0
    %5203 = vdwg.mxu0
    %v5204 = vsel %vm700, %v5201, -inf
    %5205 = vmax.xlane.f32.xlu0 %v5204
    %v5206 = vpop.xlane.xlu0 %5205
    %v5207 = vsub.f32 %v5201, %v5206
    %v5208 = vmul.f32 %v5207, 1.442695
    %v5209 = vpow.pop %v5208
    %v5210 = vsel %vm700, %v5209, 0.0
    %5211 = vadd.xlane.f32.xlu0 %v5210
    %v5212 = vpop.xlane.xlu0 %5211
    %v5213 = vlog2.pop %v5212
    %v5214 = vmul.f32 %v5213, 0.6931472
    %v5215 = vsub.f32 %v5207, %v5214
    %5216 = vst.msk [vmem:[%s4 + $0x7] sm:$0x1] %vm700, %v5215
    %5217 = vrot.lane.b32.xlu0 %v5130, 32
    %v5218 = vpop.permute.xlu0 %5217
    %5220 = vst.msk [vmem:[%s4 + $0x7] sm:$0x1] %vm717, %v5218
    %5221 = vrot.lane.b32.xlu0 %v4810, 64
    %v5222 = vpop.permute.xlu0 %5221
    %5224 = vst.msk [vmem:[%s4 + $0x7] sm:$0x1] %vm722, %v5222
    // Predicated region
    $region22: #{attn_decoder_decode.1} parent=1 // pred_check
      _
    $region23: #{attn_decoder_decode.1} parent=1 // pred_check_branch
      %5226 = sbr.rel (0) target = $region25
    $region24: #{attn_decoder_decode.1} parent=1 // pred_region
      _
    $region25: #{attn_decoder_decode.1} parent=1 // pred_fallthru
      _
    // Predicated region
    $region26: #{attn_decoder_decode.1} parent=1 // pred_check
      _
    $region27: #{attn_decoder_decode.1} parent=1 // pred_check_branch
      %5228 = sbr.rel (0) target = $region29
    $region28: #{attn_decoder_decode.1} parent=1 // pred_region
      _
    $region29: #{attn_decoder_decode.1} parent=1 // pred_fallthru
      _
    %5229 = vsyncpa [#allocation3], 1

</llo_original>
